<compile_context>
chip_gen: v7x
topology: tpu7x:2x2x1
jax: 0.10.0
libtpu: 0.0.40
codegen_flags: <defaults>
</compile_context>

<pallas_src>
import functools

import jax
import jax.numpy as jnp
from jax import lax
from jax.experimental import pallas as pl
from jax.experimental.pallas import tpu as pltpu

EPS = 1e-5
LANE = 128
SUBLANE = 8
TM = 512                        # target rows per grid step (M tile)

_COMPILER_PARAMS = pltpu.CompilerParams(
    dimension_semantics=("parallel",),      # shard M tiles across TensorCores
    vmem_limit_bytes=32 * 1024 * 1024,
)


# ------------------------------ Pallas kernels ------------------------------

def _matmul_stats_kernel(x_ref, w_ref, y_ref, st_ref):
    """y = x @ w (bf16 x bf16 -> f32 accumulate); plus per-tile sum / sumsq."""
    acc = jnp.dot(x_ref[...], w_ref[...], preferred_element_type=jnp.float32)
    y_ref[...] = acc
    st_ref[:, 0, :] = jnp.sum(acc, axis=0, keepdims=True)
    st_ref[:, 1, :] = jnp.sum(acc * acc, axis=0, keepdims=True)


def _bn_relu_matmul_stats_kernel(y_ref, sc_ref, sh_ref, w_ref, o_ref, st_ref,
                                 *, tm, m_true, mask_rows):
    """o = relu(y*scale + shift) @ w, plus per-tile stats of o (f32 epilogue)."""
    a = jnp.maximum(y_ref[...] * sc_ref[...] + sh_ref[...], 0.0)
    if mask_rows:  # zero padded rows so they do not pollute the statistics
        row = pl.program_id(0) * tm + lax.broadcasted_iota(jnp.int32, a.shape, 0)
        a = jnp.where(row < m_true, a, 0.0)
    acc = jnp.dot(a.astype(jnp.bfloat16), w_ref[...],
                  preferred_element_type=jnp.float32)
    o_ref[...] = acc
    st_ref[:, 0, :] = jnp.sum(acc, axis=0, keepdims=True)
    st_ref[:, 1, :] = jnp.sum(acc * acc, axis=0, keepdims=True)


def _bn_relu_kernel(y_ref, sc_ref, sh_ref, o_ref):
    o_ref[...] = jnp.maximum(y_ref[...] * sc_ref[...] + sh_ref[...],
                             0.0).astype(o_ref.dtype)


def _bn_add_relu_proj_kernel(y_ref, sc3_ref, sh3_ref, s_ref, scs_ref, shs_ref,
                             o_ref):
    main = y_ref[...] * sc3_ref[...] + sh3_ref[...]
    short = s_ref[...] * scs_ref[...] + shs_ref[...]
    o_ref[...] = jnp.maximum(main + short, 0.0)


def _bn_add_relu_id_kernel(y_ref, sc3_ref, sh3_ref, r_ref, o_ref):
    o_ref[...] = jnp.maximum(y_ref[...] * sc3_ref[...] + sh3_ref[...]
                             + r_ref[...], 0.0)


# ------------------------------- call helpers -------------------------------

def _round_up(x, m):
    return (x + m - 1) // m * m


def _pick_tiling(m):
    tm = TM if m >= TM else _round_up(m, SUBLANE)
    return tm, _round_up(m, tm)


def _pad2d(a, rows, cols, dtype=None):
    out = jnp.pad(a, ((0, rows - a.shape[0]), (0, cols - a.shape[1])))
    return out if dtype is None else out.astype(dtype)


def _tile_spec(tm, c):
    return pl.BlockSpec((tm, c), lambda i: (i, 0))


def _rep_spec(shape):
    return pl.BlockSpec(shape, lambda i: (0,) * len(shape))


def _matmul_stats(x_bf, w_bf, tm):
    mp, k = x_bf.shape
    c = w_bf.shape[1]
    nt = mp // tm
    cost = pl.CostEstimate(flops=2 * mp * k * c, transcendentals=0,
                           bytes_accessed=x_bf.nbytes + w_bf.nbytes + mp * c * 4)
    return pl.pallas_call(
        _matmul_stats_kernel,
        out_shape=(jax.ShapeDtypeStruct((mp, c), jnp.float32),
                   jax.ShapeDtypeStruct((nt, 2, c), jnp.float32)),
        grid=(nt,),
        in_specs=[_tile_spec(tm, k), _rep_spec((k, c))],
        out_specs=(_tile_spec(tm, c),
                   pl.BlockSpec((1, 2, c), lambda i: (i, 0, 0))),
        compiler_params=_COMPILER_PARAMS,
        cost_estimate=cost,
    )(x_bf, w_bf)


def _bn_relu_matmul_stats(y_raw, scale, shift, w_bf, tm, m_true):
    mp, k = y_raw.shape
    c = w_bf.shape[1]
    nt = mp // tm
    kern = functools.partial(_bn_relu_matmul_stats_kernel, tm=tm, m_true=m_true,
                             mask_rows=(mp != m_true))
    cost = pl.CostEstimate(flops=2 * mp * k * c, transcendentals=0,
                           bytes_accessed=y_raw.nbytes + w_bf.nbytes + mp * c * 4)
    return pl.pallas_call(
        kern,
        out_shape=(jax.ShapeDtypeStruct((mp, c), jnp.float32),
                   jax.ShapeDtypeStruct((nt, 2, c), jnp.float32)),
        grid=(nt,),
        in_specs=[_tile_spec(tm, k), _rep_spec((1, k)), _rep_spec((1, k)),
                  _rep_spec((k, c))],
        out_specs=(_tile_spec(tm, c),
                   pl.BlockSpec((1, 2, c), lambda i: (i, 0, 0))),
        compiler_params=_COMPILER_PARAMS,
        cost_estimate=cost,
    )(y_raw, scale, shift, w_bf)


def _bn_relu(y_raw, scale, shift, tm, out_dtype=jnp.bfloat16):
    mp, c = y_raw.shape
    return pl.pallas_call(
        _bn_relu_kernel,
        out_shape=jax.ShapeDtypeStruct((mp, c), out_dtype),
        grid=(mp // tm,),
        in_specs=[_tile_spec(tm, c), _rep_spec((1, c)), _rep_spec((1, c))],
        out_specs=_tile_spec(tm, c),
        compiler_params=_COMPILER_PARAMS,
    )(y_raw, scale, shift)


def _bn_scale_shift(stats, gamma, beta, c_pad, m_true):
    """Reduce per-tile partials -> BN scale/shift (batch stats, biased var)."""
    tot = jnp.sum(stats, axis=0)                       # (2, C)
    mean = tot[0] / m_true
    var = jnp.maximum(tot[1] / m_true - mean * mean, 0.0)
    g = jnp.pad(gamma, (0, c_pad - gamma.shape[0]))
    b = jnp.pad(beta, (0, c_pad - beta.shape[0]))
    scale = g * lax.rsqrt(var + EPS)
    shift = b - mean * scale
    return scale.reshape(1, c_pad), shift.reshape(1, c_pad)


def _im2col(x_nhwc, ksize, stride, padding):
    """(N,H,W,C) -> (N*Ho*Wo, k*k*C), tap-major / channel-minor."""
    n, h, w, c = x_nhwc.shape
    xp = jnp.pad(x_nhwc, ((0, 0), (padding, padding), (padding, padding), (0, 0)))
    ho = (h + 2 * padding - ksize) // stride + 1
    wo = (w + 2 * padding - ksize) // stride + 1
    cols = [xp[:, kh:kh + stride * ho:stride, kw:kw + stride * wo:stride, :]
            for kh in range(ksize) for kw in range(ksize)]
    patches = jnp.concatenate(cols, axis=-1)
    return patches.reshape(n * ho * wo, ksize * ksize * c), ho, wo


def _w1x1(w_oihw, k_pad, c_pad):
    """(Cout, Cin, 1, 1) -> zero-padded (k_pad, c_pad) bf16 matmul weight."""
    return _pad2d(jnp.transpose(w_oihw[:, :, 0, 0], (1, 0)), k_pad, c_pad,
                  jnp.bfloat16)


def _w3x3(w_oihw, cin_pad, cout_pad):
    """(Cout, Cin, 3, 3) -> (9*cin_pad, cout_pad) bf16, matching _im2col order."""
    co, ci, kh, kw = w_oihw.shape
    wt = jnp.transpose(w_oihw, (2, 3, 1, 0))
    wt = jnp.pad(wt, ((0, 0), (0, 0), (0, cin_pad - ci), (0, cout_pad - co)))
    return wt.reshape(kh * kw * cin_pad, cout_pad).astype(jnp.bfloat16)


# ----------------------------- Bottleneck forward ----------------------------

EXPANSION = 4


@functools.partial(jax.jit, static_argnames=("stride",))
def bottleneck_forward(x_nchw, params, stride=1):
    x = jnp.transpose(x_nchw, (0, 2, 3, 1)).astype(jnp.float32)    # NHWC
    n, h, w, cin = x.shape
    planes = params["w1"].shape[0]
    cout = EXPANSION * planes

    cin_p = _round_up(cin, LANE)
    p_p = _round_up(planes, LANE)
    c3_p = _round_up(cout, LANE)

    # ---- conv1 (1x1) + partial stats for bn1 --------------------------------
    m1 = n * h * w
    tm1, m1p = _pick_tiling(m1)
    x2d = _pad2d(x.reshape(m1, cin), m1p, cin_p, jnp.bfloat16)
    y1_raw, st1 = _matmul_stats(x2d, _w1x1(params["w1"], cin_p, p_p), tm1)
    sc1, sh1 = _bn_scale_shift(st1, params["g1"], params["b1"], p_p, m1)

    # ---- bn1 + relu (bf16 activations feeding conv2) ------------------------
    y1 = _bn_relu(y1_raw, sc1, sh1, tm1)                           # (m1p, p_p)

    # ---- conv2 (3x3, stride) + partial stats for bn2 ------------------------
    # TODO(synk): the 3x3 conv still materializes an im2col slab in HBM; an
    # in-kernel halo (9 shifted matmuls over NHWC tiles) would remove that pass.
    y1_nhwc = y1[:m1].reshape(n, h, w, p_p)
    p2, ho, wo = _im2col(y1_nhwc, 3, stride, 1)                    # (m2, 9*p_p)
    m2 = n * ho * wo
    tm2, m2p = _pick_tiling(m2)
    p2 = _pad2d(p2, m2p, p2.shape[1])
    y2_raw, st2 = _matmul_stats(p2, _w3x3(params["w2"], p_p, p_p), tm2)
    sc2, sh2 = _bn_scale_shift(st2, params["g2"], params["b2"], p_p, m2)

    # ---- bn2 + relu fused into conv3 (1x1) + partial stats for bn3 ----------
    y3_raw, st3 = _bn_relu_matmul_stats(y2_raw, sc2, sh2,
                                        _w1x1(params["w3"], p_p, c3_p), tm2, m2)
    sc3, sh3 = _bn_scale_shift(st3, params["g3"], params["b3"], c3_p, m2)

    # ---- shortcut, bn3, add, relu -------------------------------------------
    has_proj = (stride != 1) or (cin != cout)
    if has_proj:
        xs = x[:, ::stride, ::stride, :].reshape(m2, cin)
        xs = _pad2d(xs, m2p, cin_p, jnp.bfloat16)
        sc_raw, sts = _matmul_stats(xs, _w1x1(params["ws"], cin_p, c3_p), tm2)
        scs, shs = _bn_scale_shift(sts, params["gs"], params["bs"], c3_p, m2)
        out = pl.pallas_call(
            _bn_add_relu_proj_kernel,
            out_shape=jax.ShapeDtypeStruct((m2p, c3_p), jnp.float32),
            grid=(m2p // tm2,),
            in_specs=[_tile_spec(tm2, c3_p), _rep_spec((1, c3_p)),
                      _rep_spec((1, c3_p)), _tile_spec(tm2, c3_p),
                      _rep_spec((1, c3_p)), _rep_spec((1, c3_p))],
            out_specs=_tile_spec(tm2, c3_p),
            compiler_params=_COMPILER_PARAMS,
        )(y3_raw, sc3, sh3, sc_raw, scs, shs)
    else:
        # identity shortcut implies stride == 1 and cin == EXPANSION*planes
        res = _pad2d(x.reshape(m1, cin), m2p, c3_p)                # f32 residual
        out = pl.pallas_call(
            _bn_add_relu_id_kernel,
            out_shape=jax.ShapeDtypeStruct((m2p, c3_p), jnp.float32),
            grid=(m2p // tm2,),
            in_specs=[_tile_spec(tm2, c3_p), _rep_spec((1, c3_p)),
                      _rep_spec((1, c3_p)), _tile_spec(tm2, c3_p)],
            out_specs=_tile_spec(tm2, c3_p),
            compiler_params=_COMPILER_PARAMS,
        )(y3_raw, sc3, sh3, res)

    out = out[:m2, :cout].reshape(n, ho, wo, cout)
    return jnp.transpose(out, (0, 3, 1, 2))                        # NCHW


# -------------------------------- pure-JAX ref -------------------------------

def _ref_forward(x_nchw, params, stride=1):
    x = jnp.transpose(x_nchw, (0, 2, 3, 1)).astype(jnp.float32)

    def conv(h, w_oihw, s, pad):
        return lax.conv_general_dilated(
            h, jnp.transpose(w_oihw, (2, 3, 1, 0)), (s, s),
            [(pad, pad), (pad, pad)],
            dimension_numbers=("NHWC", "HWIO", "NHWC"),
            precision=lax.Precision.HIGHEST)

    def bn(h, g, b):
        mean = jnp.mean(h, axis=(0, 1, 2), keepdims=True)
        var = jnp.mean((h - mean) ** 2, axis=(0, 1, 2), keepdims=True)
        return (h - mean) * (g * lax.rsqrt(var + EPS)) + b

    out = jax.nn.relu(bn(conv(x, params["w1"], 1, 0), params["g1"], params["b1"]))
    out = jax.nn.relu(bn(conv(out, params["w2"], stride, 1), params["g2"], params["b2"]))
    out = bn(conv(out, params["w3"], 1, 0), params["g3"], params["b3"])
    if "ws" in params:
        sc = bn(conv(x, params["ws"], stride, 0), params["gs"], params["bs"])
    else:
        sc = x
    out = jax.nn.relu(out + sc)
    return jnp.transpose(out, (0, 3, 1, 2))


# ------------------------------------ main -----------------------------------

def init_params(key, in_planes, planes, stride):
    ks = jax.random.split(key, 12)
    cout = EXPANSION * planes
    p = {
        "w1": 0.1 * jax.random.normal(ks[0], (planes, in_planes, 1, 1), jnp.float32),
        "g1": 1.0 + 0.1 * jax.random.normal(ks[1], (planes,), jnp.float32),
        "b1": 0.1 * jax.random.normal(ks[2], (planes,), jnp.float32),
        "w2": 0.1 * jax.random.normal(ks[3], (planes, planes, 3, 3), jnp.float32),
        "g2": 1.0 + 0.1 * jax.random.normal(ks[4], (planes,), jnp.float32),
        "b2": 0.1 * jax.random.normal(ks[5], (planes,), jnp.float32),
        "w3": 0.1 * jax.random.normal(ks[6], (cout, planes, 1, 1), jnp.float32),
        "g3": 1.0 + 0.1 * jax.random.normal(ks[7], (cout,), jnp.float32),
        "b3": 0.1 * jax.random.normal(ks[8], (cout,), jnp.float32),
    }
    if stride != 1 or in_planes != cout:
        p["ws"] = 0.1 * jax.random.normal(ks[9], (cout, in_planes, 1, 1), jnp.float32)
        p["gs"] = 1.0 + 0.1 * jax.random.normal(ks[10], (cout,), jnp.float32)
        p["bs"] = 0.1 * jax.random.normal(ks[11], (cout,), jnp.float32)
    return p


if __name__ == "__main__":
    # TODO(synk): nn.BatchNorm2d running_mean/running_var buffer updates are
    # module-state mutation and are not modeled; the forward output (training-
    # mode batch-statistics normalization) is reproduced.
    key = jax.random.PRNGKey(0)

    cases = [
        # (N, in_planes, planes, H, W, stride)
        (2, 4, 8, 24, 24, 1),    # projection shortcut, multi-tile M + row masking
        (2, 32, 8, 16, 16, 1),   # identity shortcut
        (2, 16, 8, 16, 16, 2),   # strided projection shortcut
    ]
    for idx, (n, cin, planes, h, w, stride) in enumerate(cases):
        kx, kp = jax.random.split(jax.random.fold_in(key, idx))
        x = jax.random.normal(kx, (n, cin, h, w), jnp.float32)
        params = init_params(kp, cin, planes, stride)

        out = jax.block_until_ready(bottleneck_forward(x, params, stride=stride))
        ref = _ref_forward(x, params, stride=stride)

        ho = (h - 1) // stride + 1
        wo = (w - 1) // stride + 1
        assert out.shape == (n, EXPANSION * planes, ho, wo), out.shape
        max_err = float(jnp.max(jnp.abs(out - ref)))
        mean_err = float(jnp.mean(jnp.abs(out - ref)))
        # bf16 matmul operands with f32 accumulation -> loose but discriminative
        assert max_err < 0.3 and mean_err < 0.03, (idx, max_err, mean_err)

    print("KERNEL_OK")
</pallas_src>

<mosaic_0001>
module attributes {stable_mosaic.version = 11 : i64} {
  func.func @_matmul_stats_kernel(%arg0: i32, %arg1: memref<512x128xbf16, #tpu.memory_space<vmem>>, %arg2: memref<128x128xbf16, #tpu.memory_space<vmem>>, %arg3: memref<512x128xf32, #tpu.memory_space<vmem>>, %arg4: memref<1x2x128xf32, #tpu.memory_space<vmem>>) attributes {dimension_semantics = [#tpu.dimension_semantics<parallel>], iteration_bounds = array<i64: 3>, scalar_prefetch = 0 : i64, scratch_operands = 0 : i64, tpu.core_type = #tpu.core_type<tc>, window_params = [{transform_indices = @transform_0, window_bounds = array<i64: 512, 128>}, {pipeline_mode = #tpu.pipeline_mode<synchronous>, transform_indices = @transform_1, window_bounds = array<i64: 128, 128>}, {transform_indices = @transform_2, window_bounds = array<i64: 512, 128>}, {transform_indices = @transform_3, window_bounds = array<i64: 1, 2, 128>}]} {
    %c0 = arith.constant 0 : index
    %c0_0 = arith.constant 0 : index
    %0 = vector.load %arg1[%c0, %c0_0] : memref<512x128xbf16, #tpu.memory_space<vmem>>, vector<512x128xbf16>
    %c0_1 = arith.constant 0 : index
    %c0_2 = arith.constant 0 : index
    %1 = vector.load %arg2[%c0_1, %c0_2] : memref<128x128xbf16, #tpu.memory_space<vmem>>, vector<128x128xbf16>
    %cst = arith.constant dense<0.000000e+00> : vector<512x128xf32>
    %2 = tpu.matmul %0, %1, %cst {dimension_numbers = #tpu.dot_dimension_numbers<[1], [0], [0], [1], [0, 0, 1, 1], [], []>} : vector<512x128xbf16>, vector<128x128xbf16>, vector<512x128xf32> -> vector<512x128xf32>
    %c0_3 = arith.constant 0 : index
    %c0_4 = arith.constant 0 : index
    %3 = vector.load %arg3[%c0_3, %c0_4] : memref<512x128xf32, #tpu.memory_space<vmem>>, vector<512x128xf32>
    tpu.vector_store %arg3[%c0_3, %c0_4], %2 {strides = array<i32>} : memref<512x128xf32, #tpu.memory_space<vmem>>, vector<512x128xf32>,
    %cst_5 = arith.constant dense<0.000000e+00> : vector<128xf32>
    %4 = vector.multi_reduction <add>, %2, %cst_5 [0] : vector<512x128xf32> to vector<128xf32>
    %5 = vector.shape_cast %4 : vector<128xf32> to vector<1x128xf32>
    %c0_6 = arith.constant 0 : index
    %c0_7 = arith.constant 0 : index
    %c0_8 = arith.constant 0 : index
    %6 = vector.load %arg4[%c0_6, %c0_7, %c0_8] : memref<1x2x128xf32, #tpu.memory_space<vmem>>, vector<1x1x128xf32>
    %7 = vector.shape_cast %6 : vector<1x1x128xf32> to vector<1x128xf32>
    %8 = vector.shape_cast %5 : vector<1x128xf32> to vector<1x1x128xf32>
    tpu.vector_store %arg4[%c0_6, %c0_7, %c0_8], %8 {strides = array<i32>} : memref<1x2x128xf32, #tpu.memory_space<vmem>>, vector<1x1x128xf32>,
    %9 = arith.mulf %2, %2 : vector<512x128xf32>
    %cst_9 = arith.constant dense<0.000000e+00> : vector<128xf32>
    %10 = vector.multi_reduction <add>, %9, %cst_9 [0] : vector<512x128xf32> to vector<128xf32>
    %11 = vector.shape_cast %10 : vector<128xf32> to vector<1x128xf32>
    %c0_10 = arith.constant 0 : index
    %c1 = arith.constant 1 : index
    %c0_11 = arith.constant 0 : index
    %12 = vector.load %arg4[%c0_10, %c1, %c0_11] : memref<1x2x128xf32, #tpu.memory_space<vmem>>, vector<1x1x128xf32>
    %13 = vector.shape_cast %12 : vector<1x1x128xf32> to vector<1x128xf32>
    %14 = vector.shape_cast %11 : vector<1x128xf32> to vector<1x1x128xf32>
    tpu.vector_store %arg4[%c0_10, %c1, %c0_11], %14 {strides = array<i32>} : memref<1x2x128xf32, #tpu.memory_space<vmem>>, vector<1x1x128xf32>,
    return
  }
  func.func @transform_0(%arg0: i32) -> (i32, i32) {
    %c0_i32 = arith.constant 0 : i32
    %c0_i32_0 = arith.constant 0 : i32
    return %arg0, %c0_i32 : i32, i32
  }
  func.func @transform_1(%arg0: i32) -> (i32, i32) {
    %c0_i32 = arith.constant 0 : i32
    %c0_i32_0 = arith.constant 0 : i32
    %c0_i32_1 = arith.constant 0 : i32
    return %c0_i32, %c0_i32_0 : i32, i32
  }
  func.func @transform_2(%arg0: i32) -> (i32, i32) {
    %c0_i32 = arith.constant 0 : i32
    %c0_i32_0 = arith.constant 0 : i32
    return %arg0, %c0_i32 : i32, i32
  }
  func.func @transform_3(%arg0: i32) -> (i32, i32, i32) {
    %c0_i32 = arith.constant 0 : i32
    %c0_i32_0 = arith.constant 0 : i32
    %c0_i32_1 = arith.constant 0 : i32
    return %arg0, %c0_i32, %c0_i32_0 : i32, i32, i32
  }
}

module attributes {stable_mosaic.version = 11 : i64} {
  func.func @_bn_relu_kernel(%arg0: i32, %arg1: memref<512x128xf32, #tpu.memory_space<vmem>>, %arg2: memref<1x128xf32, #tpu.memory_space<vmem>>, %arg3: memref<1x128xf32, #tpu.memory_space<vmem>>, %arg4: memref<512x128xbf16, #tpu.memory_space<vmem>>) attributes {dimension_semantics = [#tpu.dimension_semantics<parallel>], iteration_bounds = array<i64: 3>, scalar_prefetch = 0 : i64, scratch_operands = 0 : i64, tpu.core_type = #tpu.core_type<tc>, window_params = [{transform_indices = @transform_0, window_bounds = array<i64: 512, 128>}, {pipeline_mode = #tpu.pipeline_mode<synchronous>, transform_indices = @transform_1, window_bounds = array<i64: 1, 128>}, {pipeline_mode = #tpu.pipeline_mode<synchronous>, transform_indices = @transform_2, window_bounds = array<i64: 1, 128>}, {transform_indices = @transform_3, window_bounds = array<i64: 512, 128>}]} {
    %c0 = arith.constant 0 : index
    %c0_0 = arith.constant 0 : index
    %0 = vector.load %arg1[%c0, %c0_0] : memref<512x128xf32, #tpu.memory_space<vmem>>, vector<512x128xf32>
    %c0_1 = arith.constant 0 : index
    %c0_2 = arith.constant 0 : index
    %1 = vector.load %arg2[%c0_1, %c0_2] : memref<1x128xf32, #tpu.memory_space<vmem>>, vector<1x128xf32>
    %2 = vector.broadcast %1 : vector<1x128xf32> to vector<512x128xf32>
    %3 = arith.mulf %0, %2 : vector<512x128xf32>
    %c0_3 = arith.constant 0 : index
    %c0_4 = arith.constant 0 : index
    %4 = vector.load %arg3[%c0_3, %c0_4] : memref<1x128xf32, #tpu.memory_space<vmem>>, vector<1x128xf32>
    %5 = vector.broadcast %4 : vector<1x128xf32> to vector<512x128xf32>
    %6 = arith.addf %3, %5 : vector<512x128xf32>
    %cst = arith.constant 0.000000e+00 : f32
    %7 = vector.broadcast %cst : f32 to vector<512x128xf32>
    %8 = arith.maximumf %6, %7 : vector<512x128xf32>
    %9 = arith.truncf %8 : vector<512x128xf32> to vector<512x128xbf16>
    %c0_5 = arith.constant 0 : index
    %c0_6 = arith.constant 0 : index
    %10 = vector.load %arg4[%c0_5, %c0_6] : memref<512x128xbf16, #tpu.memory_space<vmem>>, vector<512x128xbf16>
    tpu.vector_store %arg4[%c0_5, %c0_6], %9 {strides = array<i32>} : memref<512x128xbf16, #tpu.memory_space<vmem>>, vector<512x128xbf16>,
    return
  }
  func.func @transform_0(%arg0: i32) -> (i32, i32) {
    %c0_i32 = arith.constant 0 : i32
    %c0_i32_0 = arith.constant 0 : i32
    return %arg0, %c0_i32 : i32, i32
  }
  func.func @transform_1(%arg0: i32) -> (i32, i32) {
    %c0_i32 = arith.constant 0 : i32
    %c0_i32_0 = arith.constant 0 : i32
    %c0_i32_1 = arith.constant 0 : i32
    return %c0_i32, %c0_i32_0 : i32, i32
  }
  func.func @transform_2(%arg0: i32) -> (i32, i32) {
    %c0_i32 = arith.constant 0 : i32
    %c0_i32_0 = arith.constant 0 : i32
    %c0_i32_1 = arith.constant 0 : i32
    return %c0_i32, %c0_i32_0 : i32, i32
  }
  func.func @transform_3(%arg0: i32) -> (i32, i32) {
    %c0_i32 = arith.constant 0 : i32
    %c0_i32_0 = arith.constant 0 : i32
    return %arg0, %c0_i32 : i32, i32
  }
}

module attributes {stable_mosaic.version = 11 : i64} {
  func.func @_matmul_stats_kernel(%arg0: i32, %arg1: memref<512x1152xbf16, #tpu.memory_space<vmem>>, %arg2: memref<1152x128xbf16, #tpu.memory_space<vmem>>, %arg3: memref<512x128xf32, #tpu.memory_space<vmem>>, %arg4: memref<1x2x128xf32, #tpu.memory_space<vmem>>) attributes {dimension_semantics = [#tpu.dimension_semantics<parallel>], iteration_bounds = array<i64: 3>, scalar_prefetch = 0 : i64, scratch_operands = 0 : i64, tpu.core_type = #tpu.core_type<tc>, window_params = [{transform_indices = @transform_0, window_bounds = array<i64: 512, 1152>}, {pipeline_mode = #tpu.pipeline_mode<synchronous>, transform_indices = @transform_1, window_bounds = array<i64: 1152, 128>}, {transform_indices = @transform_2, window_bounds = array<i64: 512, 128>}, {transform_indices = @transform_3, window_bounds = array<i64: 1, 2, 128>}]} {
    %c0 = arith.constant 0 : index
    %c0_0 = arith.constant 0 : index
    %0 = vector.load %arg1[%c0, %c0_0] : memref<512x1152xbf16, #tpu.memory_space<vmem>>, vector<512x1152xbf16>
    %c0_1 = arith.constant 0 : index
    %c0_2 = arith.constant 0 : index
    %1 = vector.load %arg2[%c0_1, %c0_2] : memref<1152x128xbf16, #tpu.memory_space<vmem>>, vector<1152x128xbf16>
    %cst = arith.constant dense<0.000000e+00> : vector<512x128xf32>
    %2 = tpu.matmul %0, %1, %cst {dimension_numbers = #tpu.dot_dimension_numbers<[1], [0], [0], [1], [0, 0, 1, 1], [], []>} : vector<512x1152xbf16>, vector<1152x128xbf16>, vector<512x128xf32> -> vector<512x128xf32>
    %c0_3 = arith.constant 0 : index
    %c0_4 = arith.constant 0 : index
    %3 = vector.load %arg3[%c0_3, %c0_4] : memref<512x128xf32, #tpu.memory_space<vmem>>, vector<512x128xf32>
    tpu.vector_store %arg3[%c0_3, %c0_4], %2 {strides = array<i32>} : memref<512x128xf32, #tpu.memory_space<vmem>>, vector<512x128xf32>,
    %cst_5 = arith.constant dense<0.000000e+00> : vector<128xf32>
    %4 = vector.multi_reduction <add>, %2, %cst_5 [0] : vector<512x128xf32> to vector<128xf32>
    %5 = vector.shape_cast %4 : vector<128xf32> to vector<1x128xf32>
    %c0_6 = arith.constant 0 : index
    %c0_7 = arith.constant 0 : index
    %c0_8 = arith.constant 0 : index
    %6 = vector.load %arg4[%c0_6, %c0_7, %c0_8] : memref<1x2x128xf32, #tpu.memory_space<vmem>>, vector<1x1x128xf32>
    %7 = vector.shape_cast %6 : vector<1x1x128xf32> to vector<1x128xf32>
    %8 = vector.shape_cast %5 : vector<1x128xf32> to vector<1x1x128xf32>
    tpu.vector_store %arg4[%c0_6, %c0_7, %c0_8], %8 {strides = array<i32>} : memref<1x2x128xf32, #tpu.memory_space<vmem>>, vector<1x1x128xf32>,
    %9 = arith.mulf %2, %2 : vector<512x128xf32>
    %cst_9 = arith.constant dense<0.000000e+00> : vector<128xf32>
    %10 = vector.multi_reduction <add>, %9, %cst_9 [0] : vector<512x128xf32> to vector<128xf32>
    %11 = vector.shape_cast %10 : vector<128xf32> to vector<1x128xf32>
    %c0_10 = arith.constant 0 : index
    %c1 = arith.constant 1 : index
    %c0_11 = arith.constant 0 : index
    %12 = vector.load %arg4[%c0_10, %c1, %c0_11] : memref<1x2x128xf32, #tpu.memory_space<vmem>>, vector<1x1x128xf32>
    %13 = vector.shape_cast %12 : vector<1x1x128xf32> to vector<1x128xf32>
    %14 = vector.shape_cast %11 : vector<1x128xf32> to vector<1x1x128xf32>
    tpu.vector_store %arg4[%c0_10, %c1, %c0_11], %14 {strides = array<i32>} : memref<1x2x128xf32, #tpu.memory_space<vmem>>, vector<1x1x128xf32>,
    return
  }
  func.func @transform_0(%arg0: i32) -> (i32, i32) {
    %c0_i32 = arith.constant 0 : i32
    %c0_i32_0 = arith.constant 0 : i32
    return %arg0, %c0_i32 : i32, i32
  }
  func.func @transform_1(%arg0: i32) -> (i32, i32) {
    %c0_i32 = arith.constant 0 : i32
    %c0_i32_0 = arith.constant 0 : i32
    %c0_i32_1 = arith.constant 0 : i32
    return %c0_i32, %c0_i32_0 : i32, i32
  }
  func.func @transform_2(%arg0: i32) -> (i32, i32) {
    %c0_i32 = arith.constant 0 : i32
    %c0_i32_0 = arith.constant 0 : i32
    return %arg0, %c0_i32 : i32, i32
  }
  func.func @transform_3(%arg0: i32) -> (i32, i32, i32) {
    %c0_i32 = arith.constant 0 : i32
    %c0_i32_0 = arith.constant 0 : i32
    %c0_i32_1 = arith.constant 0 : i32
    return %arg0, %c0_i32, %c0_i32_0 : i32, i32, i32
  }
}

module attributes {stable_mosaic.version = 11 : i64} {
  func.func @_bn_relu_matmul_stats_kernel(%arg0: i32, %arg1: memref<512x128xf32, #tpu.memory_space<vmem>>, %arg2: memref<1x128xf32, #tpu.memory_space<vmem>>, %arg3: memref<1x128xf32, #tpu.memory_space<vmem>>, %arg4: memref<128x128xbf16, #tpu.memory_space<vmem>>, %arg5: memref<512x128xf32, #tpu.memory_space<vmem>>, %arg6: memref<1x2x128xf32, #tpu.memory_space<vmem>>) attributes {dimension_semantics = [#tpu.dimension_semantics<parallel>], iteration_bounds = array<i64: 3>, scalar_prefetch = 0 : i64, scratch_operands = 0 : i64, tpu.core_type = #tpu.core_type<tc>, window_params = [{transform_indices = @transform_0, window_bounds = array<i64: 512, 128>}, {pipeline_mode = #tpu.pipeline_mode<synchronous>, transform_indices = @transform_1, window_bounds = array<i64: 1, 128>}, {pipeline_mode = #tpu.pipeline_mode<synchronous>, transform_indices = @transform_2, window_bounds = array<i64: 1, 128>}, {pipeline_mode = #tpu.pipeline_mode<synchronous>, transform_indices = @transform_3, window_bounds = array<i64: 128, 128>}, {transform_indices = @transform_4, window_bounds = array<i64: 512, 128>}, {transform_indices = @transform_5, window_bounds = array<i64: 1, 2, 128>}]} {
    %c0 = arith.constant 0 : index
    %c0_0 = arith.constant 0 : index
    %0 = vector.load %arg1[%c0, %c0_0] : memref<512x128xf32, #tpu.memory_space<vmem>>, vector<512x128xf32>
    %c0_1 = arith.constant 0 : index
    %c0_2 = arith.constant 0 : index
    %1 = vector.load %arg2[%c0_1, %c0_2] : memref<1x128xf32, #tpu.memory_space<vmem>>, vector<1x128xf32>
    %2 = vector.broadcast %1 : vector<1x128xf32> to vector<512x128xf32>
    %3 = arith.mulf %0, %2 : vector<512x128xf32>
    %c0_3 = arith.constant 0 : index
    %c0_4 = arith.constant 0 : index
    %4 = vector.load %arg3[%c0_3, %c0_4] : memref<1x128xf32, #tpu.memory_space<vmem>>, vector<1x128xf32>
    %5 = vector.broadcast %4 : vector<1x128xf32> to vector<512x128xf32>
    %6 = arith.addf %3, %5 : vector<512x128xf32>
    %cst = arith.constant 0.000000e+00 : f32
    %7 = vector.broadcast %cst : f32 to vector<512x128xf32>
    %8 = arith.maximumf %6, %7 : vector<512x128xf32>
    %c512_i32 = arith.constant 512 : i32
    %9 = arith.muli %arg0, %c512_i32 : i32
    %10 = tpu.iota {dimensions = array<i32: 0>} : vector<512x128xi32>
    %11 = vector.broadcast %9 : i32 to vector<512x128xi32>
    %12 = arith.addi %11, %10 : vector<512x128xi32>
    %c1152_i32 = arith.constant 1152 : i32
    %13 = vector.broadcast %c1152_i32 : i32 to vector<512x128xi32>
    %14 = arith.cmpi slt, %12, %13 : vector<512x128xi32>
    %cst_5 = arith.constant 0.000000e+00 : f32
    %15 = vector.broadcast %cst_5 : f32 to vector<512x128xf32>
    %16 = arith.select %14, %8, %15 : vector<512x128xi1>, vector<512x128xf32>
    %17 = arith.truncf %16 : vector<512x128xf32> to vector<512x128xbf16>
    %c0_6 = arith.constant 0 : index
    %c0_7 = arith.constant 0 : index
    %18 = vector.load %arg4[%c0_6, %c0_7] : memref<128x128xbf16, #tpu.memory_space<vmem>>, vector<128x128xbf16>
    %cst_8 = arith.constant dense<0.000000e+00> : vector<512x128xf32>
    %19 = tpu.matmul %17, %18, %cst_8 {dimension_numbers = #tpu.dot_dimension_numbers<[1], [0], [0], [1], [0, 0, 1, 1], [], []>} : vector<512x128xbf16>, vector<128x128xbf16>, vector<512x128xf32> -> vector<512x128xf32>
    %c0_9 = arith.constant 0 : index
    %c0_10 = arith.constant 0 : index
    %20 = vector.load %arg5[%c0_9, %c0_10] : memref<512x128xf32, #tpu.memory_space<vmem>>, vector<512x128xf32>
    tpu.vector_store %arg5[%c0_9, %c0_10], %19 {strides = array<i32>} : memref<512x128xf32, #tpu.memory_space<vmem>>, vector<512x128xf32>,
    %cst_11 = arith.constant dense<0.000000e+00> : vector<128xf32>
    %21 = vector.multi_reduction <add>, %19, %cst_11 [0] : vector<512x128xf32> to vector<128xf32>
    %22 = vector.shape_cast %21 : vector<128xf32> to vector<1x128xf32>
    %c0_12 = arith.constant 0 : index
    %c0_13 = arith.constant 0 : index
    %c0_14 = arith.constant 0 : index
    %23 = vector.load %arg6[%c0_12, %c0_13, %c0_14] : memref<1x2x128xf32, #tpu.memory_space<vmem>>, vector<1x1x128xf32>
    %24 = vector.shape_cast %23 : vector<1x1x128xf32> to vector<1x128xf32>
    %25 = vector.shape_cast %22 : vector<1x128xf32> to vector<1x1x128xf32>
    tpu.vector_store %arg6[%c0_12, %c0_13, %c0_14], %25 {strides = array<i32>} : memref<1x2x128xf32, #tpu.memory_space<vmem>>, vector<1x1x128xf32>,
    %26 = arith.mulf %19, %19 : vector<512x128xf32>
    %cst_15 = arith.constant dense<0.000000e+00> : vector<128xf32>
    %27 = vector.multi_reduction <add>, %26, %cst_15 [0] : vector<512x128xf32> to vector<128xf32>
    %28 = vector.shape_cast %27 : vector<128xf32> to vector<1x128xf32>
    %c0_16 = arith.constant 0 : index
    %c1 = arith.constant 1 : index
    %c0_17 = arith.constant 0 : index
    %29 = vector.load %arg6[%c0_16, %c1, %c0_17] : memref<1x2x128xf32, #tpu.memory_space<vmem>>, vector<1x1x128xf32>
    %30 = vector.shape_cast %29 : vector<1x1x128xf32> to vector<1x128xf32>
    %31 = vector.shape_cast %28 : vector<1x128xf32> to vector<1x1x128xf32>
    tpu.vector_store %arg6[%c0_16, %c1, %c0_17], %31 {strides = array<i32>} : memref<1x2x128xf32, #tpu.memory_space<vmem>>, vector<1x1x128xf32>,
    return
  }
  func.func @transform_0(%arg0: i32) -> (i32, i32) {
    %c0_i32 = arith.constant 0 : i32
    %c0_i32_0 = arith.constant 0 : i32
    return %arg0, %c0_i32 : i32, i32
  }
  func.func @transform_1(%arg0: i32) -> (i32, i32) {
    %c0_i32 = arith.constant 0 : i32
    %c0_i32_0 = arith.constant 0 : i32
    %c0_i32_1 = arith.constant 0 : i32
    return %c0_i32, %c0_i32_0 : i32, i32
  }
  func.func @transform_2(%arg0: i32) -> (i32, i32) {
    %c0_i32 = arith.constant 0 : i32
    %c0_i32_0 = arith.constant 0 : i32
    %c0_i32_1 = arith.constant 0 : i32
    return %c0_i32, %c0_i32_0 : i32, i32
  }
  func.func @transform_3(%arg0: i32) -> (i32, i32) {
    %c0_i32 = arith.constant 0 : i32
    %c0_i32_0 = arith.constant 0 : i32
    %c0_i32_1 = arith.constant 0 : i32
    return %c0_i32, %c0_i32_0 : i32, i32
  }
  func.func @transform_4(%arg0: i32) -> (i32, i32) {
    %c0_i32 = arith.constant 0 : i32
    %c0_i32_0 = arith.constant 0 : i32
    return %arg0, %c0_i32 : i32, i32
  }
  func.func @transform_5(%arg0: i32) -> (i32, i32, i32) {
    %c0_i32 = arith.constant 0 : i32
    %c0_i32_0 = arith.constant 0 : i32
    %c0_i32_1 = arith.constant 0 : i32
    return %arg0, %c0_i32, %c0_i32_0 : i32, i32, i32
  }
}

module attributes {stable_mosaic.version = 11 : i64} {
  func.func @_bn_add_relu_proj_kernel(%arg0: i32, %arg1: memref<512x128xf32, #tpu.memory_space<vmem>>, %arg2: memref<1x128xf32, #tpu.memory_space<vmem>>, %arg3: memref<1x128xf32, #tpu.memory_space<vmem>>, %arg4: memref<512x128xf32, #tpu.memory_space<vmem>>, %arg5: memref<1x128xf32, #tpu.memory_space<vmem>>, %arg6: memref<1x128xf32, #tpu.memory_space<vmem>>, %arg7: memref<512x128xf32, #tpu.memory_space<vmem>>) attributes {dimension_semantics = [#tpu.dimension_semantics<parallel>], iteration_bounds = array<i64: 3>, scalar_prefetch = 0 : i64, scratch_operands = 0 : i64, tpu.core_type = #tpu.core_type<tc>, window_params = [{transform_indices = @transform_0, window_bounds = array<i64: 512, 128>}, {pipeline_mode = #tpu.pipeline_mode<synchronous>, transform_indices = @transform_1, window_bounds = array<i64: 1, 128>}, {pipeline_mode = #tpu.pipeline_mode<synchronous>, transform_indices = @transform_2, window_bounds = array<i64: 1, 128>}, {transform_indices = @transform_3, window_bounds = array<i64: 512, 128>}, {pipeline_mode = #tpu.pipeline_mode<synchronous>, transform_indices = @transform_4, window_bounds = array<i64: 1, 128>}, {pipeline_mode = #tpu.pipeline_mode<synchronous>, transform_indices = @transform_5, window_bounds = array<i64: 1, 128>}, {transform_indices = @transform_6, window_bounds = array<i64: 512, 128>}]} {
    %c0 = arith.constant 0 : index
    %c0_0 = arith.constant 0 : index
    %0 = vector.load %arg1[%c0, %c0_0] : memref<512x128xf32, #tpu.memory_space<vmem>>, vector<512x128xf32>
    %c0_1 = arith.constant 0 : index
    %c0_2 = arith.constant 0 : index
    %1 = vector.load %arg2[%c0_1, %c0_2] : memref<1x128xf32, #tpu.memory_space<vmem>>, vector<1x128xf32>
    %2 = vector.broadcast %1 : vector<1x128xf32> to vector<512x128xf32>
    %3 = arith.mulf %0, %2 : vector<512x128xf32>
    %c0_3 = arith.constant 0 : index
    %c0_4 = arith.constant 0 : index
    %4 = vector.load %arg3[%c0_3, %c0_4] : memref<1x128xf32, #tpu.memory_space<vmem>>, vector<1x128xf32>
    %5 = vector.broadcast %4 : vector<1x128xf32> to vector<512x128xf32>
    %6 = arith.addf %3, %5 : vector<512x128xf32>
    %c0_5 = arith.constant 0 : index
    %c0_6 = arith.constant 0 : index
    %7 = vector.load %arg4[%c0_5, %c0_6] : memref<512x128xf32, #tpu.memory_space<vmem>>, vector<512x128xf32>
    %c0_7 = arith.constant 0 : index
    %c0_8 = arith.constant 0 : index
    %8 = vector.load %arg5[%c0_7, %c0_8] : memref<1x128xf32, #tpu.memory_space<vmem>>, vector<1x128xf32>
    %9 = vector.broadcast %8 : vector<1x128xf32> to vector<512x128xf32>
    %10 = arith.mulf %7, %9 : vector<512x128xf32>
    %c0_9 = arith.constant 0 : index
    %c0_10 = arith.constant 0 : index
    %11 = vector.load %arg6[%c0_9, %c0_10] : memref<1x128xf32, #tpu.memory_space<vmem>>, vector<1x128xf32>
    %12 = vector.broadcast %11 : vector<1x128xf32> to vector<512x128xf32>
    %13 = arith.addf %10, %12 : vector<512x128xf32>
    %14 = arith.addf %6, %13 : vector<512x128xf32>
    %cst = arith.constant 0.000000e+00 : f32
    %15 = vector.broadcast %cst : f32 to vector<512x128xf32>
    %16 = arith.maximumf %14, %15 : vector<512x128xf32>
    %c0_11 = arith.constant 0 : index
    %c0_12 = arith.constant 0 : index
    %17 = vector.load %arg7[%c0_11, %c0_12] : memref<512x128xf32, #tpu.memory_space<vmem>>, vector<512x128xf32>
    tpu.vector_store %arg7[%c0_11, %c0_12], %16 {strides = array<i32>} : memref<512x128xf32, #tpu.memory_space<vmem>>, vector<512x128xf32>,
    return
  }
  func.func @transform_0(%arg0: i32) -> (i32, i32) {
    %c0_i32 = arith.constant 0 : i32
    %c0_i32_0 = arith.constant 0 : i32
    return %arg0, %c0_i32 : i32, i32
  }
  func.func @transform_1(%arg0: i32) -> (i32, i32) {
    %c0_i32 = arith.constant 0 : i32
    %c0_i32_0 = arith.constant 0 : i32
    %c0_i32_1 = arith.constant 0 : i32
    return %c0_i32, %c0_i32_0 : i32, i32
  }
  func.func @transform_2(%arg0: i32) -> (i32, i32) {
    %c0_i32 = arith.constant 0 : i32
    %c0_i32_0 = arith.constant 0 : i32
    %c0_i32_1 = arith.constant 0 : i32
    return %c0_i32, %c0_i32_0 : i32, i32
  }
  func.func @transform_3(%arg0: i32) -> (i32, i32) {
    %c0_i32 = arith.constant 0 : i32
    %c0_i32_0 = arith.constant 0 : i32
    return %arg0, %c0_i32 : i32, i32
  }
  func.func @transform_4(%arg0: i32) -> (i32, i32) {
    %c0_i32 = arith.constant 0 : i32
    %c0_i32_0 = arith.constant 0 : i32
    %c0_i32_1 = arith.constant 0 : i32
    return %c0_i32, %c0_i32_0 : i32, i32
  }
  func.func @transform_5(%arg0: i32) -> (i32, i32) {
    %c0_i32 = arith.constant 0 : i32
    %c0_i32_0 = arith.constant 0 : i32
    %c0_i32_1 = arith.constant 0 : i32
    return %c0_i32, %c0_i32_0 : i32, i32
  }
  func.func @transform_6(%arg0: i32) -> (i32, i32) {
    %c0_i32 = arith.constant 0 : i32
    %c0_i32_0 = arith.constant 0 : i32
    return %arg0, %c0_i32 : i32, i32
  }
}

</mosaic_0001>

<llo_original>
// kernel: bottleneck_forward.7
$region0: #{bottleneck_forward.7}
  #allocation0 [shape = 'u32[]', space=smem, size = 0x4, offset = 0x4, fixed_abs, tag = 'smem constant byte address 0x4 - core index']
  #allocation1 [shape = 'u32[144,128]{1,0:T(1,128)}', space=vmem, size = 0x12000, scoped, tag = 'internal scratch']
  %s0 = inlined_call_operand.vmem [shape: f32[1536,128], index: 0, kind: input, shape index: {}]
  %s1 = inlined_call_operand.vmem [shape: f32[1,128], index: 1, kind: input, shape index: {}]
  %s2 = inlined_call_operand.vmem [shape: f32[1,128], index: 2, kind: input, shape index: {}]
  %s3 = inlined_call_operand.vmem [shape: bf16[1536,128], index: 3, kind: output, shape index: {}]
  %s4 = sld [smem:[#allocation0]]
  $region45: #{bottleneck_forward.7} parent=0
    _
  %s6 = ssub.s32 1, %s4
  %s7 = scalar_select 0, %s6, %s4
  loop: start=0, step=1, limit=5
  $region2: #{bottleneck_forward.7} parent=0 // loop_pre_header
    _
  $region3: #{bottleneck_forward.7} parent=0 // loop_header
    %s9 = sphi 0, %s13
    %p10 = scmp.ge.s32.totalorder %s9, 5
    %s19 = sphi 0, %s21
    %s22 = sphi 0, %s19
    %s23 = sphi 0, %s22
    %s39 = sphi 0, %s23
    %s43 = sphi 0, %s43
    %s45 = sphi 0, %s43
    %s46 = sphi 0, %s45
    %s60 = sphi 0, %s46
    %s64 = sphi 0, %s64
    %s66 = sphi 0, %s64
    %s67 = sphi 0, %s66
    %s81 = sphi 0, %s67
    %s87 = sphi 0, %s89
    %s90 = sphi 0, %s87
    %s91 = sphi 0, %s90
    %s107 = sphi 0, %s91
  $region4: #{bottleneck_forward.7} parent=0 // loop_header_branch
    %12 = sbr.rel (%p10) target = $region8
  $region5: #{bottleneck_forward.7} parent=0 // loop_body
    %s14 = ssub.s32 %s9, 1
    %s15 = ssub.s32 %s9, 2
    %s16 = sadd.s32 %s9, 1
    %s17 = ssub.s32 %s9, %s16
    %p18 = scmp.eq.s32.totalorder %s17, 0
    %s20 = sadd.s32 %s19, 1
    %s21 = scalar_select %p18, %s19, %s20
    %p24 = pneg %p18
    %p25 = scmp.eq.s32.totalorder %s9, 2
    %p26 = por %p24, %p25
    %p27 = scmp.ne.s32.totalorder %s19, %s22
    %p28 = scmp.eq.s32.totalorder %s9, 0
    %p29 = por %p27, %p28
    %p30 = scmp.ne.s32.totalorder %s19, %s22
    %p31 = scmp.eq.s32.totalorder %s14, 2
    %p32 = por %p30, %p31
    %p33 = scmp.ne.s32.totalorder %s22, %s23
    %p34 = scmp.eq.s32.totalorder %s14, 0
    %p35 = por %p33, %p34
    %p36 = scmp.ne.s32.totalorder %s22, %s23
    %p37 = scmp.eq.s32.totalorder %s15, 2
    %p38 = por %p36, %p37
    %p40 = scmp.ne.s32.totalorder %s23, %s39
    %p41 = scmp.eq.s32.totalorder %s15, 0
    %p42 = por %p40, %p41
    %s44 = sadd.s32 %s43, 1
    %p47 = scmp.eq.s32.totalorder %s9, 2
    %p48 = scmp.ne.s32.totalorder %s43, %s45
    %p49 = scmp.eq.s32.totalorder %s9, 0
    %p50 = por %p48, %p49
    %p51 = scmp.ne.s32.totalorder %s43, %s45
    %p52 = scmp.eq.s32.totalorder %s14, 2
    %p53 = por %p51, %p52
    %p54 = scmp.ne.s32.totalorder %s45, %s46
    %p55 = scmp.eq.s32.totalorder %s14, 0
    %p56 = por %p54, %p55
    %p57 = scmp.ne.s32.totalorder %s45, %s46
    %p58 = scmp.eq.s32.totalorder %s15, 2
    %p59 = por %p57, %p58
    %p61 = scmp.ne.s32.totalorder %s46, %s60
    %p62 = scmp.eq.s32.totalorder %s15, 0
    %p63 = por %p61, %p62
    %s65 = sadd.s32 %s64, 1
    %p68 = scmp.eq.s32.totalorder %s9, 2
    %p69 = scmp.ne.s32.totalorder %s64, %s66
    %p70 = scmp.eq.s32.totalorder %s9, 0
    %p71 = por %p69, %p70
    %p72 = scmp.ne.s32.totalorder %s64, %s66
    %p73 = scmp.eq.s32.totalorder %s14, 2
    %p74 = por %p72, %p73
    %p75 = scmp.ne.s32.totalorder %s66, %s67
    %p76 = scmp.eq.s32.totalorder %s14, 0
    %p77 = por %p75, %p76
    %p78 = scmp.ne.s32.totalorder %s66, %s67
    %p79 = scmp.eq.s32.totalorder %s15, 2
    %p80 = por %p78, %p79
    %p82 = scmp.ne.s32.totalorder %s67, %s81
    %p83 = scmp.eq.s32.totalorder %s15, 0
    %p84 = por %p82, %p83
    %s85 = ssub.s32 %s9, %s16
    %p86 = scmp.eq.s32.totalorder %s85, 0
    %s88 = sadd.s32 %s87, 1
    %s89 = scalar_select %p86, %s87, %s88
    %p92 = pneg %p86
    %p93 = scmp.eq.s32.totalorder %s9, 2
    %p94 = por %p92, %p93
    %p95 = scmp.ne.s32.totalorder %s87, %s90
    %p96 = scmp.eq.s32.totalorder %s9, 0
    %p97 = por %p95, %p96
    %p98 = scmp.ne.s32.totalorder %s87, %s90
    %p99 = scmp.eq.s32.totalorder %s14, 2
    %p100 = por %p98, %p99
    %p101 = scmp.ne.s32.totalorder %s90, %s91
    %p102 = scmp.eq.s32.totalorder %s14, 0
    %p103 = por %p101, %p102
    %p104 = scmp.ne.s32.totalorder %s90, %s91
    %p105 = scmp.eq.s32.totalorder %s15, 2
    %p106 = por %p104, %p105
    %p108 = scmp.ne.s32.totalorder %s91, %s107
    %p109 = scmp.eq.s32.totalorder %s15, 0
    %p110 = por %p108, %p109
    %p111 = scmp.le.s32.totalorder 1, %s9
    %p112 = scmp.lt.s32.totalorder %s9, 4
    %p113 = pnand %p111, %p112
    %p114 = pneg %p113
    // Predicated region
    $region9: #{bottleneck_forward.7} parent=5 // pred_check
      _
    $region10: #{bottleneck_forward.7} parent=5 // pred_check_branch
      %116 = sbr.rel (%p113) target = $region12
    $region11: #{bottleneck_forward.7} parent=5 // pred_region
      %s117 = ssub.s32 %s9, 1
      // Predicated region
      $region13: #{bottleneck_forward.7} parent=11 // pred_check
        %p118 = pneg %p56
      $region14: #{bottleneck_forward.7} parent=11 // pred_check_branch
        %120 = sbr.rel (%p118) target = $region16
      $region15: #{bottleneck_forward.7} parent=11 // pred_region
        _
      $region16: #{bottleneck_forward.7} parent=11 // pred_fallthru
        _
      // Predicated region
      $region17: #{bottleneck_forward.7} parent=11 // pred_check
        %p121 = pneg %p77
      $region18: #{bottleneck_forward.7} parent=11 // pred_check_branch
        %123 = sbr.rel (%p121) target = $region20
      $region19: #{bottleneck_forward.7} parent=11 // pred_region
        _
      $region20: #{bottleneck_forward.7} parent=11 // pred_fallthru
        _
    $region12: #{bottleneck_forward.7} parent=5 // pred_fallthru
      _
    %p124 = scmp.lt.s32.totalorder %s9, 3
    // Predicated region
    $region21: #{bottleneck_forward.7} parent=5 // pred_check
      %p125 = pneg %p124
    $region22: #{bottleneck_forward.7} parent=5 // pred_check_branch
      %127 = sbr.rel (%p125) target = $region24
    $region23: #{bottleneck_forward.7} parent=5 // pred_region
      // Predicated region
      $region25: #{bottleneck_forward.7} parent=23 // pred_check
        %p128 = pneg %p29
      $region26: #{bottleneck_forward.7} parent=23 // pred_check_branch
        %130 = sbr.rel (%p128) target = $region28
      $region27: #{bottleneck_forward.7} parent=23 // pred_region
        %s131 = smul.u32 64, %s9
        %p132 = scmp.lt.s32.totalorder %s131, 191
        %s133 = scalar_select %p132, %s131, 191
        %s134 = smul.addr %s133, 8
        %s135 = scalar_lea.vmem %s0, %s134
        %s136 = smul.u32 64, %s9
      $region28: #{bottleneck_forward.7} parent=23 // pred_fallthru
        _
    $region24: #{bottleneck_forward.7} parent=5 // pred_fallthru
      _
    %p137 = scmp.le.s32.totalorder 1, %s9
    %p138 = scmp.lt.s32.totalorder %s9, 4
    %p139 = pnand %p137, %p138
    %p140 = pneg %p139
    // Predicated region
    $region29: #{bottleneck_forward.7} parent=5 // pred_check
      _
    $region30: #{bottleneck_forward.7} parent=5 // pred_check_branch
      %142 = sbr.rel (%p139) target = $region32
    $region31: #{bottleneck_forward.7} parent=5 // pred_region
      %s143 = ssub.s32 %s9, 1
      %s144 = smul.u32 64, %s14
      %p145 = scmp.lt.s32.totalorder %s144, 191
      %s146 = scalar_select %p145, %s144, 191
      %s147 = smul.addr %s146, 8
      %s148 = scalar_lea.vmem %s0, %s147
      %p149 = pneg %p35
      %p150 = pneg %p32
      %p151 = pneg %p56
      %p152 = pneg %p53
      %p153 = pneg %p77
      %p154 = pneg %p74
      %p155 = pneg %p103
      %p156 = pneg %p100
      %s157 = smul.u32 64, %s14
      %p158 = scmp.lt.s32.totalorder %s157, 191
      %s159 = scalar_select %p158, %s157, 191
      %s160 = smul.addr %s159, 4
      %s161 = scalar_lea.vmem %s3, %s160
      %s162 = smul.u32 64, %s14
      %p163 = scmp.lt.s32.totalorder %s162, 191
      %s164 = scalar_select %p163, %s162, 191
      %s165 = smul.addr %s164, 8
      %s166 = scalar_lea.vmem %s0, %s165
      %s167 = smul.u32 64, %s14
      %s168 = smul.u32 64, %s14
      %p169 = scmp.lt.s32.totalorder %s168, 191
      %s170 = scalar_select %p169, %s168, 191
      %s171 = smul.addr %s170, 4
      %s172 = scalar_lea.vmem %s3, %s171
      %s173 = smul.u32 64, %s14
      %v174 = vld [vmem:[%s166] sm:$0xff]
      %v175 = vld [vmem:[%s166 + $0x8] sm:$0xff]
      %v176 = vld [vmem:[%s166 + $0x10] sm:$0xff]
      %v177 = vld [vmem:[%s166 + $0x18] sm:$0xff]
      %v178 = vld [vmem:[%s166 + $0x20] sm:$0xff]
      %v179 = vld [vmem:[%s166 + $0x28] sm:$0xff]
      %v180 = vld [vmem:[%s166 + $0x30] sm:$0xff]
      %v181 = vld [vmem:[%s166 + $0x38] sm:$0xff]
      %v182 = vld [vmem:[%s166 + $0x40] sm:$0xff]
      %v183 = vld [vmem:[%s166 + $0x48] sm:$0xff]
      %v184 = vld [vmem:[%s166 + $0x50] sm:$0xff]
      %v185 = vld [vmem:[%s166 + $0x58] sm:$0xff]
      %v186 = vld [vmem:[%s166 + $0x60] sm:$0xff]
      %v187 = vld [vmem:[%s166 + $0x68] sm:$0xff]
      %v188 = vld [vmem:[%s166 + $0x70] sm:$0xff]
      %v189 = vld [vmem:[%s166 + $0x78] sm:$0xff]
      %v190 = vld [vmem:[%s166 + $0x80] sm:$0xff]
      %v191 = vld [vmem:[%s166 + $0x88] sm:$0xff]
      %v192 = vld [vmem:[%s166 + $0x90] sm:$0xff]
      %v193 = vld [vmem:[%s166 + $0x98] sm:$0xff]
      %v194 = vld [vmem:[%s166 + $0xa0] sm:$0xff]
      %v195 = vld [vmem:[%s166 + $0xa8] sm:$0xff]
      %v196 = vld [vmem:[%s166 + $0xb0] sm:$0xff]
      %v197 = vld [vmem:[%s166 + $0xb8] sm:$0xff]
      %v198 = vld [vmem:[%s166 + $0xc0] sm:$0xff]
      %v199 = vld [vmem:[%s166 + $0xc8] sm:$0xff]
      %v200 = vld [vmem:[%s166 + $0xd0] sm:$0xff]
      %v201 = vld [vmem:[%s166 + $0xd8] sm:$0xff]
      %v202 = vld [vmem:[%s166 + $0xe0] sm:$0xff]
      %v203 = vld [vmem:[%s166 + $0xe8] sm:$0xff]
      %v204 = vld [vmem:[%s166 + $0xf0] sm:$0xff]
      %v205 = vld [vmem:[%s166 + $0xf8] sm:$0xff]
      %v206 = vld [vmem:[%s166 + $0x100] sm:$0xff]
      %v207 = vld [vmem:[%s166 + $0x108] sm:$0xff]
      %v208 = vld [vmem:[%s166 + $0x110] sm:$0xff]
      %v209 = vld [vmem:[%s166 + $0x118] sm:$0xff]
      %v210 = vld [vmem:[%s166 + $0x120] sm:$0xff]
      %v211 = vld [vmem:[%s166 + $0x128] sm:$0xff]
      %v212 = vld [vmem:[%s166 + $0x130] sm:$0xff]
      %v213 = vld [vmem:[%s166 + $0x138] sm:$0xff]
      %v214 = vld [vmem:[%s166 + $0x140] sm:$0xff]
      %v215 = vld [vmem:[%s166 + $0x148] sm:$0xff]
      %v216 = vld [vmem:[%s166 + $0x150] sm:$0xff]
      %v217 = vld [vmem:[%s166 + $0x158] sm:$0xff]
      %v218 = vld [vmem:[%s166 + $0x160] sm:$0xff]
      %v219 = vld [vmem:[%s166 + $0x168] sm:$0xff]
      %v220 = vld [vmem:[%s166 + $0x170] sm:$0xff]
      %v221 = vld [vmem:[%s166 + $0x178] sm:$0xff]
      %v222 = vld [vmem:[%s166 + $0x180] sm:$0xff]
      %v223 = vld [vmem:[%s166 + $0x188] sm:$0xff]
      %v224 = vld [vmem:[%s166 + $0x190] sm:$0xff]
      %v225 = vld [vmem:[%s166 + $0x198] sm:$0xff]
      %v226 = vld [vmem:[%s166 + $0x1a0] sm:$0xff]
      %v227 = vld [vmem:[%s166 + $0x1a8] sm:$0xff]
      %v228 = vld [vmem:[%s166 + $0x1b0] sm:$0xff]
      %v229 = vld [vmem:[%s166 + $0x1b8] sm:$0xff]
      %v230 = vld [vmem:[%s166 + $0x1c0] sm:$0xff]
      %v231 = vld [vmem:[%s166 + $0x1c8] sm:$0xff]
      %v232 = vld [vmem:[%s166 + $0x1d0] sm:$0xff]
      %v233 = vld [vmem:[%s166 + $0x1d8] sm:$0xff]
      %v234 = vld [vmem:[%s166 + $0x1e0] sm:$0xff]
      %v235 = vld [vmem:[%s166 + $0x1e8] sm:$0xff]
      %v236 = vld [vmem:[%s166 + $0x1f0] sm:$0xff]
      %v237 = vld [vmem:[%s166 + $0x1f8] sm:$0xff]
      %v238 = vld [vmem:[%s1] sm:$0x1]
      %v240 = vlaneseq
      %v241 = vshrl.u32 %v240, 7
      %v242 = vsub.s32 0, %v241
      %v243 = vrot.slane %v238, %v242
      %v245 = vmul.f32 %v174, %v243
      %v246 = vmul.f32 %v175, %v243
      %v247 = vmul.f32 %v176, %v243
      %v248 = vmul.f32 %v177, %v243
      %v249 = vmul.f32 %v178, %v243
      %v250 = vmul.f32 %v179, %v243
      %v251 = vmul.f32 %v180, %v243
      %v252 = vmul.f32 %v181, %v243
      %v253 = vmul.f32 %v182, %v243
      %v254 = vmul.f32 %v183, %v243
      %v255 = vmul.f32 %v184, %v243
      %v256 = vmul.f32 %v185, %v243
      %v257 = vmul.f32 %v186, %v243
      %v258 = vmul.f32 %v187, %v243
      %v259 = vmul.f32 %v188, %v243
      %v260 = vmul.f32 %v189, %v243
      %v261 = vmul.f32 %v190, %v243
      %v262 = vmul.f32 %v191, %v243
      %v263 = vmul.f32 %v192, %v243
      %v264 = vmul.f32 %v193, %v243
      %v265 = vmul.f32 %v194, %v243
      %v266 = vmul.f32 %v195, %v243
      %v267 = vmul.f32 %v196, %v243
      %v268 = vmul.f32 %v197, %v243
      %v269 = vmul.f32 %v198, %v243
      %v270 = vmul.f32 %v199, %v243
      %v271 = vmul.f32 %v200, %v243
      %v272 = vmul.f32 %v201, %v243
      %v273 = vmul.f32 %v202, %v243
      %v274 = vmul.f32 %v203, %v243
      %v275 = vmul.f32 %v204, %v243
      %v276 = vmul.f32 %v205, %v243
      %v277 = vmul.f32 %v206, %v243
      %v278 = vmul.f32 %v207, %v243
      %v279 = vmul.f32 %v208, %v243
      %v280 = vmul.f32 %v209, %v243
      %v281 = vmul.f32 %v210, %v243
      %v282 = vmul.f32 %v211, %v243
      %v283 = vmul.f32 %v212, %v243
      %v284 = vmul.f32 %v213, %v243
      %v285 = vmul.f32 %v214, %v243
      %v286 = vmul.f32 %v215, %v243
      %v287 = vmul.f32 %v216, %v243
      %v288 = vmul.f32 %v217, %v243
      %v289 = vmul.f32 %v218, %v243
      %v290 = vmul.f32 %v219, %v243
      %v291 = vmul.f32 %v220, %v243
      %v292 = vmul.f32 %v221, %v243
      %v293 = vmul.f32 %v222, %v243
      %v294 = vmul.f32 %v223, %v243
      %v295 = vmul.f32 %v224, %v243
      %v296 = vmul.f32 %v225, %v243
      %v297 = vmul.f32 %v226, %v243
      %v298 = vmul.f32 %v227, %v243
      %v299 = vmul.f32 %v228, %v243
      %v300 = vmul.f32 %v229, %v243
      %v301 = vmul.f32 %v230, %v243
      %v302 = vmul.f32 %v231, %v243
      %v303 = vmul.f32 %v232, %v243
      %v304 = vmul.f32 %v233, %v243
      %v305 = vmul.f32 %v234, %v243
      %v306 = vmul.f32 %v235, %v243
      %v307 = vmul.f32 %v236, %v243
      %v308 = vmul.f32 %v237, %v243
      %v309 = vld [vmem:[%s2] sm:$0x1]
      %v311 = vlaneseq
      %v312 = vshrl.u32 %v311, 7
      %v313 = vsub.s32 0, %v312
      %v314 = vrot.slane %v309, %v313
      %v316 = vadd.f32 %v245, %v314
      %v317 = vadd.f32 %v246, %v314
      %v318 = vadd.f32 %v247, %v314
      %v319 = vadd.f32 %v248, %v314
      %v320 = vadd.f32 %v249, %v314
      %v321 = vadd.f32 %v250, %v314
      %v322 = vadd.f32 %v251, %v314
      %v323 = vadd.f32 %v252, %v314
      %v324 = vadd.f32 %v253, %v314
      %v325 = vadd.f32 %v254, %v314
      %v326 = vadd.f32 %v255, %v314
      %v327 = vadd.f32 %v256, %v314
      %v328 = vadd.f32 %v257, %v314
      %v329 = vadd.f32 %v258, %v314
      %v330 = vadd.f32 %v259, %v314
      %v331 = vadd.f32 %v260, %v314
      %v332 = vadd.f32 %v261, %v314
      %v333 = vadd.f32 %v262, %v314
      %v334 = vadd.f32 %v263, %v314
      %v335 = vadd.f32 %v264, %v314
      %v336 = vadd.f32 %v265, %v314
      %v337 = vadd.f32 %v266, %v314
      %v338 = vadd.f32 %v267, %v314
      %v339 = vadd.f32 %v268, %v314
      %v340 = vadd.f32 %v269, %v314
      %v341 = vadd.f32 %v270, %v314
      %v342 = vadd.f32 %v271, %v314
      %v343 = vadd.f32 %v272, %v314
      %v344 = vadd.f32 %v273, %v314
      %v345 = vadd.f32 %v274, %v314
      %v346 = vadd.f32 %v275, %v314
      %v347 = vadd.f32 %v276, %v314
      %v348 = vadd.f32 %v277, %v314
      %v349 = vadd.f32 %v278, %v314
      %v350 = vadd.f32 %v279, %v314
      %v351 = vadd.f32 %v280, %v314
      %v352 = vadd.f32 %v281, %v314
      %v353 = vadd.f32 %v282, %v314
      %v354 = vadd.f32 %v283, %v314
      %v355 = vadd.f32 %v284, %v314
      %v356 = vadd.f32 %v285, %v314
      %v357 = vadd.f32 %v286, %v314
      %v358 = vadd.f32 %v287, %v314
      %v359 = vadd.f32 %v288, %v314
      %v360 = vadd.f32 %v289, %v314
      %v361 = vadd.f32 %v290, %v314
      %v362 = vadd.f32 %v291, %v314
      %v363 = vadd.f32 %v292, %v314
      %v364 = vadd.f32 %v293, %v314
      %v365 = vadd.f32 %v294, %v314
      %v366 = vadd.f32 %v295, %v314
      %v367 = vadd.f32 %v296, %v314
      %v368 = vadd.f32 %v297, %v314
      %v369 = vadd.f32 %v298, %v314
      %v370 = vadd.f32 %v299, %v314
      %v371 = vadd.f32 %v300, %v314
      %v372 = vadd.f32 %v301, %v314
      %v373 = vadd.f32 %v302, %v314
      %v374 = vadd.f32 %v303, %v314
      %v375 = vadd.f32 %v304, %v314
      %v376 = vadd.f32 %v305, %v314
      %v377 = vadd.f32 %v306, %v314
      %v378 = vadd.f32 %v307, %v314
      %v379 = vadd.f32 %v308, %v314
      %v380 = vmax.f32 %v316, 0.0
      %v381 = vmax.f32 %v317, 0.0
      %v382 = vmax.f32 %v318, 0.0
      %v383 = vmax.f32 %v319, 0.0
      %v384 = vmax.f32 %v320, 0.0
      %v385 = vmax.f32 %v321, 0.0
      %v386 = vmax.f32 %v322, 0.0
      %v387 = vmax.f32 %v323, 0.0
      %v388 = vmax.f32 %v324, 0.0
      %v389 = vmax.f32 %v325, 0.0
      %v390 = vmax.f32 %v326, 0.0
      %v391 = vmax.f32 %v327, 0.0
      %v392 = vmax.f32 %v328, 0.0
      %v393 = vmax.f32 %v329, 0.0
      %v394 = vmax.f32 %v330, 0.0
      %v395 = vmax.f32 %v331, 0.0
      %v396 = vmax.f32 %v332, 0.0
      %v397 = vmax.f32 %v333, 0.0
      %v398 = vmax.f32 %v334, 0.0
      %v399 = vmax.f32 %v335, 0.0
      %v400 = vmax.f32 %v336, 0.0
      %v401 = vmax.f32 %v337, 0.0
      %v402 = vmax.f32 %v338, 0.0
      %v403 = vmax.f32 %v339, 0.0
      %v404 = vmax.f32 %v340, 0.0
      %v405 = vmax.f32 %v341, 0.0
      %v406 = vmax.f32 %v342, 0.0
      %v407 = vmax.f32 %v343, 0.0
      %v408 = vmax.f32 %v344, 0.0
      %v409 = vmax.f32 %v345, 0.0
      %v410 = vmax.f32 %v346, 0.0
      %v411 = vmax.f32 %v347, 0.0
      %v412 = vmax.f32 %v348, 0.0
      %v413 = vmax.f32 %v349, 0.0
      %v414 = vmax.f32 %v350, 0.0
      %v415 = vmax.f32 %v351, 0.0
      %v416 = vmax.f32 %v352, 0.0
      %v417 = vmax.f32 %v353, 0.0
      %v418 = vmax.f32 %v354, 0.0
      %v419 = vmax.f32 %v355, 0.0
      %v420 = vmax.f32 %v356, 0.0
      %v421 = vmax.f32 %v357, 0.0
      %v422 = vmax.f32 %v358, 0.0
      %v423 = vmax.f32 %v359, 0.0
      %v424 = vmax.f32 %v360, 0.0
      %v425 = vmax.f32 %v361, 0.0
      %v426 = vmax.f32 %v362, 0.0
      %v427 = vmax.f32 %v363, 0.0
      %v428 = vmax.f32 %v364, 0.0
      %v429 = vmax.f32 %v365, 0.0
      %v430 = vmax.f32 %v366, 0.0
      %v431 = vmax.f32 %v367, 0.0
      %v432 = vmax.f32 %v368, 0.0
      %v433 = vmax.f32 %v369, 0.0
      %v434 = vmax.f32 %v370, 0.0
      %v435 = vmax.f32 %v371, 0.0
      %v436 = vmax.f32 %v372, 0.0
      %v437 = vmax.f32 %v373, 0.0
      %v438 = vmax.f32 %v374, 0.0
      %v439 = vmax.f32 %v375, 0.0
      %v440 = vmax.f32 %v376, 0.0
      %v441 = vmax.f32 %v377, 0.0
      %v442 = vmax.f32 %v378, 0.0
      %v443 = vmax.f32 %v379, 0.0
      %v444 = vpack.c.bf16 %v381, %v380
      %v445 = vpack.c.bf16 %v383, %v382
      %v446 = vpack.c.bf16 %v385, %v384
      %v447 = vpack.c.bf16 %v387, %v386
      %v448 = vpack.c.bf16 %v389, %v388
      %v449 = vpack.c.bf16 %v391, %v390
      %v450 = vpack.c.bf16 %v393, %v392
      %v451 = vpack.c.bf16 %v395, %v394
      %v452 = vpack.c.bf16 %v397, %v396
      %v453 = vpack.c.bf16 %v399, %v398
      %v454 = vpack.c.bf16 %v401, %v400
      %v455 = vpack.c.bf16 %v403, %v402
      %v456 = vpack.c.bf16 %v405, %v404
      %v457 = vpack.c.bf16 %v407, %v406
      %v458 = vpack.c.bf16 %v409, %v408
      %v459 = vpack.c.bf16 %v411, %v410
      %v460 = vpack.c.bf16 %v413, %v412
      %v461 = vpack.c.bf16 %v415, %v414
      %v462 = vpack.c.bf16 %v417, %v416
      %v463 = vpack.c.bf16 %v419, %v418
      %v464 = vpack.c.bf16 %v421, %v420
      %v465 = vpack.c.bf16 %v423, %v422
      %v466 = vpack.c.bf16 %v425, %v424
      %v467 = vpack.c.bf16 %v427, %v426
      %v468 = vpack.c.bf16 %v429, %v428
      %v469 = vpack.c.bf16 %v431, %v430
      %v470 = vpack.c.bf16 %v433, %v432
      %v471 = vpack.c.bf16 %v435, %v434
      %v472 = vpack.c.bf16 %v437, %v436
      %v473 = vpack.c.bf16 %v439, %v438
      %v474 = vpack.c.bf16 %v441, %v440
      %v475 = vpack.c.bf16 %v443, %v442
      %v508 = vunpack.c.l.b16 %v444
      %v509 = vunpack.c.h.b16 %v444
      %v510 = vunpack.c.l.b16 %v445
      %v511 = vunpack.c.h.b16 %v445
      %v512 = vunpack.c.l.b16 %v446
      %v513 = vunpack.c.h.b16 %v446
      %v514 = vunpack.c.l.b16 %v447
      %v515 = vunpack.c.h.b16 %v447
      %v516 = vunpack.c.l.b16 %v448
      %v517 = vunpack.c.h.b16 %v448
      %v518 = vunpack.c.l.b16 %v449
      %v519 = vunpack.c.h.b16 %v449
      %v520 = vunpack.c.l.b16 %v450
      %v521 = vunpack.c.h.b16 %v450
      %v522 = vunpack.c.l.b16 %v451
      %v523 = vunpack.c.h.b16 %v451
      %v524 = vunpack.c.l.b16 %v452
      %v525 = vunpack.c.h.b16 %v452
      %v526 = vunpack.c.l.b16 %v453
      %v527 = vunpack.c.h.b16 %v453
      %v528 = vunpack.c.l.b16 %v454
      %v529 = vunpack.c.h.b16 %v454
      %v530 = vunpack.c.l.b16 %v455
      %v531 = vunpack.c.h.b16 %v455
      %v532 = vunpack.c.l.b16 %v456
      %v533 = vunpack.c.h.b16 %v456
      %v534 = vunpack.c.l.b16 %v457
      %v535 = vunpack.c.h.b16 %v457
      %v536 = vunpack.c.l.b16 %v458
      %v537 = vunpack.c.h.b16 %v458
      %v538 = vunpack.c.l.b16 %v459
      %v539 = vunpack.c.h.b16 %v459
      %v540 = vunpack.c.l.b16 %v460
      %v541 = vunpack.c.h.b16 %v460
      %v542 = vunpack.c.l.b16 %v461
      %v543 = vunpack.c.h.b16 %v461
      %v544 = vunpack.c.l.b16 %v462
      %v545 = vunpack.c.h.b16 %v462
      %v546 = vunpack.c.l.b16 %v463
      %v547 = vunpack.c.h.b16 %v463
      %v548 = vunpack.c.l.b16 %v464
      %v549 = vunpack.c.h.b16 %v464
      %v550 = vunpack.c.l.b16 %v465
      %v551 = vunpack.c.h.b16 %v465
      %v552 = vunpack.c.l.b16 %v466
      %v553 = vunpack.c.h.b16 %v466
      %v554 = vunpack.c.l.b16 %v467
      %v555 = vunpack.c.h.b16 %v467
      %v556 = vunpack.c.l.b16 %v468
      %v557 = vunpack.c.h.b16 %v468
      %v558 = vunpack.c.l.b16 %v469
      %v559 = vunpack.c.h.b16 %v469
      %v560 = vunpack.c.l.b16 %v470
      %v561 = vunpack.c.h.b16 %v470
      %v562 = vunpack.c.l.b16 %v471
      %v563 = vunpack.c.h.b16 %v471
      %v564 = vunpack.c.l.b16 %v472
      %v565 = vunpack.c.h.b16 %v472
      %v566 = vunpack.c.l.b16 %v473
      %v567 = vunpack.c.h.b16 %v473
      %v568 = vunpack.c.l.b16 %v474
      %v569 = vunpack.c.h.b16 %v474
      %v570 = vunpack.c.l.b16 %v475
      %v571 = vunpack.c.h.b16 %v475
      %v572 = vpack.c.b16 %v508, %v508
      %v573 = vpack.c.b16 %v509, %v509
      %v574 = vpack.c.b16 %v510, %v510
      %v575 = vpack.c.b16 %v511, %v511
      %v576 = vpack.c.b16 %v512, %v512
      %v577 = vpack.c.b16 %v513, %v513
      %v578 = vpack.c.b16 %v514, %v514
      %v579 = vpack.c.b16 %v515, %v515
      %v580 = vpack.c.b16 %v516, %v516
      %v581 = vpack.c.b16 %v517, %v517
      %v582 = vpack.c.b16 %v518, %v518
      %v583 = vpack.c.b16 %v519, %v519
      %v584 = vpack.c.b16 %v520, %v520
      %v585 = vpack.c.b16 %v521, %v521
      %v586 = vpack.c.b16 %v522, %v522
      %v587 = vpack.c.b16 %v523, %v523
      %v588 = vpack.c.b16 %v524, %v524
      %v589 = vpack.c.b16 %v525, %v525
      %v590 = vpack.c.b16 %v526, %v526
      %v591 = vpack.c.b16 %v527, %v527
      %v592 = vpack.c.b16 %v528, %v528
      %v593 = vpack.c.b16 %v529, %v529
      %v594 = vpack.c.b16 %v530, %v530
      %v595 = vpack.c.b16 %v531, %v531
      %v596 = vpack.c.b16 %v532, %v532
      %v597 = vpack.c.b16 %v533, %v533
      %v598 = vpack.c.b16 %v534, %v534
      %v599 = vpack.c.b16 %v535, %v535
      %v600 = vpack.c.b16 %v536, %v536
      %v601 = vpack.c.b16 %v537, %v537
      %v602 = vpack.c.b16 %v538, %v538
      %v603 = vpack.c.b16 %v539, %v539
      %v604 = vpack.c.b16 %v540, %v540
      %v605 = vpack.c.b16 %v541, %v541
      %v606 = vpack.c.b16 %v542, %v542
      %v607 = vpack.c.b16 %v543, %v543
      %v608 = vpack.c.b16 %v544, %v544
      %v609 = vpack.c.b16 %v545, %v545
      %v610 = vpack.c.b16 %v546, %v546
      %v611 = vpack.c.b16 %v547, %v547
      %v612 = vpack.c.b16 %v548, %v548
      %v613 = vpack.c.b16 %v549, %v549
      %v614 = vpack.c.b16 %v550, %v550
      %v615 = vpack.c.b16 %v551, %v551
      %v616 = vpack.c.b16 %v552, %v552
      %v617 = vpack.c.b16 %v553, %v553
      %v618 = vpack.c.b16 %v554, %v554
      %v619 = vpack.c.b16 %v555, %v555
      %v620 = vpack.c.b16 %v556, %v556
      %v621 = vpack.c.b16 %v557, %v557
      %v622 = vpack.c.b16 %v558, %v558
      %v623 = vpack.c.b16 %v559, %v559
      %v624 = vpack.c.b16 %v560, %v560
      %v625 = vpack.c.b16 %v561, %v561
      %v626 = vpack.c.b16 %v562, %v562
      %v627 = vpack.c.b16 %v563, %v563
      %v628 = vpack.c.b16 %v564, %v564
      %v629 = vpack.c.b16 %v565, %v565
      %v630 = vpack.c.b16 %v566, %v566
      %v631 = vpack.c.b16 %v567, %v567
      %v632 = vpack.c.b16 %v568, %v568
      %v633 = vpack.c.b16 %v569, %v569
      %v634 = vpack.c.b16 %v570, %v570
      %v635 = vpack.c.b16 %v571, %v571
      %700 = vst [vmem:[%s172] sm:$0xf] %v572
      %701 = vst [vmem:[%s172 + $0x4] sm:$0xf] %v573
      %702 = vst [vmem:[%s172 + $0x8] sm:$0xf] %v574
      %703 = vst [vmem:[%s172 + $0xc] sm:$0xf] %v575
      %704 = vst [vmem:[%s172 + $0x10] sm:$0xf] %v576
      %705 = vst [vmem:[%s172 + $0x14] sm:$0xf] %v577
      %706 = vst [vmem:[%s172 + $0x18] sm:$0xf] %v578
      %707 = vst [vmem:[%s172 + $0x1c] sm:$0xf] %v579
      %708 = vst [vmem:[%s172 + $0x20] sm:$0xf] %v580
      %709 = vst [vmem:[%s172 + $0x24] sm:$0xf] %v581
      %710 = vst [vmem:[%s172 + $0x28] sm:$0xf] %v582
      %711 = vst [vmem:[%s172 + $0x2c] sm:$0xf] %v583
      %712 = vst [vmem:[%s172 + $0x30] sm:$0xf] %v584
      %713 = vst [vmem:[%s172 + $0x34] sm:$0xf] %v585
      %714 = vst [vmem:[%s172 + $0x38] sm:$0xf] %v586
      %715 = vst [vmem:[%s172 + $0x3c] sm:$0xf] %v587
      %716 = vst [vmem:[%s172 + $0x40] sm:$0xf] %v588
      %717 = vst [vmem:[%s172 + $0x44] sm:$0xf] %v589
      %718 = vst [vmem:[%s172 + $0x48] sm:$0xf] %v590
      %719 = vst [vmem:[%s172 + $0x4c] sm:$0xf] %v591
      %720 = vst [vmem:[%s172 + $0x50] sm:$0xf] %v592
      %721 = vst [vmem:[%s172 + $0x54] sm:$0xf] %v593
      %722 = vst [vmem:[%s172 + $0x58] sm:$0xf] %v594
      %723 = vst [vmem:[%s172 + $0x5c] sm:$0xf] %v595
      %724 = vst [vmem:[%s172 + $0x60] sm:$0xf] %v596
      %725 = vst [vmem:[%s172 + $0x64] sm:$0xf] %v597
      %726 = vst [vmem:[%s172 + $0x68] sm:$0xf] %v598
      %727 = vst [vmem:[%s172 + $0x6c] sm:$0xf] %v599
      %728 = vst [vmem:[%s172 + $0x70] sm:$0xf] %v600
      %729 = vst [vmem:[%s172 + $0x74] sm:$0xf] %v601
      %730 = vst [vmem:[%s172 + $0x78] sm:$0xf] %v602
      %731 = vst [vmem:[%s172 + $0x7c] sm:$0xf] %v603
      %732 = vst [vmem:[%s172 + $0x80] sm:$0xf] %v604
      %733 = vst [vmem:[%s172 + $0x84] sm:$0xf] %v605
      %734 = vst [vmem:[%s172 + $0x88] sm:$0xf] %v606
      %735 = vst [vmem:[%s172 + $0x8c] sm:$0xf] %v607
      %736 = vst [vmem:[%s172 + $0x90] sm:$0xf] %v608
      %737 = vst [vmem:[%s172 + $0x94] sm:$0xf] %v609
      %738 = vst [vmem:[%s172 + $0x98] sm:$0xf] %v610
      %739 = vst [vmem:[%s172 + $0x9c] sm:$0xf] %v611
      %740 = vst [vmem:[%s172 + $0xa0] sm:$0xf] %v612
      %741 = vst [vmem:[%s172 + $0xa4] sm:$0xf] %v613
      %742 = vst [vmem:[%s172 + $0xa8] sm:$0xf] %v614
      %743 = vst [vmem:[%s172 + $0xac] sm:$0xf] %v615
      %744 = vst [vmem:[%s172 + $0xb0] sm:$0xf] %v616
      %745 = vst [vmem:[%s172 + $0xb4] sm:$0xf] %v617
      %746 = vst [vmem:[%s172 + $0xb8] sm:$0xf] %v618
      %747 = vst [vmem:[%s172 + $0xbc] sm:$0xf] %v619
      %748 = vst [vmem:[%s172 + $0xc0] sm:$0xf] %v620
      %749 = vst [vmem:[%s172 + $0xc4] sm:$0xf] %v621
      %750 = vst [vmem:[%s172 + $0xc8] sm:$0xf] %v622
      %751 = vst [vmem:[%s172 + $0xcc] sm:$0xf] %v623
      %752 = vst [vmem:[%s172 + $0xd0] sm:$0xf] %v624
      %753 = vst [vmem:[%s172 + $0xd4] sm:$0xf] %v625
      %754 = vst [vmem:[%s172 + $0xd8] sm:$0xf] %v626
      %755 = vst [vmem:[%s172 + $0xdc] sm:$0xf] %v627
      %756 = vst [vmem:[%s172 + $0xe0] sm:$0xf] %v628
      %757 = vst [vmem:[%s172 + $0xe4] sm:$0xf] %v629
      %758 = vst [vmem:[%s172 + $0xe8] sm:$0xf] %v630
      %759 = vst [vmem:[%s172 + $0xec] sm:$0xf] %v631
      %760 = vst [vmem:[%s172 + $0xf0] sm:$0xf] %v632
      %761 = vst [vmem:[%s172 + $0xf4] sm:$0xf] %v633
      %762 = vst [vmem:[%s172 + $0xf8] sm:$0xf] %v634
      %763 = vst [vmem:[%s172 + $0xfc] sm:$0xf] %v635
      %s764 = smul.u32 64, %s14
      %p765 = scmp.lt.s32.totalorder %s764, 191
      %s766 = scalar_select %p765, %s764, 191
      %s767 = smul.addr %s766, 4
      %s768 = scalar_lea.vmem %s3, %s767
      // Predicated region
      $region33: #{bottleneck_forward.7} parent=31 // pred_check
        %p769 = pneg %p100
      $region34: #{bottleneck_forward.7} parent=31 // pred_check_branch
        %771 = sbr.rel (%p769) target = $region36
      $region35: #{bottleneck_forward.7} parent=31 // pred_region
        %s772 = smul.u32 64, %s14
      $region36: #{bottleneck_forward.7} parent=31 // pred_fallthru
        _
    $region32: #{bottleneck_forward.7} parent=5 // pred_fallthru
      _
    %p773 = scmp.le.s32.totalorder 2, %s9
    // Predicated region
    $region37: #{bottleneck_forward.7} parent=5 // pred_check
      %p774 = pneg %p773
    $region38: #{bottleneck_forward.7} parent=5 // pred_check_branch
      %776 = sbr.rel (%p774) target = $region40
    $region39: #{bottleneck_forward.7} parent=5 // pred_region
      %s777 = ssub.s32 %s9, 2
      // Predicated region
      $region41: #{bottleneck_forward.7} parent=39 // pred_check
        %p778 = pneg %p106
      $region42: #{bottleneck_forward.7} parent=39 // pred_check_branch
        %780 = sbr.rel (%p778) target = $region44
      $region43: #{bottleneck_forward.7} parent=39 // pred_region
        %s781 = smul.u32 64, %s15
        %p782 = scmp.lt.s32.totalorder %s781, 191
        %s783 = scalar_select %p782, %s781, 191
        %s784 = smul.addr %s783, 4
        %s785 = scalar_lea.vmem %s3, %s784
      $region44: #{bottleneck_forward.7} parent=39 // pred_fallthru
        _
    $region40: #{bottleneck_forward.7} parent=5 // pred_fallthru
      _
  $region6: #{bottleneck_forward.7} parent=0 // loop_footer
    %s13 = sadd.s32 1, %s9
  $region7: #{bottleneck_forward.7} parent=0 // loop_footer_branch
    %8 = sbr.rel target = $region3
  $region8: #{bottleneck_forward.7} parent=0 // loop_exit
    _

// kernel: bottleneck_forward.6
$region0: #{bottleneck_forward.6}
  #allocation0 [shape = 'u32[]', space=smem, size = 0x4, offset = 0x4, fixed_abs, tag = 'smem constant byte address 0x4 - core index']
  #allocation1 [shape = 'u32[144,128]{1,0:T(1,128)}', space=vmem, size = 0x12000, scoped, tag = 'internal scratch']
  %s0 = inlined_call_operand.vmem [shape: bf16[1536,128], index: 0, kind: input, shape index: {}]
  %s1 = inlined_call_operand.vmem [shape: bf16[128,128], index: 1, kind: input, shape index: {}]
  %s2 = inlined_call_operand.vmem [shape: f32[1536,128], index: 2, kind: output, shape index: {0}]
  %s3 = inlined_call_operand.vmem [shape: f32[3,2,128], index: 3, kind: output, shape index: {1}]
  %4 = xla_tuple %s2, %s3
  %s5 = sld [smem:[#allocation0]]
  $region49: #{bottleneck_forward.6} parent=0
    _
  %s7 = ssub.s32 1, %s5
  %s8 = scalar_select 0, %s7, %s5
  loop: start=0, step=1, limit=5
  $region2: #{bottleneck_forward.6} parent=0 // loop_pre_header
    _
  $region3: #{bottleneck_forward.6} parent=0 // loop_header
    %s10 = sphi 0, %s14
    %p11 = scmp.ge.s32.totalorder %s10, 5
    %s20 = sphi 0, %s22
    %s23 = sphi 0, %s20
    %s24 = sphi 0, %s23
    %s40 = sphi 0, %s24
    %s44 = sphi 0, %s44
    %s46 = sphi 0, %s44
    %s47 = sphi 0, %s46
    %s61 = sphi 0, %s47
    %s67 = sphi 0, %s69
    %s70 = sphi 0, %s67
    %s71 = sphi 0, %s70
    %s87 = sphi 0, %s71
    %s93 = sphi 0, %s95
    %s96 = sphi 0, %s93
    %s97 = sphi 0, %s96
    %s113 = sphi 0, %s97
  $region4: #{bottleneck_forward.6} parent=0 // loop_header_branch
    %13 = sbr.rel (%p11) target = $region8
  $region5: #{bottleneck_forward.6} parent=0 // loop_body
    %s15 = ssub.s32 %s10, 1
    %s16 = ssub.s32 %s10, 2
    %s17 = sadd.s32 %s10, 1
    %s18 = ssub.s32 %s10, %s17
    %p19 = scmp.eq.s32.totalorder %s18, 0
    %s21 = sadd.s32 %s20, 1
    %s22 = scalar_select %p19, %s20, %s21
    %p25 = pneg %p19
    %p26 = scmp.eq.s32.totalorder %s10, 2
    %p27 = por %p25, %p26
    %p28 = scmp.ne.s32.totalorder %s20, %s23
    %p29 = scmp.eq.s32.totalorder %s10, 0
    %p30 = por %p28, %p29
    %p31 = scmp.ne.s32.totalorder %s20, %s23
    %p32 = scmp.eq.s32.totalorder %s15, 2
    %p33 = por %p31, %p32
    %p34 = scmp.ne.s32.totalorder %s23, %s24
    %p35 = scmp.eq.s32.totalorder %s15, 0
    %p36 = por %p34, %p35
    %p37 = scmp.ne.s32.totalorder %s23, %s24
    %p38 = scmp.eq.s32.totalorder %s16, 2
    %p39 = por %p37, %p38
    %p41 = scmp.ne.s32.totalorder %s24, %s40
    %p42 = scmp.eq.s32.totalorder %s16, 0
    %p43 = por %p41, %p42
    %s45 = sadd.s32 %s44, 1
    %p48 = scmp.eq.s32.totalorder %s10, 2
    %p49 = scmp.ne.s32.totalorder %s44, %s46
    %p50 = scmp.eq.s32.totalorder %s10, 0
    %p51 = por %p49, %p50
    %p52 = scmp.ne.s32.totalorder %s44, %s46
    %p53 = scmp.eq.s32.totalorder %s15, 2
    %p54 = por %p52, %p53
    %p55 = scmp.ne.s32.totalorder %s46, %s47
    %p56 = scmp.eq.s32.totalorder %s15, 0
    %p57 = por %p55, %p56
    %p58 = scmp.ne.s32.totalorder %s46, %s47
    %p59 = scmp.eq.s32.totalorder %s16, 2
    %p60 = por %p58, %p59
    %p62 = scmp.ne.s32.totalorder %s47, %s61
    %p63 = scmp.eq.s32.totalorder %s16, 0
    %p64 = por %p62, %p63
    %s65 = ssub.s32 %s10, %s17
    %p66 = scmp.eq.s32.totalorder %s65, 0
    %s68 = sadd.s32 %s67, 1
    %s69 = scalar_select %p66, %s67, %s68
    %p72 = pneg %p66
    %p73 = scmp.eq.s32.totalorder %s10, 2
    %p74 = por %p72, %p73
    %p75 = scmp.ne.s32.totalorder %s67, %s70
    %p76 = scmp.eq.s32.totalorder %s10, 0
    %p77 = por %p75, %p76
    %p78 = scmp.ne.s32.totalorder %s67, %s70
    %p79 = scmp.eq.s32.totalorder %s15, 2
    %p80 = por %p78, %p79
    %p81 = scmp.ne.s32.totalorder %s70, %s71
    %p82 = scmp.eq.s32.totalorder %s15, 0
    %p83 = por %p81, %p82
    %p84 = scmp.ne.s32.totalorder %s70, %s71
    %p85 = scmp.eq.s32.totalorder %s16, 2
    %p86 = por %p84, %p85
    %p88 = scmp.ne.s32.totalorder %s71, %s87
    %p89 = scmp.eq.s32.totalorder %s16, 0
    %p90 = por %p88, %p89
    %s91 = ssub.s32 %s10, %s17
    %p92 = scmp.eq.s32.totalorder %s91, 0
    %s94 = sadd.s32 %s93, 1
    %s95 = scalar_select %p92, %s93, %s94
    %p98 = pneg %p92
    %p99 = scmp.eq.s32.totalorder %s10, 2
    %p100 = por %p98, %p99
    %p101 = scmp.ne.s32.totalorder %s93, %s96
    %p102 = scmp.eq.s32.totalorder %s10, 0
    %p103 = por %p101, %p102
    %p104 = scmp.ne.s32.totalorder %s93, %s96
    %p105 = scmp.eq.s32.totalorder %s15, 2
    %p106 = por %p104, %p105
    %p107 = scmp.ne.s32.totalorder %s96, %s97
    %p108 = scmp.eq.s32.totalorder %s15, 0
    %p109 = por %p107, %p108
    %p110 = scmp.ne.s32.totalorder %s96, %s97
    %p111 = scmp.eq.s32.totalorder %s16, 2
    %p112 = por %p110, %p111
    %p114 = scmp.ne.s32.totalorder %s97, %s113
    %p115 = scmp.eq.s32.totalorder %s16, 0
    %p116 = por %p114, %p115
    %p117 = scmp.le.s32.totalorder 1, %s10
    %p118 = scmp.lt.s32.totalorder %s10, 4
    %p119 = pnand %p117, %p118
    %p120 = pneg %p119
    // Predicated region
    $region9: #{bottleneck_forward.6} parent=5 // pred_check
      _
    $region10: #{bottleneck_forward.6} parent=5 // pred_check_branch
      %122 = sbr.rel (%p119) target = $region12
    $region11: #{bottleneck_forward.6} parent=5 // pred_region
      %s123 = ssub.s32 %s10, 1
      // Predicated region
      $region13: #{bottleneck_forward.6} parent=11 // pred_check
        %p124 = pneg %p57
      $region14: #{bottleneck_forward.6} parent=11 // pred_check_branch
        %126 = sbr.rel (%p124) target = $region16
      $region15: #{bottleneck_forward.6} parent=11 // pred_region
        _
      $region16: #{bottleneck_forward.6} parent=11 // pred_fallthru
        _
    $region12: #{bottleneck_forward.6} parent=5 // pred_fallthru
      _
    %p127 = scmp.lt.s32.totalorder %s10, 3
    // Predicated region
    $region17: #{bottleneck_forward.6} parent=5 // pred_check
      %p128 = pneg %p127
    $region18: #{bottleneck_forward.6} parent=5 // pred_check_branch
      %130 = sbr.rel (%p128) target = $region20
    $region19: #{bottleneck_forward.6} parent=5 // pred_region
      // Predicated region
      $region21: #{bottleneck_forward.6} parent=19 // pred_check
        %p131 = pneg %p30
      $region22: #{bottleneck_forward.6} parent=19 // pred_check_branch
        %133 = sbr.rel (%p131) target = $region24
      $region23: #{bottleneck_forward.6} parent=19 // pred_region
        %s134 = smul.u32 64, %s10
        %p135 = scmp.lt.s32.totalorder %s134, 191
        %s136 = scalar_select %p135, %s134, 191
        %s137 = smul.addr %s136, 4
        %s138 = scalar_lea.vmem %s0, %s137
        %s139 = smul.u32 64, %s10
      $region24: #{bottleneck_forward.6} parent=19 // pred_fallthru
        _
    $region20: #{bottleneck_forward.6} parent=5 // pred_fallthru
      _
    %p140 = scmp.le.s32.totalorder 1, %s10
    %p141 = scmp.lt.s32.totalorder %s10, 4
    %p142 = pnand %p140, %p141
    %p143 = pneg %p142
    // Predicated region
    $region25: #{bottleneck_forward.6} parent=5 // pred_check
      _
    $region26: #{bottleneck_forward.6} parent=5 // pred_check_branch
      %145 = sbr.rel (%p142) target = $region28
    $region27: #{bottleneck_forward.6} parent=5 // pred_region
      %s146 = ssub.s32 %s10, 1
      %s147 = smul.u32 64, %s15
      %p148 = scmp.lt.s32.totalorder %s147, 191
      %s149 = scalar_select %p148, %s147, 191
      %s150 = smul.addr %s149, 4
      %s151 = scalar_lea.vmem %s0, %s150
      %p152 = pneg %p36
      %p153 = pneg %p33
      %p154 = pneg %p57
      %p155 = pneg %p54
      %p156 = pneg %p83
      %p157 = pneg %p80
      %s158 = smul.u32 64, %s15
      %p159 = scmp.lt.s32.totalorder %s158, 191
      %s160 = scalar_select %p159, %s158, 191
      %s161 = smul.addr %s160, 8
      %s162 = scalar_lea.vmem %s2, %s161
      %p163 = pneg %p109
      %p164 = pneg %p106
      %p165 = scmp.lt.s32.totalorder %s15, 2
      %s166 = scalar_select %p165, %s15, 2
      %s167 = smul.addr %s166, 2
      %s168 = scalar_lea.vmem %s3, %s167
      %s169 = smul.u32 64, %s15
      %p170 = scmp.lt.s32.totalorder %s169, 191
      %s171 = scalar_select %p170, %s169, 191
      %s172 = smul.addr %s171, 4
      %s173 = scalar_lea.vmem %s0, %s172
      %s174 = smul.u32 64, %s15
      %s175 = smul.u32 64, %s15
      %p176 = scmp.lt.s32.totalorder %s175, 191
      %s177 = scalar_select %p176, %s175, 191
      %s178 = smul.addr %s177, 8
      %s179 = scalar_lea.vmem %s2, %s178
      %s180 = smul.u32 64, %s15
      %p181 = scmp.lt.s32.totalorder %s15, 2
      %s182 = scalar_select %p181, %s15, 2
      %s183 = smul.addr %s182, 2
      %s184 = scalar_lea.vmem %s3, %s183
      %v186 = vld [vmem:[%s173] sm:$0xf]
      %v187 = vld [vmem:[%s173 + $0x4] sm:$0xf]
      %v188 = vld [vmem:[%s173 + $0x8] sm:$0xf]
      %v189 = vld [vmem:[%s173 + $0xc] sm:$0xf]
      %v190 = vld [vmem:[%s173 + $0x10] sm:$0xf]
      %v191 = vld [vmem:[%s173 + $0x14] sm:$0xf]
      %v192 = vld [vmem:[%s173 + $0x18] sm:$0xf]
      %v193 = vld [vmem:[%s173 + $0x1c] sm:$0xf]
      %v194 = vld [vmem:[%s173 + $0x20] sm:$0xf]
      %v195 = vld [vmem:[%s173 + $0x24] sm:$0xf]
      %v196 = vld [vmem:[%s173 + $0x28] sm:$0xf]
      %v197 = vld [vmem:[%s173 + $0x2c] sm:$0xf]
      %v198 = vld [vmem:[%s173 + $0x30] sm:$0xf]
      %v199 = vld [vmem:[%s173 + $0x34] sm:$0xf]
      %v200 = vld [vmem:[%s173 + $0x38] sm:$0xf]
      %v201 = vld [vmem:[%s173 + $0x3c] sm:$0xf]
      %v202 = vld [vmem:[%s173 + $0x40] sm:$0xf]
      %v203 = vld [vmem:[%s173 + $0x44] sm:$0xf]
      %v204 = vld [vmem:[%s173 + $0x48] sm:$0xf]
      %v205 = vld [vmem:[%s173 + $0x4c] sm:$0xf]
      %v206 = vld [vmem:[%s173 + $0x50] sm:$0xf]
      %v207 = vld [vmem:[%s173 + $0x54] sm:$0xf]
      %v208 = vld [vmem:[%s173 + $0x58] sm:$0xf]
      %v209 = vld [vmem:[%s173 + $0x5c] sm:$0xf]
      %v210 = vld [vmem:[%s173 + $0x60] sm:$0xf]
      %v211 = vld [vmem:[%s173 + $0x64] sm:$0xf]
      %v212 = vld [vmem:[%s173 + $0x68] sm:$0xf]
      %v213 = vld [vmem:[%s173 + $0x6c] sm:$0xf]
      %v214 = vld [vmem:[%s173 + $0x70] sm:$0xf]
      %v215 = vld [vmem:[%s173 + $0x74] sm:$0xf]
      %v216 = vld [vmem:[%s173 + $0x78] sm:$0xf]
      %v217 = vld [vmem:[%s173 + $0x7c] sm:$0xf]
      %v218 = vld [vmem:[%s173 + $0x80] sm:$0xf]
      %v219 = vld [vmem:[%s173 + $0x84] sm:$0xf]
      %v220 = vld [vmem:[%s173 + $0x88] sm:$0xf]
      %v221 = vld [vmem:[%s173 + $0x8c] sm:$0xf]
      %v222 = vld [vmem:[%s173 + $0x90] sm:$0xf]
      %v223 = vld [vmem:[%s173 + $0x94] sm:$0xf]
      %v224 = vld [vmem:[%s173 + $0x98] sm:$0xf]
      %v225 = vld [vmem:[%s173 + $0x9c] sm:$0xf]
      %v226 = vld [vmem:[%s173 + $0xa0] sm:$0xf]
      %v227 = vld [vmem:[%s173 + $0xa4] sm:$0xf]
      %v228 = vld [vmem:[%s173 + $0xa8] sm:$0xf]
      %v229 = vld [vmem:[%s173 + $0xac] sm:$0xf]
      %v230 = vld [vmem:[%s173 + $0xb0] sm:$0xf]
      %v231 = vld [vmem:[%s173 + $0xb4] sm:$0xf]
      %v232 = vld [vmem:[%s173 + $0xb8] sm:$0xf]
      %v233 = vld [vmem:[%s173 + $0xbc] sm:$0xf]
      %v234 = vld [vmem:[%s173 + $0xc0] sm:$0xf]
      %v235 = vld [vmem:[%s173 + $0xc4] sm:$0xf]
      %v236 = vld [vmem:[%s173 + $0xc8] sm:$0xf]
      %v237 = vld [vmem:[%s173 + $0xcc] sm:$0xf]
      %v238 = vld [vmem:[%s173 + $0xd0] sm:$0xf]
      %v239 = vld [vmem:[%s173 + $0xd4] sm:$0xf]
      %v240 = vld [vmem:[%s173 + $0xd8] sm:$0xf]
      %v241 = vld [vmem:[%s173 + $0xdc] sm:$0xf]
      %v242 = vld [vmem:[%s173 + $0xe0] sm:$0xf]
      %v243 = vld [vmem:[%s173 + $0xe4] sm:$0xf]
      %v244 = vld [vmem:[%s173 + $0xe8] sm:$0xf]
      %v245 = vld [vmem:[%s173 + $0xec] sm:$0xf]
      %v246 = vld [vmem:[%s173 + $0xf0] sm:$0xf]
      %v247 = vld [vmem:[%s173 + $0xf4] sm:$0xf]
      %v248 = vld [vmem:[%s173 + $0xf8] sm:$0xf]
      %v249 = vld [vmem:[%s173 + $0xfc] sm:$0xf]
      %v250 = vld [vmem:[%s1] sm:$0xf]
      %v251 = vld [vmem:[%s1 + $0x4] sm:$0xf]
      %v252 = vld [vmem:[%s1 + $0x8] sm:$0xf]
      %v253 = vld [vmem:[%s1 + $0xc] sm:$0xf]
      %v254 = vld [vmem:[%s1 + $0x10] sm:$0xf]
      %v255 = vld [vmem:[%s1 + $0x14] sm:$0xf]
      %v256 = vld [vmem:[%s1 + $0x18] sm:$0xf]
      %v257 = vld [vmem:[%s1 + $0x1c] sm:$0xf]
      %v258 = vld [vmem:[%s1 + $0x20] sm:$0xf]
      %v259 = vld [vmem:[%s1 + $0x24] sm:$0xf]
      %v260 = vld [vmem:[%s1 + $0x28] sm:$0xf]
      %v261 = vld [vmem:[%s1 + $0x2c] sm:$0xf]
      %v262 = vld [vmem:[%s1 + $0x30] sm:$0xf]
      %v263 = vld [vmem:[%s1 + $0x34] sm:$0xf]
      %v264 = vld [vmem:[%s1 + $0x38] sm:$0xf]
      %v265 = vld [vmem:[%s1 + $0x3c] sm:$0xf]
      %v330 = vunpack.c.l.b16 %v186
      %v331 = vunpack.c.l.b16 %v187
      %v332 = vunpack.c.l.b16 %v188
      %v333 = vunpack.c.l.b16 %v189
      %v334 = vunpack.c.l.b16 %v190
      %v335 = vunpack.c.l.b16 %v191
      %v336 = vunpack.c.l.b16 %v192
      %v337 = vunpack.c.l.b16 %v193
      %v338 = vunpack.c.l.b16 %v194
      %v339 = vunpack.c.l.b16 %v195
      %v340 = vunpack.c.l.b16 %v196
      %v341 = vunpack.c.l.b16 %v197
      %v342 = vunpack.c.l.b16 %v198
      %v343 = vunpack.c.l.b16 %v199
      %v344 = vunpack.c.l.b16 %v200
      %v345 = vunpack.c.l.b16 %v201
      %v346 = vunpack.c.l.b16 %v202
      %v347 = vunpack.c.l.b16 %v203
      %v348 = vunpack.c.l.b16 %v204
      %v349 = vunpack.c.l.b16 %v205
      %v350 = vunpack.c.l.b16 %v206
      %v351 = vunpack.c.l.b16 %v207
      %v352 = vunpack.c.l.b16 %v208
      %v353 = vunpack.c.l.b16 %v209
      %v354 = vunpack.c.l.b16 %v210
      %v355 = vunpack.c.l.b16 %v211
      %v356 = vunpack.c.l.b16 %v212
      %v357 = vunpack.c.l.b16 %v213
      %v358 = vunpack.c.l.b16 %v214
      %v359 = vunpack.c.l.b16 %v215
      %v360 = vunpack.c.l.b16 %v216
      %v361 = vunpack.c.l.b16 %v217
      %v362 = vunpack.c.l.b16 %v218
      %v363 = vunpack.c.l.b16 %v219
      %v364 = vunpack.c.l.b16 %v220
      %v365 = vunpack.c.l.b16 %v221
      %v366 = vunpack.c.l.b16 %v222
      %v367 = vunpack.c.l.b16 %v223
      %v368 = vunpack.c.l.b16 %v224
      %v369 = vunpack.c.l.b16 %v225
      %v370 = vunpack.c.l.b16 %v226
      %v371 = vunpack.c.l.b16 %v227
      %v372 = vunpack.c.l.b16 %v228
      %v373 = vunpack.c.l.b16 %v229
      %v374 = vunpack.c.l.b16 %v230
      %v375 = vunpack.c.l.b16 %v231
      %v376 = vunpack.c.l.b16 %v232
      %v377 = vunpack.c.l.b16 %v233
      %v378 = vunpack.c.l.b16 %v234
      %v379 = vunpack.c.l.b16 %v235
      %v380 = vunpack.c.l.b16 %v236
      %v381 = vunpack.c.l.b16 %v237
      %v382 = vunpack.c.l.b16 %v238
      %v383 = vunpack.c.l.b16 %v239
      %v384 = vunpack.c.l.b16 %v240
      %v385 = vunpack.c.l.b16 %v241
      %v386 = vunpack.c.l.b16 %v242
      %v387 = vunpack.c.l.b16 %v243
      %v388 = vunpack.c.l.b16 %v244
      %v389 = vunpack.c.l.b16 %v245
      %v390 = vunpack.c.l.b16 %v246
      %v391 = vunpack.c.l.b16 %v247
      %v392 = vunpack.c.l.b16 %v248
      %v393 = vunpack.c.l.b16 %v249
      %v394 = vpack.c.b16 %v331, %v330
      %v395 = vpack.c.b16 %v333, %v332
      %v396 = vpack.c.b16 %v335, %v334
      %v397 = vpack.c.b16 %v337, %v336
      %v398 = vpack.c.b16 %v339, %v338
      %v399 = vpack.c.b16 %v341, %v340
      %v400 = vpack.c.b16 %v343, %v342
      %v401 = vpack.c.b16 %v345, %v344
      %v402 = vpack.c.b16 %v347, %v346
      %v403 = vpack.c.b16 %v349, %v348
      %v404 = vpack.c.b16 %v351, %v350
      %v405 = vpack.c.b16 %v353, %v352
      %v406 = vpack.c.b16 %v355, %v354
      %v407 = vpack.c.b16 %v357, %v356
      %v408 = vpack.c.b16 %v359, %v358
      %v409 = vpack.c.b16 %v361, %v360
      %v410 = vpack.c.b16 %v363, %v362
      %v411 = vpack.c.b16 %v365, %v364
      %v412 = vpack.c.b16 %v367, %v366
      %v413 = vpack.c.b16 %v369, %v368
      %v414 = vpack.c.b16 %v371, %v370
      %v415 = vpack.c.b16 %v373, %v372
      %v416 = vpack.c.b16 %v375, %v374
      %v417 = vpack.c.b16 %v377, %v376
      %v418 = vpack.c.b16 %v379, %v378
      %v419 = vpack.c.b16 %v381, %v380
      %v420 = vpack.c.b16 %v383, %v382
      %v421 = vpack.c.b16 %v385, %v384
      %v422 = vpack.c.b16 %v387, %v386
      %v423 = vpack.c.b16 %v389, %v388
      %v424 = vpack.c.b16 %v391, %v390
      %v425 = vpack.c.b16 %v393, %v392
      %v474 = vunpack.c.l.b16 %v250
      %v475 = vunpack.c.l.b16 %v251
      %v476 = vunpack.c.l.b16 %v252
      %v477 = vunpack.c.l.b16 %v253
      %v478 = vunpack.c.l.b16 %v254
      %v479 = vunpack.c.l.b16 %v255
      %v480 = vunpack.c.l.b16 %v256
      %v481 = vunpack.c.l.b16 %v257
      %v482 = vunpack.c.l.b16 %v258
      %v483 = vunpack.c.l.b16 %v259
      %v484 = vunpack.c.l.b16 %v260
      %v485 = vunpack.c.l.b16 %v261
      %v486 = vunpack.c.l.b16 %v262
      %v487 = vunpack.c.l.b16 %v263
      %v488 = vunpack.c.l.b16 %v264
      %v489 = vunpack.c.l.b16 %v265
      %v490 = vpack.c.b16 %v475, %v474
      %v491 = vpack.c.b16 %v477, %v476
      %v492 = vpack.c.b16 %v479, %v478
      %v493 = vpack.c.b16 %v481, %v480
      %v494 = vpack.c.b16 %v483, %v482
      %v495 = vpack.c.b16 %v485, %v484
      %v496 = vpack.c.b16 %v487, %v486
      %v497 = vpack.c.b16 %v489, %v488
      %506 = vmatprep.subr.bf16.mxu0 0
      %507 = vmatpush1.bf16.msra.mxu0 %v490
      %508 = vmatprep.subr.bf16.mxu0 0
      %509 = vmatpush1.bf16.msra.mxu0 %v491
      %510 = vmatprep.subr.bf16.mxu0 0
      %511 = vmatpush1.bf16.msra.mxu0 %v492
      %512 = vmatprep.subr.bf16.mxu0 0
      %513 = vmatpush1.bf16.msra.mxu0 %v493
      %514 = vmatprep.subr.bf16.mxu0 0
      %515 = vmatpush1.bf16.msra.mxu0 %v494
      %516 = vmatprep.subr.bf16.mxu0 0
      %517 = vmatpush1.bf16.msra.mxu0 %v495
      %518 = vmatprep.subr.bf16.mxu0 0
      %519 = vmatpush1.bf16.msra.mxu0 %v496
      %520 = vmatprep.subr.bf16.mxu0 0
      %521 = vmatpush1.bf16.msra.mxu0 %v497
      %522 = vmatprep.subr.bf16.mxu0 0
      %523 = vmatpush1.bf16.msra.mxu0 0
      %524 = vmatprep.subr.bf16.mxu0 0
      %525 = vmatpush1.bf16.msra.mxu0 0
      %526 = vmatprep.subr.bf16.mxu0 0
      %527 = vmatpush1.bf16.msra.mxu0 0
      %528 = vmatprep.subr.bf16.mxu0 0
      %529 = vmatpush1.bf16.msra.mxu0 0
      %530 = vmatprep.subr.bf16.mxu0 0
      %531 = vmatpush1.bf16.msra.mxu0 0
      %532 = vmatprep.subr.bf16.mxu0 0
      %533 = vmatpush1.bf16.msra.mxu0 0
      %534 = vmatprep.subr.bf16.mxu0 0
      %535 = vmatpush1.bf16.msra.mxu0 0
      %536 = vmatprep.subr.bf16.mxu0 0
      %537 = vmatpush1.bf16.msra.mxu0 0
      %538 = vmatprep.mubr.bf16.mxu0 0
      %539 = vmatmul.mubr.bf16.gmra.mrb[0].mxu0 %v394
      %v540 = vpop.f32.mrb[0].mxu0
      %v541 = vadd.f32 0.0, %v540
      %v542 = vpop.f32.mrb[0].mxu0
      %v543 = vpop.f32.mrb[0].mxu0
      %v544 = vadd.f32 0.0, %v543
      %v545 = vpop.f32.mrb[0].mxu0
      %546 = vmatprep.mubr.bf16.mxu0 0
      %547 = vmatmul.mubr.bf16.gmra.mrb[0].mxu0 %v395
      %v548 = vpop.f32.mrb[0].mxu0
      %v549 = vadd.f32 0.0, %v548
      %v550 = vpop.f32.mrb[0].mxu0
      %v551 = vpop.f32.mrb[0].mxu0
      %v552 = vadd.f32 0.0, %v551
      %v553 = vpop.f32.mrb[0].mxu0
      %554 = vmatprep.mubr.bf16.mxu0 0
      %555 = vmatmul.mubr.bf16.gmra.mrb[0].mxu0 %v396
      %v556 = vpop.f32.mrb[0].mxu0
      %v557 = vadd.f32 0.0, %v556
      %v558 = vpop.f32.mrb[0].mxu0
      %v559 = vpop.f32.mrb[0].mxu0
      %v560 = vadd.f32 0.0, %v559
      %v561 = vpop.f32.mrb[0].mxu0
      %562 = vmatprep.mubr.bf16.mxu0 0
      %563 = vmatmul.mubr.bf16.gmra.mrb[0].mxu0 %v397
      %v564 = vpop.f32.mrb[0].mxu0
      %v565 = vadd.f32 0.0, %v564
      %v566 = vpop.f32.mrb[0].mxu0
      %v567 = vpop.f32.mrb[0].mxu0
      %v568 = vadd.f32 0.0, %v567
      %v569 = vpop.f32.mrb[0].mxu0
      %570 = vmatprep.mubr.bf16.mxu0 0
      %571 = vmatmul.mubr.bf16.gmra.mrb[0].mxu0 %v398
      %v572 = vpop.f32.mrb[0].mxu0
      %v573 = vadd.f32 0.0, %v572
      %v574 = vpop.f32.mrb[0].mxu0
      %v575 = vpop.f32.mrb[0].mxu0
      %v576 = vadd.f32 0.0, %v575
      %v577 = vpop.f32.mrb[0].mxu0
      %578 = vmatprep.mubr.bf16.mxu0 0
      %579 = vmatmul.mubr.bf16.gmra.mrb[0].mxu0 %v399
      %v580 = vpop.f32.mrb[0].mxu0
      %v581 = vadd.f32 0.0, %v580
      %v582 = vpop.f32.mrb[0].mxu0
      %v583 = vpop.f32.mrb[0].mxu0
      %v584 = vadd.f32 0.0, %v583
      %v585 = vpop.f32.mrb[0].mxu0
      %586 = vmatprep.mubr.bf16.mxu0 0
      %587 = vmatmul.mubr.bf16.gmra.mrb[0].mxu0 %v400
      %v588 = vpop.f32.mrb[0].mxu0
      %v589 = vadd.f32 0.0, %v588
      %v590 = vpop.f32.mrb[0].mxu0
      %v591 = vpop.f32.mrb[0].mxu0
      %v592 = vadd.f32 0.0, %v591
      %v593 = vpop.f32.mrb[0].mxu0
      %594 = vmatprep.mubr.bf16.mxu0 0
      %595 = vmatmul.mubr.bf16.gmra.mrb[0].mxu0 %v401
      %v596 = vpop.f32.mrb[0].mxu0
      %v597 = vadd.f32 0.0, %v596
      %v598 = vpop.f32.mrb[0].mxu0
      %v599 = vpop.f32.mrb[0].mxu0
      %v600 = vadd.f32 0.0, %v599
      %v601 = vpop.f32.mrb[0].mxu0
      %602 = vmatprep.mubr.bf16.mxu0 0
      %603 = vmatmul.mubr.bf16.gmra.mrb[0].mxu0 %v402
      %v604 = vpop.f32.mrb[0].mxu0
      %v605 = vadd.f32 0.0, %v604
      %v606 = vpop.f32.mrb[0].mxu0
      %v607 = vpop.f32.mrb[0].mxu0
      %v608 = vadd.f32 0.0, %v607
      %v609 = vpop.f32.mrb[0].mxu0
      %610 = vmatprep.mubr.bf16.mxu0 0
      %611 = vmatmul.mubr.bf16.gmra.mrb[0].mxu0 %v403
      %v612 = vpop.f32.mrb[0].mxu0
      %v613 = vadd.f32 0.0, %v612
      %v614 = vpop.f32.mrb[0].mxu0
      %v615 = vpop.f32.mrb[0].mxu0
      %v616 = vadd.f32 0.0, %v615
      %v617 = vpop.f32.mrb[0].mxu0
      %618 = vmatprep.mubr.bf16.mxu0 0
      %619 = vmatmul.mubr.bf16.gmra.mrb[0].mxu0 %v404
      %v620 = vpop.f32.mrb[0].mxu0
      %v621 = vadd.f32 0.0, %v620
      %v622 = vpop.f32.mrb[0].mxu0
      %v623 = vpop.f32.mrb[0].mxu0
      %v624 = vadd.f32 0.0, %v623
      %v625 = vpop.f32.mrb[0].mxu0
      %626 = vmatprep.mubr.bf16.mxu0 0
      %627 = vmatmul.mubr.bf16.gmra.mrb[0].mxu0 %v405
      %v628 = vpop.f32.mrb[0].mxu0
      %v629 = vadd.f32 0.0, %v628
      %v630 = vpop.f32.mrb[0].mxu0
      %v631 = vpop.f32.mrb[0].mxu0
      %v632 = vadd.f32 0.0, %v631
      %v633 = vpop.f32.mrb[0].mxu0
      %634 = vmatprep.mubr.bf16.mxu0 0
      %635 = vmatmul.mubr.bf16.gmra.mrb[0].mxu0 %v406
      %v636 = vpop.f32.mrb[0].mxu0
      %v637 = vadd.f32 0.0, %v636
      %v638 = vpop.f32.mrb[0].mxu0
      %v639 = vpop.f32.mrb[0].mxu0
      %v640 = vadd.f32 0.0, %v639
      %v641 = vpop.f32.mrb[0].mxu0
      %642 = vmatprep.mubr.bf16.mxu0 0
      %643 = vmatmul.mubr.bf16.gmra.mrb[0].mxu0 %v407
      %v644 = vpop.f32.mrb[0].mxu0
      %v645 = vadd.f32 0.0, %v644
      %v646 = vpop.f32.mrb[0].mxu0
      %v647 = vpop.f32.mrb[0].mxu0
      %v648 = vadd.f32 0.0, %v647
      %v649 = vpop.f32.mrb[0].mxu0
      %650 = vmatprep.mubr.bf16.mxu0 0
      %651 = vmatmul.mubr.bf16.gmra.mrb[0].mxu0 %v408
      %v652 = vpop.f32.mrb[0].mxu0
      %v653 = vadd.f32 0.0, %v652
      %v654 = vpop.f32.mrb[0].mxu0
      %v655 = vpop.f32.mrb[0].mxu0
      %v656 = vadd.f32 0.0, %v655
      %v657 = vpop.f32.mrb[0].mxu0
      %658 = vmatprep.mubr.bf16.mxu0 0
      %659 = vmatmul.mubr.bf16.gmra.mrb[0].mxu0 %v409
      %v660 = vpop.f32.mrb[0].mxu0
      %v661 = vadd.f32 0.0, %v660
      %v662 = vpop.f32.mrb[0].mxu0
      %v663 = vpop.f32.mrb[0].mxu0
      %v664 = vadd.f32 0.0, %v663
      %v665 = vpop.f32.mrb[0].mxu0
      %666 = vmatprep.mubr.bf16.mxu0 0
      %667 = vmatmul.mubr.bf16.gmra.mrb[0].mxu0 %v410
      %v668 = vpop.f32.mrb[0].mxu0
      %v669 = vadd.f32 0.0, %v668
      %v670 = vpop.f32.mrb[0].mxu0
      %v671 = vpop.f32.mrb[0].mxu0
      %v672 = vadd.f32 0.0, %v671
      %v673 = vpop.f32.mrb[0].mxu0
      %674 = vmatprep.mubr.bf16.mxu0 0
      %675 = vmatmul.mubr.bf16.gmra.mrb[0].mxu0 %v411
      %v676 = vpop.f32.mrb[0].mxu0
      %v677 = vadd.f32 0.0, %v676
      %v678 = vpop.f32.mrb[0].mxu0
      %v679 = vpop.f32.mrb[0].mxu0
      %v680 = vadd.f32 0.0, %v679
      %v681 = vpop.f32.mrb[0].mxu0
      %682 = vmatprep.mubr.bf16.mxu0 0
      %683 = vmatmul.mubr.bf16.gmra.mrb[0].mxu0 %v412
      %v684 = vpop.f32.mrb[0].mxu0
      %v685 = vadd.f32 0.0, %v684
      %v686 = vpop.f32.mrb[0].mxu0
      %v687 = vpop.f32.mrb[0].mxu0
      %v688 = vadd.f32 0.0, %v687
      %v689 = vpop.f32.mrb[0].mxu0
      %690 = vmatprep.mubr.bf16.mxu0 0
      %691 = vmatmul.mubr.bf16.gmra.mrb[0].mxu0 %v413
      %v692 = vpop.f32.mrb[0].mxu0
      %v693 = vadd.f32 0.0, %v692
      %v694 = vpop.f32.mrb[0].mxu0
      %v695 = vpop.f32.mrb[0].mxu0
      %v696 = vadd.f32 0.0, %v695
      %v697 = vpop.f32.mrb[0].mxu0
      %698 = vmatprep.mubr.bf16.mxu0 0
      %699 = vmatmul.mubr.bf16.gmra.mrb[0].mxu0 %v414
      %v700 = vpop.f32.mrb[0].mxu0
      %v701 = vadd.f32 0.0, %v700
      %v702 = vpop.f32.mrb[0].mxu0
      %v703 = vpop.f32.mrb[0].mxu0
      %v704 = vadd.f32 0.0, %v703
      %v705 = vpop.f32.mrb[0].mxu0
      %706 = vmatprep.mubr.bf16.mxu0 0
      %707 = vmatmul.mubr.bf16.gmra.mrb[0].mxu0 %v415
      %v708 = vpop.f32.mrb[0].mxu0
      %v709 = vadd.f32 0.0, %v708
      %v710 = vpop.f32.mrb[0].mxu0
      %v711 = vpop.f32.mrb[0].mxu0
      %v712 = vadd.f32 0.0, %v711
      %v713 = vpop.f32.mrb[0].mxu0
      %714 = vmatprep.mubr.bf16.mxu0 0
      %715 = vmatmul.mubr.bf16.gmra.mrb[0].mxu0 %v416
      %v716 = vpop.f32.mrb[0].mxu0
      %v717 = vadd.f32 0.0, %v716
      %v718 = vpop.f32.mrb[0].mxu0
      %v719 = vpop.f32.mrb[0].mxu0
      %v720 = vadd.f32 0.0, %v719
      %v721 = vpop.f32.mrb[0].mxu0
      %722 = vmatprep.mubr.bf16.mxu0 0
      %723 = vmatmul.mubr.bf16.gmra.mrb[0].mxu0 %v417
      %v724 = vpop.f32.mrb[0].mxu0
      %v725 = vadd.f32 0.0, %v724
      %v726 = vpop.f32.mrb[0].mxu0
      %v727 = vpop.f32.mrb[0].mxu0
      %v728 = vadd.f32 0.0, %v727
      %v729 = vpop.f32.mrb[0].mxu0
      %730 = vmatprep.mubr.bf16.mxu0 0
      %731 = vmatmul.mubr.bf16.gmra.mrb[0].mxu0 %v418
      %v732 = vpop.f32.mrb[0].mxu0
      %v733 = vadd.f32 0.0, %v732
      %v734 = vpop.f32.mrb[0].mxu0
      %v735 = vpop.f32.mrb[0].mxu0
      %v736 = vadd.f32 0.0, %v735
      %v737 = vpop.f32.mrb[0].mxu0
      %738 = vmatprep.mubr.bf16.mxu0 0
      %739 = vmatmul.mubr.bf16.gmra.mrb[0].mxu0 %v419
      %v740 = vpop.f32.mrb[0].mxu0
      %v741 = vadd.f32 0.0, %v740
      %v742 = vpop.f32.mrb[0].mxu0
      %v743 = vpop.f32.mrb[0].mxu0
      %v744 = vadd.f32 0.0, %v743
      %v745 = vpop.f32.mrb[0].mxu0
      %746 = vmatprep.mubr.bf16.mxu0 0
      %747 = vmatmul.mubr.bf16.gmra.mrb[0].mxu0 %v420
      %v748 = vpop.f32.mrb[0].mxu0
      %v749 = vadd.f32 0.0, %v748
      %v750 = vpop.f32.mrb[0].mxu0
      %v751 = vpop.f32.mrb[0].mxu0
      %v752 = vadd.f32 0.0, %v751
      %v753 = vpop.f32.mrb[0].mxu0
      %754 = vmatprep.mubr.bf16.mxu0 0
      %755 = vmatmul.mubr.bf16.gmra.mrb[0].mxu0 %v421
      %v756 = vpop.f32.mrb[0].mxu0
      %v757 = vadd.f32 0.0, %v756
      %v758 = vpop.f32.mrb[0].mxu0
      %v759 = vpop.f32.mrb[0].mxu0
      %v760 = vadd.f32 0.0, %v759
      %v761 = vpop.f32.mrb[0].mxu0
      %762 = vmatprep.mubr.bf16.mxu0 0
      %763 = vmatmul.mubr.bf16.gmra.mrb[0].mxu0 %v422
      %v764 = vpop.f32.mrb[0].mxu0
      %v765 = vadd.f32 0.0, %v764
      %v766 = vpop.f32.mrb[0].mxu0
      %v767 = vpop.f32.mrb[0].mxu0
      %v768 = vadd.f32 0.0, %v767
      %v769 = vpop.f32.mrb[0].mxu0
      %770 = vmatprep.mubr.bf16.mxu0 0
      %771 = vmatmul.mubr.bf16.gmra.mrb[0].mxu0 %v423
      %v772 = vpop.f32.mrb[0].mxu0
      %v773 = vadd.f32 0.0, %v772
      %v774 = vpop.f32.mrb[0].mxu0
      %v775 = vpop.f32.mrb[0].mxu0
      %v776 = vadd.f32 0.0, %v775
      %v777 = vpop.f32.mrb[0].mxu0
      %778 = vmatprep.mubr.bf16.mxu0 0
      %779 = vmatmul.mubr.bf16.gmra.mrb[0].mxu0 %v424
      %v780 = vpop.f32.mrb[0].mxu0
      %v781 = vadd.f32 0.0, %v780
      %v782 = vpop.f32.mrb[0].mxu0
      %v783 = vpop.f32.mrb[0].mxu0
      %v784 = vadd.f32 0.0, %v783
      %v785 = vpop.f32.mrb[0].mxu0
      %786 = vmatprep.mubr.bf16.mxu0 0
      %787 = vmatmul.mubr.bf16.gmra.mrb[0].mxu0 %v425
      %v788 = vpop.f32.mrb[0].mxu0
      %v789 = vadd.f32 0.0, %v788
      %v790 = vpop.f32.mrb[0].mxu0
      %v791 = vpop.f32.mrb[0].mxu0
      %v792 = vadd.f32 0.0, %v791
      %v793 = vpop.f32.mrb[0].mxu0
      %794 = vdwg.mxu0
      %795 = vst [vmem:[%s179] sm:$0xff] %v541
      %796 = vst [vmem:[%s179 + $0x8] sm:$0xff] %v544
      %797 = vst [vmem:[%s179 + $0x10] sm:$0xff] %v549
      %798 = vst [vmem:[%s179 + $0x18] sm:$0xff] %v552
      %799 = vst [vmem:[%s179 + $0x20] sm:$0xff] %v557
      %800 = vst [vmem:[%s179 + $0x28] sm:$0xff] %v560
      %801 = vst [vmem:[%s179 + $0x30] sm:$0xff] %v565
      %802 = vst [vmem:[%s179 + $0x38] sm:$0xff] %v568
      %803 = vst [vmem:[%s179 + $0x40] sm:$0xff] %v573
      %804 = vst [vmem:[%s179 + $0x48] sm:$0xff] %v576
      %805 = vst [vmem:[%s179 + $0x50] sm:$0xff] %v581
      %806 = vst [vmem:[%s179 + $0x58] sm:$0xff] %v584
      %807 = vst [vmem:[%s179 + $0x60] sm:$0xff] %v589
      %808 = vst [vmem:[%s179 + $0x68] sm:$0xff] %v592
      %809 = vst [vmem:[%s179 + $0x70] sm:$0xff] %v597
      %810 = vst [vmem:[%s179 + $0x78] sm:$0xff] %v600
      %811 = vst [vmem:[%s179 + $0x80] sm:$0xff] %v605
      %812 = vst [vmem:[%s179 + $0x88] sm:$0xff] %v608
      %813 = vst [vmem:[%s179 + $0x90] sm:$0xff] %v613
      %814 = vst [vmem:[%s179 + $0x98] sm:$0xff] %v616
      %815 = vst [vmem:[%s179 + $0xa0] sm:$0xff] %v621
      %816 = vst [vmem:[%s179 + $0xa8] sm:$0xff] %v624
      %817 = vst [vmem:[%s179 + $0xb0] sm:$0xff] %v629
      %818 = vst [vmem:[%s179 + $0xb8] sm:$0xff] %v632
      %819 = vst [vmem:[%s179 + $0xc0] sm:$0xff] %v637
      %820 = vst [vmem:[%s179 + $0xc8] sm:$0xff] %v640
      %821 = vst [vmem:[%s179 + $0xd0] sm:$0xff] %v645
      %822 = vst [vmem:[%s179 + $0xd8] sm:$0xff] %v648
      %823 = vst [vmem:[%s179 + $0xe0] sm:$0xff] %v653
      %824 = vst [vmem:[%s179 + $0xe8] sm:$0xff] %v656
      %825 = vst [vmem:[%s179 + $0xf0] sm:$0xff] %v661
      %826 = vst [vmem:[%s179 + $0xf8] sm:$0xff] %v664
      %827 = vst [vmem:[%s179 + $0x100] sm:$0xff] %v669
      %828 = vst [vmem:[%s179 + $0x108] sm:$0xff] %v672
      %829 = vst [vmem:[%s179 + $0x110] sm:$0xff] %v677
      %830 = vst [vmem:[%s179 + $0x118] sm:$0xff] %v680
      %831 = vst [vmem:[%s179 + $0x120] sm:$0xff] %v685
      %832 = vst [vmem:[%s179 + $0x128] sm:$0xff] %v688
      %833 = vst [vmem:[%s179 + $0x130] sm:$0xff] %v693
      %834 = vst [vmem:[%s179 + $0x138] sm:$0xff] %v696
      %835 = vst [vmem:[%s179 + $0x140] sm:$0xff] %v701
      %836 = vst [vmem:[%s179 + $0x148] sm:$0xff] %v704
      %837 = vst [vmem:[%s179 + $0x150] sm:$0xff] %v709
      %838 = vst [vmem:[%s179 + $0x158] sm:$0xff] %v712
      %839 = vst [vmem:[%s179 + $0x160] sm:$0xff] %v717
      %840 = vst [vmem:[%s179 + $0x168] sm:$0xff] %v720
      %841 = vst [vmem:[%s179 + $0x170] sm:$0xff] %v725
      %842 = vst [vmem:[%s179 + $0x178] sm:$0xff] %v728
      %843 = vst [vmem:[%s179 + $0x180] sm:$0xff] %v733
      %844 = vst [vmem:[%s179 + $0x188] sm:$0xff] %v736
      %845 = vst [vmem:[%s179 + $0x190] sm:$0xff] %v741
      %846 = vst [vmem:[%s179 + $0x198] sm:$0xff] %v744
      %847 = vst [vmem:[%s179 + $0x1a0] sm:$0xff] %v749
      %848 = vst [vmem:[%s179 + $0x1a8] sm:$0xff] %v752
      %849 = vst [vmem:[%s179 + $0x1b0] sm:$0xff] %v757
      %850 = vst [vmem:[%s179 + $0x1b8] sm:$0xff] %v760
      %851 = vst [vmem:[%s179 + $0x1c0] sm:$0xff] %v765
      %852 = vst [vmem:[%s179 + $0x1c8] sm:$0xff] %v768
      %853 = vst [vmem:[%s179 + $0x1d0] sm:$0xff] %v773
      %854 = vst [vmem:[%s179 + $0x1d8] sm:$0xff] %v776
      %855 = vst [vmem:[%s179 + $0x1e0] sm:$0xff] %v781
      %856 = vst [vmem:[%s179 + $0x1e8] sm:$0xff] %v784
      %857 = vst [vmem:[%s179 + $0x1f0] sm:$0xff] %v789
      %858 = vst [vmem:[%s179 + $0x1f8] sm:$0xff] %v792
      %v859 = vadd.f32 %v541, %v544
      %v860 = vadd.f32 %v859, %v549
      %v861 = vadd.f32 %v860, %v552
      %v862 = vadd.f32 %v861, %v557
      %v863 = vadd.f32 %v862, %v560
      %v864 = vadd.f32 %v863, %v565
      %v865 = vadd.f32 %v864, %v568
      %v866 = vadd.f32 %v865, %v573
      %v867 = vadd.f32 %v866, %v576
      %v868 = vadd.f32 %v867, %v581
      %v869 = vadd.f32 %v868, %v584
      %v870 = vadd.f32 %v869, %v589
      %v871 = vadd.f32 %v870, %v592
      %v872 = vadd.f32 %v871, %v597
      %v873 = vadd.f32 %v872, %v600
      %v874 = vadd.f32 %v873, %v605
      %v875 = vadd.f32 %v874, %v608
      %v876 = vadd.f32 %v875, %v613
      %v877 = vadd.f32 %v876, %v616
      %v878 = vadd.f32 %v877, %v621
      %v879 = vadd.f32 %v878, %v624
      %v880 = vadd.f32 %v879, %v629
      %v881 = vadd.f32 %v880, %v632
      %v882 = vadd.f32 %v881, %v637
      %v883 = vadd.f32 %v882, %v640
      %v884 = vadd.f32 %v883, %v645
      %v885 = vadd.f32 %v884, %v648
      %v886 = vadd.f32 %v885, %v653
      %v887 = vadd.f32 %v886, %v656
      %v888 = vadd.f32 %v887, %v661
      %v889 = vadd.f32 %v888, %v664
      %v890 = vadd.f32 %v889, %v669
      %v891 = vadd.f32 %v890, %v672
      %v892 = vadd.f32 %v891, %v677
      %v893 = vadd.f32 %v892, %v680
      %v894 = vadd.f32 %v893, %v685
      %v895 = vadd.f32 %v894, %v688
      %v896 = vadd.f32 %v895, %v693
      %v897 = vadd.f32 %v896, %v696
      %v898 = vadd.f32 %v897, %v701
      %v899 = vadd.f32 %v898, %v704
      %v900 = vadd.f32 %v899, %v709
      %v901 = vadd.f32 %v900, %v712
      %v902 = vadd.f32 %v901, %v717
      %v903 = vadd.f32 %v902, %v720
      %v904 = vadd.f32 %v903, %v725
      %v905 = vadd.f32 %v904, %v728
      %v906 = vadd.f32 %v905, %v733
      %v907 = vadd.f32 %v906, %v736
      %v908 = vadd.f32 %v907, %v741
      %v909 = vadd.f32 %v908, %v744
      %v910 = vadd.f32 %v909, %v749
      %v911 = vadd.f32 %v910, %v752
      %v912 = vadd.f32 %v911, %v757
      %v913 = vadd.f32 %v912, %v760
      %v914 = vadd.f32 %v913, %v765
      %v915 = vadd.f32 %v914, %v768
      %v916 = vadd.f32 %v915, %v773
      %v917 = vadd.f32 %v916, %v776
      %v918 = vadd.f32 %v917, %v781
      %v919 = vadd.f32 %v918, %v784
      %v920 = vadd.f32 %v919, %v789
      %v921 = vadd.f32 %v920, %v792
      %v922 = vrot.slane %v921, 4
      %v923 = vadd.f32 %v921, %v922
      %v924 = vrot.slane %v923, 2
      %v925 = vadd.f32 %v923, %v924
      %v926 = vrot.slane %v925, 1
      %v927 = vadd.f32 %v925, %v926
      %928 = vst [vmem:[%s184] sm:$0x1] %v927
      %v929 = vmul.f32 %v541, %v541
      %v930 = vmul.f32 %v544, %v544
      %v931 = vmul.f32 %v549, %v549
      %v932 = vmul.f32 %v552, %v552
      %v933 = vmul.f32 %v557, %v557
      %v934 = vmul.f32 %v560, %v560
      %v935 = vmul.f32 %v565, %v565
      %v936 = vmul.f32 %v568, %v568
      %v937 = vmul.f32 %v573, %v573
      %v938 = vmul.f32 %v576, %v576
      %v939 = vmul.f32 %v581, %v581
      %v940 = vmul.f32 %v584, %v584
      %v941 = vmul.f32 %v589, %v589
      %v942 = vmul.f32 %v592, %v592
      %v943 = vmul.f32 %v597, %v597
      %v944 = vmul.f32 %v600, %v600
      %v945 = vmul.f32 %v605, %v605
      %v946 = vmul.f32 %v608, %v608
      %v947 = vmul.f32 %v613, %v613
      %v948 = vmul.f32 %v616, %v616
      %v949 = vmul.f32 %v621, %v621
      %v950 = vmul.f32 %v624, %v624
      %v951 = vmul.f32 %v629, %v629
      %v952 = vmul.f32 %v632, %v632
      %v953 = vmul.f32 %v637, %v637
      %v954 = vmul.f32 %v640, %v640
      %v955 = vmul.f32 %v645, %v645
      %v956 = vmul.f32 %v648, %v648
      %v957 = vmul.f32 %v653, %v653
      %v958 = vmul.f32 %v656, %v656
      %v959 = vmul.f32 %v661, %v661
      %v960 = vmul.f32 %v664, %v664
      %v961 = vmul.f32 %v669, %v669
      %v962 = vmul.f32 %v672, %v672
      %v963 = vmul.f32 %v677, %v677
      %v964 = vmul.f32 %v680, %v680
      %v965 = vmul.f32 %v685, %v685
      %v966 = vmul.f32 %v688, %v688
      %v967 = vmul.f32 %v693, %v693
      %v968 = vmul.f32 %v696, %v696
      %v969 = vmul.f32 %v701, %v701
      %v970 = vmul.f32 %v704, %v704
      %v971 = vmul.f32 %v709, %v709
      %v972 = vmul.f32 %v712, %v712
      %v973 = vmul.f32 %v717, %v717
      %v974 = vmul.f32 %v720, %v720
      %v975 = vmul.f32 %v725, %v725
      %v976 = vmul.f32 %v728, %v728
      %v977 = vmul.f32 %v733, %v733
      %v978 = vmul.f32 %v736, %v736
      %v979 = vmul.f32 %v741, %v741
      %v980 = vmul.f32 %v744, %v744
      %v981 = vmul.f32 %v749, %v749
      %v982 = vmul.f32 %v752, %v752
      %v983 = vmul.f32 %v757, %v757
      %v984 = vmul.f32 %v760, %v760
      %v985 = vmul.f32 %v765, %v765
      %v986 = vmul.f32 %v768, %v768
      %v987 = vmul.f32 %v773, %v773
      %v988 = vmul.f32 %v776, %v776
      %v989 = vmul.f32 %v781, %v781
      %v990 = vmul.f32 %v784, %v784
      %v991 = vmul.f32 %v789, %v789
      %v992 = vmul.f32 %v792, %v792
      %v993 = vadd.f32 %v929, %v930
      %v994 = vadd.f32 %v993, %v931
      %v995 = vadd.f32 %v994, %v932
      %v996 = vadd.f32 %v995, %v933
      %v997 = vadd.f32 %v996, %v934
      %v998 = vadd.f32 %v997, %v935
      %v999 = vadd.f32 %v998, %v936
      %v1000 = vadd.f32 %v999, %v937
      %v1001 = vadd.f32 %v1000, %v938
      %v1002 = vadd.f32 %v1001, %v939
      %v1003 = vadd.f32 %v1002, %v940
      %v1004 = vadd.f32 %v1003, %v941
      %v1005 = vadd.f32 %v1004, %v942
      %v1006 = vadd.f32 %v1005, %v943
      %v1007 = vadd.f32 %v1006, %v944
      %v1008 = vadd.f32 %v1007, %v945
      %v1009 = vadd.f32 %v1008, %v946
      %v1010 = vadd.f32 %v1009, %v947
      %v1011 = vadd.f32 %v1010, %v948
      %v1012 = vadd.f32 %v1011, %v949
      %v1013 = vadd.f32 %v1012, %v950
      %v1014 = vadd.f32 %v1013, %v951
      %v1015 = vadd.f32 %v1014, %v952
      %v1016 = vadd.f32 %v1015, %v953
      %v1017 = vadd.f32 %v1016, %v954
      %v1018 = vadd.f32 %v1017, %v955
      %v1019 = vadd.f32 %v1018, %v956
      %v1020 = vadd.f32 %v1019, %v957
      %v1021 = vadd.f32 %v1020, %v958
      %v1022 = vadd.f32 %v1021, %v959
      %v1023 = vadd.f32 %v1022, %v960
      %v1024 = vadd.f32 %v1023, %v961
      %v1025 = vadd.f32 %v1024, %v962
      %v1026 = vadd.f32 %v1025, %v963
      %v1027 = vadd.f32 %v1026, %v964
      %v1028 = vadd.f32 %v1027, %v965
      %v1029 = vadd.f32 %v1028, %v966
      %v1030 = vadd.f32 %v1029, %v967
      %v1031 = vadd.f32 %v1030, %v968
      %v1032 = vadd.f32 %v1031, %v969
      %v1033 = vadd.f32 %v1032, %v970
      %v1034 = vadd.f32 %v1033, %v971
      %v1035 = vadd.f32 %v1034, %v972
      %v1036 = vadd.f32 %v1035, %v973
      %v1037 = vadd.f32 %v1036, %v974
      %v1038 = vadd.f32 %v1037, %v975
      %v1039 = vadd.f32 %v1038, %v976
      %v1040 = vadd.f32 %v1039, %v977
      %v1041 = vadd.f32 %v1040, %v978
      %v1042 = vadd.f32 %v1041, %v979
      %v1043 = vadd.f32 %v1042, %v980
      %v1044 = vadd.f32 %v1043, %v981
      %v1045 = vadd.f32 %v1044, %v982
      %v1046 = vadd.f32 %v1045, %v983
      %v1047 = vadd.f32 %v1046, %v984
      %v1048 = vadd.f32 %v1047, %v985
      %v1049 = vadd.f32 %v1048, %v986
      %v1050 = vadd.f32 %v1049, %v987
      %v1051 = vadd.f32 %v1050, %v988
      %v1052 = vadd.f32 %v1051, %v989
      %v1053 = vadd.f32 %v1052, %v990
      %v1054 = vadd.f32 %v1053, %v991
      %v1055 = vadd.f32 %v1054, %v992
      %v1056 = vrot.slane %v1055, 4
      %v1057 = vadd.f32 %v1055, %v1056
      %v1058 = vrot.slane %v1057, 2
      %v1059 = vadd.f32 %v1057, %v1058
      %v1060 = vrot.slane %v1059, 1
      %v1061 = vadd.f32 %v1059, %v1060
      %1062 = vst [vmem:[%s184 + $0x1] sm:$0x1] %v1061
      %s1063 = smul.u32 64, %s15
      %p1064 = scmp.lt.s32.totalorder %s1063, 191
      %s1065 = scalar_select %p1064, %s1063, 191
      %s1066 = smul.addr %s1065, 8
      %s1067 = scalar_lea.vmem %s2, %s1066
      %p1068 = scmp.lt.s32.totalorder %s15, 2
      %s1069 = scalar_select %p1068, %s15, 2
      %s1070 = smul.addr %s1069, 2
      %s1071 = scalar_lea.vmem %s3, %s1070
      // Predicated region
      $region29: #{bottleneck_forward.6} parent=27 // pred_check
        %p1072 = pneg %p80
      $region30: #{bottleneck_forward.6} parent=27 // pred_check_branch
        %1074 = sbr.rel (%p1072) target = $region32
      $region31: #{bottleneck_forward.6} parent=27 // pred_region
        %s1075 = smul.u32 64, %s15
      $region32: #{bottleneck_forward.6} parent=27 // pred_fallthru
        _
      // Predicated region
      $region33: #{bottleneck_forward.6} parent=27 // pred_check
        %p1076 = pneg %p106
      $region34: #{bottleneck_forward.6} parent=27 // pred_check_branch
        %1078 = sbr.rel (%p1076) target = $region36
      $region35: #{bottleneck_forward.6} parent=27 // pred_region
        _
      $region36: #{bottleneck_forward.6} parent=27 // pred_fallthru
        _
    $region28: #{bottleneck_forward.6} parent=5 // pred_fallthru
      _
    %p1079 = scmp.le.s32.totalorder 2, %s10
    // Predicated region
    $region37: #{bottleneck_forward.6} parent=5 // pred_check
      %p1080 = pneg %p1079
    $region38: #{bottleneck_forward.6} parent=5 // pred_check_branch
      %1082 = sbr.rel (%p1080) target = $region40
    $region39: #{bottleneck_forward.6} parent=5 // pred_region
      %s1083 = ssub.s32 %s10, 2
      // Predicated region
      $region41: #{bottleneck_forward.6} parent=39 // pred_check
        %p1084 = pneg %p86
      $region42: #{bottleneck_forward.6} parent=39 // pred_check_branch
        %1086 = sbr.rel (%p1084) target = $region44
      $region43: #{bottleneck_forward.6} parent=39 // pred_region
        %s1087 = smul.u32 64, %s16
        %p1088 = scmp.lt.s32.totalorder %s1087, 191
        %s1089 = scalar_select %p1088, %s1087, 191
        %s1090 = smul.addr %s1089, 8
        %s1091 = scalar_lea.vmem %s2, %s1090
      $region44: #{bottleneck_forward.6} parent=39 // pred_fallthru
        _
      // Predicated region
      $region45: #{bottleneck_forward.6} parent=39 // pred_check
        %p1092 = pneg %p112
      $region46: #{bottleneck_forward.6} parent=39 // pred_check_branch
        %1094 = sbr.rel (%p1092) target = $region48
      $region47: #{bottleneck_forward.6} parent=39 // pred_region
        %p1095 = scmp.lt.s32.totalorder %s16, 2
        %s1096 = scalar_select %p1095, %s16, 2
        %s1097 = smul.addr %s1096, 2
        %s1098 = scalar_lea.vmem %s3, %s1097
      $region48: #{bottleneck_forward.6} parent=39 // pred_fallthru
        _
    $region40: #{bottleneck_forward.6} parent=5 // pred_fallthru
      _
  $region6: #{bottleneck_forward.6} parent=0 // loop_footer
    %s14 = sadd.s32 1, %s10
  $region7: #{bottleneck_forward.6} parent=0 // loop_footer_branch
    %9 = sbr.rel target = $region3
  $region8: #{bottleneck_forward.6} parent=0 // loop_exit
    _

// kernel: bottleneck_forward.9
$region0: #{bottleneck_forward.9}
  #allocation0 [shape = 'u32[]', space=smem, size = 0x4, offset = 0x4, fixed_abs, tag = 'smem constant byte address 0x4 - core index']
  #allocation1 [shape = 'u32[144,128]{1,0:T(1,128)}', space=vmem, size = 0x12000, scoped, tag = 'internal scratch']
  %s0 = inlined_call_operand.vmem [shape: f32[1536,128], index: 0, kind: input, shape index: {}]
  %s1 = inlined_call_operand.vmem [shape: f32[1,128], index: 1, kind: input, shape index: {}]
  %s2 = inlined_call_operand.vmem [shape: f32[1,128], index: 2, kind: input, shape index: {}]
  %s3 = inlined_call_operand.vmem [shape: bf16[128,128], index: 3, kind: input, shape index: {}]
  %s4 = inlined_call_operand.vmem [shape: f32[1536,128], index: 4, kind: output, shape index: {0}]
  %s5 = inlined_call_operand.vmem [shape: f32[3,2,128], index: 5, kind: output, shape index: {1}]
  %6 = xla_tuple %s4, %s5
  %s7 = sld [smem:[#allocation0]]
  $region57: #{bottleneck_forward.9} parent=0
    _
  %s9 = ssub.s32 1, %s7
  %s10 = scalar_select 0, %s9, %s7
  loop: start=0, step=1, limit=5
  $region2: #{bottleneck_forward.9} parent=0 // loop_pre_header
    _
  $region3: #{bottleneck_forward.9} parent=0 // loop_header
    %s12 = sphi 0, %s16
    %p13 = scmp.ge.s32.totalorder %s12, 5
    %s22 = sphi 0, %s24
    %s25 = sphi 0, %s22
    %s26 = sphi 0, %s25
    %s42 = sphi 0, %s26
    %s46 = sphi 0, %s46
    %s48 = sphi 0, %s46
    %s49 = sphi 0, %s48
    %s63 = sphi 0, %s49
    %s67 = sphi 0, %s67
    %s69 = sphi 0, %s67
    %s70 = sphi 0, %s69
    %s84 = sphi 0, %s70
    %s88 = sphi 0, %s88
    %s90 = sphi 0, %s88
    %s91 = sphi 0, %s90
    %s105 = sphi 0, %s91
    %s111 = sphi 0, %s113
    %s114 = sphi 0, %s111
    %s115 = sphi 0, %s114
    %s131 = sphi 0, %s115
    %s137 = sphi 0, %s139
    %s140 = sphi 0, %s137
    %s141 = sphi 0, %s140
    %s157 = sphi 0, %s141
  $region4: #{bottleneck_forward.9} parent=0 // loop_header_branch
    %15 = sbr.rel (%p13) target = $region8
  $region5: #{bottleneck_forward.9} parent=0 // loop_body
    %s17 = ssub.s32 %s12, 1
    %s18 = ssub.s32 %s12, 2
    %s19 = sadd.s32 %s12, 1
    %s20 = ssub.s32 %s12, %s19
    %p21 = scmp.eq.s32.totalorder %s20, 0
    %s23 = sadd.s32 %s22, 1
    %s24 = scalar_select %p21, %s22, %s23
    %p27 = pneg %p21
    %p28 = scmp.eq.s32.totalorder %s12, 2
    %p29 = por %p27, %p28
    %p30 = scmp.ne.s32.totalorder %s22, %s25
    %p31 = scmp.eq.s32.totalorder %s12, 0
    %p32 = por %p30, %p31
    %p33 = scmp.ne.s32.totalorder %s22, %s25
    %p34 = scmp.eq.s32.totalorder %s17, 2
    %p35 = por %p33, %p34
    %p36 = scmp.ne.s32.totalorder %s25, %s26
    %p37 = scmp.eq.s32.totalorder %s17, 0
    %p38 = por %p36, %p37
    %p39 = scmp.ne.s32.totalorder %s25, %s26
    %p40 = scmp.eq.s32.totalorder %s18, 2
    %p41 = por %p39, %p40
    %p43 = scmp.ne.s32.totalorder %s26, %s42
    %p44 = scmp.eq.s32.totalorder %s18, 0
    %p45 = por %p43, %p44
    %s47 = sadd.s32 %s46, 1
    %p50 = scmp.eq.s32.totalorder %s12, 2
    %p51 = scmp.ne.s32.totalorder %s46, %s48
    %p52 = scmp.eq.s32.totalorder %s12, 0
    %p53 = por %p51, %p52
    %p54 = scmp.ne.s32.totalorder %s46, %s48
    %p55 = scmp.eq.s32.totalorder %s17, 2
    %p56 = por %p54, %p55
    %p57 = scmp.ne.s32.totalorder %s48, %s49
    %p58 = scmp.eq.s32.totalorder %s17, 0
    %p59 = por %p57, %p58
    %p60 = scmp.ne.s32.totalorder %s48, %s49
    %p61 = scmp.eq.s32.totalorder %s18, 2
    %p62 = por %p60, %p61
    %p64 = scmp.ne.s32.totalorder %s49, %s63
    %p65 = scmp.eq.s32.totalorder %s18, 0
    %p66 = por %p64, %p65
    %s68 = sadd.s32 %s67, 1
    %p71 = scmp.eq.s32.totalorder %s12, 2
    %p72 = scmp.ne.s32.totalorder %s67, %s69
    %p73 = scmp.eq.s32.totalorder %s12, 0
    %p74 = por %p72, %p73
    %p75 = scmp.ne.s32.totalorder %s67, %s69
    %p76 = scmp.eq.s32.totalorder %s17, 2
    %p77 = por %p75, %p76
    %p78 = scmp.ne.s32.totalorder %s69, %s70
    %p79 = scmp.eq.s32.totalorder %s17, 0
    %p80 = por %p78, %p79
    %p81 = scmp.ne.s32.totalorder %s69, %s70
    %p82 = scmp.eq.s32.totalorder %s18, 2
    %p83 = por %p81, %p82
    %p85 = scmp.ne.s32.totalorder %s70, %s84
    %p86 = scmp.eq.s32.totalorder %s18, 0
    %p87 = por %p85, %p86
    %s89 = sadd.s32 %s88, 1
    %p92 = scmp.eq.s32.totalorder %s12, 2
    %p93 = scmp.ne.s32.totalorder %s88, %s90
    %p94 = scmp.eq.s32.totalorder %s12, 0
    %p95 = por %p93, %p94
    %p96 = scmp.ne.s32.totalorder %s88, %s90
    %p97 = scmp.eq.s32.totalorder %s17, 2
    %p98 = por %p96, %p97
    %p99 = scmp.ne.s32.totalorder %s90, %s91
    %p100 = scmp.eq.s32.totalorder %s17, 0
    %p101 = por %p99, %p100
    %p102 = scmp.ne.s32.totalorder %s90, %s91
    %p103 = scmp.eq.s32.totalorder %s18, 2
    %p104 = por %p102, %p103
    %p106 = scmp.ne.s32.totalorder %s91, %s105
    %p107 = scmp.eq.s32.totalorder %s18, 0
    %p108 = por %p106, %p107
    %s109 = ssub.s32 %s12, %s19
    %p110 = scmp.eq.s32.totalorder %s109, 0
    %s112 = sadd.s32 %s111, 1
    %s113 = scalar_select %p110, %s111, %s112
    %p116 = pneg %p110
    %p117 = scmp.eq.s32.totalorder %s12, 2
    %p118 = por %p116, %p117
    %p119 = scmp.ne.s32.totalorder %s111, %s114
    %p120 = scmp.eq.s32.totalorder %s12, 0
    %p121 = por %p119, %p120
    %p122 = scmp.ne.s32.totalorder %s111, %s114
    %p123 = scmp.eq.s32.totalorder %s17, 2
    %p124 = por %p122, %p123
    %p125 = scmp.ne.s32.totalorder %s114, %s115
    %p126 = scmp.eq.s32.totalorder %s17, 0
    %p127 = por %p125, %p126
    %p128 = scmp.ne.s32.totalorder %s114, %s115
    %p129 = scmp.eq.s32.totalorder %s18, 2
    %p130 = por %p128, %p129
    %p132 = scmp.ne.s32.totalorder %s115, %s131
    %p133 = scmp.eq.s32.totalorder %s18, 0
    %p134 = por %p132, %p133
    %s135 = ssub.s32 %s12, %s19
    %p136 = scmp.eq.s32.totalorder %s135, 0
    %s138 = sadd.s32 %s137, 1
    %s139 = scalar_select %p136, %s137, %s138
    %p142 = pneg %p136
    %p143 = scmp.eq.s32.totalorder %s12, 2
    %p144 = por %p142, %p143
    %p145 = scmp.ne.s32.totalorder %s137, %s140
    %p146 = scmp.eq.s32.totalorder %s12, 0
    %p147 = por %p145, %p146
    %p148 = scmp.ne.s32.totalorder %s137, %s140
    %p149 = scmp.eq.s32.totalorder %s17, 2
    %p150 = por %p148, %p149
    %p151 = scmp.ne.s32.totalorder %s140, %s141
    %p152 = scmp.eq.s32.totalorder %s17, 0
    %p153 = por %p151, %p152
    %p154 = scmp.ne.s32.totalorder %s140, %s141
    %p155 = scmp.eq.s32.totalorder %s18, 2
    %p156 = por %p154, %p155
    %p158 = scmp.ne.s32.totalorder %s141, %s157
    %p159 = scmp.eq.s32.totalorder %s18, 0
    %p160 = por %p158, %p159
    %p161 = scmp.le.s32.totalorder 1, %s12
    %p162 = scmp.lt.s32.totalorder %s12, 4
    %p163 = pnand %p161, %p162
    %p164 = pneg %p163
    // Predicated region
    $region9: #{bottleneck_forward.9} parent=5 // pred_check
      _
    $region10: #{bottleneck_forward.9} parent=5 // pred_check_branch
      %166 = sbr.rel (%p163) target = $region12
    $region11: #{bottleneck_forward.9} parent=5 // pred_region
      %s167 = ssub.s32 %s12, 1
      // Predicated region
      $region13: #{bottleneck_forward.9} parent=11 // pred_check
        %p168 = pneg %p59
      $region14: #{bottleneck_forward.9} parent=11 // pred_check_branch
        %170 = sbr.rel (%p168) target = $region16
      $region15: #{bottleneck_forward.9} parent=11 // pred_region
        _
      $region16: #{bottleneck_forward.9} parent=11 // pred_fallthru
        _
      // Predicated region
      $region17: #{bottleneck_forward.9} parent=11 // pred_check
        %p171 = pneg %p80
      $region18: #{bottleneck_forward.9} parent=11 // pred_check_branch
        %173 = sbr.rel (%p171) target = $region20
      $region19: #{bottleneck_forward.9} parent=11 // pred_region
        _
      $region20: #{bottleneck_forward.9} parent=11 // pred_fallthru
        _
      // Predicated region
      $region21: #{bottleneck_forward.9} parent=11 // pred_check
        %p174 = pneg %p101
      $region22: #{bottleneck_forward.9} parent=11 // pred_check_branch
        %176 = sbr.rel (%p174) target = $region24
      $region23: #{bottleneck_forward.9} parent=11 // pred_region
        _
      $region24: #{bottleneck_forward.9} parent=11 // pred_fallthru
        _
    $region12: #{bottleneck_forward.9} parent=5 // pred_fallthru
      _
    %p177 = scmp.lt.s32.totalorder %s12, 3
    // Predicated region
    $region25: #{bottleneck_forward.9} parent=5 // pred_check
      %p178 = pneg %p177
    $region26: #{bottleneck_forward.9} parent=5 // pred_check_branch
      %180 = sbr.rel (%p178) target = $region28
    $region27: #{bottleneck_forward.9} parent=5 // pred_region
      // Predicated region
      $region29: #{bottleneck_forward.9} parent=27 // pred_check
        %p181 = pneg %p32
      $region30: #{bottleneck_forward.9} parent=27 // pred_check_branch
        %183 = sbr.rel (%p181) target = $region32
      $region31: #{bottleneck_forward.9} parent=27 // pred_region
        %s184 = smul.u32 64, %s12
        %p185 = scmp.lt.s32.totalorder %s184, 191
        %s186 = scalar_select %p185, %s184, 191
        %s187 = smul.addr %s186, 8
        %s188 = scalar_lea.vmem %s0, %s187
        %s189 = smul.u32 64, %s12
      $region32: #{bottleneck_forward.9} parent=27 // pred_fallthru
        _
    $region28: #{bottleneck_forward.9} parent=5 // pred_fallthru
      _
    %p190 = scmp.le.s32.totalorder 1, %s12
    %p191 = scmp.lt.s32.totalorder %s12, 4
    %p192 = pnand %p190, %p191
    %p193 = pneg %p192
    // Predicated region
    $region33: #{bottleneck_forward.9} parent=5 // pred_check
      _
    $region34: #{bottleneck_forward.9} parent=5 // pred_check_branch
      %195 = sbr.rel (%p192) target = $region36
    $region35: #{bottleneck_forward.9} parent=5 // pred_region
      %s196 = ssub.s32 %s12, 1
      %s197 = smul.u32 64, %s17
      %p198 = scmp.lt.s32.totalorder %s197, 191
      %s199 = scalar_select %p198, %s197, 191
      %s200 = smul.addr %s199, 8
      %s201 = scalar_lea.vmem %s0, %s200
      %p202 = pneg %p38
      %p203 = pneg %p35
      %p204 = pneg %p59
      %p205 = pneg %p56
      %p206 = pneg %p80
      %p207 = pneg %p77
      %p208 = pneg %p101
      %p209 = pneg %p98
      %p210 = pneg %p127
      %p211 = pneg %p124
      %s212 = smul.u32 64, %s17
      %p213 = scmp.lt.s32.totalorder %s212, 191
      %s214 = scalar_select %p213, %s212, 191
      %s215 = smul.addr %s214, 8
      %s216 = scalar_lea.vmem %s4, %s215
      %p217 = pneg %p153
      %p218 = pneg %p150
      %p219 = scmp.lt.s32.totalorder %s17, 2
      %s220 = scalar_select %p219, %s17, 2
      %s221 = smul.addr %s220, 2
      %s222 = scalar_lea.vmem %s5, %s221
      %s223 = smul.u32 64, %s17
      %p224 = scmp.lt.s32.totalorder %s223, 191
      %s225 = scalar_select %p224, %s223, 191
      %s226 = smul.addr %s225, 8
      %s227 = scalar_lea.vmem %s0, %s226
      %s228 = smul.u32 64, %s17
      %s229 = smul.u32 64, %s17
      %p230 = scmp.lt.s32.totalorder %s229, 191
      %s231 = scalar_select %p230, %s229, 191
      %s232 = smul.addr %s231, 8
      %s233 = scalar_lea.vmem %s4, %s232
      %s234 = smul.u32 64, %s17
      %p235 = scmp.lt.s32.totalorder %s17, 2
      %s236 = scalar_select %p235, %s17, 2
      %s237 = smul.addr %s236, 2
      %s238 = scalar_lea.vmem %s5, %s237
      %v240 = vld [vmem:[%s227] sm:$0xff]
      %v241 = vld [vmem:[%s227 + $0x8] sm:$0xff]
      %v242 = vld [vmem:[%s227 + $0x10] sm:$0xff]
      %v243 = vld [vmem:[%s227 + $0x18] sm:$0xff]
      %v244 = vld [vmem:[%s227 + $0x20] sm:$0xff]
      %v245 = vld [vmem:[%s227 + $0x28] sm:$0xff]
      %v246 = vld [vmem:[%s227 + $0x30] sm:$0xff]
      %v247 = vld [vmem:[%s227 + $0x38] sm:$0xff]
      %v248 = vld [vmem:[%s227 + $0x40] sm:$0xff]
      %v249 = vld [vmem:[%s227 + $0x48] sm:$0xff]
      %v250 = vld [vmem:[%s227 + $0x50] sm:$0xff]
      %v251 = vld [vmem:[%s227 + $0x58] sm:$0xff]
      %v252 = vld [vmem:[%s227 + $0x60] sm:$0xff]
      %v253 = vld [vmem:[%s227 + $0x68] sm:$0xff]
      %v254 = vld [vmem:[%s227 + $0x70] sm:$0xff]
      %v255 = vld [vmem:[%s227 + $0x78] sm:$0xff]
      %v256 = vld [vmem:[%s227 + $0x80] sm:$0xff]
      %v257 = vld [vmem:[%s227 + $0x88] sm:$0xff]
      %v258 = vld [vmem:[%s227 + $0x90] sm:$0xff]
      %v259 = vld [vmem:[%s227 + $0x98] sm:$0xff]
      %v260 = vld [vmem:[%s227 + $0xa0] sm:$0xff]
      %v261 = vld [vmem:[%s227 + $0xa8] sm:$0xff]
      %v262 = vld [vmem:[%s227 + $0xb0] sm:$0xff]
      %v263 = vld [vmem:[%s227 + $0xb8] sm:$0xff]
      %v264 = vld [vmem:[%s227 + $0xc0] sm:$0xff]
      %v265 = vld [vmem:[%s227 + $0xc8] sm:$0xff]
      %v266 = vld [vmem:[%s227 + $0xd0] sm:$0xff]
      %v267 = vld [vmem:[%s227 + $0xd8] sm:$0xff]
      %v268 = vld [vmem:[%s227 + $0xe0] sm:$0xff]
      %v269 = vld [vmem:[%s227 + $0xe8] sm:$0xff]
      %v270 = vld [vmem:[%s227 + $0xf0] sm:$0xff]
      %v271 = vld [vmem:[%s227 + $0xf8] sm:$0xff]
      %v272 = vld [vmem:[%s227 + $0x100] sm:$0xff]
      %v273 = vld [vmem:[%s227 + $0x108] sm:$0xff]
      %v274 = vld [vmem:[%s227 + $0x110] sm:$0xff]
      %v275 = vld [vmem:[%s227 + $0x118] sm:$0xff]
      %v276 = vld [vmem:[%s227 + $0x120] sm:$0xff]
      %v277 = vld [vmem:[%s227 + $0x128] sm:$0xff]
      %v278 = vld [vmem:[%s227 + $0x130] sm:$0xff]
      %v279 = vld [vmem:[%s227 + $0x138] sm:$0xff]
      %v280 = vld [vmem:[%s227 + $0x140] sm:$0xff]
      %v281 = vld [vmem:[%s227 + $0x148] sm:$0xff]
      %v282 = vld [vmem:[%s227 + $0x150] sm:$0xff]
      %v283 = vld [vmem:[%s227 + $0x158] sm:$0xff]
      %v284 = vld [vmem:[%s227 + $0x160] sm:$0xff]
      %v285 = vld [vmem:[%s227 + $0x168] sm:$0xff]
      %v286 = vld [vmem:[%s227 + $0x170] sm:$0xff]
      %v287 = vld [vmem:[%s227 + $0x178] sm:$0xff]
      %v288 = vld [vmem:[%s227 + $0x180] sm:$0xff]
      %v289 = vld [vmem:[%s227 + $0x188] sm:$0xff]
      %v290 = vld [vmem:[%s227 + $0x190] sm:$0xff]
      %v291 = vld [vmem:[%s227 + $0x198] sm:$0xff]
      %v292 = vld [vmem:[%s227 + $0x1a0] sm:$0xff]
      %v293 = vld [vmem:[%s227 + $0x1a8] sm:$0xff]
      %v294 = vld [vmem:[%s227 + $0x1b0] sm:$0xff]
      %v295 = vld [vmem:[%s227 + $0x1b8] sm:$0xff]
      %v296 = vld [vmem:[%s227 + $0x1c0] sm:$0xff]
      %v297 = vld [vmem:[%s227 + $0x1c8] sm:$0xff]
      %v298 = vld [vmem:[%s227 + $0x1d0] sm:$0xff]
      %v299 = vld [vmem:[%s227 + $0x1d8] sm:$0xff]
      %v300 = vld [vmem:[%s227 + $0x1e0] sm:$0xff]
      %v301 = vld [vmem:[%s227 + $0x1e8] sm:$0xff]
      %v302 = vld [vmem:[%s227 + $0x1f0] sm:$0xff]
      %v303 = vld [vmem:[%s227 + $0x1f8] sm:$0xff]
      %v304 = vld [vmem:[%s1] sm:$0x1]
      %v306 = vlaneseq
      %v307 = vshrl.u32 %v306, 7
      %v308 = vsub.s32 0, %v307
      %v309 = vrot.slane %v304, %v308
      %v311 = vmul.f32 %v240, %v309
      %v312 = vmul.f32 %v241, %v309
      %v313 = vmul.f32 %v242, %v309
      %v314 = vmul.f32 %v243, %v309
      %v315 = vmul.f32 %v244, %v309
      %v316 = vmul.f32 %v245, %v309
      %v317 = vmul.f32 %v246, %v309
      %v318 = vmul.f32 %v247, %v309
      %v319 = vmul.f32 %v248, %v309
      %v320 = vmul.f32 %v249, %v309
      %v321 = vmul.f32 %v250, %v309
      %v322 = vmul.f32 %v251, %v309
      %v323 = vmul.f32 %v252, %v309
      %v324 = vmul.f32 %v253, %v309
      %v325 = vmul.f32 %v254, %v309
      %v326 = vmul.f32 %v255, %v309
      %v327 = vmul.f32 %v256, %v309
      %v328 = vmul.f32 %v257, %v309
      %v329 = vmul.f32 %v258, %v309
      %v330 = vmul.f32 %v259, %v309
      %v331 = vmul.f32 %v260, %v309
      %v332 = vmul.f32 %v261, %v309
      %v333 = vmul.f32 %v262, %v309
      %v334 = vmul.f32 %v263, %v309
      %v335 = vmul.f32 %v264, %v309
      %v336 = vmul.f32 %v265, %v309
      %v337 = vmul.f32 %v266, %v309
      %v338 = vmul.f32 %v267, %v309
      %v339 = vmul.f32 %v268, %v309
      %v340 = vmul.f32 %v269, %v309
      %v341 = vmul.f32 %v270, %v309
      %v342 = vmul.f32 %v271, %v309
      %v343 = vmul.f32 %v272, %v309
      %v344 = vmul.f32 %v273, %v309
      %v345 = vmul.f32 %v274, %v309
      %v346 = vmul.f32 %v275, %v309
      %v347 = vmul.f32 %v276, %v309
      %v348 = vmul.f32 %v277, %v309
      %v349 = vmul.f32 %v278, %v309
      %v350 = vmul.f32 %v279, %v309
      %v351 = vmul.f32 %v280, %v309
      %v352 = vmul.f32 %v281, %v309
      %v353 = vmul.f32 %v282, %v309
      %v354 = vmul.f32 %v283, %v309
      %v355 = vmul.f32 %v284, %v309
      %v356 = vmul.f32 %v285, %v309
      %v357 = vmul.f32 %v286, %v309
      %v358 = vmul.f32 %v287, %v309
      %v359 = vmul.f32 %v288, %v309
      %v360 = vmul.f32 %v289, %v309
      %v361 = vmul.f32 %v290, %v309
      %v362 = vmul.f32 %v291, %v309
      %v363 = vmul.f32 %v292, %v309
      %v364 = vmul.f32 %v293, %v309
      %v365 = vmul.f32 %v294, %v309
      %v366 = vmul.f32 %v295, %v309
      %v367 = vmul.f32 %v296, %v309
      %v368 = vmul.f32 %v297, %v309
      %v369 = vmul.f32 %v298, %v309
      %v370 = vmul.f32 %v299, %v309
      %v371 = vmul.f32 %v300, %v309
      %v372 = vmul.f32 %v301, %v309
      %v373 = vmul.f32 %v302, %v309
      %v374 = vmul.f32 %v303, %v309
      %v375 = vld [vmem:[%s2] sm:$0x1]
      %v377 = vlaneseq
      %v378 = vshrl.u32 %v377, 7
      %v379 = vsub.s32 0, %v378
      %v380 = vrot.slane %v375, %v379
      %v382 = vadd.f32 %v311, %v380
      %v383 = vadd.f32 %v312, %v380
      %v384 = vadd.f32 %v313, %v380
      %v385 = vadd.f32 %v314, %v380
      %v386 = vadd.f32 %v315, %v380
      %v387 = vadd.f32 %v316, %v380
      %v388 = vadd.f32 %v317, %v380
      %v389 = vadd.f32 %v318, %v380
      %v390 = vadd.f32 %v319, %v380
      %v391 = vadd.f32 %v320, %v380
      %v392 = vadd.f32 %v321, %v380
      %v393 = vadd.f32 %v322, %v380
      %v394 = vadd.f32 %v323, %v380
      %v395 = vadd.f32 %v324, %v380
      %v396 = vadd.f32 %v325, %v380
      %v397 = vadd.f32 %v326, %v380
      %v398 = vadd.f32 %v327, %v380
      %v399 = vadd.f32 %v328, %v380
      %v400 = vadd.f32 %v329, %v380
      %v401 = vadd.f32 %v330, %v380
      %v402 = vadd.f32 %v331, %v380
      %v403 = vadd.f32 %v332, %v380
      %v404 = vadd.f32 %v333, %v380
      %v405 = vadd.f32 %v334, %v380
      %v406 = vadd.f32 %v335, %v380
      %v407 = vadd.f32 %v336, %v380
      %v408 = vadd.f32 %v337, %v380
      %v409 = vadd.f32 %v338, %v380
      %v410 = vadd.f32 %v339, %v380
      %v411 = vadd.f32 %v340, %v380
      %v412 = vadd.f32 %v341, %v380
      %v413 = vadd.f32 %v342, %v380
      %v414 = vadd.f32 %v343, %v380
      %v415 = vadd.f32 %v344, %v380
      %v416 = vadd.f32 %v345, %v380
      %v417 = vadd.f32 %v346, %v380
      %v418 = vadd.f32 %v347, %v380
      %v419 = vadd.f32 %v348, %v380
      %v420 = vadd.f32 %v349, %v380
      %v421 = vadd.f32 %v350, %v380
      %v422 = vadd.f32 %v351, %v380
      %v423 = vadd.f32 %v352, %v380
      %v424 = vadd.f32 %v353, %v380
      %v425 = vadd.f32 %v354, %v380
      %v426 = vadd.f32 %v355, %v380
      %v427 = vadd.f32 %v356, %v380
      %v428 = vadd.f32 %v357, %v380
      %v429 = vadd.f32 %v358, %v380
      %v430 = vadd.f32 %v359, %v380
      %v431 = vadd.f32 %v360, %v380
      %v432 = vadd.f32 %v361, %v380
      %v433 = vadd.f32 %v362, %v380
      %v434 = vadd.f32 %v363, %v380
      %v435 = vadd.f32 %v364, %v380
      %v436 = vadd.f32 %v365, %v380
      %v437 = vadd.f32 %v366, %v380
      %v438 = vadd.f32 %v367, %v380
      %v439 = vadd.f32 %v368, %v380
      %v440 = vadd.f32 %v369, %v380
      %v441 = vadd.f32 %v370, %v380
      %v442 = vadd.f32 %v371, %v380
      %v443 = vadd.f32 %v372, %v380
      %v444 = vadd.f32 %v373, %v380
      %v445 = vadd.f32 %v374, %v380
      %v446 = vmax.f32 %v382, 0.0
      %v447 = vmax.f32 %v383, 0.0
      %v448 = vmax.f32 %v384, 0.0
      %v449 = vmax.f32 %v385, 0.0
      %v450 = vmax.f32 %v386, 0.0
      %v451 = vmax.f32 %v387, 0.0
      %v452 = vmax.f32 %v388, 0.0
      %v453 = vmax.f32 %v389, 0.0
      %v454 = vmax.f32 %v390, 0.0
      %v455 = vmax.f32 %v391, 0.0
      %v456 = vmax.f32 %v392, 0.0
      %v457 = vmax.f32 %v393, 0.0
      %v458 = vmax.f32 %v394, 0.0
      %v459 = vmax.f32 %v395, 0.0
      %v460 = vmax.f32 %v396, 0.0
      %v461 = vmax.f32 %v397, 0.0
      %v462 = vmax.f32 %v398, 0.0
      %v463 = vmax.f32 %v399, 0.0
      %v464 = vmax.f32 %v400, 0.0
      %v465 = vmax.f32 %v401, 0.0
      %v466 = vmax.f32 %v402, 0.0
      %v467 = vmax.f32 %v403, 0.0
      %v468 = vmax.f32 %v404, 0.0
      %v469 = vmax.f32 %v405, 0.0
      %v470 = vmax.f32 %v406, 0.0
      %v471 = vmax.f32 %v407, 0.0
      %v472 = vmax.f32 %v408, 0.0
      %v473 = vmax.f32 %v409, 0.0
      %v474 = vmax.f32 %v410, 0.0
      %v475 = vmax.f32 %v411, 0.0
      %v476 = vmax.f32 %v412, 0.0
      %v477 = vmax.f32 %v413, 0.0
      %v478 = vmax.f32 %v414, 0.0
      %v479 = vmax.f32 %v415, 0.0
      %v480 = vmax.f32 %v416, 0.0
      %v481 = vmax.f32 %v417, 0.0
      %v482 = vmax.f32 %v418, 0.0
      %v483 = vmax.f32 %v419, 0.0
      %v484 = vmax.f32 %v420, 0.0
      %v485 = vmax.f32 %v421, 0.0
      %v486 = vmax.f32 %v422, 0.0
      %v487 = vmax.f32 %v423, 0.0
      %v488 = vmax.f32 %v424, 0.0
      %v489 = vmax.f32 %v425, 0.0
      %v490 = vmax.f32 %v426, 0.0
      %v491 = vmax.f32 %v427, 0.0
      %v492 = vmax.f32 %v428, 0.0
      %v493 = vmax.f32 %v429, 0.0
      %v494 = vmax.f32 %v430, 0.0
      %v495 = vmax.f32 %v431, 0.0
      %v496 = vmax.f32 %v432, 0.0
      %v497 = vmax.f32 %v433, 0.0
      %v498 = vmax.f32 %v434, 0.0
      %v499 = vmax.f32 %v435, 0.0
      %v500 = vmax.f32 %v436, 0.0
      %v501 = vmax.f32 %v437, 0.0
      %v502 = vmax.f32 %v438, 0.0
      %v503 = vmax.f32 %v439, 0.0
      %v504 = vmax.f32 %v440, 0.0
      %v505 = vmax.f32 %v441, 0.0
      %v506 = vmax.f32 %v442, 0.0
      %v507 = vmax.f32 %v443, 0.0
      %v508 = vmax.f32 %v444, 0.0
      %v509 = vmax.f32 %v445, 0.0
      %s510 = smul.u32 %s17, 512
      %v511 = vlaneseq
      %v512 = vshrl.u32 %v511, 7
      %v513 = vadd.s32 %v512, 8
      %v514 = vadd.s32 %v512, 16
      %v515 = vadd.s32 %v512, 24
      %v516 = vadd.s32 %v512, 32
      %v517 = vadd.s32 %v512, 40
      %v518 = vadd.s32 %v512, 48
      %v519 = vadd.s32 %v512, 56
      %v520 = vadd.s32 %v512, 64
      %v521 = vadd.s32 %v512, 72
      %v522 = vadd.s32 %v512, 80
      %v523 = vadd.s32 %v512, 88
      %v524 = vadd.s32 %v512, 96
      %v525 = vadd.s32 %v512, 104
      %v526 = vadd.s32 %v512, 112
      %v527 = vadd.s32 %v512, 120
      %v528 = vadd.s32 %v512, 128
      %v529 = vadd.s32 %v512, 136
      %v530 = vadd.s32 %v512, 144
      %v531 = vadd.s32 %v512, 152
      %v532 = vadd.s32 %v512, 160
      %v533 = vadd.s32 %v512, 168
      %v534 = vadd.s32 %v512, 176
      %v535 = vadd.s32 %v512, 184
      %v536 = vadd.s32 %v512, 192
      %v537 = vadd.s32 %v512, 200
      %v538 = vadd.s32 %v512, 208
      %v539 = vadd.s32 %v512, 216
      %v540 = vadd.s32 %v512, 224
      %v541 = vadd.s32 %v512, 232
      %v542 = vadd.s32 %v512, 240
      %v543 = vadd.s32 %v512, 248
      %v544 = vadd.s32 %v512, 256
      %v545 = vadd.s32 %v512, 264
      %v546 = vadd.s32 %v512, 272
      %v547 = vadd.s32 %v512, 280
      %v548 = vadd.s32 %v512, 288
      %v549 = vadd.s32 %v512, 296
      %v550 = vadd.s32 %v512, 304
      %v551 = vadd.s32 %v512, 312
      %v552 = vadd.s32 %v512, 320
      %v553 = vadd.s32 %v512, 328
      %v554 = vadd.s32 %v512, 336
      %v555 = vadd.s32 %v512, 344
      %v556 = vadd.s32 %v512, 352
      %v557 = vadd.s32 %v512, 360
      %v558 = vadd.s32 %v512, 368
      %v559 = vadd.s32 %v512, 376
      %v560 = vadd.s32 %v512, 384
      %v561 = vadd.s32 %v512, 392
      %v562 = vadd.s32 %v512, 400
      %v563 = vadd.s32 %v512, 408
      %v564 = vadd.s32 %v512, 416
      %v565 = vadd.s32 %v512, 424
      %v566 = vadd.s32 %v512, 432
      %v567 = vadd.s32 %v512, 440
      %v568 = vadd.s32 %v512, 448
      %v569 = vadd.s32 %v512, 456
      %v570 = vadd.s32 %v512, 464
      %v571 = vadd.s32 %v512, 472
      %v572 = vadd.s32 %v512, 480
      %v573 = vadd.s32 %v512, 488
      %v574 = vadd.s32 %v512, 496
      %v575 = vadd.s32 %v512, 504
      %v576 = vstv %s510
      %v577 = vadd.s32 %v576, %v512
      %v578 = vadd.s32 %v576, %v513
      %v579 = vadd.s32 %v576, %v514
      %v580 = vadd.s32 %v576, %v515
      %v581 = vadd.s32 %v576, %v516
      %v582 = vadd.s32 %v576, %v517
      %v583 = vadd.s32 %v576, %v518
      %v584 = vadd.s32 %v576, %v519
      %v585 = vadd.s32 %v576, %v520
      %v586 = vadd.s32 %v576, %v521
      %v587 = vadd.s32 %v576, %v522
      %v588 = vadd.s32 %v576, %v523
      %v589 = vadd.s32 %v576, %v524
      %v590 = vadd.s32 %v576, %v525
      %v591 = vadd.s32 %v576, %v526
      %v592 = vadd.s32 %v576, %v527
      %v593 = vadd.s32 %v576, %v528
      %v594 = vadd.s32 %v576, %v529
      %v595 = vadd.s32 %v576, %v530
      %v596 = vadd.s32 %v576, %v531
      %v597 = vadd.s32 %v576, %v532
      %v598 = vadd.s32 %v576, %v533
      %v599 = vadd.s32 %v576, %v534
      %v600 = vadd.s32 %v576, %v535
      %v601 = vadd.s32 %v576, %v536
      %v602 = vadd.s32 %v576, %v537
      %v603 = vadd.s32 %v576, %v538
      %v604 = vadd.s32 %v576, %v539
      %v605 = vadd.s32 %v576, %v540
      %v606 = vadd.s32 %v576, %v541
      %v607 = vadd.s32 %v576, %v542
      %v608 = vadd.s32 %v576, %v543
      %v609 = vadd.s32 %v576, %v544
      %v610 = vadd.s32 %v576, %v545
      %v611 = vadd.s32 %v576, %v546
      %v612 = vadd.s32 %v576, %v547
      %v613 = vadd.s32 %v576, %v548
      %v614 = vadd.s32 %v576, %v549
      %v615 = vadd.s32 %v576, %v550
      %v616 = vadd.s32 %v576, %v551
      %v617 = vadd.s32 %v576, %v552
      %v618 = vadd.s32 %v576, %v553
      %v619 = vadd.s32 %v576, %v554
      %v620 = vadd.s32 %v576, %v555
      %v621 = vadd.s32 %v576, %v556
      %v622 = vadd.s32 %v576, %v557
      %v623 = vadd.s32 %v576, %v558
      %v624 = vadd.s32 %v576, %v559
      %v625 = vadd.s32 %v576, %v560
      %v626 = vadd.s32 %v576, %v561
      %v627 = vadd.s32 %v576, %v562
      %v628 = vadd.s32 %v576, %v563
      %v629 = vadd.s32 %v576, %v564
      %v630 = vadd.s32 %v576, %v565
      %v631 = vadd.s32 %v576, %v566
      %v632 = vadd.s32 %v576, %v567
      %v633 = vadd.s32 %v576, %v568
      %v634 = vadd.s32 %v576, %v569
      %v635 = vadd.s32 %v576, %v570
      %v636 = vadd.s32 %v576, %v571
      %v637 = vadd.s32 %v576, %v572
      %v638 = vadd.s32 %v576, %v573
      %v639 = vadd.s32 %v576, %v574
      %v640 = vadd.s32 %v576, %v575
      %vm641 = vcmp.lt.s32.totalorder %v577, 1152
      %vm642 = vcmp.lt.s32.totalorder %v578, 1152
      %vm643 = vcmp.lt.s32.totalorder %v579, 1152
      %vm644 = vcmp.lt.s32.totalorder %v580, 1152
      %vm645 = vcmp.lt.s32.totalorder %v581, 1152
      %vm646 = vcmp.lt.s32.totalorder %v582, 1152
      %vm647 = vcmp.lt.s32.totalorder %v583, 1152
      %vm648 = vcmp.lt.s32.totalorder %v584, 1152
      %vm649 = vcmp.lt.s32.totalorder %v585, 1152
      %vm650 = vcmp.lt.s32.totalorder %v586, 1152
      %vm651 = vcmp.lt.s32.totalorder %v587, 1152
      %vm652 = vcmp.lt.s32.totalorder %v588, 1152
      %vm653 = vcmp.lt.s32.totalorder %v589, 1152
      %vm654 = vcmp.lt.s32.totalorder %v590, 1152
      %vm655 = vcmp.lt.s32.totalorder %v591, 1152
      %vm656 = vcmp.lt.s32.totalorder %v592, 1152
      %vm657 = vcmp.lt.s32.totalorder %v593, 1152
      %vm658 = vcmp.lt.s32.totalorder %v594, 1152
      %vm659 = vcmp.lt.s32.totalorder %v595, 1152
      %vm660 = vcmp.lt.s32.totalorder %v596, 1152
      %vm661 = vcmp.lt.s32.totalorder %v597, 1152
      %vm662 = vcmp.lt.s32.totalorder %v598, 1152
      %vm663 = vcmp.lt.s32.totalorder %v599, 1152
      %vm664 = vcmp.lt.s32.totalorder %v600, 1152
      %vm665 = vcmp.lt.s32.totalorder %v601, 1152
      %vm666 = vcmp.lt.s32.totalorder %v602, 1152
      %vm667 = vcmp.lt.s32.totalorder %v603, 1152
      %vm668 = vcmp.lt.s32.totalorder %v604, 1152
      %vm669 = vcmp.lt.s32.totalorder %v605, 1152
      %vm670 = vcmp.lt.s32.totalorder %v606, 1152
      %vm671 = vcmp.lt.s32.totalorder %v607, 1152
      %vm672 = vcmp.lt.s32.totalorder %v608, 1152
      %vm673 = vcmp.lt.s32.totalorder %v609, 1152
      %vm674 = vcmp.lt.s32.totalorder %v610, 1152
      %vm675 = vcmp.lt.s32.totalorder %v611, 1152
      %vm676 = vcmp.lt.s32.totalorder %v612, 1152
      %vm677 = vcmp.lt.s32.totalorder %v613, 1152
      %vm678 = vcmp.lt.s32.totalorder %v614, 1152
      %vm679 = vcmp.lt.s32.totalorder %v615, 1152
      %vm680 = vcmp.lt.s32.totalorder %v616, 1152
      %vm681 = vcmp.lt.s32.totalorder %v617, 1152
      %vm682 = vcmp.lt.s32.totalorder %v618, 1152
      %vm683 = vcmp.lt.s32.totalorder %v619, 1152
      %vm684 = vcmp.lt.s32.totalorder %v620, 1152
      %vm685 = vcmp.lt.s32.totalorder %v621, 1152
      %vm686 = vcmp.lt.s32.totalorder %v622, 1152
      %vm687 = vcmp.lt.s32.totalorder %v623, 1152
      %vm688 = vcmp.lt.s32.totalorder %v624, 1152
      %vm689 = vcmp.lt.s32.totalorder %v625, 1152
      %vm690 = vcmp.lt.s32.totalorder %v626, 1152
      %vm691 = vcmp.lt.s32.totalorder %v627, 1152
      %vm692 = vcmp.lt.s32.totalorder %v628, 1152
      %vm693 = vcmp.lt.s32.totalorder %v629, 1152
      %vm694 = vcmp.lt.s32.totalorder %v630, 1152
      %vm695 = vcmp.lt.s32.totalorder %v631, 1152
      %vm696 = vcmp.lt.s32.totalorder %v632, 1152
      %vm697 = vcmp.lt.s32.totalorder %v633, 1152
      %vm698 = vcmp.lt.s32.totalorder %v634, 1152
      %vm699 = vcmp.lt.s32.totalorder %v635, 1152
      %vm700 = vcmp.lt.s32.totalorder %v636, 1152
      %vm701 = vcmp.lt.s32.totalorder %v637, 1152
      %vm702 = vcmp.lt.s32.totalorder %v638, 1152
      %vm703 = vcmp.lt.s32.totalorder %v639, 1152
      %vm704 = vcmp.lt.s32.totalorder %v640, 1152
      %v705 = vsel %vm641, %v446, 0.0
      %v706 = vsel %vm642, %v447, 0.0
      %v707 = vsel %vm643, %v448, 0.0
      %v708 = vsel %vm644, %v449, 0.0
      %v709 = vsel %vm645, %v450, 0.0
      %v710 = vsel %vm646, %v451, 0.0
      %v711 = vsel %vm647, %v452, 0.0
      %v712 = vsel %vm648, %v453, 0.0
      %v713 = vsel %vm649, %v454, 0.0
      %v714 = vsel %vm650, %v455, 0.0
      %v715 = vsel %vm651, %v456, 0.0
      %v716 = vsel %vm652, %v457, 0.0
      %v717 = vsel %vm653, %v458, 0.0
      %v718 = vsel %vm654, %v459, 0.0
      %v719 = vsel %vm655, %v460, 0.0
      %v720 = vsel %vm656, %v461, 0.0
      %v721 = vsel %vm657, %v462, 0.0
      %v722 = vsel %vm658, %v463, 0.0
      %v723 = vsel %vm659, %v464, 0.0
      %v724 = vsel %vm660, %v465, 0.0
      %v725 = vsel %vm661, %v466, 0.0
      %v726 = vsel %vm662, %v467, 0.0
      %v727 = vsel %vm663, %v468, 0.0
      %v728 = vsel %vm664, %v469, 0.0
      %v729 = vsel %vm665, %v470, 0.0
      %v730 = vsel %vm666, %v471, 0.0
      %v731 = vsel %vm667, %v472, 0.0
      %v732 = vsel %vm668, %v473, 0.0
      %v733 = vsel %vm669, %v474, 0.0
      %v734 = vsel %vm670, %v475, 0.0
      %v735 = vsel %vm671, %v476, 0.0
      %v736 = vsel %vm672, %v477, 0.0
      %v737 = vsel %vm673, %v478, 0.0
      %v738 = vsel %vm674, %v479, 0.0
      %v739 = vsel %vm675, %v480, 0.0
      %v740 = vsel %vm676, %v481, 0.0
      %v741 = vsel %vm677, %v482, 0.0
      %v742 = vsel %vm678, %v483, 0.0
      %v743 = vsel %vm679, %v484, 0.0
      %v744 = vsel %vm680, %v485, 0.0
      %v745 = vsel %vm681, %v486, 0.0
      %v746 = vsel %vm682, %v487, 0.0
      %v747 = vsel %vm683, %v488, 0.0
      %v748 = vsel %vm684, %v489, 0.0
      %v749 = vsel %vm685, %v490, 0.0
      %v750 = vsel %vm686, %v491, 0.0
      %v751 = vsel %vm687, %v492, 0.0
      %v752 = vsel %vm688, %v493, 0.0
      %v753 = vsel %vm689, %v494, 0.0
      %v754 = vsel %vm690, %v495, 0.0
      %v755 = vsel %vm691, %v496, 0.0
      %v756 = vsel %vm692, %v497, 0.0
      %v757 = vsel %vm693, %v498, 0.0
      %v758 = vsel %vm694, %v499, 0.0
      %v759 = vsel %vm695, %v500, 0.0
      %v760 = vsel %vm696, %v501, 0.0
      %v761 = vsel %vm697, %v502, 0.0
      %v762 = vsel %vm698, %v503, 0.0
      %v763 = vsel %vm699, %v504, 0.0
      %v764 = vsel %vm700, %v505, 0.0
      %v765 = vsel %vm701, %v506, 0.0
      %v766 = vsel %vm702, %v507, 0.0
      %v767 = vsel %vm703, %v508, 0.0
      %v768 = vsel %vm704, %v509, 0.0
      %v769 = vpack.c.bf16 %v706, %v705
      %v770 = vpack.c.bf16 %v708, %v707
      %v771 = vpack.c.bf16 %v710, %v709
      %v772 = vpack.c.bf16 %v712, %v711
      %v773 = vpack.c.bf16 %v714, %v713
      %v774 = vpack.c.bf16 %v716, %v715
      %v775 = vpack.c.bf16 %v718, %v717
      %v776 = vpack.c.bf16 %v720, %v719
      %v777 = vpack.c.bf16 %v722, %v721
      %v778 = vpack.c.bf16 %v724, %v723
      %v779 = vpack.c.bf16 %v726, %v725
      %v780 = vpack.c.bf16 %v728, %v727
      %v781 = vpack.c.bf16 %v730, %v729
      %v782 = vpack.c.bf16 %v732, %v731
      %v783 = vpack.c.bf16 %v734, %v733
      %v784 = vpack.c.bf16 %v736, %v735
      %v785 = vpack.c.bf16 %v738, %v737
      %v786 = vpack.c.bf16 %v740, %v739
      %v787 = vpack.c.bf16 %v742, %v741
      %v788 = vpack.c.bf16 %v744, %v743
      %v789 = vpack.c.bf16 %v746, %v745
      %v790 = vpack.c.bf16 %v748, %v747
      %v791 = vpack.c.bf16 %v750, %v749
      %v792 = vpack.c.bf16 %v752, %v751
      %v793 = vpack.c.bf16 %v754, %v753
      %v794 = vpack.c.bf16 %v756, %v755
      %v795 = vpack.c.bf16 %v758, %v757
      %v796 = vpack.c.bf16 %v760, %v759
      %v797 = vpack.c.bf16 %v762, %v761
      %v798 = vpack.c.bf16 %v764, %v763
      %v799 = vpack.c.bf16 %v766, %v765
      %v800 = vpack.c.bf16 %v768, %v767
      %v801 = vld [vmem:[%s3] sm:$0xf]
      %v802 = vld [vmem:[%s3 + $0x4] sm:$0xf]
      %v803 = vld [vmem:[%s3 + $0x8] sm:$0xf]
      %v804 = vld [vmem:[%s3 + $0xc] sm:$0xf]
      %v805 = vld [vmem:[%s3 + $0x10] sm:$0xf]
      %v806 = vld [vmem:[%s3 + $0x14] sm:$0xf]
      %v807 = vld [vmem:[%s3 + $0x18] sm:$0xf]
      %v808 = vld [vmem:[%s3 + $0x1c] sm:$0xf]
      %v809 = vld [vmem:[%s3 + $0x20] sm:$0xf]
      %v810 = vld [vmem:[%s3 + $0x24] sm:$0xf]
      %v811 = vld [vmem:[%s3 + $0x28] sm:$0xf]
      %v812 = vld [vmem:[%s3 + $0x2c] sm:$0xf]
      %v813 = vld [vmem:[%s3 + $0x30] sm:$0xf]
      %v814 = vld [vmem:[%s3 + $0x34] sm:$0xf]
      %v815 = vld [vmem:[%s3 + $0x38] sm:$0xf]
      %v816 = vld [vmem:[%s3 + $0x3c] sm:$0xf]
      %v833 = vunpack.c.l.b16 %v801
      %v834 = vunpack.c.l.b16 %v802
      %v835 = vunpack.c.l.b16 %v803
      %v836 = vunpack.c.l.b16 %v804
      %v837 = vunpack.c.l.b16 %v805
      %v838 = vunpack.c.l.b16 %v806
      %v839 = vunpack.c.l.b16 %v807
      %v840 = vunpack.c.l.b16 %v808
      %v841 = vunpack.c.l.b16 %v809
      %v842 = vunpack.c.l.b16 %v810
      %v843 = vunpack.c.l.b16 %v811
      %v844 = vunpack.c.l.b16 %v812
      %v845 = vunpack.c.l.b16 %v813
      %v846 = vunpack.c.l.b16 %v814
      %v847 = vunpack.c.l.b16 %v815
      %v848 = vunpack.c.l.b16 %v816
      %v849 = vpack.c.b16 %v834, %v833
      %v850 = vpack.c.b16 %v836, %v835
      %v851 = vpack.c.b16 %v838, %v837
      %v852 = vpack.c.b16 %v840, %v839
      %v853 = vpack.c.b16 %v842, %v841
      %v854 = vpack.c.b16 %v844, %v843
      %v855 = vpack.c.b16 %v846, %v845
      %v856 = vpack.c.b16 %v848, %v847
      %865 = vmatprep.subr.bf16.mxu0 0
      %866 = vmatpush1.bf16.msra.mxu0 %v849
      %867 = vmatprep.subr.bf16.mxu0 0
      %868 = vmatpush1.bf16.msra.mxu0 %v850
      %869 = vmatprep.subr.bf16.mxu0 0
      %870 = vmatpush1.bf16.msra.mxu0 %v851
      %871 = vmatprep.subr.bf16.mxu0 0
      %872 = vmatpush1.bf16.msra.mxu0 %v852
      %873 = vmatprep.subr.bf16.mxu0 0
      %874 = vmatpush1.bf16.msra.mxu0 %v853
      %875 = vmatprep.subr.bf16.mxu0 0
      %876 = vmatpush1.bf16.msra.mxu0 %v854
      %877 = vmatprep.subr.bf16.mxu0 0
      %878 = vmatpush1.bf16.msra.mxu0 %v855
      %879 = vmatprep.subr.bf16.mxu0 0
      %880 = vmatpush1.bf16.msra.mxu0 %v856
      %881 = vmatprep.subr.bf16.mxu0 0
      %882 = vmatpush1.bf16.msra.mxu0 0
      %883 = vmatprep.subr.bf16.mxu0 0
      %884 = vmatpush1.bf16.msra.mxu0 0
      %885 = vmatprep.subr.bf16.mxu0 0
      %886 = vmatpush1.bf16.msra.mxu0 0
      %887 = vmatprep.subr.bf16.mxu0 0
      %888 = vmatpush1.bf16.msra.mxu0 0
      %889 = vmatprep.subr.bf16.mxu0 0
      %890 = vmatpush1.bf16.msra.mxu0 0
      %891 = vmatprep.subr.bf16.mxu0 0
      %892 = vmatpush1.bf16.msra.mxu0 0
      %893 = vmatprep.subr.bf16.mxu0 0
      %894 = vmatpush1.bf16.msra.mxu0 0
      %895 = vmatprep.subr.bf16.mxu0 0
      %896 = vmatpush1.bf16.msra.mxu0 0
      %897 = vmatprep.mubr.bf16.mxu0 0
      %898 = vmatmul.mubr.bf16.gmra.mrb[0].mxu0 %v769
      %v899 = vpop.f32.mrb[0].mxu0
      %v900 = vadd.f32 0.0, %v899
      %v901 = vpop.f32.mrb[0].mxu0
      %v902 = vpop.f32.mrb[0].mxu0
      %v903 = vadd.f32 0.0, %v902
      %v904 = vpop.f32.mrb[0].mxu0
      %905 = vmatprep.mubr.bf16.mxu0 0
      %906 = vmatmul.mubr.bf16.gmra.mrb[0].mxu0 %v770
      %v907 = vpop.f32.mrb[0].mxu0
      %v908 = vadd.f32 0.0, %v907
      %v909 = vpop.f32.mrb[0].mxu0
      %v910 = vpop.f32.mrb[0].mxu0
      %v911 = vadd.f32 0.0, %v910
      %v912 = vpop.f32.mrb[0].mxu0
      %913 = vmatprep.mubr.bf16.mxu0 0
      %914 = vmatmul.mubr.bf16.gmra.mrb[0].mxu0 %v771
      %v915 = vpop.f32.mrb[0].mxu0
      %v916 = vadd.f32 0.0, %v915
      %v917 = vpop.f32.mrb[0].mxu0
      %v918 = vpop.f32.mrb[0].mxu0
      %v919 = vadd.f32 0.0, %v918
      %v920 = vpop.f32.mrb[0].mxu0
      %921 = vmatprep.mubr.bf16.mxu0 0
      %922 = vmatmul.mubr.bf16.gmra.mrb[0].mxu0 %v772
      %v923 = vpop.f32.mrb[0].mxu0
      %v924 = vadd.f32 0.0, %v923
      %v925 = vpop.f32.mrb[0].mxu0
      %v926 = vpop.f32.mrb[0].mxu0
      %v927 = vadd.f32 0.0, %v926
      %v928 = vpop.f32.mrb[0].mxu0
      %929 = vmatprep.mubr.bf16.mxu0 0
      %930 = vmatmul.mubr.bf16.gmra.mrb[0].mxu0 %v773
      %v931 = vpop.f32.mrb[0].mxu0
      %v932 = vadd.f32 0.0, %v931
      %v933 = vpop.f32.mrb[0].mxu0
      %v934 = vpop.f32.mrb[0].mxu0
      %v935 = vadd.f32 0.0, %v934
      %v936 = vpop.f32.mrb[0].mxu0
      %937 = vmatprep.mubr.bf16.mxu0 0
      %938 = vmatmul.mubr.bf16.gmra.mrb[0].mxu0 %v774
      %v939 = vpop.f32.mrb[0].mxu0
      %v940 = vadd.f32 0.0, %v939
      %v941 = vpop.f32.mrb[0].mxu0
      %v942 = vpop.f32.mrb[0].mxu0
      %v943 = vadd.f32 0.0, %v942
      %v944 = vpop.f32.mrb[0].mxu0
      %945 = vmatprep.mubr.bf16.mxu0 0
      %946 = vmatmul.mubr.bf16.gmra.mrb[0].mxu0 %v775
      %v947 = vpop.f32.mrb[0].mxu0
      %v948 = vadd.f32 0.0, %v947
      %v949 = vpop.f32.mrb[0].mxu0
      %v950 = vpop.f32.mrb[0].mxu0
      %v951 = vadd.f32 0.0, %v950
      %v952 = vpop.f32.mrb[0].mxu0
      %953 = vmatprep.mubr.bf16.mxu0 0
      %954 = vmatmul.mubr.bf16.gmra.mrb[0].mxu0 %v776
      %v955 = vpop.f32.mrb[0].mxu0
      %v956 = vadd.f32 0.0, %v955
      %v957 = vpop.f32.mrb[0].mxu0
      %v958 = vpop.f32.mrb[0].mxu0
      %v959 = vadd.f32 0.0, %v958
      %v960 = vpop.f32.mrb[0].mxu0
      %961 = vmatprep.mubr.bf16.mxu0 0
      %962 = vmatmul.mubr.bf16.gmra.mrb[0].mxu0 %v777
      %v963 = vpop.f32.mrb[0].mxu0
      %v964 = vadd.f32 0.0, %v963
      %v965 = vpop.f32.mrb[0].mxu0
      %v966 = vpop.f32.mrb[0].mxu0
      %v967 = vadd.f32 0.0, %v966
      %v968 = vpop.f32.mrb[0].mxu0
      %969 = vmatprep.mubr.bf16.mxu0 0
      %970 = vmatmul.mubr.bf16.gmra.mrb[0].mxu0 %v778
      %v971 = vpop.f32.mrb[0].mxu0
      %v972 = vadd.f32 0.0, %v971
      %v973 = vpop.f32.mrb[0].mxu0
      %v974 = vpop.f32.mrb[0].mxu0
      %v975 = vadd.f32 0.0, %v974
      %v976 = vpop.f32.mrb[0].mxu0
      %977 = vmatprep.mubr.bf16.mxu0 0
      %978 = vmatmul.mubr.bf16.gmra.mrb[0].mxu0 %v779
      %v979 = vpop.f32.mrb[0].mxu0
      %v980 = vadd.f32 0.0, %v979
      %v981 = vpop.f32.mrb[0].mxu0
      %v982 = vpop.f32.mrb[0].mxu0
      %v983 = vadd.f32 0.0, %v982
      %v984 = vpop.f32.mrb[0].mxu0
      %985 = vmatprep.mubr.bf16.mxu0 0
      %986 = vmatmul.mubr.bf16.gmra.mrb[0].mxu0 %v780
      %v987 = vpop.f32.mrb[0].mxu0
      %v988 = vadd.f32 0.0, %v987
      %v989 = vpop.f32.mrb[0].mxu0
      %v990 = vpop.f32.mrb[0].mxu0
      %v991 = vadd.f32 0.0, %v990
      %v992 = vpop.f32.mrb[0].mxu0
      %993 = vmatprep.mubr.bf16.mxu0 0
      %994 = vmatmul.mubr.bf16.gmra.mrb[0].mxu0 %v781
      %v995 = vpop.f32.mrb[0].mxu0
      %v996 = vadd.f32 0.0, %v995
      %v997 = vpop.f32.mrb[0].mxu0
      %v998 = vpop.f32.mrb[0].mxu0
      %v999 = vadd.f32 0.0, %v998
      %v1000 = vpop.f32.mrb[0].mxu0
      %1001 = vmatprep.mubr.bf16.mxu0 0
      %1002 = vmatmul.mubr.bf16.gmra.mrb[0].mxu0 %v782
      %v1003 = vpop.f32.mrb[0].mxu0
      %v1004 = vadd.f32 0.0, %v1003
      %v1005 = vpop.f32.mrb[0].mxu0
      %v1006 = vpop.f32.mrb[0].mxu0
      %v1007 = vadd.f32 0.0, %v1006
      %v1008 = vpop.f32.mrb[0].mxu0
      %1009 = vmatprep.mubr.bf16.mxu0 0
      %1010 = vmatmul.mubr.bf16.gmra.mrb[0].mxu0 %v783
      %v1011 = vpop.f32.mrb[0].mxu0
      %v1012 = vadd.f32 0.0, %v1011
      %v1013 = vpop.f32.mrb[0].mxu0
      %v1014 = vpop.f32.mrb[0].mxu0
      %v1015 = vadd.f32 0.0, %v1014
      %v1016 = vpop.f32.mrb[0].mxu0
      %1017 = vmatprep.mubr.bf16.mxu0 0
      %1018 = vmatmul.mubr.bf16.gmra.mrb[0].mxu0 %v784
      %v1019 = vpop.f32.mrb[0].mxu0
      %v1020 = vadd.f32 0.0, %v1019
      %v1021 = vpop.f32.mrb[0].mxu0
      %v1022 = vpop.f32.mrb[0].mxu0
      %v1023 = vadd.f32 0.0, %v1022
      %v1024 = vpop.f32.mrb[0].mxu0
      %1025 = vmatprep.mubr.bf16.mxu0 0
      %1026 = vmatmul.mubr.bf16.gmra.mrb[0].mxu0 %v785
      %v1027 = vpop.f32.mrb[0].mxu0
      %v1028 = vadd.f32 0.0, %v1027
      %v1029 = vpop.f32.mrb[0].mxu0
      %v1030 = vpop.f32.mrb[0].mxu0
      %v1031 = vadd.f32 0.0, %v1030
      %v1032 = vpop.f32.mrb[0].mxu0
      %1033 = vmatprep.mubr.bf16.mxu0 0
      %1034 = vmatmul.mubr.bf16.gmra.mrb[0].mxu0 %v786
      %v1035 = vpop.f32.mrb[0].mxu0
      %v1036 = vadd.f32 0.0, %v1035
      %v1037 = vpop.f32.mrb[0].mxu0
      %v1038 = vpop.f32.mrb[0].mxu0
      %v1039 = vadd.f32 0.0, %v1038
      %v1040 = vpop.f32.mrb[0].mxu0
      %1041 = vmatprep.mubr.bf16.mxu0 0
      %1042 = vmatmul.mubr.bf16.gmra.mrb[0].mxu0 %v787
      %v1043 = vpop.f32.mrb[0].mxu0
      %v1044 = vadd.f32 0.0, %v1043
      %v1045 = vpop.f32.mrb[0].mxu0
      %v1046 = vpop.f32.mrb[0].mxu0
      %v1047 = vadd.f32 0.0, %v1046
      %v1048 = vpop.f32.mrb[0].mxu0
      %1049 = vmatprep.mubr.bf16.mxu0 0
      %1050 = vmatmul.mubr.bf16.gmra.mrb[0].mxu0 %v788
      %v1051 = vpop.f32.mrb[0].mxu0
      %v1052 = vadd.f32 0.0, %v1051
      %v1053 = vpop.f32.mrb[0].mxu0
      %v1054 = vpop.f32.mrb[0].mxu0
      %v1055 = vadd.f32 0.0, %v1054
      %v1056 = vpop.f32.mrb[0].mxu0
      %1057 = vmatprep.mubr.bf16.mxu0 0
      %1058 = vmatmul.mubr.bf16.gmra.mrb[0].mxu0 %v789
      %v1059 = vpop.f32.mrb[0].mxu0
      %v1060 = vadd.f32 0.0, %v1059
      %v1061 = vpop.f32.mrb[0].mxu0
      %v1062 = vpop.f32.mrb[0].mxu0
      %v1063 = vadd.f32 0.0, %v1062
      %v1064 = vpop.f32.mrb[0].mxu0
      %1065 = vmatprep.mubr.bf16.mxu0 0
      %1066 = vmatmul.mubr.bf16.gmra.mrb[0].mxu0 %v790
      %v1067 = vpop.f32.mrb[0].mxu0
      %v1068 = vadd.f32 0.0, %v1067
      %v1069 = vpop.f32.mrb[0].mxu0
      %v1070 = vpop.f32.mrb[0].mxu0
      %v1071 = vadd.f32 0.0, %v1070
      %v1072 = vpop.f32.mrb[0].mxu0
      %1073 = vmatprep.mubr.bf16.mxu0 0
      %1074 = vmatmul.mubr.bf16.gmra.mrb[0].mxu0 %v791
      %v1075 = vpop.f32.mrb[0].mxu0
      %v1076 = vadd.f32 0.0, %v1075
      %v1077 = vpop.f32.mrb[0].mxu0
      %v1078 = vpop.f32.mrb[0].mxu0
      %v1079 = vadd.f32 0.0, %v1078
      %v1080 = vpop.f32.mrb[0].mxu0
      %1081 = vmatprep.mubr.bf16.mxu0 0
      %1082 = vmatmul.mubr.bf16.gmra.mrb[0].mxu0 %v792
      %v1083 = vpop.f32.mrb[0].mxu0
      %v1084 = vadd.f32 0.0, %v1083
      %v1085 = vpop.f32.mrb[0].mxu0
      %v1086 = vpop.f32.mrb[0].mxu0
      %v1087 = vadd.f32 0.0, %v1086
      %v1088 = vpop.f32.mrb[0].mxu0
      %1089 = vmatprep.mubr.bf16.mxu0 0
      %1090 = vmatmul.mubr.bf16.gmra.mrb[0].mxu0 %v793
      %v1091 = vpop.f32.mrb[0].mxu0
      %v1092 = vadd.f32 0.0, %v1091
      %v1093 = vpop.f32.mrb[0].mxu0
      %v1094 = vpop.f32.mrb[0].mxu0
      %v1095 = vadd.f32 0.0, %v1094
      %v1096 = vpop.f32.mrb[0].mxu0
      %1097 = vmatprep.mubr.bf16.mxu0 0
      %1098 = vmatmul.mubr.bf16.gmra.mrb[0].mxu0 %v794
      %v1099 = vpop.f32.mrb[0].mxu0
      %v1100 = vadd.f32 0.0, %v1099
      %v1101 = vpop.f32.mrb[0].mxu0
      %v1102 = vpop.f32.mrb[0].mxu0
      %v1103 = vadd.f32 0.0, %v1102
      %v1104 = vpop.f32.mrb[0].mxu0
      %1105 = vmatprep.mubr.bf16.mxu0 0
      %1106 = vmatmul.mubr.bf16.gmra.mrb[0].mxu0 %v795
      %v1107 = vpop.f32.mrb[0].mxu0
      %v1108 = vadd.f32 0.0, %v1107
      %v1109 = vpop.f32.mrb[0].mxu0
      %v1110 = vpop.f32.mrb[0].mxu0
      %v1111 = vadd.f32 0.0, %v1110
      %v1112 = vpop.f32.mrb[0].mxu0
      %1113 = vmatprep.mubr.bf16.mxu0 0
      %1114 = vmatmul.mubr.bf16.gmra.mrb[0].mxu0 %v796
      %v1115 = vpop.f32.mrb[0].mxu0
      %v1116 = vadd.f32 0.0, %v1115
      %v1117 = vpop.f32.mrb[0].mxu0
      %v1118 = vpop.f32.mrb[0].mxu0
      %v1119 = vadd.f32 0.0, %v1118
      %v1120 = vpop.f32.mrb[0].mxu0
      %1121 = vmatprep.mubr.bf16.mxu0 0
      %1122 = vmatmul.mubr.bf16.gmra.mrb[0].mxu0 %v797
      %v1123 = vpop.f32.mrb[0].mxu0
      %v1124 = vadd.f32 0.0, %v1123
      %v1125 = vpop.f32.mrb[0].mxu0
      %v1126 = vpop.f32.mrb[0].mxu0
      %v1127 = vadd.f32 0.0, %v1126
      %v1128 = vpop.f32.mrb[0].mxu0
      %1129 = vmatprep.mubr.bf16.mxu0 0
      %1130 = vmatmul.mubr.bf16.gmra.mrb[0].mxu0 %v798
      %v1131 = vpop.f32.mrb[0].mxu0
      %v1132 = vadd.f32 0.0, %v1131
      %v1133 = vpop.f32.mrb[0].mxu0
      %v1134 = vpop.f32.mrb[0].mxu0
      %v1135 = vadd.f32 0.0, %v1134
      %v1136 = vpop.f32.mrb[0].mxu0
      %1137 = vmatprep.mubr.bf16.mxu0 0
      %1138 = vmatmul.mubr.bf16.gmra.mrb[0].mxu0 %v799
      %v1139 = vpop.f32.mrb[0].mxu0
      %v1140 = vadd.f32 0.0, %v1139
      %v1141 = vpop.f32.mrb[0].mxu0
      %v1142 = vpop.f32.mrb[0].mxu0
      %v1143 = vadd.f32 0.0, %v1142
      %v1144 = vpop.f32.mrb[0].mxu0
      %1145 = vmatprep.mubr.bf16.mxu0 0
      %1146 = vmatmul.mubr.bf16.gmra.mrb[0].mxu0 %v800
      %v1147 = vpop.f32.mrb[0].mxu0
      %v1148 = vadd.f32 0.0, %v1147
      %v1149 = vpop.f32.mrb[0].mxu0
      %v1150 = vpop.f32.mrb[0].mxu0
      %v1151 = vadd.f32 0.0, %v1150
      %v1152 = vpop.f32.mrb[0].mxu0
      %1153 = vdwg.mxu0
      %1154 = vst [vmem:[%s233] sm:$0xff] %v900
      %1155 = vst [vmem:[%s233 + $0x8] sm:$0xff] %v903
      %1156 = vst [vmem:[%s233 + $0x10] sm:$0xff] %v908
      %1157 = vst [vmem:[%s233 + $0x18] sm:$0xff] %v911
      %1158 = vst [vmem:[%s233 + $0x20] sm:$0xff] %v916
      %1159 = vst [vmem:[%s233 + $0x28] sm:$0xff] %v919
      %1160 = vst [vmem:[%s233 + $0x30] sm:$0xff] %v924
      %1161 = vst [vmem:[%s233 + $0x38] sm:$0xff] %v927
      %1162 = vst [vmem:[%s233 + $0x40] sm:$0xff] %v932
      %1163 = vst [vmem:[%s233 + $0x48] sm:$0xff] %v935
      %1164 = vst [vmem:[%s233 + $0x50] sm:$0xff] %v940
      %1165 = vst [vmem:[%s233 + $0x58] sm:$0xff] %v943
      %1166 = vst [vmem:[%s233 + $0x60] sm:$0xff] %v948
      %1167 = vst [vmem:[%s233 + $0x68] sm:$0xff] %v951
      %1168 = vst [vmem:[%s233 + $0x70] sm:$0xff] %v956
      %1169 = vst [vmem:[%s233 + $0x78] sm:$0xff] %v959
      %1170 = vst [vmem:[%s233 + $0x80] sm:$0xff] %v964
      %1171 = vst [vmem:[%s233 + $0x88] sm:$0xff] %v967
      %1172 = vst [vmem:[%s233 + $0x90] sm:$0xff] %v972
      %1173 = vst [vmem:[%s233 + $0x98] sm:$0xff] %v975
      %1174 = vst [vmem:[%s233 + $0xa0] sm:$0xff] %v980
      %1175 = vst [vmem:[%s233 + $0xa8] sm:$0xff] %v983
      %1176 = vst [vmem:[%s233 + $0xb0] sm:$0xff] %v988
      %1177 = vst [vmem:[%s233 + $0xb8] sm:$0xff] %v991
      %1178 = vst [vmem:[%s233 + $0xc0] sm:$0xff] %v996
      %1179 = vst [vmem:[%s233 + $0xc8] sm:$0xff] %v999
      %1180 = vst [vmem:[%s233 + $0xd0] sm:$0xff] %v1004
      %1181 = vst [vmem:[%s233 + $0xd8] sm:$0xff] %v1007
      %1182 = vst [vmem:[%s233 + $0xe0] sm:$0xff] %v1012
      %1183 = vst [vmem:[%s233 + $0xe8] sm:$0xff] %v1015
      %1184 = vst [vmem:[%s233 + $0xf0] sm:$0xff] %v1020
      %1185 = vst [vmem:[%s233 + $0xf8] sm:$0xff] %v1023
      %1186 = vst [vmem:[%s233 + $0x100] sm:$0xff] %v1028
      %1187 = vst [vmem:[%s233 + $0x108] sm:$0xff] %v1031
      %1188 = vst [vmem:[%s233 + $0x110] sm:$0xff] %v1036
      %1189 = vst [vmem:[%s233 + $0x118] sm:$0xff] %v1039
      %1190 = vst [vmem:[%s233 + $0x120] sm:$0xff] %v1044
      %1191 = vst [vmem:[%s233 + $0x128] sm:$0xff] %v1047
      %1192 = vst [vmem:[%s233 + $0x130] sm:$0xff] %v1052
      %1193 = vst [vmem:[%s233 + $0x138] sm:$0xff] %v1055
      %1194 = vst [vmem:[%s233 + $0x140] sm:$0xff] %v1060
      %1195 = vst [vmem:[%s233 + $0x148] sm:$0xff] %v1063
      %1196 = vst [vmem:[%s233 + $0x150] sm:$0xff] %v1068
      %1197 = vst [vmem:[%s233 + $0x158] sm:$0xff] %v1071
      %1198 = vst [vmem:[%s233 + $0x160] sm:$0xff] %v1076
      %1199 = vst [vmem:[%s233 + $0x168] sm:$0xff] %v1079
      %1200 = vst [vmem:[%s233 + $0x170] sm:$0xff] %v1084
      %1201 = vst [vmem:[%s233 + $0x178] sm:$0xff] %v1087
      %1202 = vst [vmem:[%s233 + $0x180] sm:$0xff] %v1092
      %1203 = vst [vmem:[%s233 + $0x188] sm:$0xff] %v1095
      %1204 = vst [vmem:[%s233 + $0x190] sm:$0xff] %v1100
      %1205 = vst [vmem:[%s233 + $0x198] sm:$0xff] %v1103
      %1206 = vst [vmem:[%s233 + $0x1a0] sm:$0xff] %v1108
      %1207 = vst [vmem:[%s233 + $0x1a8] sm:$0xff] %v1111
      %1208 = vst [vmem:[%s233 + $0x1b0] sm:$0xff] %v1116
      %1209 = vst [vmem:[%s233 + $0x1b8] sm:$0xff] %v1119
      %1210 = vst [vmem:[%s233 + $0x1c0] sm:$0xff] %v1124
      %1211 = vst [vmem:[%s233 + $0x1c8] sm:$0xff] %v1127
      %1212 = vst [vmem:[%s233 + $0x1d0] sm:$0xff] %v1132
      %1213 = vst [vmem:[%s233 + $0x1d8] sm:$0xff] %v1135
      %1214 = vst [vmem:[%s233 + $0x1e0] sm:$0xff] %v1140
      %1215 = vst [vmem:[%s233 + $0x1e8] sm:$0xff] %v1143
      %1216 = vst [vmem:[%s233 + $0x1f0] sm:$0xff] %v1148
      %1217 = vst [vmem:[%s233 + $0x1f8] sm:$0xff] %v1151
      %v1218 = vadd.f32 %v900, %v903
      %v1219 = vadd.f32 %v1218, %v908
      %v1220 = vadd.f32 %v1219, %v911
      %v1221 = vadd.f32 %v1220, %v916
      %v1222 = vadd.f32 %v1221, %v919
      %v1223 = vadd.f32 %v1222, %v924
      %v1224 = vadd.f32 %v1223, %v927
      %v1225 = vadd.f32 %v1224, %v932
      %v1226 = vadd.f32 %v1225, %v935
      %v1227 = vadd.f32 %v1226, %v940
      %v1228 = vadd.f32 %v1227, %v943
      %v1229 = vadd.f32 %v1228, %v948
      %v1230 = vadd.f32 %v1229, %v951
      %v1231 = vadd.f32 %v1230, %v956
      %v1232 = vadd.f32 %v1231, %v959
      %v1233 = vadd.f32 %v1232, %v964
      %v1234 = vadd.f32 %v1233, %v967
      %v1235 = vadd.f32 %v1234, %v972
      %v1236 = vadd.f32 %v1235, %v975
      %v1237 = vadd.f32 %v1236, %v980
      %v1238 = vadd.f32 %v1237, %v983
      %v1239 = vadd.f32 %v1238, %v988
      %v1240 = vadd.f32 %v1239, %v991
      %v1241 = vadd.f32 %v1240, %v996
      %v1242 = vadd.f32 %v1241, %v999
      %v1243 = vadd.f32 %v1242, %v1004
      %v1244 = vadd.f32 %v1243, %v1007
      %v1245 = vadd.f32 %v1244, %v1012
      %v1246 = vadd.f32 %v1245, %v1015
      %v1247 = vadd.f32 %v1246, %v1020
      %v1248 = vadd.f32 %v1247, %v1023
      %v1249 = vadd.f32 %v1248, %v1028
      %v1250 = vadd.f32 %v1249, %v1031
      %v1251 = vadd.f32 %v1250, %v1036
      %v1252 = vadd.f32 %v1251, %v1039
      %v1253 = vadd.f32 %v1252, %v1044
      %v1254 = vadd.f32 %v1253, %v1047
      %v1255 = vadd.f32 %v1254, %v1052
      %v1256 = vadd.f32 %v1255, %v1055
      %v1257 = vadd.f32 %v1256, %v1060
      %v1258 = vadd.f32 %v1257, %v1063
      %v1259 = vadd.f32 %v1258, %v1068
      %v1260 = vadd.f32 %v1259, %v1071
      %v1261 = vadd.f32 %v1260, %v1076
      %v1262 = vadd.f32 %v1261, %v1079
      %v1263 = vadd.f32 %v1262, %v1084
      %v1264 = vadd.f32 %v1263, %v1087
      %v1265 = vadd.f32 %v1264, %v1092
      %v1266 = vadd.f32 %v1265, %v1095
      %v1267 = vadd.f32 %v1266, %v1100
      %v1268 = vadd.f32 %v1267, %v1103
      %v1269 = vadd.f32 %v1268, %v1108
      %v1270 = vadd.f32 %v1269, %v1111
      %v1271 = vadd.f32 %v1270, %v1116
      %v1272 = vadd.f32 %v1271, %v1119
      %v1273 = vadd.f32 %v1272, %v1124
      %v1274 = vadd.f32 %v1273, %v1127
      %v1275 = vadd.f32 %v1274, %v1132
      %v1276 = vadd.f32 %v1275, %v1135
      %v1277 = vadd.f32 %v1276, %v1140
      %v1278 = vadd.f32 %v1277, %v1143
      %v1279 = vadd.f32 %v1278, %v1148
      %v1280 = vadd.f32 %v1279, %v1151
      %v1281 = vrot.slane %v1280, 4
      %v1282 = vadd.f32 %v1280, %v1281
      %v1283 = vrot.slane %v1282, 2
      %v1284 = vadd.f32 %v1282, %v1283
      %v1285 = vrot.slane %v1284, 1
      %v1286 = vadd.f32 %v1284, %v1285
      %1287 = vst [vmem:[%s238] sm:$0x1] %v1286
      %v1288 = vmul.f32 %v900, %v900
      %v1289 = vmul.f32 %v903, %v903
      %v1290 = vmul.f32 %v908, %v908
      %v1291 = vmul.f32 %v911, %v911
      %v1292 = vmul.f32 %v916, %v916
      %v1293 = vmul.f32 %v919, %v919
      %v1294 = vmul.f32 %v924, %v924
      %v1295 = vmul.f32 %v927, %v927
      %v1296 = vmul.f32 %v932, %v932
      %v1297 = vmul.f32 %v935, %v935
      %v1298 = vmul.f32 %v940, %v940
      %v1299 = vmul.f32 %v943, %v943
      %v1300 = vmul.f32 %v948, %v948
      %v1301 = vmul.f32 %v951, %v951
      %v1302 = vmul.f32 %v956, %v956
      %v1303 = vmul.f32 %v959, %v959
      %v1304 = vmul.f32 %v964, %v964
      %v1305 = vmul.f32 %v967, %v967
      %v1306 = vmul.f32 %v972, %v972
      %v1307 = vmul.f32 %v975, %v975
      %v1308 = vmul.f32 %v980, %v980
      %v1309 = vmul.f32 %v983, %v983
      %v1310 = vmul.f32 %v988, %v988
      %v1311 = vmul.f32 %v991, %v991
      %v1312 = vmul.f32 %v996, %v996
      %v1313 = vmul.f32 %v999, %v999
      %v1314 = vmul.f32 %v1004, %v1004
      %v1315 = vmul.f32 %v1007, %v1007
      %v1316 = vmul.f32 %v1012, %v1012
      %v1317 = vmul.f32 %v1015, %v1015
      %v1318 = vmul.f32 %v1020, %v1020
      %v1319 = vmul.f32 %v1023, %v1023
      %v1320 = vmul.f32 %v1028, %v1028
      %v1321 = vmul.f32 %v1031, %v1031
      %v1322 = vmul.f32 %v1036, %v1036
      %v1323 = vmul.f32 %v1039, %v1039
      %v1324 = vmul.f32 %v1044, %v1044
      %v1325 = vmul.f32 %v1047, %v1047
      %v1326 = vmul.f32 %v1052, %v1052
      %v1327 = vmul.f32 %v1055, %v1055
      %v1328 = vmul.f32 %v1060, %v1060
      %v1329 = vmul.f32 %v1063, %v1063
      %v1330 = vmul.f32 %v1068, %v1068
      %v1331 = vmul.f32 %v1071, %v1071
      %v1332 = vmul.f32 %v1076, %v1076
      %v1333 = vmul.f32 %v1079, %v1079
      %v1334 = vmul.f32 %v1084, %v1084
      %v1335 = vmul.f32 %v1087, %v1087
      %v1336 = vmul.f32 %v1092, %v1092
      %v1337 = vmul.f32 %v1095, %v1095
      %v1338 = vmul.f32 %v1100, %v1100
      %v1339 = vmul.f32 %v1103, %v1103
      %v1340 = vmul.f32 %v1108, %v1108
      %v1341 = vmul.f32 %v1111, %v1111
      %v1342 = vmul.f32 %v1116, %v1116
      %v1343 = vmul.f32 %v1119, %v1119
      %v1344 = vmul.f32 %v1124, %v1124
      %v1345 = vmul.f32 %v1127, %v1127
      %v1346 = vmul.f32 %v1132, %v1132
      %v1347 = vmul.f32 %v1135, %v1135
      %v1348 = vmul.f32 %v1140, %v1140
      %v1349 = vmul.f32 %v1143, %v1143
      %v1350 = vmul.f32 %v1148, %v1148
      %v1351 = vmul.f32 %v1151, %v1151
      %v1352 = vadd.f32 %v1288, %v1289
      %v1353 = vadd.f32 %v1352, %v1290
      %v1354 = vadd.f32 %v1353, %v1291
      %v1355 = vadd.f32 %v1354, %v1292
      %v1356 = vadd.f32 %v1355, %v1293
      %v1357 = vadd.f32 %v1356, %v1294
      %v1358 = vadd.f32 %v1357, %v1295
      %v1359 = vadd.f32 %v1358, %v1296
      %v1360 = vadd.f32 %v1359, %v1297
      %v1361 = vadd.f32 %v1360, %v1298
      %v1362 = vadd.f32 %v1361, %v1299
      %v1363 = vadd.f32 %v1362, %v1300
      %v1364 = vadd.f32 %v1363, %v1301
      %v1365 = vadd.f32 %v1364, %v1302
      %v1366 = vadd.f32 %v1365, %v1303
      %v1367 = vadd.f32 %v1366, %v1304
      %v1368 = vadd.f32 %v1367, %v1305
      %v1369 = vadd.f32 %v1368, %v1306
      %v1370 = vadd.f32 %v1369, %v1307
      %v1371 = vadd.f32 %v1370, %v1308
      %v1372 = vadd.f32 %v1371, %v1309
      %v1373 = vadd.f32 %v1372, %v1310
      %v1374 = vadd.f32 %v1373, %v1311
      %v1375 = vadd.f32 %v1374, %v1312
      %v1376 = vadd.f32 %v1375, %v1313
      %v1377 = vadd.f32 %v1376, %v1314
      %v1378 = vadd.f32 %v1377, %v1315
      %v1379 = vadd.f32 %v1378, %v1316
      %v1380 = vadd.f32 %v1379, %v1317
      %v1381 = vadd.f32 %v1380, %v1318
      %v1382 = vadd.f32 %v1381, %v1319
      %v1383 = vadd.f32 %v1382, %v1320
      %v1384 = vadd.f32 %v1383, %v1321
      %v1385 = vadd.f32 %v1384, %v1322
      %v1386 = vadd.f32 %v1385, %v1323
      %v1387 = vadd.f32 %v1386, %v1324
      %v1388 = vadd.f32 %v1387, %v1325
      %v1389 = vadd.f32 %v1388, %v1326
      %v1390 = vadd.f32 %v1389, %v1327
      %v1391 = vadd.f32 %v1390, %v1328
      %v1392 = vadd.f32 %v1391, %v1329
      %v1393 = vadd.f32 %v1392, %v1330
      %v1394 = vadd.f32 %v1393, %v1331
      %v1395 = vadd.f32 %v1394, %v1332
      %v1396 = vadd.f32 %v1395, %v1333
      %v1397 = vadd.f32 %v1396, %v1334
      %v1398 = vadd.f32 %v1397, %v1335
      %v1399 = vadd.f32 %v1398, %v1336
      %v1400 = vadd.f32 %v1399, %v1337
      %v1401 = vadd.f32 %v1400, %v1338
      %v1402 = vadd.f32 %v1401, %v1339
      %v1403 = vadd.f32 %v1402, %v1340
      %v1404 = vadd.f32 %v1403, %v1341
      %v1405 = vadd.f32 %v1404, %v1342
      %v1406 = vadd.f32 %v1405, %v1343
      %v1407 = vadd.f32 %v1406, %v1344
      %v1408 = vadd.f32 %v1407, %v1345
      %v1409 = vadd.f32 %v1408, %v1346
      %v1410 = vadd.f32 %v1409, %v1347
      %v1411 = vadd.f32 %v1410, %v1348
      %v1412 = vadd.f32 %v1411, %v1349
      %v1413 = vadd.f32 %v1412, %v1350
      %v1414 = vadd.f32 %v1413, %v1351
      %v1415 = vrot.slane %v1414, 4
      %v1416 = vadd.f32 %v1414, %v1415
      %v1417 = vrot.slane %v1416, 2
      %v1418 = vadd.f32 %v1416, %v1417
      %v1419 = vrot.slane %v1418, 1
      %v1420 = vadd.f32 %v1418, %v1419
      %1421 = vst [vmem:[%s238 + $0x1] sm:$0x1] %v1420
      %s1422 = smul.u32 64, %s17
      %p1423 = scmp.lt.s32.totalorder %s1422, 191
      %s1424 = scalar_select %p1423, %s1422, 191
      %s1425 = smul.addr %s1424, 8
      %s1426 = scalar_lea.vmem %s4, %s1425
      %p1427 = scmp.lt.s32.totalorder %s17, 2
      %s1428 = scalar_select %p1427, %s17, 2
      %s1429 = smul.addr %s1428, 2
      %s1430 = scalar_lea.vmem %s5, %s1429
      // Predicated region
      $region37: #{bottleneck_forward.9} parent=35 // pred_check
        %p1431 = pneg %p124
      $region38: #{bottleneck_forward.9} parent=35 // pred_check_branch
        %1433 = sbr.rel (%p1431) target = $region40
      $region39: #{bottleneck_forward.9} parent=35 // pred_region
        %s1434 = smul.u32 64, %s17
      $region40: #{bottleneck_forward.9} parent=35 // pred_fallthru
        _
      // Predicated region
      $region41: #{bottleneck_forward.9} parent=35 // pred_check
        %p1435 = pneg %p150
      $region42: #{bottleneck_forward.9} parent=35 // pred_check_branch
        %1437 = sbr.rel (%p1435) target = $region44
      $region43: #{bottleneck_forward.9} parent=35 // pred_region
        _
      $region44: #{bottleneck_forward.9} parent=35 // pred_fallthru
        _
    $region36: #{bottleneck_forward.9} parent=5 // pred_fallthru
      _
    %p1438 = scmp.le.s32.totalorder 2, %s12
    // Predicated region
    $region45: #{bottleneck_forward.9} parent=5 // pred_check
      %p1439 = pneg %p1438
    $region46: #{bottleneck_forward.9} parent=5 // pred_check_branch
      %1441 = sbr.rel (%p1439) target = $region48
    $region47: #{bottleneck_forward.9} parent=5 // pred_region
      %s1442 = ssub.s32 %s12, 2
      // Predicated region
      $region49: #{bottleneck_forward.9} parent=47 // pred_check
        %p1443 = pneg %p130
      $region50: #{bottleneck_forward.9} parent=47 // pred_check_branch
        %1445 = sbr.rel (%p1443) target = $region52
      $region51: #{bottleneck_forward.9} parent=47 // pred_region
        %s1446 = smul.u32 64, %s18
        %p1447 = scmp.lt.s32.totalorder %s1446, 191
        %s1448 = scalar_select %p1447, %s1446, 191
        %s1449 = smul.addr %s1448, 8
        %s1450 = scalar_lea.vmem %s4, %s1449
      $region52: #{bottleneck_forward.9} parent=47 // pred_fallthru
        _
      // Predicated region
      $region53: #{bottleneck_forward.9} parent=47 // pred_check
        %p1451 = pneg %p156
      $region54: #{bottleneck_forward.9} parent=47 // pred_check_branch
        %1453 = sbr.rel (%p1451) target = $region56
      $region55: #{bottleneck_forward.9} parent=47 // pred_region
        %p1454 = scmp.lt.s32.totalorder %s18, 2
        %s1455 = scalar_select %p1454, %s18, 2
        %s1456 = smul.addr %s1455, 2
        %s1457 = scalar_lea.vmem %s5, %s1456
      $region56: #{bottleneck_forward.9} parent=47 // pred_fallthru
        _
    $region48: #{bottleneck_forward.9} parent=5 // pred_fallthru
      _
  $region6: #{bottleneck_forward.9} parent=0 // loop_footer
    %s16 = sadd.s32 1, %s12
  $region7: #{bottleneck_forward.9} parent=0 // loop_footer_branch
    %11 = sbr.rel target = $region3
  $region8: #{bottleneck_forward.9} parent=0 // loop_exit
    _

// kernel: bottleneck_forward.8
$region0: #{bottleneck_forward.8}
  #allocation0 [shape = 'u32[]', space=smem, size = 0x4, offset = 0x4, fixed_abs, tag = 'smem constant byte address 0x4 - core index']
  #allocation1 [shape = 'u32[144,128]{1,0:T(1,128)}', space=vmem, size = 0x12000, scoped, tag = 'internal scratch']
  %s0 = inlined_call_operand.vmem [shape: bf16[1536,1152], index: 0, kind: input, shape index: {}]
  %s1 = inlined_call_operand.vmem [shape: bf16[1152,128], index: 1, kind: input, shape index: {}]
  %s2 = inlined_call_operand.vmem [shape: f32[1536,128], index: 2, kind: output, shape index: {0}]
  %s3 = inlined_call_operand.vmem [shape: f32[3,2,128], index: 3, kind: output, shape index: {1}]
  %4 = xla_tuple %s2, %s3
  %s5 = sld [smem:[#allocation0]]
  $region49: #{bottleneck_forward.8} parent=0
    _
  %s7 = ssub.s32 1, %s5
  %s8 = scalar_select 0, %s7, %s5
  loop: start=0, step=1, limit=5
  $region2: #{bottleneck_forward.8} parent=0 // loop_pre_header
    _
  $region3: #{bottleneck_forward.8} parent=0 // loop_header
    %s10 = sphi 0, %s14
    %p11 = scmp.ge.s32.totalorder %s10, 5
    %s20 = sphi 0, %s22
    %s23 = sphi 0, %s20
    %s24 = sphi 0, %s23
    %s40 = sphi 0, %s24
    %s44 = sphi 0, %s44
    %s46 = sphi 0, %s44
    %s47 = sphi 0, %s46
    %s61 = sphi 0, %s47
    %s67 = sphi 0, %s69
    %s70 = sphi 0, %s67
    %s71 = sphi 0, %s70
    %s87 = sphi 0, %s71
    %s93 = sphi 0, %s95
    %s96 = sphi 0, %s93
    %s97 = sphi 0, %s96
    %s113 = sphi 0, %s97
  $region4: #{bottleneck_forward.8} parent=0 // loop_header_branch
    %13 = sbr.rel (%p11) target = $region8
  $region5: #{bottleneck_forward.8} parent=0 // loop_body
    %s15 = ssub.s32 %s10, 1
    %s16 = ssub.s32 %s10, 2
    %s17 = sadd.s32 %s10, 1
    %s18 = ssub.s32 %s10, %s17
    %p19 = scmp.eq.s32.totalorder %s18, 0
    %s21 = sadd.s32 %s20, 1
    %s22 = scalar_select %p19, %s20, %s21
    %p25 = pneg %p19
    %p26 = scmp.eq.s32.totalorder %s10, 2
    %p27 = por %p25, %p26
    %p28 = scmp.ne.s32.totalorder %s20, %s23
    %p29 = scmp.eq.s32.totalorder %s10, 0
    %p30 = por %p28, %p29
    %p31 = scmp.ne.s32.totalorder %s20, %s23
    %p32 = scmp.eq.s32.totalorder %s15, 2
    %p33 = por %p31, %p32
    %p34 = scmp.ne.s32.totalorder %s23, %s24
    %p35 = scmp.eq.s32.totalorder %s15, 0
    %p36 = por %p34, %p35
    %p37 = scmp.ne.s32.totalorder %s23, %s24
    %p38 = scmp.eq.s32.totalorder %s16, 2
    %p39 = por %p37, %p38
    %p41 = scmp.ne.s32.totalorder %s24, %s40
    %p42 = scmp.eq.s32.totalorder %s16, 0
    %p43 = por %p41, %p42
    %s45 = sadd.s32 %s44, 1
    %p48 = scmp.eq.s32.totalorder %s10, 2
    %p49 = scmp.ne.s32.totalorder %s44, %s46
    %p50 = scmp.eq.s32.totalorder %s10, 0
    %p51 = por %p49, %p50
    %p52 = scmp.ne.s32.totalorder %s44, %s46
    %p53 = scmp.eq.s32.totalorder %s15, 2
    %p54 = por %p52, %p53
    %p55 = scmp.ne.s32.totalorder %s46, %s47
    %p56 = scmp.eq.s32.totalorder %s15, 0
    %p57 = por %p55, %p56
    %p58 = scmp.ne.s32.totalorder %s46, %s47
    %p59 = scmp.eq.s32.totalorder %s16, 2
    %p60 = por %p58, %p59
    %p62 = scmp.ne.s32.totalorder %s47, %s61
    %p63 = scmp.eq.s32.totalorder %s16, 0
    %p64 = por %p62, %p63
    %s65 = ssub.s32 %s10, %s17
    %p66 = scmp.eq.s32.totalorder %s65, 0
    %s68 = sadd.s32 %s67, 1
    %s69 = scalar_select %p66, %s67, %s68
    %p72 = pneg %p66
    %p73 = scmp.eq.s32.totalorder %s10, 2
    %p74 = por %p72, %p73
    %p75 = scmp.ne.s32.totalorder %s67, %s70
    %p76 = scmp.eq.s32.totalorder %s10, 0
    %p77 = por %p75, %p76
    %p78 = scmp.ne.s32.totalorder %s67, %s70
    %p79 = scmp.eq.s32.totalorder %s15, 2
    %p80 = por %p78, %p79
    %p81 = scmp.ne.s32.totalorder %s70, %s71
    %p82 = scmp.eq.s32.totalorder %s15, 0
    %p83 = por %p81, %p82
    %p84 = scmp.ne.s32.totalorder %s70, %s71
    %p85 = scmp.eq.s32.totalorder %s16, 2
    %p86 = por %p84, %p85
    %p88 = scmp.ne.s32.totalorder %s71, %s87
    %p89 = scmp.eq.s32.totalorder %s16, 0
    %p90 = por %p88, %p89
    %s91 = ssub.s32 %s10, %s17
    %p92 = scmp.eq.s32.totalorder %s91, 0
    %s94 = sadd.s32 %s93, 1
    %s95 = scalar_select %p92, %s93, %s94
    %p98 = pneg %p92
    %p99 = scmp.eq.s32.totalorder %s10, 2
    %p100 = por %p98, %p99
    %p101 = scmp.ne.s32.totalorder %s93, %s96
    %p102 = scmp.eq.s32.totalorder %s10, 0
    %p103 = por %p101, %p102
    %p104 = scmp.ne.s32.totalorder %s93, %s96
    %p105 = scmp.eq.s32.totalorder %s15, 2
    %p106 = por %p104, %p105
    %p107 = scmp.ne.s32.totalorder %s96, %s97
    %p108 = scmp.eq.s32.totalorder %s15, 0
    %p109 = por %p107, %p108
    %p110 = scmp.ne.s32.totalorder %s96, %s97
    %p111 = scmp.eq.s32.totalorder %s16, 2
    %p112 = por %p110, %p111
    %p114 = scmp.ne.s32.totalorder %s97, %s113
    %p115 = scmp.eq.s32.totalorder %s16, 0
    %p116 = por %p114, %p115
    %p117 = scmp.le.s32.totalorder 1, %s10
    %p118 = scmp.lt.s32.totalorder %s10, 4
    %p119 = pnand %p117, %p118
    %p120 = pneg %p119
    // Predicated region
    $region9: #{bottleneck_forward.8} parent=5 // pred_check
      _
    $region10: #{bottleneck_forward.8} parent=5 // pred_check_branch
      %122 = sbr.rel (%p119) target = $region12
    $region11: #{bottleneck_forward.8} parent=5 // pred_region
      %s123 = ssub.s32 %s10, 1
      // Predicated region
      $region13: #{bottleneck_forward.8} parent=11 // pred_check
        %p124 = pneg %p57
      $region14: #{bottleneck_forward.8} parent=11 // pred_check_branch
        %126 = sbr.rel (%p124) target = $region16
      $region15: #{bottleneck_forward.8} parent=11 // pred_region
        _
      $region16: #{bottleneck_forward.8} parent=11 // pred_fallthru
        _
    $region12: #{bottleneck_forward.8} parent=5 // pred_fallthru
      _
    %p127 = scmp.lt.s32.totalorder %s10, 3
    // Predicated region
    $region17: #{bottleneck_forward.8} parent=5 // pred_check
      %p128 = pneg %p127
    $region18: #{bottleneck_forward.8} parent=5 // pred_check_branch
      %130 = sbr.rel (%p128) target = $region20
    $region19: #{bottleneck_forward.8} parent=5 // pred_region
      // Predicated region
      $region21: #{bottleneck_forward.8} parent=19 // pred_check
        %p131 = pneg %p30
      $region22: #{bottleneck_forward.8} parent=19 // pred_check_branch
        %133 = sbr.rel (%p131) target = $region24
      $region23: #{bottleneck_forward.8} parent=19 // pred_region
        %s134 = smul.u32 64, %s10
        %p135 = scmp.lt.s32.totalorder %s134, 191
        %s136 = scalar_select %p135, %s134, 191
        %s137 = smul.addr %s136, 9
        %s138 = smul.addr %s137, 4
        %s139 = scalar_lea.vmem %s0, %s138
        %s140 = smul.u32 64, %s10
      $region24: #{bottleneck_forward.8} parent=19 // pred_fallthru
        _
    $region20: #{bottleneck_forward.8} parent=5 // pred_fallthru
      _
    %p141 = scmp.le.s32.totalorder 1, %s10
    %p142 = scmp.lt.s32.totalorder %s10, 4
    %p143 = pnand %p141, %p142
    %p144 = pneg %p143
    // Predicated region
    $region25: #{bottleneck_forward.8} parent=5 // pred_check
      _
    $region26: #{bottleneck_forward.8} parent=5 // pred_check_branch
      %146 = sbr.rel (%p143) target = $region28
    $region27: #{bottleneck_forward.8} parent=5 // pred_region
      %s147 = ssub.s32 %s10, 1
      %s148 = smul.u32 64, %s15
      %p149 = scmp.lt.s32.totalorder %s148, 191
      %s150 = scalar_select %p149, %s148, 191
      %s151 = smul.addr %s150, 9
      %s152 = smul.addr %s151, 4
      %s153 = scalar_lea.vmem %s0, %s152
      %p154 = pneg %p36
      %p155 = pneg %p33
      %p156 = pneg %p57
      %p157 = pneg %p54
      %p158 = pneg %p83
      %p159 = pneg %p80
      %s160 = smul.u32 64, %s15
      %p161 = scmp.lt.s32.totalorder %s160, 191
      %s162 = scalar_select %p161, %s160, 191
      %s163 = smul.addr %s162, 8
      %s164 = scalar_lea.vmem %s2, %s163
      %p165 = pneg %p109
      %p166 = pneg %p106
      %p167 = scmp.lt.s32.totalorder %s15, 2
      %s168 = scalar_select %p167, %s15, 2
      %s169 = smul.addr %s168, 2
      %s170 = scalar_lea.vmem %s3, %s169
      %s171 = smul.u32 64, %s15
      %p172 = scmp.lt.s32.totalorder %s171, 191
      %s173 = scalar_select %p172, %s171, 191
      %s174 = smul.addr %s173, 9
      %s175 = smul.addr %s174, 4
      %s176 = scalar_lea.vmem %s0, %s175
      %s177 = smul.u32 64, %s15
      %s178 = smul.u32 64, %s15
      %p179 = scmp.lt.s32.totalorder %s178, 191
      %s180 = scalar_select %p179, %s178, 191
      %s181 = smul.addr %s180, 8
      %s182 = scalar_lea.vmem %s2, %s181
      %s183 = smul.u32 64, %s15
      %p184 = scmp.lt.s32.totalorder %s15, 2
      %s185 = scalar_select %p184, %s15, 2
      %s186 = smul.addr %s185, 2
      %s187 = scalar_lea.vmem %s3, %s186
      %v189 = vld [vmem:[%s176] sm:$0xff]
      %v190 = vld [vmem:[%s176 + $0x8] sm:$0xff]
      %v191 = vld [vmem:[%s176 + $0x10] sm:$0xff]
      %v192 = vld [vmem:[%s176 + $0x18] sm:$0xff]
      %v193 = vld [vmem:[%s176 + $0x20] sm:$0xf]
      %v194 = vld [vmem:[%s176 + $0x24] sm:$0xff]
      %v195 = vld [vmem:[%s176 + $0x2c] sm:$0xff]
      %v196 = vld [vmem:[%s176 + $0x34] sm:$0xff]
      %v197 = vld [vmem:[%s176 + $0x3c] sm:$0xff]
      %v198 = vld [vmem:[%s176 + $0x44] sm:$0xf]
      %v199 = vld [vmem:[%s176 + $0x48] sm:$0xff]
      %v200 = vld [vmem:[%s176 + $0x50] sm:$0xff]
      %v201 = vld [vmem:[%s176 + $0x58] sm:$0xff]
      %v202 = vld [vmem:[%s176 + $0x60] sm:$0xff]
      %v203 = vld [vmem:[%s176 + $0x68] sm:$0xf]
      %v204 = vld [vmem:[%s176 + $0x6c] sm:$0xff]
      %v205 = vld [vmem:[%s176 + $0x74] sm:$0xff]
      %v206 = vld [vmem:[%s176 + $0x7c] sm:$0xff]
      %v207 = vld [vmem:[%s176 + $0x84] sm:$0xff]
      %v208 = vld [vmem:[%s176 + $0x8c] sm:$0xf]
      %v209 = vld [vmem:[%s176 + $0x90] sm:$0xff]
      %v210 = vld [vmem:[%s176 + $0x98] sm:$0xff]
      %v211 = vld [vmem:[%s176 + $0xa0] sm:$0xff]
      %v212 = vld [vmem:[%s176 + $0xa8] sm:$0xff]
      %v213 = vld [vmem:[%s176 + $0xb0] sm:$0xf]
      %v214 = vld [vmem:[%s176 + $0xb4] sm:$0xff]
      %v215 = vld [vmem:[%s176 + $0xbc] sm:$0xff]
      %v216 = vld [vmem:[%s176 + $0xc4] sm:$0xff]
      %v217 = vld [vmem:[%s176 + $0xcc] sm:$0xff]
      %v218 = vld [vmem:[%s176 + $0xd4] sm:$0xf]
      %v219 = vld [vmem:[%s176 + $0xd8] sm:$0xff]
      %v220 = vld [vmem:[%s176 + $0xe0] sm:$0xff]
      %v221 = vld [vmem:[%s176 + $0xe8] sm:$0xff]
      %v222 = vld [vmem:[%s176 + $0xf0] sm:$0xff]
      %v223 = vld [vmem:[%s176 + $0xf8] sm:$0xf]
      %v224 = vld [vmem:[%s176 + $0xfc] sm:$0xff]
      %v225 = vld [vmem:[%s176 + $0x104] sm:$0xff]
      %v226 = vld [vmem:[%s176 + $0x10c] sm:$0xff]
      %v227 = vld [vmem:[%s176 + $0x114] sm:$0xff]
      %v228 = vld [vmem:[%s176 + $0x11c] sm:$0xf]
      %v229 = vld [vmem:[%s176 + $0x120] sm:$0xff]
      %v230 = vld [vmem:[%s176 + $0x128] sm:$0xff]
      %v231 = vld [vmem:[%s176 + $0x130] sm:$0xff]
      %v232 = vld [vmem:[%s176 + $0x138] sm:$0xff]
      %v233 = vld [vmem:[%s176 + $0x140] sm:$0xf]
      %v234 = vld [vmem:[%s176 + $0x144] sm:$0xff]
      %v235 = vld [vmem:[%s176 + $0x14c] sm:$0xff]
      %v236 = vld [vmem:[%s176 + $0x154] sm:$0xff]
      %v237 = vld [vmem:[%s176 + $0x15c] sm:$0xff]
      %v238 = vld [vmem:[%s176 + $0x164] sm:$0xf]
      %v239 = vld [vmem:[%s176 + $0x168] sm:$0xff]
      %v240 = vld [vmem:[%s176 + $0x170] sm:$0xff]
      %v241 = vld [vmem:[%s176 + $0x178] sm:$0xff]
      %v242 = vld [vmem:[%s176 + $0x180] sm:$0xff]
      %v243 = vld [vmem:[%s176 + $0x188] sm:$0xf]
      %v244 = vld [vmem:[%s176 + $0x18c] sm:$0xff]
      %v245 = vld [vmem:[%s176 + $0x194] sm:$0xff]
      %v246 = vld [vmem:[%s176 + $0x19c] sm:$0xff]
      %v247 = vld [vmem:[%s176 + $0x1a4] sm:$0xff]
      %v248 = vld [vmem:[%s176 + $0x1ac] sm:$0xf]
      %v249 = vld [vmem:[%s176 + $0x1b0] sm:$0xff]
      %v250 = vld [vmem:[%s176 + $0x1b8] sm:$0xff]
      %v251 = vld [vmem:[%s176 + $0x1c0] sm:$0xff]
      %v252 = vld [vmem:[%s176 + $0x1c8] sm:$0xff]
      %v253 = vld [vmem:[%s176 + $0x1d0] sm:$0xf]
      %v254 = vld [vmem:[%s176 + $0x1d4] sm:$0xff]
      %v255 = vld [vmem:[%s176 + $0x1dc] sm:$0xff]
      %v256 = vld [vmem:[%s176 + $0x1e4] sm:$0xff]
      %v257 = vld [vmem:[%s176 + $0x1ec] sm:$0xff]
      %v258 = vld [vmem:[%s176 + $0x1f4] sm:$0xf]
      %v259 = vld [vmem:[%s176 + $0x1f8] sm:$0xff]
      %v260 = vld [vmem:[%s176 + $0x200] sm:$0xff]
      %v261 = vld [vmem:[%s176 + $0x208] sm:$0xff]
      %v262 = vld [vmem:[%s176 + $0x210] sm:$0xff]
      %v263 = vld [vmem:[%s176 + $0x218] sm:$0xf]
      %v264 = vld [vmem:[%s176 + $0x21c] sm:$0xff]
      %v265 = vld [vmem:[%s176 + $0x224] sm:$0xff]
      %v266 = vld [vmem:[%s176 + $0x22c] sm:$0xff]
      %v267 = vld [vmem:[%s176 + $0x234] sm:$0xff]
      %v268 = vld [vmem:[%s176 + $0x23c] sm:$0xf]
      %v269 = vld [vmem:[%s176 + $0x240] sm:$0xff]
      %v270 = vld [vmem:[%s176 + $0x248] sm:$0xff]
      %v271 = vld [vmem:[%s176 + $0x250] sm:$0xff]
      %v272 = vld [vmem:[%s176 + $0x258] sm:$0xff]
      %v273 = vld [vmem:[%s176 + $0x260] sm:$0xf]
      %v274 = vld [vmem:[%s176 + $0x264] sm:$0xff]
      %v275 = vld [vmem:[%s176 + $0x26c] sm:$0xff]
      %v276 = vld [vmem:[%s176 + $0x274] sm:$0xff]
      %v277 = vld [vmem:[%s176 + $0x27c] sm:$0xff]
      %v278 = vld [vmem:[%s176 + $0x284] sm:$0xf]
      %v279 = vld [vmem:[%s176 + $0x288] sm:$0xff]
      %v280 = vld [vmem:[%s176 + $0x290] sm:$0xff]
      %v281 = vld [vmem:[%s176 + $0x298] sm:$0xff]
      %v282 = vld [vmem:[%s176 + $0x2a0] sm:$0xff]
      %v283 = vld [vmem:[%s176 + $0x2a8] sm:$0xf]
      %v284 = vld [vmem:[%s176 + $0x2ac] sm:$0xff]
      %v285 = vld [vmem:[%s176 + $0x2b4] sm:$0xff]
      %v286 = vld [vmem:[%s176 + $0x2bc] sm:$0xff]
      %v287 = vld [vmem:[%s176 + $0x2c4] sm:$0xff]
      %v288 = vld [vmem:[%s176 + $0x2cc] sm:$0xf]
      %v289 = vld [vmem:[%s176 + $0x2d0] sm:$0xff]
      %v290 = vld [vmem:[%s176 + $0x2d8] sm:$0xff]
      %v291 = vld [vmem:[%s176 + $0x2e0] sm:$0xff]
      %v292 = vld [vmem:[%s176 + $0x2e8] sm:$0xff]
      %v293 = vld [vmem:[%s176 + $0x2f0] sm:$0xf]
      %v294 = vld [vmem:[%s176 + $0x2f4] sm:$0xff]
      %v295 = vld [vmem:[%s176 + $0x2fc] sm:$0xff]
      %v296 = vld [vmem:[%s176 + $0x304] sm:$0xff]
      %v297 = vld [vmem:[%s176 + $0x30c] sm:$0xff]
      %v298 = vld [vmem:[%s176 + $0x314] sm:$0xf]
      %v299 = vld [vmem:[%s176 + $0x318] sm:$0xff]
      %v300 = vld [vmem:[%s176 + $0x320] sm:$0xff]
      %v301 = vld [vmem:[%s176 + $0x328] sm:$0xff]
      %v302 = vld [vmem:[%s176 + $0x330] sm:$0xff]
      %v303 = vld [vmem:[%s176 + $0x338] sm:$0xf]
      %v304 = vld [vmem:[%s176 + $0x33c] sm:$0xff]
      %v305 = vld [vmem:[%s176 + $0x344] sm:$0xff]
      %v306 = vld [vmem:[%s176 + $0x34c] sm:$0xff]
      %v307 = vld [vmem:[%s176 + $0x354] sm:$0xff]
      %v308 = vld [vmem:[%s176 + $0x35c] sm:$0xf]
      %v309 = vld [vmem:[%s176 + $0x360] sm:$0xff]
      %v310 = vld [vmem:[%s176 + $0x368] sm:$0xff]
      %v311 = vld [vmem:[%s176 + $0x370] sm:$0xff]
      %v312 = vld [vmem:[%s176 + $0x378] sm:$0xff]
      %v313 = vld [vmem:[%s176 + $0x380] sm:$0xf]
      %v314 = vld [vmem:[%s176 + $0x384] sm:$0xff]
      %v315 = vld [vmem:[%s176 + $0x38c] sm:$0xff]
      %v316 = vld [vmem:[%s176 + $0x394] sm:$0xff]
      %v317 = vld [vmem:[%s176 + $0x39c] sm:$0xff]
      %v318 = vld [vmem:[%s176 + $0x3a4] sm:$0xf]
      %v319 = vld [vmem:[%s176 + $0x3a8] sm:$0xff]
      %v320 = vld [vmem:[%s176 + $0x3b0] sm:$0xff]
      %v321 = vld [vmem:[%s176 + $0x3b8] sm:$0xff]
      %v322 = vld [vmem:[%s176 + $0x3c0] sm:$0xff]
      %v323 = vld [vmem:[%s176 + $0x3c8] sm:$0xf]
      %v324 = vld [vmem:[%s176 + $0x3cc] sm:$0xff]
      %v325 = vld [vmem:[%s176 + $0x3d4] sm:$0xff]
      %v326 = vld [vmem:[%s176 + $0x3dc] sm:$0xff]
      %v327 = vld [vmem:[%s176 + $0x3e4] sm:$0xff]
      %v328 = vld [vmem:[%s176 + $0x3ec] sm:$0xf]
      %v329 = vld [vmem:[%s176 + $0x3f0] sm:$0xff]
      %v330 = vld [vmem:[%s176 + $0x3f8] sm:$0xff]
      %v331 = vld [vmem:[%s176 + $0x400] sm:$0xff]
      %v332 = vld [vmem:[%s176 + $0x408] sm:$0xff]
      %v333 = vld [vmem:[%s176 + $0x410] sm:$0xf]
      %v334 = vld [vmem:[%s176 + $0x414] sm:$0xff]
      %v335 = vld [vmem:[%s176 + $0x41c] sm:$0xff]
      %v336 = vld [vmem:[%s176 + $0x424] sm:$0xff]
      %v337 = vld [vmem:[%s176 + $0x42c] sm:$0xff]
      %v338 = vld [vmem:[%s176 + $0x434] sm:$0xf]
      %v339 = vld [vmem:[%s176 + $0x438] sm:$0xff]
      %v340 = vld [vmem:[%s176 + $0x440] sm:$0xff]
      %v341 = vld [vmem:[%s176 + $0x448] sm:$0xff]
      %v342 = vld [vmem:[%s176 + $0x450] sm:$0xff]
      %v343 = vld [vmem:[%s176 + $0x458] sm:$0xf]
      %v344 = vld [vmem:[%s176 + $0x45c] sm:$0xff]
      %v345 = vld [vmem:[%s176 + $0x464] sm:$0xff]
      %v346 = vld [vmem:[%s176 + $0x46c] sm:$0xff]
      %v347 = vld [vmem:[%s176 + $0x474] sm:$0xff]
      %v348 = vld [vmem:[%s176 + $0x47c] sm:$0xf]
      %v349 = vld [vmem:[%s176 + $0x480] sm:$0xff]
      %v350 = vld [vmem:[%s176 + $0x488] sm:$0xff]
      %v351 = vld [vmem:[%s176 + $0x490] sm:$0xff]
      %v352 = vld [vmem:[%s176 + $0x498] sm:$0xff]
      %v353 = vld [vmem:[%s176 + $0x4a0] sm:$0xf]
      %v354 = vld [vmem:[%s176 + $0x4a4] sm:$0xff]
      %v355 = vld [vmem:[%s176 + $0x4ac] sm:$0xff]
      %v356 = vld [vmem:[%s176 + $0x4b4] sm:$0xff]
      %v357 = vld [vmem:[%s176 + $0x4bc] sm:$0xff]
      %v358 = vld [vmem:[%s176 + $0x4c4] sm:$0xf]
      %v359 = vld [vmem:[%s176 + $0x4c8] sm:$0xff]
      %v360 = vld [vmem:[%s176 + $0x4d0] sm:$0xff]
      %v361 = vld [vmem:[%s176 + $0x4d8] sm:$0xff]
      %v362 = vld [vmem:[%s176 + $0x4e0] sm:$0xff]
      %v363 = vld [vmem:[%s176 + $0x4e8] sm:$0xf]
      %v364 = vld [vmem:[%s176 + $0x4ec] sm:$0xff]
      %v365 = vld [vmem:[%s176 + $0x4f4] sm:$0xff]
      %v366 = vld [vmem:[%s176 + $0x4fc] sm:$0xff]
      %v367 = vld [vmem:[%s176 + $0x504] sm:$0xff]
      %v368 = vld [vmem:[%s176 + $0x50c] sm:$0xf]
      %v369 = vld [vmem:[%s176 + $0x510] sm:$0xff]
      %v370 = vld [vmem:[%s176 + $0x518] sm:$0xff]
      %v371 = vld [vmem:[%s176 + $0x520] sm:$0xff]
      %v372 = vld [vmem:[%s176 + $0x528] sm:$0xff]
      %v373 = vld [vmem:[%s176 + $0x530] sm:$0xf]
      %v374 = vld [vmem:[%s176 + $0x534] sm:$0xff]
      %v375 = vld [vmem:[%s176 + $0x53c] sm:$0xff]
      %v376 = vld [vmem:[%s176 + $0x544] sm:$0xff]
      %v377 = vld [vmem:[%s176 + $0x54c] sm:$0xff]
      %v378 = vld [vmem:[%s176 + $0x554] sm:$0xf]
      %v379 = vld [vmem:[%s176 + $0x558] sm:$0xff]
      %v380 = vld [vmem:[%s176 + $0x560] sm:$0xff]
      %v381 = vld [vmem:[%s176 + $0x568] sm:$0xff]
      %v382 = vld [vmem:[%s176 + $0x570] sm:$0xff]
      %v383 = vld [vmem:[%s176 + $0x578] sm:$0xf]
      %v384 = vld [vmem:[%s176 + $0x57c] sm:$0xff]
      %v385 = vld [vmem:[%s176 + $0x584] sm:$0xff]
      %v386 = vld [vmem:[%s176 + $0x58c] sm:$0xff]
      %v387 = vld [vmem:[%s176 + $0x594] sm:$0xff]
      %v388 = vld [vmem:[%s176 + $0x59c] sm:$0xf]
      %v389 = vld [vmem:[%s176 + $0x5a0] sm:$0xff]
      %v390 = vld [vmem:[%s176 + $0x5a8] sm:$0xff]
      %v391 = vld [vmem:[%s176 + $0x5b0] sm:$0xff]
      %v392 = vld [vmem:[%s176 + $0x5b8] sm:$0xff]
      %v393 = vld [vmem:[%s176 + $0x5c0] sm:$0xf]
      %v394 = vld [vmem:[%s176 + $0x5c4] sm:$0xff]
      %v395 = vld [vmem:[%s176 + $0x5cc] sm:$0xff]
      %v396 = vld [vmem:[%s176 + $0x5d4] sm:$0xff]
      %v397 = vld [vmem:[%s176 + $0x5dc] sm:$0xff]
      %v398 = vld [vmem:[%s176 + $0x5e4] sm:$0xf]
      %v399 = vld [vmem:[%s176 + $0x5e8] sm:$0xff]
      %v400 = vld [vmem:[%s176 + $0x5f0] sm:$0xff]
      %v401 = vld [vmem:[%s176 + $0x5f8] sm:$0xff]
      %v402 = vld [vmem:[%s176 + $0x600] sm:$0xff]
      %v403 = vld [vmem:[%s176 + $0x608] sm:$0xf]
      %v404 = vld [vmem:[%s176 + $0x60c] sm:$0xff]
      %v405 = vld [vmem:[%s176 + $0x614] sm:$0xff]
      %v406 = vld [vmem:[%s176 + $0x61c] sm:$0xff]
      %v407 = vld [vmem:[%s176 + $0x624] sm:$0xff]
      %v408 = vld [vmem:[%s176 + $0x62c] sm:$0xf]
      %v409 = vld [vmem:[%s176 + $0x630] sm:$0xff]
      %v410 = vld [vmem:[%s176 + $0x638] sm:$0xff]
      %v411 = vld [vmem:[%s176 + $0x640] sm:$0xff]
      %v412 = vld [vmem:[%s176 + $0x648] sm:$0xff]
      %v413 = vld [vmem:[%s176 + $0x650] sm:$0xf]
      %v414 = vld [vmem:[%s176 + $0x654] sm:$0xff]
      %v415 = vld [vmem:[%s176 + $0x65c] sm:$0xff]
      %v416 = vld [vmem:[%s176 + $0x664] sm:$0xff]
      %v417 = vld [vmem:[%s176 + $0x66c] sm:$0xff]
      %v418 = vld [vmem:[%s176 + $0x674] sm:$0xf]
      %v419 = vld [vmem:[%s176 + $0x678] sm:$0xff]
      %v420 = vld [vmem:[%s176 + $0x680] sm:$0xff]
      %v421 = vld [vmem:[%s176 + $0x688] sm:$0xff]
      %v422 = vld [vmem:[%s176 + $0x690] sm:$0xff]
      %v423 = vld [vmem:[%s176 + $0x698] sm:$0xf]
      %v424 = vld [vmem:[%s176 + $0x69c] sm:$0xff]
      %v425 = vld [vmem:[%s176 + $0x6a4] sm:$0xff]
      %v426 = vld [vmem:[%s176 + $0x6ac] sm:$0xff]
      %v427 = vld [vmem:[%s176 + $0x6b4] sm:$0xff]
      %v428 = vld [vmem:[%s176 + $0x6bc] sm:$0xf]
      %v429 = vld [vmem:[%s176 + $0x6c0] sm:$0xff]
      %v430 = vld [vmem:[%s176 + $0x6c8] sm:$0xff]
      %v431 = vld [vmem:[%s176 + $0x6d0] sm:$0xff]
      %v432 = vld [vmem:[%s176 + $0x6d8] sm:$0xff]
      %v433 = vld [vmem:[%s176 + $0x6e0] sm:$0xf]
      %v434 = vld [vmem:[%s176 + $0x6e4] sm:$0xff]
      %v435 = vld [vmem:[%s176 + $0x6ec] sm:$0xff]
      %v436 = vld [vmem:[%s176 + $0x6f4] sm:$0xff]
      %v437 = vld [vmem:[%s176 + $0x6fc] sm:$0xff]
      %v438 = vld [vmem:[%s176 + $0x704] sm:$0xf]
      %v439 = vld [vmem:[%s176 + $0x708] sm:$0xff]
      %v440 = vld [vmem:[%s176 + $0x710] sm:$0xff]
      %v441 = vld [vmem:[%s176 + $0x718] sm:$0xff]
      %v442 = vld [vmem:[%s176 + $0x720] sm:$0xff]
      %v443 = vld [vmem:[%s176 + $0x728] sm:$0xf]
      %v444 = vld [vmem:[%s176 + $0x72c] sm:$0xff]
      %v445 = vld [vmem:[%s176 + $0x734] sm:$0xff]
      %v446 = vld [vmem:[%s176 + $0x73c] sm:$0xff]
      %v447 = vld [vmem:[%s176 + $0x744] sm:$0xff]
      %v448 = vld [vmem:[%s176 + $0x74c] sm:$0xf]
      %v449 = vld [vmem:[%s176 + $0x750] sm:$0xff]
      %v450 = vld [vmem:[%s176 + $0x758] sm:$0xff]
      %v451 = vld [vmem:[%s176 + $0x760] sm:$0xff]
      %v452 = vld [vmem:[%s176 + $0x768] sm:$0xff]
      %v453 = vld [vmem:[%s176 + $0x770] sm:$0xf]
      %v454 = vld [vmem:[%s176 + $0x774] sm:$0xff]
      %v455 = vld [vmem:[%s176 + $0x77c] sm:$0xff]
      %v456 = vld [vmem:[%s176 + $0x784] sm:$0xff]
      %v457 = vld [vmem:[%s176 + $0x78c] sm:$0xff]
      %v458 = vld [vmem:[%s176 + $0x794] sm:$0xf]
      %v459 = vld [vmem:[%s176 + $0x798] sm:$0xff]
      %v460 = vld [vmem:[%s176 + $0x7a0] sm:$0xff]
      %v461 = vld [vmem:[%s176 + $0x7a8] sm:$0xff]
      %v462 = vld [vmem:[%s176 + $0x7b0] sm:$0xff]
      %v463 = vld [vmem:[%s176 + $0x7b8] sm:$0xf]
      %v464 = vld [vmem:[%s176 + $0x7bc] sm:$0xff]
      %v465 = vld [vmem:[%s176 + $0x7c4] sm:$0xff]
      %v466 = vld [vmem:[%s176 + $0x7cc] sm:$0xff]
      %v467 = vld [vmem:[%s176 + $0x7d4] sm:$0xff]
      %v468 = vld [vmem:[%s176 + $0x7dc] sm:$0xf]
      %v469 = vld [vmem:[%s176 + $0x7e0] sm:$0xff]
      %v470 = vld [vmem:[%s176 + $0x7e8] sm:$0xff]
      %v471 = vld [vmem:[%s176 + $0x7f0] sm:$0xff]
      %v472 = vld [vmem:[%s176 + $0x7f8] sm:$0xff]
      %v473 = vld [vmem:[%s176 + $0x800] sm:$0xf]
      %v474 = vld [vmem:[%s176 + $0x804] sm:$0xff]
      %v475 = vld [vmem:[%s176 + $0x80c] sm:$0xff]
      %v476 = vld [vmem:[%s176 + $0x814] sm:$0xff]
      %v477 = vld [vmem:[%s176 + $0x81c] sm:$0xff]
      %v478 = vld [vmem:[%s176 + $0x824] sm:$0xf]
      %v479 = vld [vmem:[%s176 + $0x828] sm:$0xff]
      %v480 = vld [vmem:[%s176 + $0x830] sm:$0xff]
      %v481 = vld [vmem:[%s176 + $0x838] sm:$0xff]
      %v482 = vld [vmem:[%s176 + $0x840] sm:$0xff]
      %v483 = vld [vmem:[%s176 + $0x848] sm:$0xf]
      %v484 = vld [vmem:[%s176 + $0x84c] sm:$0xff]
      %v485 = vld [vmem:[%s176 + $0x854] sm:$0xff]
      %v486 = vld [vmem:[%s176 + $0x85c] sm:$0xff]
      %v487 = vld [vmem:[%s176 + $0x864] sm:$0xff]
      %v488 = vld [vmem:[%s176 + $0x86c] sm:$0xf]
      %v489 = vld [vmem:[%s176 + $0x870] sm:$0xff]
      %v490 = vld [vmem:[%s176 + $0x878] sm:$0xff]
      %v491 = vld [vmem:[%s176 + $0x880] sm:$0xff]
      %v492 = vld [vmem:[%s176 + $0x888] sm:$0xff]
      %v493 = vld [vmem:[%s176 + $0x890] sm:$0xf]
      %v494 = vld [vmem:[%s176 + $0x894] sm:$0xff]
      %v495 = vld [vmem:[%s176 + $0x89c] sm:$0xff]
      %v496 = vld [vmem:[%s176 + $0x8a4] sm:$0xff]
      %v497 = vld [vmem:[%s176 + $0x8ac] sm:$0xff]
      %v498 = vld [vmem:[%s176 + $0x8b4] sm:$0xf]
      %v499 = vld [vmem:[%s176 + $0x8b8] sm:$0xff]
      %v500 = vld [vmem:[%s176 + $0x8c0] sm:$0xff]
      %v501 = vld [vmem:[%s176 + $0x8c8] sm:$0xff]
      %v502 = vld [vmem:[%s176 + $0x8d0] sm:$0xff]
      %v503 = vld [vmem:[%s176 + $0x8d8] sm:$0xf]
      %v504 = vld [vmem:[%s176 + $0x8dc] sm:$0xff]
      %v505 = vld [vmem:[%s176 + $0x8e4] sm:$0xff]
      %v506 = vld [vmem:[%s176 + $0x8ec] sm:$0xff]
      %v507 = vld [vmem:[%s176 + $0x8f4] sm:$0xff]
      %v508 = vld [vmem:[%s176 + $0x8fc] sm:$0xf]
      %v509 = vld [vmem:[%s1] sm:$0xf]
      %v510 = vld [vmem:[%s1 + $0x4] sm:$0xf]
      %v511 = vld [vmem:[%s1 + $0x8] sm:$0xf]
      %v512 = vld [vmem:[%s1 + $0xc] sm:$0xf]
      %v513 = vld [vmem:[%s1 + $0x10] sm:$0xf]
      %v514 = vld [vmem:[%s1 + $0x14] sm:$0xf]
      %v515 = vld [vmem:[%s1 + $0x18] sm:$0xf]
      %v516 = vld [vmem:[%s1 + $0x1c] sm:$0xf]
      %v517 = vld [vmem:[%s1 + $0x20] sm:$0xf]
      %v518 = vld [vmem:[%s1 + $0x24] sm:$0xf]
      %v519 = vld [vmem:[%s1 + $0x28] sm:$0xf]
      %v520 = vld [vmem:[%s1 + $0x2c] sm:$0xf]
      %v521 = vld [vmem:[%s1 + $0x30] sm:$0xf]
      %v522 = vld [vmem:[%s1 + $0x34] sm:$0xf]
      %v523 = vld [vmem:[%s1 + $0x38] sm:$0xf]
      %v524 = vld [vmem:[%s1 + $0x3c] sm:$0xf]
      %v525 = vld [vmem:[%s1 + $0x40] sm:$0xf]
      %v526 = vld [vmem:[%s1 + $0x44] sm:$0xf]
      %v527 = vld [vmem:[%s1 + $0x48] sm:$0xf]
      %v528 = vld [vmem:[%s1 + $0x4c] sm:$0xf]
      %v529 = vld [vmem:[%s1 + $0x50] sm:$0xf]
      %v530 = vld [vmem:[%s1 + $0x54] sm:$0xf]
      %v531 = vld [vmem:[%s1 + $0x58] sm:$0xf]
      %v532 = vld [vmem:[%s1 + $0x5c] sm:$0xf]
      %v533 = vld [vmem:[%s1 + $0x60] sm:$0xf]
      %v534 = vld [vmem:[%s1 + $0x64] sm:$0xf]
      %v535 = vld [vmem:[%s1 + $0x68] sm:$0xf]
      %v536 = vld [vmem:[%s1 + $0x6c] sm:$0xf]
      %v537 = vld [vmem:[%s1 + $0x70] sm:$0xf]
      %v538 = vld [vmem:[%s1 + $0x74] sm:$0xf]
      %v539 = vld [vmem:[%s1 + $0x78] sm:$0xf]
      %v540 = vld [vmem:[%s1 + $0x7c] sm:$0xf]
      %v541 = vld [vmem:[%s1 + $0x80] sm:$0xf]
      %v542 = vld [vmem:[%s1 + $0x84] sm:$0xf]
      %v543 = vld [vmem:[%s1 + $0x88] sm:$0xf]
      %v544 = vld [vmem:[%s1 + $0x8c] sm:$0xf]
      %v545 = vld [vmem:[%s1 + $0x90] sm:$0xf]
      %v546 = vld [vmem:[%s1 + $0x94] sm:$0xf]
      %v547 = vld [vmem:[%s1 + $0x98] sm:$0xf]
      %v548 = vld [vmem:[%s1 + $0x9c] sm:$0xf]
      %v549 = vld [vmem:[%s1 + $0xa0] sm:$0xf]
      %v550 = vld [vmem:[%s1 + $0xa4] sm:$0xf]
      %v551 = vld [vmem:[%s1 + $0xa8] sm:$0xf]
      %v552 = vld [vmem:[%s1 + $0xac] sm:$0xf]
      %v553 = vld [vmem:[%s1 + $0xb0] sm:$0xf]
      %v554 = vld [vmem:[%s1 + $0xb4] sm:$0xf]
      %v555 = vld [vmem:[%s1 + $0xb8] sm:$0xf]
      %v556 = vld [vmem:[%s1 + $0xbc] sm:$0xf]
      %v557 = vld [vmem:[%s1 + $0xc0] sm:$0xf]
      %v558 = vld [vmem:[%s1 + $0xc4] sm:$0xf]
      %v559 = vld [vmem:[%s1 + $0xc8] sm:$0xf]
      %v560 = vld [vmem:[%s1 + $0xcc] sm:$0xf]
      %v561 = vld [vmem:[%s1 + $0xd0] sm:$0xf]
      %v562 = vld [vmem:[%s1 + $0xd4] sm:$0xf]
      %v563 = vld [vmem:[%s1 + $0xd8] sm:$0xf]
      %v564 = vld [vmem:[%s1 + $0xdc] sm:$0xf]
      %v565 = vld [vmem:[%s1 + $0xe0] sm:$0xf]
      %v566 = vld [vmem:[%s1 + $0xe4] sm:$0xf]
      %v567 = vld [vmem:[%s1 + $0xe8] sm:$0xf]
      %v568 = vld [vmem:[%s1 + $0xec] sm:$0xf]
      %v569 = vld [vmem:[%s1 + $0xf0] sm:$0xf]
      %v570 = vld [vmem:[%s1 + $0xf4] sm:$0xf]
      %v571 = vld [vmem:[%s1 + $0xf8] sm:$0xf]
      %v572 = vld [vmem:[%s1 + $0xfc] sm:$0xf]
      %v573 = vld [vmem:[%s1 + $0x100] sm:$0xf]
      %v574 = vld [vmem:[%s1 + $0x104] sm:$0xf]
      %v575 = vld [vmem:[%s1 + $0x108] sm:$0xf]
      %v576 = vld [vmem:[%s1 + $0x10c] sm:$0xf]
      %v577 = vld [vmem:[%s1 + $0x110] sm:$0xf]
      %v578 = vld [vmem:[%s1 + $0x114] sm:$0xf]
      %v579 = vld [vmem:[%s1 + $0x118] sm:$0xf]
      %v580 = vld [vmem:[%s1 + $0x11c] sm:$0xf]
      %v581 = vld [vmem:[%s1 + $0x120] sm:$0xf]
      %v582 = vld [vmem:[%s1 + $0x124] sm:$0xf]
      %v583 = vld [vmem:[%s1 + $0x128] sm:$0xf]
      %v584 = vld [vmem:[%s1 + $0x12c] sm:$0xf]
      %v585 = vld [vmem:[%s1 + $0x130] sm:$0xf]
      %v586 = vld [vmem:[%s1 + $0x134] sm:$0xf]
      %v587 = vld [vmem:[%s1 + $0x138] sm:$0xf]
      %v588 = vld [vmem:[%s1 + $0x13c] sm:$0xf]
      %v589 = vld [vmem:[%s1 + $0x140] sm:$0xf]
      %v590 = vld [vmem:[%s1 + $0x144] sm:$0xf]
      %v591 = vld [vmem:[%s1 + $0x148] sm:$0xf]
      %v592 = vld [vmem:[%s1 + $0x14c] sm:$0xf]
      %v593 = vld [vmem:[%s1 + $0x150] sm:$0xf]
      %v594 = vld [vmem:[%s1 + $0x154] sm:$0xf]
      %v595 = vld [vmem:[%s1 + $0x158] sm:$0xf]
      %v596 = vld [vmem:[%s1 + $0x15c] sm:$0xf]
      %v597 = vld [vmem:[%s1 + $0x160] sm:$0xf]
      %v598 = vld [vmem:[%s1 + $0x164] sm:$0xf]
      %v599 = vld [vmem:[%s1 + $0x168] sm:$0xf]
      %v600 = vld [vmem:[%s1 + $0x16c] sm:$0xf]
      %v601 = vld [vmem:[%s1 + $0x170] sm:$0xf]
      %v602 = vld [vmem:[%s1 + $0x174] sm:$0xf]
      %v603 = vld [vmem:[%s1 + $0x178] sm:$0xf]
      %v604 = vld [vmem:[%s1 + $0x17c] sm:$0xf]
      %v605 = vld [vmem:[%s1 + $0x180] sm:$0xf]
      %v606 = vld [vmem:[%s1 + $0x184] sm:$0xf]
      %v607 = vld [vmem:[%s1 + $0x188] sm:$0xf]
      %v608 = vld [vmem:[%s1 + $0x18c] sm:$0xf]
      %v609 = vld [vmem:[%s1 + $0x190] sm:$0xf]
      %v610 = vld [vmem:[%s1 + $0x194] sm:$0xf]
      %v611 = vld [vmem:[%s1 + $0x198] sm:$0xf]
      %v612 = vld [vmem:[%s1 + $0x19c] sm:$0xf]
      %v613 = vld [vmem:[%s1 + $0x1a0] sm:$0xf]
      %v614 = vld [vmem:[%s1 + $0x1a4] sm:$0xf]
      %v615 = vld [vmem:[%s1 + $0x1a8] sm:$0xf]
      %v616 = vld [vmem:[%s1 + $0x1ac] sm:$0xf]
      %v617 = vld [vmem:[%s1 + $0x1b0] sm:$0xf]
      %v618 = vld [vmem:[%s1 + $0x1b4] sm:$0xf]
      %v619 = vld [vmem:[%s1 + $0x1b8] sm:$0xf]
      %v620 = vld [vmem:[%s1 + $0x1bc] sm:$0xf]
      %v621 = vld [vmem:[%s1 + $0x1c0] sm:$0xf]
      %v622 = vld [vmem:[%s1 + $0x1c4] sm:$0xf]
      %v623 = vld [vmem:[%s1 + $0x1c8] sm:$0xf]
      %v624 = vld [vmem:[%s1 + $0x1cc] sm:$0xf]
      %v625 = vld [vmem:[%s1 + $0x1d0] sm:$0xf]
      %v626 = vld [vmem:[%s1 + $0x1d4] sm:$0xf]
      %v627 = vld [vmem:[%s1 + $0x1d8] sm:$0xf]
      %v628 = vld [vmem:[%s1 + $0x1dc] sm:$0xf]
      %v629 = vld [vmem:[%s1 + $0x1e0] sm:$0xf]
      %v630 = vld [vmem:[%s1 + $0x1e4] sm:$0xf]
      %v631 = vld [vmem:[%s1 + $0x1e8] sm:$0xf]
      %v632 = vld [vmem:[%s1 + $0x1ec] sm:$0xf]
      %v633 = vld [vmem:[%s1 + $0x1f0] sm:$0xf]
      %v634 = vld [vmem:[%s1 + $0x1f4] sm:$0xf]
      %v635 = vld [vmem:[%s1 + $0x1f8] sm:$0xf]
      %v636 = vld [vmem:[%s1 + $0x1fc] sm:$0xf]
      %v637 = vld [vmem:[%s1 + $0x200] sm:$0xf]
      %v638 = vld [vmem:[%s1 + $0x204] sm:$0xf]
      %v639 = vld [vmem:[%s1 + $0x208] sm:$0xf]
      %v640 = vld [vmem:[%s1 + $0x20c] sm:$0xf]
      %v641 = vld [vmem:[%s1 + $0x210] sm:$0xf]
      %v642 = vld [vmem:[%s1 + $0x214] sm:$0xf]
      %v643 = vld [vmem:[%s1 + $0x218] sm:$0xf]
      %v644 = vld [vmem:[%s1 + $0x21c] sm:$0xf]
      %v645 = vld [vmem:[%s1 + $0x220] sm:$0xf]
      %v646 = vld [vmem:[%s1 + $0x224] sm:$0xf]
      %v647 = vld [vmem:[%s1 + $0x228] sm:$0xf]
      %v648 = vld [vmem:[%s1 + $0x22c] sm:$0xf]
      %v649 = vld [vmem:[%s1 + $0x230] sm:$0xf]
      %v650 = vld [vmem:[%s1 + $0x234] sm:$0xf]
      %v651 = vld [vmem:[%s1 + $0x238] sm:$0xf]
      %v652 = vld [vmem:[%s1 + $0x23c] sm:$0xf]
      %v973 = vunpack.c.l.b16 %v189
      %v974 = vunpack.c.h.b16 %v189
      %v975 = vunpack.c.l.b16 %v190
      %v976 = vunpack.c.h.b16 %v190
      %v977 = vunpack.c.l.b16 %v191
      %v978 = vunpack.c.h.b16 %v191
      %v979 = vunpack.c.l.b16 %v192
      %v980 = vunpack.c.h.b16 %v192
      %v981 = vunpack.c.l.b16 %v193
      %v982 = vunpack.c.l.b16 %v194
      %v983 = vunpack.c.h.b16 %v194
      %v984 = vunpack.c.l.b16 %v195
      %v985 = vunpack.c.h.b16 %v195
      %v986 = vunpack.c.l.b16 %v196
      %v987 = vunpack.c.h.b16 %v196
      %v988 = vunpack.c.l.b16 %v197
      %v989 = vunpack.c.h.b16 %v197
      %v990 = vunpack.c.l.b16 %v198
      %v991 = vunpack.c.l.b16 %v199
      %v992 = vunpack.c.h.b16 %v199
      %v993 = vunpack.c.l.b16 %v200
      %v994 = vunpack.c.h.b16 %v200
      %v995 = vunpack.c.l.b16 %v201
      %v996 = vunpack.c.h.b16 %v201
      %v997 = vunpack.c.l.b16 %v202
      %v998 = vunpack.c.h.b16 %v202
      %v999 = vunpack.c.l.b16 %v203
      %v1000 = vunpack.c.l.b16 %v204
      %v1001 = vunpack.c.h.b16 %v204
      %v1002 = vunpack.c.l.b16 %v205
      %v1003 = vunpack.c.h.b16 %v205
      %v1004 = vunpack.c.l.b16 %v206
      %v1005 = vunpack.c.h.b16 %v206
      %v1006 = vunpack.c.l.b16 %v207
      %v1007 = vunpack.c.h.b16 %v207
      %v1008 = vunpack.c.l.b16 %v208
      %v1009 = vunpack.c.l.b16 %v209
      %v1010 = vunpack.c.h.b16 %v209
      %v1011 = vunpack.c.l.b16 %v210
      %v1012 = vunpack.c.h.b16 %v210
      %v1013 = vunpack.c.l.b16 %v211
      %v1014 = vunpack.c.h.b16 %v211
      %v1015 = vunpack.c.l.b16 %v212
      %v1016 = vunpack.c.h.b16 %v212
      %v1017 = vunpack.c.l.b16 %v213
      %v1018 = vunpack.c.l.b16 %v214
      %v1019 = vunpack.c.h.b16 %v214
      %v1020 = vunpack.c.l.b16 %v215
      %v1021 = vunpack.c.h.b16 %v215
      %v1022 = vunpack.c.l.b16 %v216
      %v1023 = vunpack.c.h.b16 %v216
      %v1024 = vunpack.c.l.b16 %v217
      %v1025 = vunpack.c.h.b16 %v217
      %v1026 = vunpack.c.l.b16 %v218
      %v1027 = vunpack.c.l.b16 %v219
      %v1028 = vunpack.c.h.b16 %v219
      %v1029 = vunpack.c.l.b16 %v220
      %v1030 = vunpack.c.h.b16 %v220
      %v1031 = vunpack.c.l.b16 %v221
      %v1032 = vunpack.c.h.b16 %v221
      %v1033 = vunpack.c.l.b16 %v222
      %v1034 = vunpack.c.h.b16 %v222
      %v1035 = vunpack.c.l.b16 %v223
      %v1036 = vunpack.c.l.b16 %v224
      %v1037 = vunpack.c.h.b16 %v224
      %v1038 = vunpack.c.l.b16 %v225
      %v1039 = vunpack.c.h.b16 %v225
      %v1040 = vunpack.c.l.b16 %v226
      %v1041 = vunpack.c.h.b16 %v226
      %v1042 = vunpack.c.l.b16 %v227
      %v1043 = vunpack.c.h.b16 %v227
      %v1044 = vunpack.c.l.b16 %v228
      %v1045 = vunpack.c.l.b16 %v229
      %v1046 = vunpack.c.h.b16 %v229
      %v1047 = vunpack.c.l.b16 %v230
      %v1048 = vunpack.c.h.b16 %v230
      %v1049 = vunpack.c.l.b16 %v231
      %v1050 = vunpack.c.h.b16 %v231
      %v1051 = vunpack.c.l.b16 %v232
      %v1052 = vunpack.c.h.b16 %v232
      %v1053 = vunpack.c.l.b16 %v233
      %v1054 = vunpack.c.l.b16 %v234
      %v1055 = vunpack.c.h.b16 %v234
      %v1056 = vunpack.c.l.b16 %v235
      %v1057 = vunpack.c.h.b16 %v235
      %v1058 = vunpack.c.l.b16 %v236
      %v1059 = vunpack.c.h.b16 %v236
      %v1060 = vunpack.c.l.b16 %v237
      %v1061 = vunpack.c.h.b16 %v237
      %v1062 = vunpack.c.l.b16 %v238
      %v1063 = vunpack.c.l.b16 %v239
      %v1064 = vunpack.c.h.b16 %v239
      %v1065 = vunpack.c.l.b16 %v240
      %v1066 = vunpack.c.h.b16 %v240
      %v1067 = vunpack.c.l.b16 %v241
      %v1068 = vunpack.c.h.b16 %v241
      %v1069 = vunpack.c.l.b16 %v242
      %v1070 = vunpack.c.h.b16 %v242
      %v1071 = vunpack.c.l.b16 %v243
      %v1072 = vunpack.c.l.b16 %v244
      %v1073 = vunpack.c.h.b16 %v244
      %v1074 = vunpack.c.l.b16 %v245
      %v1075 = vunpack.c.h.b16 %v245
      %v1076 = vunpack.c.l.b16 %v246
      %v1077 = vunpack.c.h.b16 %v246
      %v1078 = vunpack.c.l.b16 %v247
      %v1079 = vunpack.c.h.b16 %v247
      %v1080 = vunpack.c.l.b16 %v248
      %v1081 = vunpack.c.l.b16 %v249
      %v1082 = vunpack.c.h.b16 %v249
      %v1083 = vunpack.c.l.b16 %v250
      %v1084 = vunpack.c.h.b16 %v250
      %v1085 = vunpack.c.l.b16 %v251
      %v1086 = vunpack.c.h.b16 %v251
      %v1087 = vunpack.c.l.b16 %v252
      %v1088 = vunpack.c.h.b16 %v252
      %v1089 = vunpack.c.l.b16 %v253
      %v1090 = vunpack.c.l.b16 %v254
      %v1091 = vunpack.c.h.b16 %v254
      %v1092 = vunpack.c.l.b16 %v255
      %v1093 = vunpack.c.h.b16 %v255
      %v1094 = vunpack.c.l.b16 %v256
      %v1095 = vunpack.c.h.b16 %v256
      %v1096 = vunpack.c.l.b16 %v257
      %v1097 = vunpack.c.h.b16 %v257
      %v1098 = vunpack.c.l.b16 %v258
      %v1099 = vunpack.c.l.b16 %v259
      %v1100 = vunpack.c.h.b16 %v259
      %v1101 = vunpack.c.l.b16 %v260
      %v1102 = vunpack.c.h.b16 %v260
      %v1103 = vunpack.c.l.b16 %v261
      %v1104 = vunpack.c.h.b16 %v261
      %v1105 = vunpack.c.l.b16 %v262
      %v1106 = vunpack.c.h.b16 %v262
      %v1107 = vunpack.c.l.b16 %v263
      %v1108 = vunpack.c.l.b16 %v264
      %v1109 = vunpack.c.h.b16 %v264
      %v1110 = vunpack.c.l.b16 %v265
      %v1111 = vunpack.c.h.b16 %v265
      %v1112 = vunpack.c.l.b16 %v266
      %v1113 = vunpack.c.h.b16 %v266
      %v1114 = vunpack.c.l.b16 %v267
      %v1115 = vunpack.c.h.b16 %v267
      %v1116 = vunpack.c.l.b16 %v268
      %v1117 = vunpack.c.l.b16 %v269
      %v1118 = vunpack.c.h.b16 %v269
      %v1119 = vunpack.c.l.b16 %v270
      %v1120 = vunpack.c.h.b16 %v270
      %v1121 = vunpack.c.l.b16 %v271
      %v1122 = vunpack.c.h.b16 %v271
      %v1123 = vunpack.c.l.b16 %v272
      %v1124 = vunpack.c.h.b16 %v272
      %v1125 = vunpack.c.l.b16 %v273
      %v1126 = vunpack.c.l.b16 %v274
      %v1127 = vunpack.c.h.b16 %v274
      %v1128 = vunpack.c.l.b16 %v275
      %v1129 = vunpack.c.h.b16 %v275
      %v1130 = vunpack.c.l.b16 %v276
      %v1131 = vunpack.c.h.b16 %v276
      %v1132 = vunpack.c.l.b16 %v277
      %v1133 = vunpack.c.h.b16 %v277
      %v1134 = vunpack.c.l.b16 %v278
      %v1135 = vunpack.c.l.b16 %v279
      %v1136 = vunpack.c.h.b16 %v279
      %v1137 = vunpack.c.l.b16 %v280
      %v1138 = vunpack.c.h.b16 %v280
      %v1139 = vunpack.c.l.b16 %v281
      %v1140 = vunpack.c.h.b16 %v281
      %v1141 = vunpack.c.l.b16 %v282
      %v1142 = vunpack.c.h.b16 %v282
      %v1143 = vunpack.c.l.b16 %v283
      %v1144 = vunpack.c.l.b16 %v284
      %v1145 = vunpack.c.h.b16 %v284
      %v1146 = vunpack.c.l.b16 %v285
      %v1147 = vunpack.c.h.b16 %v285
      %v1148 = vunpack.c.l.b16 %v286
      %v1149 = vunpack.c.h.b16 %v286
      %v1150 = vunpack.c.l.b16 %v287
      %v1151 = vunpack.c.h.b16 %v287
      %v1152 = vunpack.c.l.b16 %v288
      %v1153 = vunpack.c.l.b16 %v289
      %v1154 = vunpack.c.h.b16 %v289
      %v1155 = vunpack.c.l.b16 %v290
      %v1156 = vunpack.c.h.b16 %v290
      %v1157 = vunpack.c.l.b16 %v291
      %v1158 = vunpack.c.h.b16 %v291
      %v1159 = vunpack.c.l.b16 %v292
      %v1160 = vunpack.c.h.b16 %v292
      %v1161 = vunpack.c.l.b16 %v293
      %v1162 = vunpack.c.l.b16 %v294
      %v1163 = vunpack.c.h.b16 %v294
      %v1164 = vunpack.c.l.b16 %v295
      %v1165 = vunpack.c.h.b16 %v295
      %v1166 = vunpack.c.l.b16 %v296
      %v1167 = vunpack.c.h.b16 %v296
      %v1168 = vunpack.c.l.b16 %v297
      %v1169 = vunpack.c.h.b16 %v297
      %v1170 = vunpack.c.l.b16 %v298
      %v1171 = vunpack.c.l.b16 %v299
      %v1172 = vunpack.c.h.b16 %v299
      %v1173 = vunpack.c.l.b16 %v300
      %v1174 = vunpack.c.h.b16 %v300
      %v1175 = vunpack.c.l.b16 %v301
      %v1176 = vunpack.c.h.b16 %v301
      %v1177 = vunpack.c.l.b16 %v302
      %v1178 = vunpack.c.h.b16 %v302
      %v1179 = vunpack.c.l.b16 %v303
      %v1180 = vunpack.c.l.b16 %v304
      %v1181 = vunpack.c.h.b16 %v304
      %v1182 = vunpack.c.l.b16 %v305
      %v1183 = vunpack.c.h.b16 %v305
      %v1184 = vunpack.c.l.b16 %v306
      %v1185 = vunpack.c.h.b16 %v306
      %v1186 = vunpack.c.l.b16 %v307
      %v1187 = vunpack.c.h.b16 %v307
      %v1188 = vunpack.c.l.b16 %v308
      %v1189 = vunpack.c.l.b16 %v309
      %v1190 = vunpack.c.h.b16 %v309
      %v1191 = vunpack.c.l.b16 %v310
      %v1192 = vunpack.c.h.b16 %v310
      %v1193 = vunpack.c.l.b16 %v311
      %v1194 = vunpack.c.h.b16 %v311
      %v1195 = vunpack.c.l.b16 %v312
      %v1196 = vunpack.c.h.b16 %v312
      %v1197 = vunpack.c.l.b16 %v313
      %v1198 = vunpack.c.l.b16 %v314
      %v1199 = vunpack.c.h.b16 %v314
      %v1200 = vunpack.c.l.b16 %v315
      %v1201 = vunpack.c.h.b16 %v315
      %v1202 = vunpack.c.l.b16 %v316
      %v1203 = vunpack.c.h.b16 %v316
      %v1204 = vunpack.c.l.b16 %v317
      %v1205 = vunpack.c.h.b16 %v317
      %v1206 = vunpack.c.l.b16 %v318
      %v1207 = vunpack.c.l.b16 %v319
      %v1208 = vunpack.c.h.b16 %v319
      %v1209 = vunpack.c.l.b16 %v320
      %v1210 = vunpack.c.h.b16 %v320
      %v1211 = vunpack.c.l.b16 %v321
      %v1212 = vunpack.c.h.b16 %v321
      %v1213 = vunpack.c.l.b16 %v322
      %v1214 = vunpack.c.h.b16 %v322
      %v1215 = vunpack.c.l.b16 %v323
      %v1216 = vunpack.c.l.b16 %v324
      %v1217 = vunpack.c.h.b16 %v324
      %v1218 = vunpack.c.l.b16 %v325
      %v1219 = vunpack.c.h.b16 %v325
      %v1220 = vunpack.c.l.b16 %v326
      %v1221 = vunpack.c.h.b16 %v326
      %v1222 = vunpack.c.l.b16 %v327
      %v1223 = vunpack.c.h.b16 %v327
      %v1224 = vunpack.c.l.b16 %v328
      %v1225 = vunpack.c.l.b16 %v329
      %v1226 = vunpack.c.h.b16 %v329
      %v1227 = vunpack.c.l.b16 %v330
      %v1228 = vunpack.c.h.b16 %v330
      %v1229 = vunpack.c.l.b16 %v331
      %v1230 = vunpack.c.h.b16 %v331
      %v1231 = vunpack.c.l.b16 %v332
      %v1232 = vunpack.c.h.b16 %v332
      %v1233 = vunpack.c.l.b16 %v333
      %v1234 = vunpack.c.l.b16 %v334
      %v1235 = vunpack.c.h.b16 %v334
      %v1236 = vunpack.c.l.b16 %v335
      %v1237 = vunpack.c.h.b16 %v335
      %v1238 = vunpack.c.l.b16 %v336
      %v1239 = vunpack.c.h.b16 %v336
      %v1240 = vunpack.c.l.b16 %v337
      %v1241 = vunpack.c.h.b16 %v337
      %v1242 = vunpack.c.l.b16 %v338
      %v1243 = vunpack.c.l.b16 %v339
      %v1244 = vunpack.c.h.b16 %v339
      %v1245 = vunpack.c.l.b16 %v340
      %v1246 = vunpack.c.h.b16 %v340
      %v1247 = vunpack.c.l.b16 %v341
      %v1248 = vunpack.c.h.b16 %v341
      %v1249 = vunpack.c.l.b16 %v342
      %v1250 = vunpack.c.h.b16 %v342
      %v1251 = vunpack.c.l.b16 %v343
      %v1252 = vunpack.c.l.b16 %v344
      %v1253 = vunpack.c.h.b16 %v344
      %v1254 = vunpack.c.l.b16 %v345
      %v1255 = vunpack.c.h.b16 %v345
      %v1256 = vunpack.c.l.b16 %v346
      %v1257 = vunpack.c.h.b16 %v346
      %v1258 = vunpack.c.l.b16 %v347
      %v1259 = vunpack.c.h.b16 %v347
      %v1260 = vunpack.c.l.b16 %v348
      %v1261 = vunpack.c.l.b16 %v349
      %v1262 = vunpack.c.h.b16 %v349
      %v1263 = vunpack.c.l.b16 %v350
      %v1264 = vunpack.c.h.b16 %v350
      %v1265 = vunpack.c.l.b16 %v351
      %v1266 = vunpack.c.h.b16 %v351
      %v1267 = vunpack.c.l.b16 %v352
      %v1268 = vunpack.c.h.b16 %v352
      %v1269 = vunpack.c.l.b16 %v353
      %v1270 = vunpack.c.l.b16 %v354
      %v1271 = vunpack.c.h.b16 %v354
      %v1272 = vunpack.c.l.b16 %v355
      %v1273 = vunpack.c.h.b16 %v355
      %v1274 = vunpack.c.l.b16 %v356
      %v1275 = vunpack.c.h.b16 %v356
      %v1276 = vunpack.c.l.b16 %v357
      %v1277 = vunpack.c.h.b16 %v357
      %v1278 = vunpack.c.l.b16 %v358
      %v1279 = vunpack.c.l.b16 %v359
      %v1280 = vunpack.c.h.b16 %v359
      %v1281 = vunpack.c.l.b16 %v360
      %v1282 = vunpack.c.h.b16 %v360
      %v1283 = vunpack.c.l.b16 %v361
      %v1284 = vunpack.c.h.b16 %v361
      %v1285 = vunpack.c.l.b16 %v362
      %v1286 = vunpack.c.h.b16 %v362
      %v1287 = vunpack.c.l.b16 %v363
      %v1288 = vunpack.c.l.b16 %v364
      %v1289 = vunpack.c.h.b16 %v364
      %v1290 = vunpack.c.l.b16 %v365
      %v1291 = vunpack.c.h.b16 %v365
      %v1292 = vunpack.c.l.b16 %v366
      %v1293 = vunpack.c.h.b16 %v366
      %v1294 = vunpack.c.l.b16 %v367
      %v1295 = vunpack.c.h.b16 %v367
      %v1296 = vunpack.c.l.b16 %v368
      %v1297 = vunpack.c.l.b16 %v369
      %v1298 = vunpack.c.h.b16 %v369
      %v1299 = vunpack.c.l.b16 %v370
      %v1300 = vunpack.c.h.b16 %v370
      %v1301 = vunpack.c.l.b16 %v371
      %v1302 = vunpack.c.h.b16 %v371
      %v1303 = vunpack.c.l.b16 %v372
      %v1304 = vunpack.c.h.b16 %v372
      %v1305 = vunpack.c.l.b16 %v373
      %v1306 = vunpack.c.l.b16 %v374
      %v1307 = vunpack.c.h.b16 %v374
      %v1308 = vunpack.c.l.b16 %v375
      %v1309 = vunpack.c.h.b16 %v375
      %v1310 = vunpack.c.l.b16 %v376
      %v1311 = vunpack.c.h.b16 %v376
      %v1312 = vunpack.c.l.b16 %v377
      %v1313 = vunpack.c.h.b16 %v377
      %v1314 = vunpack.c.l.b16 %v378
      %v1315 = vunpack.c.l.b16 %v379
      %v1316 = vunpack.c.h.b16 %v379
      %v1317 = vunpack.c.l.b16 %v380
      %v1318 = vunpack.c.h.b16 %v380
      %v1319 = vunpack.c.l.b16 %v381
      %v1320 = vunpack.c.h.b16 %v381
      %v1321 = vunpack.c.l.b16 %v382
      %v1322 = vunpack.c.h.b16 %v382
      %v1323 = vunpack.c.l.b16 %v383
      %v1324 = vunpack.c.l.b16 %v384
      %v1325 = vunpack.c.h.b16 %v384
      %v1326 = vunpack.c.l.b16 %v385
      %v1327 = vunpack.c.h.b16 %v385
      %v1328 = vunpack.c.l.b16 %v386
      %v1329 = vunpack.c.h.b16 %v386
      %v1330 = vunpack.c.l.b16 %v387
      %v1331 = vunpack.c.h.b16 %v387
      %v1332 = vunpack.c.l.b16 %v388
      %v1333 = vunpack.c.l.b16 %v389
      %v1334 = vunpack.c.h.b16 %v389
      %v1335 = vunpack.c.l.b16 %v390
      %v1336 = vunpack.c.h.b16 %v390
      %v1337 = vunpack.c.l.b16 %v391
      %v1338 = vunpack.c.h.b16 %v391
      %v1339 = vunpack.c.l.b16 %v392
      %v1340 = vunpack.c.h.b16 %v392
      %v1341 = vunpack.c.l.b16 %v393
      %v1342 = vunpack.c.l.b16 %v394
      %v1343 = vunpack.c.h.b16 %v394
      %v1344 = vunpack.c.l.b16 %v395
      %v1345 = vunpack.c.h.b16 %v395
      %v1346 = vunpack.c.l.b16 %v396
      %v1347 = vunpack.c.h.b16 %v396
      %v1348 = vunpack.c.l.b16 %v397
      %v1349 = vunpack.c.h.b16 %v397
      %v1350 = vunpack.c.l.b16 %v398
      %v1351 = vunpack.c.l.b16 %v399
      %v1352 = vunpack.c.h.b16 %v399
      %v1353 = vunpack.c.l.b16 %v400
      %v1354 = vunpack.c.h.b16 %v400
      %v1355 = vunpack.c.l.b16 %v401
      %v1356 = vunpack.c.h.b16 %v401
      %v1357 = vunpack.c.l.b16 %v402
      %v1358 = vunpack.c.h.b16 %v402
      %v1359 = vunpack.c.l.b16 %v403
      %v1360 = vunpack.c.l.b16 %v404
      %v1361 = vunpack.c.h.b16 %v404
      %v1362 = vunpack.c.l.b16 %v405
      %v1363 = vunpack.c.h.b16 %v405
      %v1364 = vunpack.c.l.b16 %v406
      %v1365 = vunpack.c.h.b16 %v406
      %v1366 = vunpack.c.l.b16 %v407
      %v1367 = vunpack.c.h.b16 %v407
      %v1368 = vunpack.c.l.b16 %v408
      %v1369 = vunpack.c.l.b16 %v409
      %v1370 = vunpack.c.h.b16 %v409
      %v1371 = vunpack.c.l.b16 %v410
      %v1372 = vunpack.c.h.b16 %v410
      %v1373 = vunpack.c.l.b16 %v411
      %v1374 = vunpack.c.h.b16 %v411
      %v1375 = vunpack.c.l.b16 %v412
      %v1376 = vunpack.c.h.b16 %v412
      %v1377 = vunpack.c.l.b16 %v413
      %v1378 = vunpack.c.l.b16 %v414
      %v1379 = vunpack.c.h.b16 %v414
      %v1380 = vunpack.c.l.b16 %v415
      %v1381 = vunpack.c.h.b16 %v415
      %v1382 = vunpack.c.l.b16 %v416
      %v1383 = vunpack.c.h.b16 %v416
      %v1384 = vunpack.c.l.b16 %v417
      %v1385 = vunpack.c.h.b16 %v417
      %v1386 = vunpack.c.l.b16 %v418
      %v1387 = vunpack.c.l.b16 %v419
      %v1388 = vunpack.c.h.b16 %v419
      %v1389 = vunpack.c.l.b16 %v420
      %v1390 = vunpack.c.h.b16 %v420
      %v1391 = vunpack.c.l.b16 %v421
      %v1392 = vunpack.c.h.b16 %v421
      %v1393 = vunpack.c.l.b16 %v422
      %v1394 = vunpack.c.h.b16 %v422
      %v1395 = vunpack.c.l.b16 %v423
      %v1396 = vunpack.c.l.b16 %v424
      %v1397 = vunpack.c.h.b16 %v424
      %v1398 = vunpack.c.l.b16 %v425
      %v1399 = vunpack.c.h.b16 %v425
      %v1400 = vunpack.c.l.b16 %v426
      %v1401 = vunpack.c.h.b16 %v426
      %v1402 = vunpack.c.l.b16 %v427
      %v1403 = vunpack.c.h.b16 %v427
      %v1404 = vunpack.c.l.b16 %v428
      %v1405 = vunpack.c.l.b16 %v429
      %v1406 = vunpack.c.h.b16 %v429
      %v1407 = vunpack.c.l.b16 %v430
      %v1408 = vunpack.c.h.b16 %v430
      %v1409 = vunpack.c.l.b16 %v431
      %v1410 = vunpack.c.h.b16 %v431
      %v1411 = vunpack.c.l.b16 %v432
      %v1412 = vunpack.c.h.b16 %v432
      %v1413 = vunpack.c.l.b16 %v433
      %v1414 = vunpack.c.l.b16 %v434
      %v1415 = vunpack.c.h.b16 %v434
      %v1416 = vunpack.c.l.b16 %v435
      %v1417 = vunpack.c.h.b16 %v435
      %v1418 = vunpack.c.l.b16 %v436
      %v1419 = vunpack.c.h.b16 %v436
      %v1420 = vunpack.c.l.b16 %v437
      %v1421 = vunpack.c.h.b16 %v437
      %v1422 = vunpack.c.l.b16 %v438
      %v1423 = vunpack.c.l.b16 %v439
      %v1424 = vunpack.c.h.b16 %v439
      %v1425 = vunpack.c.l.b16 %v440
      %v1426 = vunpack.c.h.b16 %v440
      %v1427 = vunpack.c.l.b16 %v441
      %v1428 = vunpack.c.h.b16 %v441
      %v1429 = vunpack.c.l.b16 %v442
      %v1430 = vunpack.c.h.b16 %v442
      %v1431 = vunpack.c.l.b16 %v443
      %v1432 = vunpack.c.l.b16 %v444
      %v1433 = vunpack.c.h.b16 %v444
      %v1434 = vunpack.c.l.b16 %v445
      %v1435 = vunpack.c.h.b16 %v445
      %v1436 = vunpack.c.l.b16 %v446
      %v1437 = vunpack.c.h.b16 %v446
      %v1438 = vunpack.c.l.b16 %v447
      %v1439 = vunpack.c.h.b16 %v447
      %v1440 = vunpack.c.l.b16 %v448
      %v1441 = vunpack.c.l.b16 %v449
      %v1442 = vunpack.c.h.b16 %v449
      %v1443 = vunpack.c.l.b16 %v450
      %v1444 = vunpack.c.h.b16 %v450
      %v1445 = vunpack.c.l.b16 %v451
      %v1446 = vunpack.c.h.b16 %v451
      %v1447 = vunpack.c.l.b16 %v452
      %v1448 = vunpack.c.h.b16 %v452
      %v1449 = vunpack.c.l.b16 %v453
      %v1450 = vunpack.c.l.b16 %v454
      %v1451 = vunpack.c.h.b16 %v454
      %v1452 = vunpack.c.l.b16 %v455
      %v1453 = vunpack.c.h.b16 %v455
      %v1454 = vunpack.c.l.b16 %v456
      %v1455 = vunpack.c.h.b16 %v456
      %v1456 = vunpack.c.l.b16 %v457
      %v1457 = vunpack.c.h.b16 %v457
      %v1458 = vunpack.c.l.b16 %v458
      %v1459 = vunpack.c.l.b16 %v459
      %v1460 = vunpack.c.h.b16 %v459
      %v1461 = vunpack.c.l.b16 %v460
      %v1462 = vunpack.c.h.b16 %v460
      %v1463 = vunpack.c.l.b16 %v461
      %v1464 = vunpack.c.h.b16 %v461
      %v1465 = vunpack.c.l.b16 %v462
      %v1466 = vunpack.c.h.b16 %v462
      %v1467 = vunpack.c.l.b16 %v463
      %v1468 = vunpack.c.l.b16 %v464
      %v1469 = vunpack.c.h.b16 %v464
      %v1470 = vunpack.c.l.b16 %v465
      %v1471 = vunpack.c.h.b16 %v465
      %v1472 = vunpack.c.l.b16 %v466
      %v1473 = vunpack.c.h.b16 %v466
      %v1474 = vunpack.c.l.b16 %v467
      %v1475 = vunpack.c.h.b16 %v467
      %v1476 = vunpack.c.l.b16 %v468
      %v1477 = vunpack.c.l.b16 %v469
      %v1478 = vunpack.c.h.b16 %v469
      %v1479 = vunpack.c.l.b16 %v470
      %v1480 = vunpack.c.h.b16 %v470
      %v1481 = vunpack.c.l.b16 %v471
      %v1482 = vunpack.c.h.b16 %v471
      %v1483 = vunpack.c.l.b16 %v472
      %v1484 = vunpack.c.h.b16 %v472
      %v1485 = vunpack.c.l.b16 %v473
      %v1486 = vunpack.c.l.b16 %v474
      %v1487 = vunpack.c.h.b16 %v474
      %v1488 = vunpack.c.l.b16 %v475
      %v1489 = vunpack.c.h.b16 %v475
      %v1490 = vunpack.c.l.b16 %v476
      %v1491 = vunpack.c.h.b16 %v476
      %v1492 = vunpack.c.l.b16 %v477
      %v1493 = vunpack.c.h.b16 %v477
      %v1494 = vunpack.c.l.b16 %v478
      %v1495 = vunpack.c.l.b16 %v479
      %v1496 = vunpack.c.h.b16 %v479
      %v1497 = vunpack.c.l.b16 %v480
      %v1498 = vunpack.c.h.b16 %v480
      %v1499 = vunpack.c.l.b16 %v481
      %v1500 = vunpack.c.h.b16 %v481
      %v1501 = vunpack.c.l.b16 %v482
      %v1502 = vunpack.c.h.b16 %v482
      %v1503 = vunpack.c.l.b16 %v483
      %v1504 = vunpack.c.l.b16 %v484
      %v1505 = vunpack.c.h.b16 %v484
      %v1506 = vunpack.c.l.b16 %v485
      %v1507 = vunpack.c.h.b16 %v485
      %v1508 = vunpack.c.l.b16 %v486
      %v1509 = vunpack.c.h.b16 %v486
      %v1510 = vunpack.c.l.b16 %v487
      %v1511 = vunpack.c.h.b16 %v487
      %v1512 = vunpack.c.l.b16 %v488
      %v1513 = vunpack.c.l.b16 %v489
      %v1514 = vunpack.c.h.b16 %v489
      %v1515 = vunpack.c.l.b16 %v490
      %v1516 = vunpack.c.h.b16 %v490
      %v1517 = vunpack.c.l.b16 %v491
      %v1518 = vunpack.c.h.b16 %v491
      %v1519 = vunpack.c.l.b16 %v492
      %v1520 = vunpack.c.h.b16 %v492
      %v1521 = vunpack.c.l.b16 %v493
      %v1522 = vunpack.c.l.b16 %v494
      %v1523 = vunpack.c.h.b16 %v494
      %v1524 = vunpack.c.l.b16 %v495
      %v1525 = vunpack.c.h.b16 %v495
      %v1526 = vunpack.c.l.b16 %v496
      %v1527 = vunpack.c.h.b16 %v496
      %v1528 = vunpack.c.l.b16 %v497
      %v1529 = vunpack.c.h.b16 %v497
      %v1530 = vunpack.c.l.b16 %v498
      %v1531 = vunpack.c.l.b16 %v499
      %v1532 = vunpack.c.h.b16 %v499
      %v1533 = vunpack.c.l.b16 %v500
      %v1534 = vunpack.c.h.b16 %v500
      %v1535 = vunpack.c.l.b16 %v501
      %v1536 = vunpack.c.h.b16 %v501
      %v1537 = vunpack.c.l.b16 %v502
      %v1538 = vunpack.c.h.b16 %v502
      %v1539 = vunpack.c.l.b16 %v503
      %v1540 = vunpack.c.l.b16 %v504
      %v1541 = vunpack.c.h.b16 %v504
      %v1542 = vunpack.c.l.b16 %v505
      %v1543 = vunpack.c.h.b16 %v505
      %v1544 = vunpack.c.l.b16 %v506
      %v1545 = vunpack.c.h.b16 %v506
      %v1546 = vunpack.c.l.b16 %v507
      %v1547 = vunpack.c.h.b16 %v507
      %v1548 = vunpack.c.l.b16 %v508
      %v1549 = vpack.c.b16 %v982, %v973
      %v1550 = vpack.c.b16 %v983, %v974
      %v1551 = vpack.c.b16 %v984, %v975
      %v1552 = vpack.c.b16 %v985, %v976
      %v1553 = vpack.c.b16 %v986, %v977
      %v1554 = vpack.c.b16 %v987, %v978
      %v1555 = vpack.c.b16 %v988, %v979
      %v1556 = vpack.c.b16 %v989, %v980
      %v1557 = vpack.c.b16 %v990, %v981
      %v1558 = vpack.c.b16 %v1000, %v991
      %v1559 = vpack.c.b16 %v1001, %v992
      %v1560 = vpack.c.b16 %v1002, %v993
      %v1561 = vpack.c.b16 %v1003, %v994
      %v1562 = vpack.c.b16 %v1004, %v995
      %v1563 = vpack.c.b16 %v1005, %v996
      %v1564 = vpack.c.b16 %v1006, %v997
      %v1565 = vpack.c.b16 %v1007, %v998
      %v1566 = vpack.c.b16 %v1008, %v999
      %v1567 = vpack.c.b16 %v1018, %v1009
      %v1568 = vpack.c.b16 %v1019, %v1010
      %v1569 = vpack.c.b16 %v1020, %v1011
      %v1570 = vpack.c.b16 %v1021, %v1012
      %v1571 = vpack.c.b16 %v1022, %v1013
      %v1572 = vpack.c.b16 %v1023, %v1014
      %v1573 = vpack.c.b16 %v1024, %v1015
      %v1574 = vpack.c.b16 %v1025, %v1016
      %v1575 = vpack.c.b16 %v1026, %v1017
      %v1576 = vpack.c.b16 %v1036, %v1027
      %v1577 = vpack.c.b16 %v1037, %v1028
      %v1578 = vpack.c.b16 %v1038, %v1029
      %v1579 = vpack.c.b16 %v1039, %v1030
      %v1580 = vpack.c.b16 %v1040, %v1031
      %v1581 = vpack.c.b16 %v1041, %v1032
      %v1582 = vpack.c.b16 %v1042, %v1033
      %v1583 = vpack.c.b16 %v1043, %v1034
      %v1584 = vpack.c.b16 %v1044, %v1035
      %v1585 = vpack.c.b16 %v1054, %v1045
      %v1586 = vpack.c.b16 %v1055, %v1046
      %v1587 = vpack.c.b16 %v1056, %v1047
      %v1588 = vpack.c.b16 %v1057, %v1048
      %v1589 = vpack.c.b16 %v1058, %v1049
      %v1590 = vpack.c.b16 %v1059, %v1050
      %v1591 = vpack.c.b16 %v1060, %v1051
      %v1592 = vpack.c.b16 %v1061, %v1052
      %v1593 = vpack.c.b16 %v1062, %v1053
      %v1594 = vpack.c.b16 %v1072, %v1063
      %v1595 = vpack.c.b16 %v1073, %v1064
      %v1596 = vpack.c.b16 %v1074, %v1065
      %v1597 = vpack.c.b16 %v1075, %v1066
      %v1598 = vpack.c.b16 %v1076, %v1067
      %v1599 = vpack.c.b16 %v1077, %v1068
      %v1600 = vpack.c.b16 %v1078, %v1069
      %v1601 = vpack.c.b16 %v1079, %v1070
      %v1602 = vpack.c.b16 %v1080, %v1071
      %v1603 = vpack.c.b16 %v1090, %v1081
      %v1604 = vpack.c.b16 %v1091, %v1082
      %v1605 = vpack.c.b16 %v1092, %v1083
      %v1606 = vpack.c.b16 %v1093, %v1084
      %v1607 = vpack.c.b16 %v1094, %v1085
      %v1608 = vpack.c.b16 %v1095, %v1086
      %v1609 = vpack.c.b16 %v1096, %v1087
      %v1610 = vpack.c.b16 %v1097, %v1088
      %v1611 = vpack.c.b16 %v1098, %v1089
      %v1612 = vpack.c.b16 %v1108, %v1099
      %v1613 = vpack.c.b16 %v1109, %v1100
      %v1614 = vpack.c.b16 %v1110, %v1101
      %v1615 = vpack.c.b16 %v1111, %v1102
      %v1616 = vpack.c.b16 %v1112, %v1103
      %v1617 = vpack.c.b16 %v1113, %v1104
      %v1618 = vpack.c.b16 %v1114, %v1105
      %v1619 = vpack.c.b16 %v1115, %v1106
      %v1620 = vpack.c.b16 %v1116, %v1107
      %v1621 = vpack.c.b16 %v1126, %v1117
      %v1622 = vpack.c.b16 %v1127, %v1118
      %v1623 = vpack.c.b16 %v1128, %v1119
      %v1624 = vpack.c.b16 %v1129, %v1120
      %v1625 = vpack.c.b16 %v1130, %v1121
      %v1626 = vpack.c.b16 %v1131, %v1122
      %v1627 = vpack.c.b16 %v1132, %v1123
      %v1628 = vpack.c.b16 %v1133, %v1124
      %v1629 = vpack.c.b16 %v1134, %v1125
      %v1630 = vpack.c.b16 %v1144, %v1135
      %v1631 = vpack.c.b16 %v1145, %v1136
      %v1632 = vpack.c.b16 %v1146, %v1137
      %v1633 = vpack.c.b16 %v1147, %v1138
      %v1634 = vpack.c.b16 %v1148, %v1139
      %v1635 = vpack.c.b16 %v1149, %v1140
      %v1636 = vpack.c.b16 %v1150, %v1141
      %v1637 = vpack.c.b16 %v1151, %v1142
      %v1638 = vpack.c.b16 %v1152, %v1143
      %v1639 = vpack.c.b16 %v1162, %v1153
      %v1640 = vpack.c.b16 %v1163, %v1154
      %v1641 = vpack.c.b16 %v1164, %v1155
      %v1642 = vpack.c.b16 %v1165, %v1156
      %v1643 = vpack.c.b16 %v1166, %v1157
      %v1644 = vpack.c.b16 %v1167, %v1158
      %v1645 = vpack.c.b16 %v1168, %v1159
      %v1646 = vpack.c.b16 %v1169, %v1160
      %v1647 = vpack.c.b16 %v1170, %v1161
      %v1648 = vpack.c.b16 %v1180, %v1171
      %v1649 = vpack.c.b16 %v1181, %v1172
      %v1650 = vpack.c.b16 %v1182, %v1173
      %v1651 = vpack.c.b16 %v1183, %v1174
      %v1652 = vpack.c.b16 %v1184, %v1175
      %v1653 = vpack.c.b16 %v1185, %v1176
      %v1654 = vpack.c.b16 %v1186, %v1177
      %v1655 = vpack.c.b16 %v1187, %v1178
      %v1656 = vpack.c.b16 %v1188, %v1179
      %v1657 = vpack.c.b16 %v1198, %v1189
      %v1658 = vpack.c.b16 %v1199, %v1190
      %v1659 = vpack.c.b16 %v1200, %v1191
      %v1660 = vpack.c.b16 %v1201, %v1192
      %v1661 = vpack.c.b16 %v1202, %v1193
      %v1662 = vpack.c.b16 %v1203, %v1194
      %v1663 = vpack.c.b16 %v1204, %v1195
      %v1664 = vpack.c.b16 %v1205, %v1196
      %v1665 = vpack.c.b16 %v1206, %v1197
      %v1666 = vpack.c.b16 %v1216, %v1207
      %v1667 = vpack.c.b16 %v1217, %v1208
      %v1668 = vpack.c.b16 %v1218, %v1209
      %v1669 = vpack.c.b16 %v1219, %v1210
      %v1670 = vpack.c.b16 %v1220, %v1211
      %v1671 = vpack.c.b16 %v1221, %v1212
      %v1672 = vpack.c.b16 %v1222, %v1213
      %v1673 = vpack.c.b16 %v1223, %v1214
      %v1674 = vpack.c.b16 %v1224, %v1215
      %v1675 = vpack.c.b16 %v1234, %v1225
      %v1676 = vpack.c.b16 %v1235, %v1226
      %v1677 = vpack.c.b16 %v1236, %v1227
      %v1678 = vpack.c.b16 %v1237, %v1228
      %v1679 = vpack.c.b16 %v1238, %v1229
      %v1680 = vpack.c.b16 %v1239, %v1230
      %v1681 = vpack.c.b16 %v1240, %v1231
      %v1682 = vpack.c.b16 %v1241, %v1232
      %v1683 = vpack.c.b16 %v1242, %v1233
      %v1684 = vpack.c.b16 %v1252, %v1243
      %v1685 = vpack.c.b16 %v1253, %v1244
      %v1686 = vpack.c.b16 %v1254, %v1245
      %v1687 = vpack.c.b16 %v1255, %v1246
      %v1688 = vpack.c.b16 %v1256, %v1247
      %v1689 = vpack.c.b16 %v1257, %v1248
      %v1690 = vpack.c.b16 %v1258, %v1249
      %v1691 = vpack.c.b16 %v1259, %v1250
      %v1692 = vpack.c.b16 %v1260, %v1251
      %v1693 = vpack.c.b16 %v1270, %v1261
      %v1694 = vpack.c.b16 %v1271, %v1262
      %v1695 = vpack.c.b16 %v1272, %v1263
      %v1696 = vpack.c.b16 %v1273, %v1264
      %v1697 = vpack.c.b16 %v1274, %v1265
      %v1698 = vpack.c.b16 %v1275, %v1266
      %v1699 = vpack.c.b16 %v1276, %v1267
      %v1700 = vpack.c.b16 %v1277, %v1268
      %v1701 = vpack.c.b16 %v1278, %v1269
      %v1702 = vpack.c.b16 %v1288, %v1279
      %v1703 = vpack.c.b16 %v1289, %v1280
      %v1704 = vpack.c.b16 %v1290, %v1281
      %v1705 = vpack.c.b16 %v1291, %v1282
      %v1706 = vpack.c.b16 %v1292, %v1283
      %v1707 = vpack.c.b16 %v1293, %v1284
      %v1708 = vpack.c.b16 %v1294, %v1285
      %v1709 = vpack.c.b16 %v1295, %v1286
      %v1710 = vpack.c.b16 %v1296, %v1287
      %v1711 = vpack.c.b16 %v1306, %v1297
      %v1712 = vpack.c.b16 %v1307, %v1298
      %v1713 = vpack.c.b16 %v1308, %v1299
      %v1714 = vpack.c.b16 %v1309, %v1300
      %v1715 = vpack.c.b16 %v1310, %v1301
      %v1716 = vpack.c.b16 %v1311, %v1302
      %v1717 = vpack.c.b16 %v1312, %v1303
      %v1718 = vpack.c.b16 %v1313, %v1304
      %v1719 = vpack.c.b16 %v1314, %v1305
      %v1720 = vpack.c.b16 %v1324, %v1315
      %v1721 = vpack.c.b16 %v1325, %v1316
      %v1722 = vpack.c.b16 %v1326, %v1317
      %v1723 = vpack.c.b16 %v1327, %v1318
      %v1724 = vpack.c.b16 %v1328, %v1319
      %v1725 = vpack.c.b16 %v1329, %v1320
      %v1726 = vpack.c.b16 %v1330, %v1321
      %v1727 = vpack.c.b16 %v1331, %v1322
      %v1728 = vpack.c.b16 %v1332, %v1323
      %v1729 = vpack.c.b16 %v1342, %v1333
      %v1730 = vpack.c.b16 %v1343, %v1334
      %v1731 = vpack.c.b16 %v1344, %v1335
      %v1732 = vpack.c.b16 %v1345, %v1336
      %v1733 = vpack.c.b16 %v1346, %v1337
      %v1734 = vpack.c.b16 %v1347, %v1338
      %v1735 = vpack.c.b16 %v1348, %v1339
      %v1736 = vpack.c.b16 %v1349, %v1340
      %v1737 = vpack.c.b16 %v1350, %v1341
      %v1738 = vpack.c.b16 %v1360, %v1351
      %v1739 = vpack.c.b16 %v1361, %v1352
      %v1740 = vpack.c.b16 %v1362, %v1353
      %v1741 = vpack.c.b16 %v1363, %v1354
      %v1742 = vpack.c.b16 %v1364, %v1355
      %v1743 = vpack.c.b16 %v1365, %v1356
      %v1744 = vpack.c.b16 %v1366, %v1357
      %v1745 = vpack.c.b16 %v1367, %v1358
      %v1746 = vpack.c.b16 %v1368, %v1359
      %v1747 = vpack.c.b16 %v1378, %v1369
      %v1748 = vpack.c.b16 %v1379, %v1370
      %v1749 = vpack.c.b16 %v1380, %v1371
      %v1750 = vpack.c.b16 %v1381, %v1372
      %v1751 = vpack.c.b16 %v1382, %v1373
      %v1752 = vpack.c.b16 %v1383, %v1374
      %v1753 = vpack.c.b16 %v1384, %v1375
      %v1754 = vpack.c.b16 %v1385, %v1376
      %v1755 = vpack.c.b16 %v1386, %v1377
      %v1756 = vpack.c.b16 %v1396, %v1387
      %v1757 = vpack.c.b16 %v1397, %v1388
      %v1758 = vpack.c.b16 %v1398, %v1389
      %v1759 = vpack.c.b16 %v1399, %v1390
      %v1760 = vpack.c.b16 %v1400, %v1391
      %v1761 = vpack.c.b16 %v1401, %v1392
      %v1762 = vpack.c.b16 %v1402, %v1393
      %v1763 = vpack.c.b16 %v1403, %v1394
      %v1764 = vpack.c.b16 %v1404, %v1395
      %v1765 = vpack.c.b16 %v1414, %v1405
      %v1766 = vpack.c.b16 %v1415, %v1406
      %v1767 = vpack.c.b16 %v1416, %v1407
      %v1768 = vpack.c.b16 %v1417, %v1408
      %v1769 = vpack.c.b16 %v1418, %v1409
      %v1770 = vpack.c.b16 %v1419, %v1410
      %v1771 = vpack.c.b16 %v1420, %v1411
      %v1772 = vpack.c.b16 %v1421, %v1412
      %v1773 = vpack.c.b16 %v1422, %v1413
      %v1774 = vpack.c.b16 %v1432, %v1423
      %v1775 = vpack.c.b16 %v1433, %v1424
      %v1776 = vpack.c.b16 %v1434, %v1425
      %v1777 = vpack.c.b16 %v1435, %v1426
      %v1778 = vpack.c.b16 %v1436, %v1427
      %v1779 = vpack.c.b16 %v1437, %v1428
      %v1780 = vpack.c.b16 %v1438, %v1429
      %v1781 = vpack.c.b16 %v1439, %v1430
      %v1782 = vpack.c.b16 %v1440, %v1431
      %v1783 = vpack.c.b16 %v1450, %v1441
      %v1784 = vpack.c.b16 %v1451, %v1442
      %v1785 = vpack.c.b16 %v1452, %v1443
      %v1786 = vpack.c.b16 %v1453, %v1444
      %v1787 = vpack.c.b16 %v1454, %v1445
      %v1788 = vpack.c.b16 %v1455, %v1446
      %v1789 = vpack.c.b16 %v1456, %v1447
      %v1790 = vpack.c.b16 %v1457, %v1448
      %v1791 = vpack.c.b16 %v1458, %v1449
      %v1792 = vpack.c.b16 %v1468, %v1459
      %v1793 = vpack.c.b16 %v1469, %v1460
      %v1794 = vpack.c.b16 %v1470, %v1461
      %v1795 = vpack.c.b16 %v1471, %v1462
      %v1796 = vpack.c.b16 %v1472, %v1463
      %v1797 = vpack.c.b16 %v1473, %v1464
      %v1798 = vpack.c.b16 %v1474, %v1465
      %v1799 = vpack.c.b16 %v1475, %v1466
      %v1800 = vpack.c.b16 %v1476, %v1467
      %v1801 = vpack.c.b16 %v1486, %v1477
      %v1802 = vpack.c.b16 %v1487, %v1478
      %v1803 = vpack.c.b16 %v1488, %v1479
      %v1804 = vpack.c.b16 %v1489, %v1480
      %v1805 = vpack.c.b16 %v1490, %v1481
      %v1806 = vpack.c.b16 %v1491, %v1482
      %v1807 = vpack.c.b16 %v1492, %v1483
      %v1808 = vpack.c.b16 %v1493, %v1484
      %v1809 = vpack.c.b16 %v1494, %v1485
      %v1810 = vpack.c.b16 %v1504, %v1495
      %v1811 = vpack.c.b16 %v1505, %v1496
      %v1812 = vpack.c.b16 %v1506, %v1497
      %v1813 = vpack.c.b16 %v1507, %v1498
      %v1814 = vpack.c.b16 %v1508, %v1499
      %v1815 = vpack.c.b16 %v1509, %v1500
      %v1816 = vpack.c.b16 %v1510, %v1501
      %v1817 = vpack.c.b16 %v1511, %v1502
      %v1818 = vpack.c.b16 %v1512, %v1503
      %v1819 = vpack.c.b16 %v1522, %v1513
      %v1820 = vpack.c.b16 %v1523, %v1514
      %v1821 = vpack.c.b16 %v1524, %v1515
      %v1822 = vpack.c.b16 %v1525, %v1516
      %v1823 = vpack.c.b16 %v1526, %v1517
      %v1824 = vpack.c.b16 %v1527, %v1518
      %v1825 = vpack.c.b16 %v1528, %v1519
      %v1826 = vpack.c.b16 %v1529, %v1520
      %v1827 = vpack.c.b16 %v1530, %v1521
      %v1828 = vpack.c.b16 %v1540, %v1531
      %v1829 = vpack.c.b16 %v1541, %v1532
      %v1830 = vpack.c.b16 %v1542, %v1533
      %v1831 = vpack.c.b16 %v1543, %v1534
      %v1832 = vpack.c.b16 %v1544, %v1535
      %v1833 = vpack.c.b16 %v1545, %v1536
      %v1834 = vpack.c.b16 %v1546, %v1537
      %v1835 = vpack.c.b16 %v1547, %v1538
      %v1836 = vpack.c.b16 %v1548, %v1539
      %v2269 = vunpack.c.l.b16 %v509
      %v2270 = vunpack.c.l.b16 %v510
      %v2271 = vunpack.c.l.b16 %v511
      %v2272 = vunpack.c.l.b16 %v512
      %v2273 = vunpack.c.l.b16 %v513
      %v2274 = vunpack.c.l.b16 %v514
      %v2275 = vunpack.c.l.b16 %v515
      %v2276 = vunpack.c.l.b16 %v516
      %v2277 = vunpack.c.l.b16 %v517
      %v2278 = vunpack.c.l.b16 %v518
      %v2279 = vunpack.c.l.b16 %v519
      %v2280 = vunpack.c.l.b16 %v520
      %v2281 = vunpack.c.l.b16 %v521
      %v2282 = vunpack.c.l.b16 %v522
      %v2283 = vunpack.c.l.b16 %v523
      %v2284 = vunpack.c.l.b16 %v524
      %v2285 = vunpack.c.l.b16 %v525
      %v2286 = vunpack.c.l.b16 %v526
      %v2287 = vunpack.c.l.b16 %v527
      %v2288 = vunpack.c.l.b16 %v528
      %v2289 = vunpack.c.l.b16 %v529
      %v2290 = vunpack.c.l.b16 %v530
      %v2291 = vunpack.c.l.b16 %v531
      %v2292 = vunpack.c.l.b16 %v532
      %v2293 = vunpack.c.l.b16 %v533
      %v2294 = vunpack.c.l.b16 %v534
      %v2295 = vunpack.c.l.b16 %v535
      %v2296 = vunpack.c.l.b16 %v536
      %v2297 = vunpack.c.l.b16 %v537
      %v2298 = vunpack.c.l.b16 %v538
      %v2299 = vunpack.c.l.b16 %v539
      %v2300 = vunpack.c.l.b16 %v540
      %v2301 = vunpack.c.l.b16 %v541
      %v2302 = vunpack.c.l.b16 %v542
      %v2303 = vunpack.c.l.b16 %v543
      %v2304 = vunpack.c.l.b16 %v544
      %v2305 = vunpack.c.l.b16 %v545
      %v2306 = vunpack.c.l.b16 %v546
      %v2307 = vunpack.c.l.b16 %v547
      %v2308 = vunpack.c.l.b16 %v548
      %v2309 = vunpack.c.l.b16 %v549
      %v2310 = vunpack.c.l.b16 %v550
      %v2311 = vunpack.c.l.b16 %v551
      %v2312 = vunpack.c.l.b16 %v552
      %v2313 = vunpack.c.l.b16 %v553
      %v2314 = vunpack.c.l.b16 %v554
      %v2315 = vunpack.c.l.b16 %v555
      %v2316 = vunpack.c.l.b16 %v556
      %v2317 = vunpack.c.l.b16 %v557
      %v2318 = vunpack.c.l.b16 %v558
      %v2319 = vunpack.c.l.b16 %v559
      %v2320 = vunpack.c.l.b16 %v560
      %v2321 = vunpack.c.l.b16 %v561
      %v2322 = vunpack.c.l.b16 %v562
      %v2323 = vunpack.c.l.b16 %v563
      %v2324 = vunpack.c.l.b16 %v564
      %v2325 = vunpack.c.l.b16 %v565
      %v2326 = vunpack.c.l.b16 %v566
      %v2327 = vunpack.c.l.b16 %v567
      %v2328 = vunpack.c.l.b16 %v568
      %v2329 = vunpack.c.l.b16 %v569
      %v2330 = vunpack.c.l.b16 %v570
      %v2331 = vunpack.c.l.b16 %v571
      %v2332 = vunpack.c.l.b16 %v572
      %v2333 = vunpack.c.l.b16 %v573
      %v2334 = vunpack.c.l.b16 %v574
      %v2335 = vunpack.c.l.b16 %v575
      %v2336 = vunpack.c.l.b16 %v576
      %v2337 = vunpack.c.l.b16 %v577
      %v2338 = vunpack.c.l.b16 %v578
      %v2339 = vunpack.c.l.b16 %v579
      %v2340 = vunpack.c.l.b16 %v580
      %v2341 = vunpack.c.l.b16 %v581
      %v2342 = vunpack.c.l.b16 %v582
      %v2343 = vunpack.c.l.b16 %v583
      %v2344 = vunpack.c.l.b16 %v584
      %v2345 = vunpack.c.l.b16 %v585
      %v2346 = vunpack.c.l.b16 %v586
      %v2347 = vunpack.c.l.b16 %v587
      %v2348 = vunpack.c.l.b16 %v588
      %v2349 = vunpack.c.l.b16 %v589
      %v2350 = vunpack.c.l.b16 %v590
      %v2351 = vunpack.c.l.b16 %v591
      %v2352 = vunpack.c.l.b16 %v592
      %v2353 = vunpack.c.l.b16 %v593
      %v2354 = vunpack.c.l.b16 %v594
      %v2355 = vunpack.c.l.b16 %v595
      %v2356 = vunpack.c.l.b16 %v596
      %v2357 = vunpack.c.l.b16 %v597
      %v2358 = vunpack.c.l.b16 %v598
      %v2359 = vunpack.c.l.b16 %v599
      %v2360 = vunpack.c.l.b16 %v600
      %v2361 = vunpack.c.l.b16 %v601
      %v2362 = vunpack.c.l.b16 %v602
      %v2363 = vunpack.c.l.b16 %v603
      %v2364 = vunpack.c.l.b16 %v604
      %v2365 = vunpack.c.l.b16 %v605
      %v2366 = vunpack.c.l.b16 %v606
      %v2367 = vunpack.c.l.b16 %v607
      %v2368 = vunpack.c.l.b16 %v608
      %v2369 = vunpack.c.l.b16 %v609
      %v2370 = vunpack.c.l.b16 %v610
      %v2371 = vunpack.c.l.b16 %v611
      %v2372 = vunpack.c.l.b16 %v612
      %v2373 = vunpack.c.l.b16 %v613
      %v2374 = vunpack.c.l.b16 %v614
      %v2375 = vunpack.c.l.b16 %v615
      %v2376 = vunpack.c.l.b16 %v616
      %v2377 = vunpack.c.l.b16 %v617
      %v2378 = vunpack.c.l.b16 %v618
      %v2379 = vunpack.c.l.b16 %v619
      %v2380 = vunpack.c.l.b16 %v620
      %v2381 = vunpack.c.l.b16 %v621
      %v2382 = vunpack.c.l.b16 %v622
      %v2383 = vunpack.c.l.b16 %v623
      %v2384 = vunpack.c.l.b16 %v624
      %v2385 = vunpack.c.l.b16 %v625
      %v2386 = vunpack.c.l.b16 %v626
      %v2387 = vunpack.c.l.b16 %v627
      %v2388 = vunpack.c.l.b16 %v628
      %v2389 = vunpack.c.l.b16 %v629
      %v2390 = vunpack.c.l.b16 %v630
      %v2391 = vunpack.c.l.b16 %v631
      %v2392 = vunpack.c.l.b16 %v632
      %v2393 = vunpack.c.l.b16 %v633
      %v2394 = vunpack.c.l.b16 %v634
      %v2395 = vunpack.c.l.b16 %v635
      %v2396 = vunpack.c.l.b16 %v636
      %v2397 = vunpack.c.l.b16 %v637
      %v2398 = vunpack.c.l.b16 %v638
      %v2399 = vunpack.c.l.b16 %v639
      %v2400 = vunpack.c.l.b16 %v640
      %v2401 = vunpack.c.l.b16 %v641
      %v2402 = vunpack.c.l.b16 %v642
      %v2403 = vunpack.c.l.b16 %v643
      %v2404 = vunpack.c.l.b16 %v644
      %v2405 = vunpack.c.l.b16 %v645
      %v2406 = vunpack.c.l.b16 %v646
      %v2407 = vunpack.c.l.b16 %v647
      %v2408 = vunpack.c.l.b16 %v648
      %v2409 = vunpack.c.l.b16 %v649
      %v2410 = vunpack.c.l.b16 %v650
      %v2411 = vunpack.c.l.b16 %v651
      %v2412 = vunpack.c.l.b16 %v652
      %v2413 = vpack.c.b16 %v2270, %v2269
      %v2414 = vpack.c.b16 %v2272, %v2271
      %v2415 = vpack.c.b16 %v2274, %v2273
      %v2416 = vpack.c.b16 %v2276, %v2275
      %v2417 = vpack.c.b16 %v2278, %v2277
      %v2418 = vpack.c.b16 %v2280, %v2279
      %v2419 = vpack.c.b16 %v2282, %v2281
      %v2420 = vpack.c.b16 %v2284, %v2283
      %v2421 = vpack.c.b16 %v2286, %v2285
      %v2422 = vpack.c.b16 %v2288, %v2287
      %v2423 = vpack.c.b16 %v2290, %v2289
      %v2424 = vpack.c.b16 %v2292, %v2291
      %v2425 = vpack.c.b16 %v2294, %v2293
      %v2426 = vpack.c.b16 %v2296, %v2295
      %v2427 = vpack.c.b16 %v2298, %v2297
      %v2428 = vpack.c.b16 %v2300, %v2299
      %v2429 = vpack.c.b16 %v2302, %v2301
      %v2430 = vpack.c.b16 %v2304, %v2303
      %v2431 = vpack.c.b16 %v2306, %v2305
      %v2432 = vpack.c.b16 %v2308, %v2307
      %v2433 = vpack.c.b16 %v2310, %v2309
      %v2434 = vpack.c.b16 %v2312, %v2311
      %v2435 = vpack.c.b16 %v2314, %v2313
      %v2436 = vpack.c.b16 %v2316, %v2315
      %v2437 = vpack.c.b16 %v2318, %v2317
      %v2438 = vpack.c.b16 %v2320, %v2319
      %v2439 = vpack.c.b16 %v2322, %v2321
      %v2440 = vpack.c.b16 %v2324, %v2323
      %v2441 = vpack.c.b16 %v2326, %v2325
      %v2442 = vpack.c.b16 %v2328, %v2327
      %v2443 = vpack.c.b16 %v2330, %v2329
      %v2444 = vpack.c.b16 %v2332, %v2331
      %v2445 = vpack.c.b16 %v2334, %v2333
      %v2446 = vpack.c.b16 %v2336, %v2335
      %v2447 = vpack.c.b16 %v2338, %v2337
      %v2448 = vpack.c.b16 %v2340, %v2339
      %v2449 = vpack.c.b16 %v2342, %v2341
      %v2450 = vpack.c.b16 %v2344, %v2343
      %v2451 = vpack.c.b16 %v2346, %v2345
      %v2452 = vpack.c.b16 %v2348, %v2347
      %v2453 = vpack.c.b16 %v2350, %v2349
      %v2454 = vpack.c.b16 %v2352, %v2351
      %v2455 = vpack.c.b16 %v2354, %v2353
      %v2456 = vpack.c.b16 %v2356, %v2355
      %v2457 = vpack.c.b16 %v2358, %v2357
      %v2458 = vpack.c.b16 %v2360, %v2359
      %v2459 = vpack.c.b16 %v2362, %v2361
      %v2460 = vpack.c.b16 %v2364, %v2363
      %v2461 = vpack.c.b16 %v2366, %v2365
      %v2462 = vpack.c.b16 %v2368, %v2367
      %v2463 = vpack.c.b16 %v2370, %v2369
      %v2464 = vpack.c.b16 %v2372, %v2371
      %v2465 = vpack.c.b16 %v2374, %v2373
      %v2466 = vpack.c.b16 %v2376, %v2375
      %v2467 = vpack.c.b16 %v2378, %v2377
      %v2468 = vpack.c.b16 %v2380, %v2379
      %v2469 = vpack.c.b16 %v2382, %v2381
      %v2470 = vpack.c.b16 %v2384, %v2383
      %v2471 = vpack.c.b16 %v2386, %v2385
      %v2472 = vpack.c.b16 %v2388, %v2387
      %v2473 = vpack.c.b16 %v2390, %v2389
      %v2474 = vpack.c.b16 %v2392, %v2391
      %v2475 = vpack.c.b16 %v2394, %v2393
      %v2476 = vpack.c.b16 %v2396, %v2395
      %v2477 = vpack.c.b16 %v2398, %v2397
      %v2478 = vpack.c.b16 %v2400, %v2399
      %v2479 = vpack.c.b16 %v2402, %v2401
      %v2480 = vpack.c.b16 %v2404, %v2403
      %v2481 = vpack.c.b16 %v2406, %v2405
      %v2482 = vpack.c.b16 %v2408, %v2407
      %v2483 = vpack.c.b16 %v2410, %v2409
      %v2484 = vpack.c.b16 %v2412, %v2411
      %2557 = vmatprep.subr.bf16.mxu0 0
      %2558 = vmatpush1.bf16.msra.mxu0 %v2413
      %2559 = vmatprep.subr.bf16.mxu0 0
      %2560 = vmatpush1.bf16.msra.mxu0 %v2414
      %2561 = vmatprep.subr.bf16.mxu0 0
      %2562 = vmatpush1.bf16.msra.mxu0 %v2415
      %2563 = vmatprep.subr.bf16.mxu0 0
      %2564 = vmatpush1.bf16.msra.mxu0 %v2416
      %2565 = vmatprep.subr.bf16.mxu0 0
      %2566 = vmatpush1.bf16.msra.mxu0 %v2417
      %2567 = vmatprep.subr.bf16.mxu0 0
      %2568 = vmatpush1.bf16.msra.mxu0 %v2418
      %2569 = vmatprep.subr.bf16.mxu0 0
      %2570 = vmatpush1.bf16.msra.mxu0 %v2419
      %2571 = vmatprep.subr.bf16.mxu0 0
      %2572 = vmatpush1.bf16.msra.mxu0 %v2420
      %2573 = vmatprep.subr.bf16.mxu0 0
      %2574 = vmatpush1.bf16.msra.mxu0 %v2421
      %2575 = vmatprep.subr.bf16.mxu0 0
      %2576 = vmatpush1.bf16.msra.mxu0 %v2422
      %2577 = vmatprep.subr.bf16.mxu0 0
      %2578 = vmatpush1.bf16.msra.mxu0 %v2423
      %2579 = vmatprep.subr.bf16.mxu0 0
      %2580 = vmatpush1.bf16.msra.mxu0 %v2424
      %2581 = vmatprep.subr.bf16.mxu0 0
      %2582 = vmatpush1.bf16.msra.mxu0 %v2425
      %2583 = vmatprep.subr.bf16.mxu0 0
      %2584 = vmatpush1.bf16.msra.mxu0 %v2426
      %2585 = vmatprep.subr.bf16.mxu0 0
      %2586 = vmatpush1.bf16.msra.mxu0 %v2427
      %2587 = vmatprep.subr.bf16.mxu0 0
      %2588 = vmatpush1.bf16.msra.mxu0 %v2428
      %2589 = vmatprep.mubr.bf16.mxu0 %v1550
      %2590 = vmatmul.mubr.bf16.gmra.mrb[0].mxu0 %v1549
      %v2591 = vpop.f32.mrb[0].mxu0
      %v2592 = vadd.f32 0.0, %v2591
      %v2593 = vpop.f32.mrb[0].mxu0
      %v2594 = vpop.f32.mrb[0].mxu0
      %v2595 = vadd.f32 0.0, %v2594
      %v2596 = vpop.f32.mrb[0].mxu0
      %2597 = vmatprep.mubr.bf16.mxu0 %v1559
      %2598 = vmatmul.mubr.bf16.gmra.mrb[0].mxu0 %v1558
      %v2599 = vpop.f32.mrb[0].mxu0
      %v2600 = vadd.f32 0.0, %v2599
      %v2601 = vpop.f32.mrb[0].mxu0
      %v2602 = vpop.f32.mrb[0].mxu0
      %v2603 = vadd.f32 0.0, %v2602
      %v2604 = vpop.f32.mrb[0].mxu0
      %2605 = vmatprep.mubr.bf16.mxu0 %v1568
      %2606 = vmatmul.mubr.bf16.gmra.mrb[0].mxu0 %v1567
      %v2607 = vpop.f32.mrb[0].mxu0
      %v2608 = vadd.f32 0.0, %v2607
      %v2609 = vpop.f32.mrb[0].mxu0
      %v2610 = vpop.f32.mrb[0].mxu0
      %v2611 = vadd.f32 0.0, %v2610
      %v2612 = vpop.f32.mrb[0].mxu0
      %2613 = vmatprep.mubr.bf16.mxu0 %v1577
      %2614 = vmatmul.mubr.bf16.gmra.mrb[0].mxu0 %v1576
      %v2615 = vpop.f32.mrb[0].mxu0
      %v2616 = vadd.f32 0.0, %v2615
      %v2617 = vpop.f32.mrb[0].mxu0
      %v2618 = vpop.f32.mrb[0].mxu0
      %v2619 = vadd.f32 0.0, %v2618
      %v2620 = vpop.f32.mrb[0].mxu0
      %2621 = vmatprep.mubr.bf16.mxu0 %v1586
      %2622 = vmatmul.mubr.bf16.gmra.mrb[0].mxu0 %v1585
      %v2623 = vpop.f32.mrb[0].mxu0
      %v2624 = vadd.f32 0.0, %v2623
      %v2625 = vpop.f32.mrb[0].mxu0
      %v2626 = vpop.f32.mrb[0].mxu0
      %v2627 = vadd.f32 0.0, %v2626
      %v2628 = vpop.f32.mrb[0].mxu0
      %2629 = vmatprep.mubr.bf16.mxu0 %v1595
      %2630 = vmatmul.mubr.bf16.gmra.mrb[0].mxu0 %v1594
      %v2631 = vpop.f32.mrb[0].mxu0
      %v2632 = vadd.f32 0.0, %v2631
      %v2633 = vpop.f32.mrb[0].mxu0
      %v2634 = vpop.f32.mrb[0].mxu0
      %v2635 = vadd.f32 0.0, %v2634
      %v2636 = vpop.f32.mrb[0].mxu0
      %2637 = vmatprep.mubr.bf16.mxu0 %v1604
      %2638 = vmatmul.mubr.bf16.gmra.mrb[0].mxu0 %v1603
      %v2639 = vpop.f32.mrb[0].mxu0
      %v2640 = vadd.f32 0.0, %v2639
      %v2641 = vpop.f32.mrb[0].mxu0
      %v2642 = vpop.f32.mrb[0].mxu0
      %v2643 = vadd.f32 0.0, %v2642
      %v2644 = vpop.f32.mrb[0].mxu0
      %2645 = vmatprep.mubr.bf16.mxu0 %v1613
      %2646 = vmatmul.mubr.bf16.gmra.mrb[0].mxu0 %v1612
      %v2647 = vpop.f32.mrb[0].mxu0
      %v2648 = vadd.f32 0.0, %v2647
      %v2649 = vpop.f32.mrb[0].mxu0
      %v2650 = vpop.f32.mrb[0].mxu0
      %v2651 = vadd.f32 0.0, %v2650
      %v2652 = vpop.f32.mrb[0].mxu0
      %2653 = vmatprep.mubr.bf16.mxu0 %v1622
      %2654 = vmatmul.mubr.bf16.gmra.mrb[0].mxu0 %v1621
      %v2655 = vpop.f32.mrb[0].mxu0
      %v2656 = vadd.f32 0.0, %v2655
      %v2657 = vpop.f32.mrb[0].mxu0
      %v2658 = vpop.f32.mrb[0].mxu0
      %v2659 = vadd.f32 0.0, %v2658
      %v2660 = vpop.f32.mrb[0].mxu0
      %2661 = vmatprep.mubr.bf16.mxu0 %v1631
      %2662 = vmatmul.mubr.bf16.gmra.mrb[0].mxu0 %v1630
      %v2663 = vpop.f32.mrb[0].mxu0
      %v2664 = vadd.f32 0.0, %v2663
      %v2665 = vpop.f32.mrb[0].mxu0
      %v2666 = vpop.f32.mrb[0].mxu0
      %v2667 = vadd.f32 0.0, %v2666
      %v2668 = vpop.f32.mrb[0].mxu0
      %2669 = vmatprep.mubr.bf16.mxu0 %v1640
      %2670 = vmatmul.mubr.bf16.gmra.mrb[0].mxu0 %v1639
      %v2671 = vpop.f32.mrb[0].mxu0
      %v2672 = vadd.f32 0.0, %v2671
      %v2673 = vpop.f32.mrb[0].mxu0
      %v2674 = vpop.f32.mrb[0].mxu0
      %v2675 = vadd.f32 0.0, %v2674
      %v2676 = vpop.f32.mrb[0].mxu0
      %2677 = vmatprep.mubr.bf16.mxu0 %v1649
      %2678 = vmatmul.mubr.bf16.gmra.mrb[0].mxu0 %v1648
      %v2679 = vpop.f32.mrb[0].mxu0
      %v2680 = vadd.f32 0.0, %v2679
      %v2681 = vpop.f32.mrb[0].mxu0
      %v2682 = vpop.f32.mrb[0].mxu0
      %v2683 = vadd.f32 0.0, %v2682
      %v2684 = vpop.f32.mrb[0].mxu0
      %2685 = vmatprep.mubr.bf16.mxu0 %v1658
      %2686 = vmatmul.mubr.bf16.gmra.mrb[0].mxu0 %v1657
      %v2687 = vpop.f32.mrb[0].mxu0
      %v2688 = vadd.f32 0.0, %v2687
      %v2689 = vpop.f32.mrb[0].mxu0
      %v2690 = vpop.f32.mrb[0].mxu0
      %v2691 = vadd.f32 0.0, %v2690
      %v2692 = vpop.f32.mrb[0].mxu0
      %2693 = vmatprep.mubr.bf16.mxu0 %v1667
      %2694 = vmatmul.mubr.bf16.gmra.mrb[0].mxu0 %v1666
      %v2695 = vpop.f32.mrb[0].mxu0
      %v2696 = vadd.f32 0.0, %v2695
      %v2697 = vpop.f32.mrb[0].mxu0
      %v2698 = vpop.f32.mrb[0].mxu0
      %v2699 = vadd.f32 0.0, %v2698
      %v2700 = vpop.f32.mrb[0].mxu0
      %2701 = vmatprep.mubr.bf16.mxu0 %v1676
      %2702 = vmatmul.mubr.bf16.gmra.mrb[0].mxu0 %v1675
      %v2703 = vpop.f32.mrb[0].mxu0
      %v2704 = vadd.f32 0.0, %v2703
      %v2705 = vpop.f32.mrb[0].mxu0
      %v2706 = vpop.f32.mrb[0].mxu0
      %v2707 = vadd.f32 0.0, %v2706
      %v2708 = vpop.f32.mrb[0].mxu0
      %2709 = vmatprep.mubr.bf16.mxu0 %v1685
      %2710 = vmatmul.mubr.bf16.gmra.mrb[0].mxu0 %v1684
      %v2711 = vpop.f32.mrb[0].mxu0
      %v2712 = vadd.f32 0.0, %v2711
      %v2713 = vpop.f32.mrb[0].mxu0
      %v2714 = vpop.f32.mrb[0].mxu0
      %v2715 = vadd.f32 0.0, %v2714
      %v2716 = vpop.f32.mrb[0].mxu0
      %2717 = vmatprep.mubr.bf16.mxu0 %v1694
      %2718 = vmatmul.mubr.bf16.gmra.mrb[0].mxu0 %v1693
      %v2719 = vpop.f32.mrb[0].mxu0
      %v2720 = vadd.f32 0.0, %v2719
      %v2721 = vpop.f32.mrb[0].mxu0
      %v2722 = vpop.f32.mrb[0].mxu0
      %v2723 = vadd.f32 0.0, %v2722
      %v2724 = vpop.f32.mrb[0].mxu0
      %2725 = vmatprep.mubr.bf16.mxu0 %v1703
      %2726 = vmatmul.mubr.bf16.gmra.mrb[0].mxu0 %v1702
      %v2727 = vpop.f32.mrb[0].mxu0
      %v2728 = vadd.f32 0.0, %v2727
      %v2729 = vpop.f32.mrb[0].mxu0
      %v2730 = vpop.f32.mrb[0].mxu0
      %v2731 = vadd.f32 0.0, %v2730
      %v2732 = vpop.f32.mrb[0].mxu0
      %2733 = vmatprep.mubr.bf16.mxu0 %v1712
      %2734 = vmatmul.mubr.bf16.gmra.mrb[0].mxu0 %v1711
      %v2735 = vpop.f32.mrb[0].mxu0
      %v2736 = vadd.f32 0.0, %v2735
      %v2737 = vpop.f32.mrb[0].mxu0
      %v2738 = vpop.f32.mrb[0].mxu0
      %v2739 = vadd.f32 0.0, %v2738
      %v2740 = vpop.f32.mrb[0].mxu0
      %2741 = vmatprep.mubr.bf16.mxu0 %v1721
      %2742 = vmatmul.mubr.bf16.gmra.mrb[0].mxu0 %v1720
      %v2743 = vpop.f32.mrb[0].mxu0
      %v2744 = vadd.f32 0.0, %v2743
      %v2745 = vpop.f32.mrb[0].mxu0
      %v2746 = vpop.f32.mrb[0].mxu0
      %v2747 = vadd.f32 0.0, %v2746
      %v2748 = vpop.f32.mrb[0].mxu0
      %2749 = vmatprep.mubr.bf16.mxu0 %v1730
      %2750 = vmatmul.mubr.bf16.gmra.mrb[0].mxu0 %v1729
      %v2751 = vpop.f32.mrb[0].mxu0
      %v2752 = vadd.f32 0.0, %v2751
      %v2753 = vpop.f32.mrb[0].mxu0
      %v2754 = vpop.f32.mrb[0].mxu0
      %v2755 = vadd.f32 0.0, %v2754
      %v2756 = vpop.f32.mrb[0].mxu0
      %2757 = vmatprep.mubr.bf16.mxu0 %v1739
      %2758 = vmatmul.mubr.bf16.gmra.mrb[0].mxu0 %v1738
      %v2759 = vpop.f32.mrb[0].mxu0
      %v2760 = vadd.f32 0.0, %v2759
      %v2761 = vpop.f32.mrb[0].mxu0
      %v2762 = vpop.f32.mrb[0].mxu0
      %v2763 = vadd.f32 0.0, %v2762
      %v2764 = vpop.f32.mrb[0].mxu0
      %2765 = vmatprep.mubr.bf16.mxu0 %v1748
      %2766 = vmatmul.mubr.bf16.gmra.mrb[0].mxu0 %v1747
      %v2767 = vpop.f32.mrb[0].mxu0
      %v2768 = vadd.f32 0.0, %v2767
      %v2769 = vpop.f32.mrb[0].mxu0
      %v2770 = vpop.f32.mrb[0].mxu0
      %v2771 = vadd.f32 0.0, %v2770
      %v2772 = vpop.f32.mrb[0].mxu0
      %2773 = vmatprep.mubr.bf16.mxu0 %v1757
      %2774 = vmatmul.mubr.bf16.gmra.mrb[0].mxu0 %v1756
      %v2775 = vpop.f32.mrb[0].mxu0
      %v2776 = vadd.f32 0.0, %v2775
      %v2777 = vpop.f32.mrb[0].mxu0
      %v2778 = vpop.f32.mrb[0].mxu0
      %v2779 = vadd.f32 0.0, %v2778
      %v2780 = vpop.f32.mrb[0].mxu0
      %2781 = vmatprep.mubr.bf16.mxu0 %v1766
      %2782 = vmatmul.mubr.bf16.gmra.mrb[0].mxu0 %v1765
      %v2783 = vpop.f32.mrb[0].mxu0
      %v2784 = vadd.f32 0.0, %v2783
      %v2785 = vpop.f32.mrb[0].mxu0
      %v2786 = vpop.f32.mrb[0].mxu0
      %v2787 = vadd.f32 0.0, %v2786
      %v2788 = vpop.f32.mrb[0].mxu0
      %2789 = vmatprep.mubr.bf16.mxu0 %v1775
      %2790 = vmatmul.mubr.bf16.gmra.mrb[0].mxu0 %v1774
      %v2791 = vpop.f32.mrb[0].mxu0
      %v2792 = vadd.f32 0.0, %v2791
      %v2793 = vpop.f32.mrb[0].mxu0
      %v2794 = vpop.f32.mrb[0].mxu0
      %v2795 = vadd.f32 0.0, %v2794
      %v2796 = vpop.f32.mrb[0].mxu0
      %2797 = vmatprep.mubr.bf16.mxu0 %v1784
      %2798 = vmatmul.mubr.bf16.gmra.mrb[0].mxu0 %v1783
      %v2799 = vpop.f32.mrb[0].mxu0
      %v2800 = vadd.f32 0.0, %v2799
      %v2801 = vpop.f32.mrb[0].mxu0
      %v2802 = vpop.f32.mrb[0].mxu0
      %v2803 = vadd.f32 0.0, %v2802
      %v2804 = vpop.f32.mrb[0].mxu0
      %2805 = vmatprep.mubr.bf16.mxu0 %v1793
      %2806 = vmatmul.mubr.bf16.gmra.mrb[0].mxu0 %v1792
      %v2807 = vpop.f32.mrb[0].mxu0
      %v2808 = vadd.f32 0.0, %v2807
      %v2809 = vpop.f32.mrb[0].mxu0
      %v2810 = vpop.f32.mrb[0].mxu0
      %v2811 = vadd.f32 0.0, %v2810
      %v2812 = vpop.f32.mrb[0].mxu0
      %2813 = vmatprep.mubr.bf16.mxu0 %v1802
      %2814 = vmatmul.mubr.bf16.gmra.mrb[0].mxu0 %v1801
      %v2815 = vpop.f32.mrb[0].mxu0
      %v2816 = vadd.f32 0.0, %v2815
      %v2817 = vpop.f32.mrb[0].mxu0
      %v2818 = vpop.f32.mrb[0].mxu0
      %v2819 = vadd.f32 0.0, %v2818
      %v2820 = vpop.f32.mrb[0].mxu0
      %2821 = vmatprep.mubr.bf16.mxu0 %v1811
      %2822 = vmatmul.mubr.bf16.gmra.mrb[0].mxu0 %v1810
      %v2823 = vpop.f32.mrb[0].mxu0
      %v2824 = vadd.f32 0.0, %v2823
      %v2825 = vpop.f32.mrb[0].mxu0
      %v2826 = vpop.f32.mrb[0].mxu0
      %v2827 = vadd.f32 0.0, %v2826
      %v2828 = vpop.f32.mrb[0].mxu0
      %2829 = vmatprep.mubr.bf16.mxu0 %v1820
      %2830 = vmatmul.mubr.bf16.gmra.mrb[0].mxu0 %v1819
      %v2831 = vpop.f32.mrb[0].mxu0
      %v2832 = vadd.f32 0.0, %v2831
      %v2833 = vpop.f32.mrb[0].mxu0
      %v2834 = vpop.f32.mrb[0].mxu0
      %v2835 = vadd.f32 0.0, %v2834
      %v2836 = vpop.f32.mrb[0].mxu0
      %2837 = vmatprep.mubr.bf16.mxu0 %v1829
      %2838 = vmatmul.mubr.bf16.gmra.mrb[0].mxu0 %v1828
      %v2839 = vpop.f32.mrb[0].mxu0
      %v2840 = vadd.f32 0.0, %v2839
      %v2841 = vpop.f32.mrb[0].mxu0
      %v2842 = vpop.f32.mrb[0].mxu0
      %v2843 = vadd.f32 0.0, %v2842
      %v2844 = vpop.f32.mrb[0].mxu0
      %2845 = vdwg.mxu0
      %2846 = vmatprep.subr.bf16.mxu0 0
      %2847 = vmatpush1.bf16.msra.mxu0 %v2429
      %2848 = vmatprep.subr.bf16.mxu0 0
      %2849 = vmatpush1.bf16.msra.mxu0 %v2430
      %2850 = vmatprep.subr.bf16.mxu0 0
      %2851 = vmatpush1.bf16.msra.mxu0 %v2431
      %2852 = vmatprep.subr.bf16.mxu0 0
      %2853 = vmatpush1.bf16.msra.mxu0 %v2432
      %2854 = vmatprep.subr.bf16.mxu0 0
      %2855 = vmatpush1.bf16.msra.mxu0 %v2433
      %2856 = vmatprep.subr.bf16.mxu0 0
      %2857 = vmatpush1.bf16.msra.mxu0 %v2434
      %2858 = vmatprep.subr.bf16.mxu0 0
      %2859 = vmatpush1.bf16.msra.mxu0 %v2435
      %2860 = vmatprep.subr.bf16.mxu0 0
      %2861 = vmatpush1.bf16.msra.mxu0 %v2436
      %2862 = vmatprep.subr.bf16.mxu0 0
      %2863 = vmatpush1.bf16.msra.mxu0 %v2437
      %2864 = vmatprep.subr.bf16.mxu0 0
      %2865 = vmatpush1.bf16.msra.mxu0 %v2438
      %2866 = vmatprep.subr.bf16.mxu0 0
      %2867 = vmatpush1.bf16.msra.mxu0 %v2439
      %2868 = vmatprep.subr.bf16.mxu0 0
      %2869 = vmatpush1.bf16.msra.mxu0 %v2440
      %2870 = vmatprep.subr.bf16.mxu0 0
      %2871 = vmatpush1.bf16.msra.mxu0 %v2441
      %2872 = vmatprep.subr.bf16.mxu0 0
      %2873 = vmatpush1.bf16.msra.mxu0 %v2442
      %2874 = vmatprep.subr.bf16.mxu0 0
      %2875 = vmatpush1.bf16.msra.mxu0 %v2443
      %2876 = vmatprep.subr.bf16.mxu0 0
      %2877 = vmatpush1.bf16.msra.mxu0 %v2444
      %2878 = vmatprep.mubr.bf16.mxu0 %v1552
      %2879 = vmatmul.mubr.bf16.gmra.mrb[0].mxu0 %v1551
      %v2880 = vpop.f32.mrb[0].mxu0
      %v2881 = vadd.f32 %v2592, %v2880
      %v2882 = vpop.f32.mrb[0].mxu0
      %v2883 = vpop.f32.mrb[0].mxu0
      %v2884 = vadd.f32 %v2595, %v2883
      %v2885 = vpop.f32.mrb[0].mxu0
      %2886 = vmatprep.mubr.bf16.mxu0 %v1561
      %2887 = vmatmul.mubr.bf16.gmra.mrb[0].mxu0 %v1560
      %v2888 = vpop.f32.mrb[0].mxu0
      %v2889 = vadd.f32 %v2600, %v2888
      %v2890 = vpop.f32.mrb[0].mxu0
      %v2891 = vpop.f32.mrb[0].mxu0
      %v2892 = vadd.f32 %v2603, %v2891
      %v2893 = vpop.f32.mrb[0].mxu0
      %2894 = vmatprep.mubr.bf16.mxu0 %v1570
      %2895 = vmatmul.mubr.bf16.gmra.mrb[0].mxu0 %v1569
      %v2896 = vpop.f32.mrb[0].mxu0
      %v2897 = vadd.f32 %v2608, %v2896
      %v2898 = vpop.f32.mrb[0].mxu0
      %v2899 = vpop.f32.mrb[0].mxu0
      %v2900 = vadd.f32 %v2611, %v2899
      %v2901 = vpop.f32.mrb[0].mxu0
      %2902 = vmatprep.mubr.bf16.mxu0 %v1579
      %2903 = vmatmul.mubr.bf16.gmra.mrb[0].mxu0 %v1578
      %v2904 = vpop.f32.mrb[0].mxu0
      %v2905 = vadd.f32 %v2616, %v2904
      %v2906 = vpop.f32.mrb[0].mxu0
      %v2907 = vpop.f32.mrb[0].mxu0
      %v2908 = vadd.f32 %v2619, %v2907
      %v2909 = vpop.f32.mrb[0].mxu0
      %2910 = vmatprep.mubr.bf16.mxu0 %v1588
      %2911 = vmatmul.mubr.bf16.gmra.mrb[0].mxu0 %v1587
      %v2912 = vpop.f32.mrb[0].mxu0
      %v2913 = vadd.f32 %v2624, %v2912
      %v2914 = vpop.f32.mrb[0].mxu0
      %v2915 = vpop.f32.mrb[0].mxu0
      %v2916 = vadd.f32 %v2627, %v2915
      %v2917 = vpop.f32.mrb[0].mxu0
      %2918 = vmatprep.mubr.bf16.mxu0 %v1597
      %2919 = vmatmul.mubr.bf16.gmra.mrb[0].mxu0 %v1596
      %v2920 = vpop.f32.mrb[0].mxu0
      %v2921 = vadd.f32 %v2632, %v2920
      %v2922 = vpop.f32.mrb[0].mxu0
      %v2923 = vpop.f32.mrb[0].mxu0
      %v2924 = vadd.f32 %v2635, %v2923
      %v2925 = vpop.f32.mrb[0].mxu0
      %2926 = vmatprep.mubr.bf16.mxu0 %v1606
      %2927 = vmatmul.mubr.bf16.gmra.mrb[0].mxu0 %v1605
      %v2928 = vpop.f32.mrb[0].mxu0
      %v2929 = vadd.f32 %v2640, %v2928
      %v2930 = vpop.f32.mrb[0].mxu0
      %v2931 = vpop.f32.mrb[0].mxu0
      %v2932 = vadd.f32 %v2643, %v2931
      %v2933 = vpop.f32.mrb[0].mxu0
      %2934 = vmatprep.mubr.bf16.mxu0 %v1615
      %2935 = vmatmul.mubr.bf16.gmra.mrb[0].mxu0 %v1614
      %v2936 = vpop.f32.mrb[0].mxu0
      %v2937 = vadd.f32 %v2648, %v2936
      %v2938 = vpop.f32.mrb[0].mxu0
      %v2939 = vpop.f32.mrb[0].mxu0
      %v2940 = vadd.f32 %v2651, %v2939
      %v2941 = vpop.f32.mrb[0].mxu0
      %2942 = vmatprep.mubr.bf16.mxu0 %v1624
      %2943 = vmatmul.mubr.bf16.gmra.mrb[0].mxu0 %v1623
      %v2944 = vpop.f32.mrb[0].mxu0
      %v2945 = vadd.f32 %v2656, %v2944
      %v2946 = vpop.f32.mrb[0].mxu0
      %v2947 = vpop.f32.mrb[0].mxu0
      %v2948 = vadd.f32 %v2659, %v2947
      %v2949 = vpop.f32.mrb[0].mxu0
      %2950 = vmatprep.mubr.bf16.mxu0 %v1633
      %2951 = vmatmul.mubr.bf16.gmra.mrb[0].mxu0 %v1632
      %v2952 = vpop.f32.mrb[0].mxu0
      %v2953 = vadd.f32 %v2664, %v2952
      %v2954 = vpop.f32.mrb[0].mxu0
      %v2955 = vpop.f32.mrb[0].mxu0
      %v2956 = vadd.f32 %v2667, %v2955
      %v2957 = vpop.f32.mrb[0].mxu0
      %2958 = vmatprep.mubr.bf16.mxu0 %v1642
      %2959 = vmatmul.mubr.bf16.gmra.mrb[0].mxu0 %v1641
      %v2960 = vpop.f32.mrb[0].mxu0
      %v2961 = vadd.f32 %v2672, %v2960
      %v2962 = vpop.f32.mrb[0].mxu0
      %v2963 = vpop.f32.mrb[0].mxu0
      %v2964 = vadd.f32 %v2675, %v2963
      %v2965 = vpop.f32.mrb[0].mxu0
      %2966 = vmatprep.mubr.bf16.mxu0 %v1651
      %2967 = vmatmul.mubr.bf16.gmra.mrb[0].mxu0 %v1650
      %v2968 = vpop.f32.mrb[0].mxu0
      %v2969 = vadd.f32 %v2680, %v2968
      %v2970 = vpop.f32.mrb[0].mxu0
      %v2971 = vpop.f32.mrb[0].mxu0
      %v2972 = vadd.f32 %v2683, %v2971
      %v2973 = vpop.f32.mrb[0].mxu0
      %2974 = vmatprep.mubr.bf16.mxu0 %v1660
      %2975 = vmatmul.mubr.bf16.gmra.mrb[0].mxu0 %v1659
      %v2976 = vpop.f32.mrb[0].mxu0
      %v2977 = vadd.f32 %v2688, %v2976
      %v2978 = vpop.f32.mrb[0].mxu0
      %v2979 = vpop.f32.mrb[0].mxu0
      %v2980 = vadd.f32 %v2691, %v2979
      %v2981 = vpop.f32.mrb[0].mxu0
      %2982 = vmatprep.mubr.bf16.mxu0 %v1669
      %2983 = vmatmul.mubr.bf16.gmra.mrb[0].mxu0 %v1668
      %v2984 = vpop.f32.mrb[0].mxu0
      %v2985 = vadd.f32 %v2696, %v2984
      %v2986 = vpop.f32.mrb[0].mxu0
      %v2987 = vpop.f32.mrb[0].mxu0
      %v2988 = vadd.f32 %v2699, %v2987
      %v2989 = vpop.f32.mrb[0].mxu0
      %2990 = vmatprep.mubr.bf16.mxu0 %v1678
      %2991 = vmatmul.mubr.bf16.gmra.mrb[0].mxu0 %v1677
      %v2992 = vpop.f32.mrb[0].mxu0
      %v2993 = vadd.f32 %v2704, %v2992
      %v2994 = vpop.f32.mrb[0].mxu0
      %v2995 = vpop.f32.mrb[0].mxu0
      %v2996 = vadd.f32 %v2707, %v2995
      %v2997 = vpop.f32.mrb[0].mxu0
      %2998 = vmatprep.mubr.bf16.mxu0 %v1687
      %2999 = vmatmul.mubr.bf16.gmra.mrb[0].mxu0 %v1686
      %v3000 = vpop.f32.mrb[0].mxu0
      %v3001 = vadd.f32 %v2712, %v3000
      %v3002 = vpop.f32.mrb[0].mxu0
      %v3003 = vpop.f32.mrb[0].mxu0
      %v3004 = vadd.f32 %v2715, %v3003
      %v3005 = vpop.f32.mrb[0].mxu0
      %3006 = vmatprep.mubr.bf16.mxu0 %v1696
      %3007 = vmatmul.mubr.bf16.gmra.mrb[0].mxu0 %v1695
      %v3008 = vpop.f32.mrb[0].mxu0
      %v3009 = vadd.f32 %v2720, %v3008
      %v3010 = vpop.f32.mrb[0].mxu0
      %v3011 = vpop.f32.mrb[0].mxu0
      %v3012 = vadd.f32 %v2723, %v3011
      %v3013 = vpop.f32.mrb[0].mxu0
      %3014 = vmatprep.mubr.bf16.mxu0 %v1705
      %3015 = vmatmul.mubr.bf16.gmra.mrb[0].mxu0 %v1704
      %v3016 = vpop.f32.mrb[0].mxu0
      %v3017 = vadd.f32 %v2728, %v3016
      %v3018 = vpop.f32.mrb[0].mxu0
      %v3019 = vpop.f32.mrb[0].mxu0
      %v3020 = vadd.f32 %v2731, %v3019
      %v3021 = vpop.f32.mrb[0].mxu0
      %3022 = vmatprep.mubr.bf16.mxu0 %v1714
      %3023 = vmatmul.mubr.bf16.gmra.mrb[0].mxu0 %v1713
      %v3024 = vpop.f32.mrb[0].mxu0
      %v3025 = vadd.f32 %v2736, %v3024
      %v3026 = vpop.f32.mrb[0].mxu0
      %v3027 = vpop.f32.mrb[0].mxu0
      %v3028 = vadd.f32 %v2739, %v3027
      %v3029 = vpop.f32.mrb[0].mxu0
      %3030 = vmatprep.mubr.bf16.mxu0 %v1723
      %3031 = vmatmul.mubr.bf16.gmra.mrb[0].mxu0 %v1722
      %v3032 = vpop.f32.mrb[0].mxu0
      %v3033 = vadd.f32 %v2744, %v3032
      %v3034 = vpop.f32.mrb[0].mxu0
      %v3035 = vpop.f32.mrb[0].mxu0
      %v3036 = vadd.f32 %v2747, %v3035
      %v3037 = vpop.f32.mrb[0].mxu0
      %3038 = vmatprep.mubr.bf16.mxu0 %v1732
      %3039 = vmatmul.mubr.bf16.gmra.mrb[0].mxu0 %v1731
      %v3040 = vpop.f32.mrb[0].mxu0
      %v3041 = vadd.f32 %v2752, %v3040
      %v3042 = vpop.f32.mrb[0].mxu0
      %v3043 = vpop.f32.mrb[0].mxu0
      %v3044 = vadd.f32 %v2755, %v3043
      %v3045 = vpop.f32.mrb[0].mxu0
      %3046 = vmatprep.mubr.bf16.mxu0 %v1741
      %3047 = vmatmul.mubr.bf16.gmra.mrb[0].mxu0 %v1740
      %v3048 = vpop.f32.mrb[0].mxu0
      %v3049 = vadd.f32 %v2760, %v3048
      %v3050 = vpop.f32.mrb[0].mxu0
      %v3051 = vpop.f32.mrb[0].mxu0
      %v3052 = vadd.f32 %v2763, %v3051
      %v3053 = vpop.f32.mrb[0].mxu0
      %3054 = vmatprep.mubr.bf16.mxu0 %v1750
      %3055 = vmatmul.mubr.bf16.gmra.mrb[0].mxu0 %v1749
      %v3056 = vpop.f32.mrb[0].mxu0
      %v3057 = vadd.f32 %v2768, %v3056
      %v3058 = vpop.f32.mrb[0].mxu0
      %v3059 = vpop.f32.mrb[0].mxu0
      %v3060 = vadd.f32 %v2771, %v3059
      %v3061 = vpop.f32.mrb[0].mxu0
      %3062 = vmatprep.mubr.bf16.mxu0 %v1759
      %3063 = vmatmul.mubr.bf16.gmra.mrb[0].mxu0 %v1758
      %v3064 = vpop.f32.mrb[0].mxu0
      %v3065 = vadd.f32 %v2776, %v3064
      %v3066 = vpop.f32.mrb[0].mxu0
      %v3067 = vpop.f32.mrb[0].mxu0
      %v3068 = vadd.f32 %v2779, %v3067
      %v3069 = vpop.f32.mrb[0].mxu0
      %3070 = vmatprep.mubr.bf16.mxu0 %v1768
      %3071 = vmatmul.mubr.bf16.gmra.mrb[0].mxu0 %v1767
      %v3072 = vpop.f32.mrb[0].mxu0
      %v3073 = vadd.f32 %v2784, %v3072
      %v3074 = vpop.f32.mrb[0].mxu0
      %v3075 = vpop.f32.mrb[0].mxu0
      %v3076 = vadd.f32 %v2787, %v3075
      %v3077 = vpop.f32.mrb[0].mxu0
      %3078 = vmatprep.mubr.bf16.mxu0 %v1777
      %3079 = vmatmul.mubr.bf16.gmra.mrb[0].mxu0 %v1776
      %v3080 = vpop.f32.mrb[0].mxu0
      %v3081 = vadd.f32 %v2792, %v3080
      %v3082 = vpop.f32.mrb[0].mxu0
      %v3083 = vpop.f32.mrb[0].mxu0
      %v3084 = vadd.f32 %v2795, %v3083
      %v3085 = vpop.f32.mrb[0].mxu0
      %3086 = vmatprep.mubr.bf16.mxu0 %v1786
      %3087 = vmatmul.mubr.bf16.gmra.mrb[0].mxu0 %v1785
      %v3088 = vpop.f32.mrb[0].mxu0
      %v3089 = vadd.f32 %v2800, %v3088
      %v3090 = vpop.f32.mrb[0].mxu0
      %v3091 = vpop.f32.mrb[0].mxu0
      %v3092 = vadd.f32 %v2803, %v3091
      %v3093 = vpop.f32.mrb[0].mxu0
      %3094 = vmatprep.mubr.bf16.mxu0 %v1795
      %3095 = vmatmul.mubr.bf16.gmra.mrb[0].mxu0 %v1794
      %v3096 = vpop.f32.mrb[0].mxu0
      %v3097 = vadd.f32 %v2808, %v3096
      %v3098 = vpop.f32.mrb[0].mxu0
      %v3099 = vpop.f32.mrb[0].mxu0
      %v3100 = vadd.f32 %v2811, %v3099
      %v3101 = vpop.f32.mrb[0].mxu0
      %3102 = vmatprep.mubr.bf16.mxu0 %v1804
      %3103 = vmatmul.mubr.bf16.gmra.mrb[0].mxu0 %v1803
      %v3104 = vpop.f32.mrb[0].mxu0
      %v3105 = vadd.f32 %v2816, %v3104
      %v3106 = vpop.f32.mrb[0].mxu0
      %v3107 = vpop.f32.mrb[0].mxu0
      %v3108 = vadd.f32 %v2819, %v3107
      %v3109 = vpop.f32.mrb[0].mxu0
      %3110 = vmatprep.mubr.bf16.mxu0 %v1813
      %3111 = vmatmul.mubr.bf16.gmra.mrb[0].mxu0 %v1812
      %v3112 = vpop.f32.mrb[0].mxu0
      %v3113 = vadd.f32 %v2824, %v3112
      %v3114 = vpop.f32.mrb[0].mxu0
      %v3115 = vpop.f32.mrb[0].mxu0
      %v3116 = vadd.f32 %v2827, %v3115
      %v3117 = vpop.f32.mrb[0].mxu0
      %3118 = vmatprep.mubr.bf16.mxu0 %v1822
      %3119 = vmatmul.mubr.bf16.gmra.mrb[0].mxu0 %v1821
      %v3120 = vpop.f32.mrb[0].mxu0
      %v3121 = vadd.f32 %v2832, %v3120
      %v3122 = vpop.f32.mrb[0].mxu0
      %v3123 = vpop.f32.mrb[0].mxu0
      %v3124 = vadd.f32 %v2835, %v3123
      %v3125 = vpop.f32.mrb[0].mxu0
      %3126 = vmatprep.mubr.bf16.mxu0 %v1831
      %3127 = vmatmul.mubr.bf16.gmra.mrb[0].mxu0 %v1830
      %v3128 = vpop.f32.mrb[0].mxu0
      %v3129 = vadd.f32 %v2840, %v3128
      %v3130 = vpop.f32.mrb[0].mxu0
      %v3131 = vpop.f32.mrb[0].mxu0
      %v3132 = vadd.f32 %v2843, %v3131
      %v3133 = vpop.f32.mrb[0].mxu0
      %3134 = vdwg.mxu0
      %3135 = vmatprep.subr.bf16.mxu0 0
      %3136 = vmatpush1.bf16.msra.mxu0 %v2445
      %3137 = vmatprep.subr.bf16.mxu0 0
      %3138 = vmatpush1.bf16.msra.mxu0 %v2446
      %3139 = vmatprep.subr.bf16.mxu0 0
      %3140 = vmatpush1.bf16.msra.mxu0 %v2447
      %3141 = vmatprep.subr.bf16.mxu0 0
      %3142 = vmatpush1.bf16.msra.mxu0 %v2448
      %3143 = vmatprep.subr.bf16.mxu0 0
      %3144 = vmatpush1.bf16.msra.mxu0 %v2449
      %3145 = vmatprep.subr.bf16.mxu0 0
      %3146 = vmatpush1.bf16.msra.mxu0 %v2450
      %3147 = vmatprep.subr.bf16.mxu0 0
      %3148 = vmatpush1.bf16.msra.mxu0 %v2451
      %3149 = vmatprep.subr.bf16.mxu0 0
      %3150 = vmatpush1.bf16.msra.mxu0 %v2452
      %3151 = vmatprep.subr.bf16.mxu0 0
      %3152 = vmatpush1.bf16.msra.mxu0 %v2453
      %3153 = vmatprep.subr.bf16.mxu0 0
      %3154 = vmatpush1.bf16.msra.mxu0 %v2454
      %3155 = vmatprep.subr.bf16.mxu0 0
      %3156 = vmatpush1.bf16.msra.mxu0 %v2455
      %3157 = vmatprep.subr.bf16.mxu0 0
      %3158 = vmatpush1.bf16.msra.mxu0 %v2456
      %3159 = vmatprep.subr.bf16.mxu0 0
      %3160 = vmatpush1.bf16.msra.mxu0 %v2457
      %3161 = vmatprep.subr.bf16.mxu0 0
      %3162 = vmatpush1.bf16.msra.mxu0 %v2458
      %3163 = vmatprep.subr.bf16.mxu0 0
      %3164 = vmatpush1.bf16.msra.mxu0 %v2459
      %3165 = vmatprep.subr.bf16.mxu0 0
      %3166 = vmatpush1.bf16.msra.mxu0 %v2460
      %3167 = vmatprep.mubr.bf16.mxu0 %v1554
      %3168 = vmatmul.mubr.bf16.gmra.mrb[0].mxu0 %v1553
      %v3169 = vpop.f32.mrb[0].mxu0
      %v3170 = vadd.f32 %v2881, %v3169
      %v3171 = vpop.f32.mrb[0].mxu0
      %v3172 = vpop.f32.mrb[0].mxu0
      %v3173 = vadd.f32 %v2884, %v3172
      %v3174 = vpop.f32.mrb[0].mxu0
      %3175 = vmatprep.mubr.bf16.mxu0 %v1563
      %3176 = vmatmul.mubr.bf16.gmra.mrb[0].mxu0 %v1562
      %v3177 = vpop.f32.mrb[0].mxu0
      %v3178 = vadd.f32 %v2889, %v3177
      %v3179 = vpop.f32.mrb[0].mxu0
      %v3180 = vpop.f32.mrb[0].mxu0
      %v3181 = vadd.f32 %v2892, %v3180
      %v3182 = vpop.f32.mrb[0].mxu0
      %3183 = vmatprep.mubr.bf16.mxu0 %v1572
      %3184 = vmatmul.mubr.bf16.gmra.mrb[0].mxu0 %v1571
      %v3185 = vpop.f32.mrb[0].mxu0
      %v3186 = vadd.f32 %v2897, %v3185
      %v3187 = vpop.f32.mrb[0].mxu0
      %v3188 = vpop.f32.mrb[0].mxu0
      %v3189 = vadd.f32 %v2900, %v3188
      %v3190 = vpop.f32.mrb[0].mxu0
      %3191 = vmatprep.mubr.bf16.mxu0 %v1581
      %3192 = vmatmul.mubr.bf16.gmra.mrb[0].mxu0 %v1580
      %v3193 = vpop.f32.mrb[0].mxu0
      %v3194 = vadd.f32 %v2905, %v3193
      %v3195 = vpop.f32.mrb[0].mxu0
      %v3196 = vpop.f32.mrb[0].mxu0
      %v3197 = vadd.f32 %v2908, %v3196
      %v3198 = vpop.f32.mrb[0].mxu0
      %3199 = vmatprep.mubr.bf16.mxu0 %v1590
      %3200 = vmatmul.mubr.bf16.gmra.mrb[0].mxu0 %v1589
      %v3201 = vpop.f32.mrb[0].mxu0
      %v3202 = vadd.f32 %v2913, %v3201
      %v3203 = vpop.f32.mrb[0].mxu0
      %v3204 = vpop.f32.mrb[0].mxu0
      %v3205 = vadd.f32 %v2916, %v3204
      %v3206 = vpop.f32.mrb[0].mxu0
      %3207 = vmatprep.mubr.bf16.mxu0 %v1599
      %3208 = vmatmul.mubr.bf16.gmra.mrb[0].mxu0 %v1598
      %v3209 = vpop.f32.mrb[0].mxu0
      %v3210 = vadd.f32 %v2921, %v3209
      %v3211 = vpop.f32.mrb[0].mxu0
      %v3212 = vpop.f32.mrb[0].mxu0
      %v3213 = vadd.f32 %v2924, %v3212
      %v3214 = vpop.f32.mrb[0].mxu0
      %3215 = vmatprep.mubr.bf16.mxu0 %v1608
      %3216 = vmatmul.mubr.bf16.gmra.mrb[0].mxu0 %v1607
      %v3217 = vpop.f32.mrb[0].mxu0
      %v3218 = vadd.f32 %v2929, %v3217
      %v3219 = vpop.f32.mrb[0].mxu0
      %v3220 = vpop.f32.mrb[0].mxu0
      %v3221 = vadd.f32 %v2932, %v3220
      %v3222 = vpop.f32.mrb[0].mxu0
      %3223 = vmatprep.mubr.bf16.mxu0 %v1617
      %3224 = vmatmul.mubr.bf16.gmra.mrb[0].mxu0 %v1616
      %v3225 = vpop.f32.mrb[0].mxu0
      %v3226 = vadd.f32 %v2937, %v3225
      %v3227 = vpop.f32.mrb[0].mxu0
      %v3228 = vpop.f32.mrb[0].mxu0
      %v3229 = vadd.f32 %v2940, %v3228
      %v3230 = vpop.f32.mrb[0].mxu0
      %3231 = vmatprep.mubr.bf16.mxu0 %v1626
      %3232 = vmatmul.mubr.bf16.gmra.mrb[0].mxu0 %v1625
      %v3233 = vpop.f32.mrb[0].mxu0
      %v3234 = vadd.f32 %v2945, %v3233
      %v3235 = vpop.f32.mrb[0].mxu0
      %v3236 = vpop.f32.mrb[0].mxu0
      %v3237 = vadd.f32 %v2948, %v3236
      %v3238 = vpop.f32.mrb[0].mxu0
      %3239 = vmatprep.mubr.bf16.mxu0 %v1635
      %3240 = vmatmul.mubr.bf16.gmra.mrb[0].mxu0 %v1634
      %v3241 = vpop.f32.mrb[0].mxu0
      %v3242 = vadd.f32 %v2953, %v3241
      %v3243 = vpop.f32.mrb[0].mxu0
      %v3244 = vpop.f32.mrb[0].mxu0
      %v3245 = vadd.f32 %v2956, %v3244
      %v3246 = vpop.f32.mrb[0].mxu0
      %3247 = vmatprep.mubr.bf16.mxu0 %v1644
      %3248 = vmatmul.mubr.bf16.gmra.mrb[0].mxu0 %v1643
      %v3249 = vpop.f32.mrb[0].mxu0
      %v3250 = vadd.f32 %v2961, %v3249
      %v3251 = vpop.f32.mrb[0].mxu0
      %v3252 = vpop.f32.mrb[0].mxu0
      %v3253 = vadd.f32 %v2964, %v3252
      %v3254 = vpop.f32.mrb[0].mxu0
      %3255 = vmatprep.mubr.bf16.mxu0 %v1653
      %3256 = vmatmul.mubr.bf16.gmra.mrb[0].mxu0 %v1652
      %v3257 = vpop.f32.mrb[0].mxu0
      %v3258 = vadd.f32 %v2969, %v3257
      %v3259 = vpop.f32.mrb[0].mxu0
      %v3260 = vpop.f32.mrb[0].mxu0
      %v3261 = vadd.f32 %v2972, %v3260
      %v3262 = vpop.f32.mrb[0].mxu0
      %3263 = vmatprep.mubr.bf16.mxu0 %v1662
      %3264 = vmatmul.mubr.bf16.gmra.mrb[0].mxu0 %v1661
      %v3265 = vpop.f32.mrb[0].mxu0
      %v3266 = vadd.f32 %v2977, %v3265
      %v3267 = vpop.f32.mrb[0].mxu0
      %v3268 = vpop.f32.mrb[0].mxu0
      %v3269 = vadd.f32 %v2980, %v3268
      %v3270 = vpop.f32.mrb[0].mxu0
      %3271 = vmatprep.mubr.bf16.mxu0 %v1671
      %3272 = vmatmul.mubr.bf16.gmra.mrb[0].mxu0 %v1670
      %v3273 = vpop.f32.mrb[0].mxu0
      %v3274 = vadd.f32 %v2985, %v3273
      %v3275 = vpop.f32.mrb[0].mxu0
      %v3276 = vpop.f32.mrb[0].mxu0
      %v3277 = vadd.f32 %v2988, %v3276
      %v3278 = vpop.f32.mrb[0].mxu0
      %3279 = vmatprep.mubr.bf16.mxu0 %v1680
      %3280 = vmatmul.mubr.bf16.gmra.mrb[0].mxu0 %v1679
      %v3281 = vpop.f32.mrb[0].mxu0
      %v3282 = vadd.f32 %v2993, %v3281
      %v3283 = vpop.f32.mrb[0].mxu0
      %v3284 = vpop.f32.mrb[0].mxu0
      %v3285 = vadd.f32 %v2996, %v3284
      %v3286 = vpop.f32.mrb[0].mxu0
      %3287 = vmatprep.mubr.bf16.mxu0 %v1689
      %3288 = vmatmul.mubr.bf16.gmra.mrb[0].mxu0 %v1688
      %v3289 = vpop.f32.mrb[0].mxu0
      %v3290 = vadd.f32 %v3001, %v3289
      %v3291 = vpop.f32.mrb[0].mxu0
      %v3292 = vpop.f32.mrb[0].mxu0
      %v3293 = vadd.f32 %v3004, %v3292
      %v3294 = vpop.f32.mrb[0].mxu0
      %3295 = vmatprep.mubr.bf16.mxu0 %v1698
      %3296 = vmatmul.mubr.bf16.gmra.mrb[0].mxu0 %v1697
      %v3297 = vpop.f32.mrb[0].mxu0
      %v3298 = vadd.f32 %v3009, %v3297
      %v3299 = vpop.f32.mrb[0].mxu0
      %v3300 = vpop.f32.mrb[0].mxu0
      %v3301 = vadd.f32 %v3012, %v3300
      %v3302 = vpop.f32.mrb[0].mxu0
      %3303 = vmatprep.mubr.bf16.mxu0 %v1707
      %3304 = vmatmul.mubr.bf16.gmra.mrb[0].mxu0 %v1706
      %v3305 = vpop.f32.mrb[0].mxu0
      %v3306 = vadd.f32 %v3017, %v3305
      %v3307 = vpop.f32.mrb[0].mxu0
      %v3308 = vpop.f32.mrb[0].mxu0
      %v3309 = vadd.f32 %v3020, %v3308
      %v3310 = vpop.f32.mrb[0].mxu0
      %3311 = vmatprep.mubr.bf16.mxu0 %v1716
      %3312 = vmatmul.mubr.bf16.gmra.mrb[0].mxu0 %v1715
      %v3313 = vpop.f32.mrb[0].mxu0
      %v3314 = vadd.f32 %v3025, %v3313
      %v3315 = vpop.f32.mrb[0].mxu0
      %v3316 = vpop.f32.mrb[0].mxu0
      %v3317 = vadd.f32 %v3028, %v3316
      %v3318 = vpop.f32.mrb[0].mxu0
      %3319 = vmatprep.mubr.bf16.mxu0 %v1725
      %3320 = vmatmul.mubr.bf16.gmra.mrb[0].mxu0 %v1724
      %v3321 = vpop.f32.mrb[0].mxu0
      %v3322 = vadd.f32 %v3033, %v3321
      %v3323 = vpop.f32.mrb[0].mxu0
      %v3324 = vpop.f32.mrb[0].mxu0
      %v3325 = vadd.f32 %v3036, %v3324
      %v3326 = vpop.f32.mrb[0].mxu0
      %3327 = vmatprep.mubr.bf16.mxu0 %v1734
      %3328 = vmatmul.mubr.bf16.gmra.mrb[0].mxu0 %v1733
      %v3329 = vpop.f32.mrb[0].mxu0
      %v3330 = vadd.f32 %v3041, %v3329
      %v3331 = vpop.f32.mrb[0].mxu0
      %v3332 = vpop.f32.mrb[0].mxu0
      %v3333 = vadd.f32 %v3044, %v3332
      %v3334 = vpop.f32.mrb[0].mxu0
      %3335 = vmatprep.mubr.bf16.mxu0 %v1743
      %3336 = vmatmul.mubr.bf16.gmra.mrb[0].mxu0 %v1742
      %v3337 = vpop.f32.mrb[0].mxu0
      %v3338 = vadd.f32 %v3049, %v3337
      %v3339 = vpop.f32.mrb[0].mxu0
      %v3340 = vpop.f32.mrb[0].mxu0
      %v3341 = vadd.f32 %v3052, %v3340
      %v3342 = vpop.f32.mrb[0].mxu0
      %3343 = vmatprep.mubr.bf16.mxu0 %v1752
      %3344 = vmatmul.mubr.bf16.gmra.mrb[0].mxu0 %v1751
      %v3345 = vpop.f32.mrb[0].mxu0
      %v3346 = vadd.f32 %v3057, %v3345
      %v3347 = vpop.f32.mrb[0].mxu0
      %v3348 = vpop.f32.mrb[0].mxu0
      %v3349 = vadd.f32 %v3060, %v3348
      %v3350 = vpop.f32.mrb[0].mxu0
      %3351 = vmatprep.mubr.bf16.mxu0 %v1761
      %3352 = vmatmul.mubr.bf16.gmra.mrb[0].mxu0 %v1760
      %v3353 = vpop.f32.mrb[0].mxu0
      %v3354 = vadd.f32 %v3065, %v3353
      %v3355 = vpop.f32.mrb[0].mxu0
      %v3356 = vpop.f32.mrb[0].mxu0
      %v3357 = vadd.f32 %v3068, %v3356
      %v3358 = vpop.f32.mrb[0].mxu0
      %3359 = vmatprep.mubr.bf16.mxu0 %v1770
      %3360 = vmatmul.mubr.bf16.gmra.mrb[0].mxu0 %v1769
      %v3361 = vpop.f32.mrb[0].mxu0
      %v3362 = vadd.f32 %v3073, %v3361
      %v3363 = vpop.f32.mrb[0].mxu0
      %v3364 = vpop.f32.mrb[0].mxu0
      %v3365 = vadd.f32 %v3076, %v3364
      %v3366 = vpop.f32.mrb[0].mxu0
      %3367 = vmatprep.mubr.bf16.mxu0 %v1779
      %3368 = vmatmul.mubr.bf16.gmra.mrb[0].mxu0 %v1778
      %v3369 = vpop.f32.mrb[0].mxu0
      %v3370 = vadd.f32 %v3081, %v3369
      %v3371 = vpop.f32.mrb[0].mxu0
      %v3372 = vpop.f32.mrb[0].mxu0
      %v3373 = vadd.f32 %v3084, %v3372
      %v3374 = vpop.f32.mrb[0].mxu0
      %3375 = vmatprep.mubr.bf16.mxu0 %v1788
      %3376 = vmatmul.mubr.bf16.gmra.mrb[0].mxu0 %v1787
      %v3377 = vpop.f32.mrb[0].mxu0
      %v3378 = vadd.f32 %v3089, %v3377
      %v3379 = vpop.f32.mrb[0].mxu0
      %v3380 = vpop.f32.mrb[0].mxu0
      %v3381 = vadd.f32 %v3092, %v3380
      %v3382 = vpop.f32.mrb[0].mxu0
      %3383 = vmatprep.mubr.bf16.mxu0 %v1797
      %3384 = vmatmul.mubr.bf16.gmra.mrb[0].mxu0 %v1796
      %v3385 = vpop.f32.mrb[0].mxu0
      %v3386 = vadd.f32 %v3097, %v3385
      %v3387 = vpop.f32.mrb[0].mxu0
      %v3388 = vpop.f32.mrb[0].mxu0
      %v3389 = vadd.f32 %v3100, %v3388
      %v3390 = vpop.f32.mrb[0].mxu0
      %3391 = vmatprep.mubr.bf16.mxu0 %v1806
      %3392 = vmatmul.mubr.bf16.gmra.mrb[0].mxu0 %v1805
      %v3393 = vpop.f32.mrb[0].mxu0
      %v3394 = vadd.f32 %v3105, %v3393
      %v3395 = vpop.f32.mrb[0].mxu0
      %v3396 = vpop.f32.mrb[0].mxu0
      %v3397 = vadd.f32 %v3108, %v3396
      %v3398 = vpop.f32.mrb[0].mxu0
      %3399 = vmatprep.mubr.bf16.mxu0 %v1815
      %3400 = vmatmul.mubr.bf16.gmra.mrb[0].mxu0 %v1814
      %v3401 = vpop.f32.mrb[0].mxu0
      %v3402 = vadd.f32 %v3113, %v3401
      %v3403 = vpop.f32.mrb[0].mxu0
      %v3404 = vpop.f32.mrb[0].mxu0
      %v3405 = vadd.f32 %v3116, %v3404
      %v3406 = vpop.f32.mrb[0].mxu0
      %3407 = vmatprep.mubr.bf16.mxu0 %v1824
      %3408 = vmatmul.mubr.bf16.gmra.mrb[0].mxu0 %v1823
      %v3409 = vpop.f32.mrb[0].mxu0
      %v3410 = vadd.f32 %v3121, %v3409
      %v3411 = vpop.f32.mrb[0].mxu0
      %v3412 = vpop.f32.mrb[0].mxu0
      %v3413 = vadd.f32 %v3124, %v3412
      %v3414 = vpop.f32.mrb[0].mxu0
      %3415 = vmatprep.mubr.bf16.mxu0 %v1833
      %3416 = vmatmul.mubr.bf16.gmra.mrb[0].mxu0 %v1832
      %v3417 = vpop.f32.mrb[0].mxu0
      %v3418 = vadd.f32 %v3129, %v3417
      %v3419 = vpop.f32.mrb[0].mxu0
      %v3420 = vpop.f32.mrb[0].mxu0
      %v3421 = vadd.f32 %v3132, %v3420
      %v3422 = vpop.f32.mrb[0].mxu0
      %3423 = vdwg.mxu0
      %3424 = vmatprep.subr.bf16.mxu0 0
      %3425 = vmatpush1.bf16.msra.mxu0 %v2461
      %3426 = vmatprep.subr.bf16.mxu0 0
      %3427 = vmatpush1.bf16.msra.mxu0 %v2462
      %3428 = vmatprep.subr.bf16.mxu0 0
      %3429 = vmatpush1.bf16.msra.mxu0 %v2463
      %3430 = vmatprep.subr.bf16.mxu0 0
      %3431 = vmatpush1.bf16.msra.mxu0 %v2464
      %3432 = vmatprep.subr.bf16.mxu0 0
      %3433 = vmatpush1.bf16.msra.mxu0 %v2465
      %3434 = vmatprep.subr.bf16.mxu0 0
      %3435 = vmatpush1.bf16.msra.mxu0 %v2466
      %3436 = vmatprep.subr.bf16.mxu0 0
      %3437 = vmatpush1.bf16.msra.mxu0 %v2467
      %3438 = vmatprep.subr.bf16.mxu0 0
      %3439 = vmatpush1.bf16.msra.mxu0 %v2468
      %3440 = vmatprep.subr.bf16.mxu0 0
      %3441 = vmatpush1.bf16.msra.mxu0 %v2469
      %3442 = vmatprep.subr.bf16.mxu0 0
      %3443 = vmatpush1.bf16.msra.mxu0 %v2470
      %3444 = vmatprep.subr.bf16.mxu0 0
      %3445 = vmatpush1.bf16.msra.mxu0 %v2471
      %3446 = vmatprep.subr.bf16.mxu0 0
      %3447 = vmatpush1.bf16.msra.mxu0 %v2472
      %3448 = vmatprep.subr.bf16.mxu0 0
      %3449 = vmatpush1.bf16.msra.mxu0 %v2473
      %3450 = vmatprep.subr.bf16.mxu0 0
      %3451 = vmatpush1.bf16.msra.mxu0 %v2474
      %3452 = vmatprep.subr.bf16.mxu0 0
      %3453 = vmatpush1.bf16.msra.mxu0 %v2475
      %3454 = vmatprep.subr.bf16.mxu0 0
      %3455 = vmatpush1.bf16.msra.mxu0 %v2476
      %3456 = vmatprep.mubr.bf16.mxu0 %v1556
      %3457 = vmatmul.mubr.bf16.gmra.mrb[0].mxu0 %v1555
      %v3458 = vpop.f32.mrb[0].mxu0
      %v3459 = vadd.f32 %v3170, %v3458
      %v3460 = vpop.f32.mrb[0].mxu0
      %v3461 = vpop.f32.mrb[0].mxu0
      %v3462 = vadd.f32 %v3173, %v3461
      %v3463 = vpop.f32.mrb[0].mxu0
      %3464 = vmatprep.mubr.bf16.mxu0 %v1565
      %3465 = vmatmul.mubr.bf16.gmra.mrb[0].mxu0 %v1564
      %v3466 = vpop.f32.mrb[0].mxu0
      %v3467 = vadd.f32 %v3178, %v3466
      %v3468 = vpop.f32.mrb[0].mxu0
      %v3469 = vpop.f32.mrb[0].mxu0
      %v3470 = vadd.f32 %v3181, %v3469
      %v3471 = vpop.f32.mrb[0].mxu0
      %3472 = vmatprep.mubr.bf16.mxu0 %v1574
      %3473 = vmatmul.mubr.bf16.gmra.mrb[0].mxu0 %v1573
      %v3474 = vpop.f32.mrb[0].mxu0
      %v3475 = vadd.f32 %v3186, %v3474
      %v3476 = vpop.f32.mrb[0].mxu0
      %v3477 = vpop.f32.mrb[0].mxu0
      %v3478 = vadd.f32 %v3189, %v3477
      %v3479 = vpop.f32.mrb[0].mxu0
      %3480 = vmatprep.mubr.bf16.mxu0 %v1583
      %3481 = vmatmul.mubr.bf16.gmra.mrb[0].mxu0 %v1582
      %v3482 = vpop.f32.mrb[0].mxu0
      %v3483 = vadd.f32 %v3194, %v3482
      %v3484 = vpop.f32.mrb[0].mxu0
      %v3485 = vpop.f32.mrb[0].mxu0
      %v3486 = vadd.f32 %v3197, %v3485
      %v3487 = vpop.f32.mrb[0].mxu0
      %3488 = vmatprep.mubr.bf16.mxu0 %v1592
      %3489 = vmatmul.mubr.bf16.gmra.mrb[0].mxu0 %v1591
      %v3490 = vpop.f32.mrb[0].mxu0
      %v3491 = vadd.f32 %v3202, %v3490
      %v3492 = vpop.f32.mrb[0].mxu0
      %v3493 = vpop.f32.mrb[0].mxu0
      %v3494 = vadd.f32 %v3205, %v3493
      %v3495 = vpop.f32.mrb[0].mxu0
      %3496 = vmatprep.mubr.bf16.mxu0 %v1601
      %3497 = vmatmul.mubr.bf16.gmra.mrb[0].mxu0 %v1600
      %v3498 = vpop.f32.mrb[0].mxu0
      %v3499 = vadd.f32 %v3210, %v3498
      %v3500 = vpop.f32.mrb[0].mxu0
      %v3501 = vpop.f32.mrb[0].mxu0
      %v3502 = vadd.f32 %v3213, %v3501
      %v3503 = vpop.f32.mrb[0].mxu0
      %3504 = vmatprep.mubr.bf16.mxu0 %v1610
      %3505 = vmatmul.mubr.bf16.gmra.mrb[0].mxu0 %v1609
      %v3506 = vpop.f32.mrb[0].mxu0
      %v3507 = vadd.f32 %v3218, %v3506
      %v3508 = vpop.f32.mrb[0].mxu0
      %v3509 = vpop.f32.mrb[0].mxu0
      %v3510 = vadd.f32 %v3221, %v3509
      %v3511 = vpop.f32.mrb[0].mxu0
      %3512 = vmatprep.mubr.bf16.mxu0 %v1619
      %3513 = vmatmul.mubr.bf16.gmra.mrb[0].mxu0 %v1618
      %v3514 = vpop.f32.mrb[0].mxu0
      %v3515 = vadd.f32 %v3226, %v3514
      %v3516 = vpop.f32.mrb[0].mxu0
      %v3517 = vpop.f32.mrb[0].mxu0
      %v3518 = vadd.f32 %v3229, %v3517
      %v3519 = vpop.f32.mrb[0].mxu0
      %3520 = vmatprep.mubr.bf16.mxu0 %v1628
      %3521 = vmatmul.mubr.bf16.gmra.mrb[0].mxu0 %v1627
      %v3522 = vpop.f32.mrb[0].mxu0
      %v3523 = vadd.f32 %v3234, %v3522
      %v3524 = vpop.f32.mrb[0].mxu0
      %v3525 = vpop.f32.mrb[0].mxu0
      %v3526 = vadd.f32 %v3237, %v3525
      %v3527 = vpop.f32.mrb[0].mxu0
      %3528 = vmatprep.mubr.bf16.mxu0 %v1637
      %3529 = vmatmul.mubr.bf16.gmra.mrb[0].mxu0 %v1636
      %v3530 = vpop.f32.mrb[0].mxu0
      %v3531 = vadd.f32 %v3242, %v3530
      %v3532 = vpop.f32.mrb[0].mxu0
      %v3533 = vpop.f32.mrb[0].mxu0
      %v3534 = vadd.f32 %v3245, %v3533
      %v3535 = vpop.f32.mrb[0].mxu0
      %3536 = vmatprep.mubr.bf16.mxu0 %v1646
      %3537 = vmatmul.mubr.bf16.gmra.mrb[0].mxu0 %v1645
      %v3538 = vpop.f32.mrb[0].mxu0
      %v3539 = vadd.f32 %v3250, %v3538
      %v3540 = vpop.f32.mrb[0].mxu0
      %v3541 = vpop.f32.mrb[0].mxu0
      %v3542 = vadd.f32 %v3253, %v3541
      %v3543 = vpop.f32.mrb[0].mxu0
      %3544 = vmatprep.mubr.bf16.mxu0 %v1655
      %3545 = vmatmul.mubr.bf16.gmra.mrb[0].mxu0 %v1654
      %v3546 = vpop.f32.mrb[0].mxu0
      %v3547 = vadd.f32 %v3258, %v3546
      %v3548 = vpop.f32.mrb[0].mxu0
      %v3549 = vpop.f32.mrb[0].mxu0
      %v3550 = vadd.f32 %v3261, %v3549
      %v3551 = vpop.f32.mrb[0].mxu0
      %3552 = vmatprep.mubr.bf16.mxu0 %v1664
      %3553 = vmatmul.mubr.bf16.gmra.mrb[0].mxu0 %v1663
      %v3554 = vpop.f32.mrb[0].mxu0
      %v3555 = vadd.f32 %v3266, %v3554
      %v3556 = vpop.f32.mrb[0].mxu0
      %v3557 = vpop.f32.mrb[0].mxu0
      %v3558 = vadd.f32 %v3269, %v3557
      %v3559 = vpop.f32.mrb[0].mxu0
      %3560 = vmatprep.mubr.bf16.mxu0 %v1673
      %3561 = vmatmul.mubr.bf16.gmra.mrb[0].mxu0 %v1672
      %v3562 = vpop.f32.mrb[0].mxu0
      %v3563 = vadd.f32 %v3274, %v3562
      %v3564 = vpop.f32.mrb[0].mxu0
      %v3565 = vpop.f32.mrb[0].mxu0
      %v3566 = vadd.f32 %v3277, %v3565
      %v3567 = vpop.f32.mrb[0].mxu0
      %3568 = vmatprep.mubr.bf16.mxu0 %v1682
      %3569 = vmatmul.mubr.bf16.gmra.mrb[0].mxu0 %v1681
      %v3570 = vpop.f32.mrb[0].mxu0
      %v3571 = vadd.f32 %v3282, %v3570
      %v3572 = vpop.f32.mrb[0].mxu0
      %v3573 = vpop.f32.mrb[0].mxu0
      %v3574 = vadd.f32 %v3285, %v3573
      %v3575 = vpop.f32.mrb[0].mxu0
      %3576 = vmatprep.mubr.bf16.mxu0 %v1691
      %3577 = vmatmul.mubr.bf16.gmra.mrb[0].mxu0 %v1690
      %v3578 = vpop.f32.mrb[0].mxu0
      %v3579 = vadd.f32 %v3290, %v3578
      %v3580 = vpop.f32.mrb[0].mxu0
      %v3581 = vpop.f32.mrb[0].mxu0
      %v3582 = vadd.f32 %v3293, %v3581
      %v3583 = vpop.f32.mrb[0].mxu0
      %3584 = vmatprep.mubr.bf16.mxu0 %v1700
      %3585 = vmatmul.mubr.bf16.gmra.mrb[0].mxu0 %v1699
      %v3586 = vpop.f32.mrb[0].mxu0
      %v3587 = vadd.f32 %v3298, %v3586
      %v3588 = vpop.f32.mrb[0].mxu0
      %v3589 = vpop.f32.mrb[0].mxu0
      %v3590 = vadd.f32 %v3301, %v3589
      %v3591 = vpop.f32.mrb[0].mxu0
      %3592 = vmatprep.mubr.bf16.mxu0 %v1709
      %3593 = vmatmul.mubr.bf16.gmra.mrb[0].mxu0 %v1708
      %v3594 = vpop.f32.mrb[0].mxu0
      %v3595 = vadd.f32 %v3306, %v3594
      %v3596 = vpop.f32.mrb[0].mxu0
      %v3597 = vpop.f32.mrb[0].mxu0
      %v3598 = vadd.f32 %v3309, %v3597
      %v3599 = vpop.f32.mrb[0].mxu0
      %3600 = vmatprep.mubr.bf16.mxu0 %v1718
      %3601 = vmatmul.mubr.bf16.gmra.mrb[0].mxu0 %v1717
      %v3602 = vpop.f32.mrb[0].mxu0
      %v3603 = vadd.f32 %v3314, %v3602
      %v3604 = vpop.f32.mrb[0].mxu0
      %v3605 = vpop.f32.mrb[0].mxu0
      %v3606 = vadd.f32 %v3317, %v3605
      %v3607 = vpop.f32.mrb[0].mxu0
      %3608 = vmatprep.mubr.bf16.mxu0 %v1727
      %3609 = vmatmul.mubr.bf16.gmra.mrb[0].mxu0 %v1726
      %v3610 = vpop.f32.mrb[0].mxu0
      %v3611 = vadd.f32 %v3322, %v3610
      %v3612 = vpop.f32.mrb[0].mxu0
      %v3613 = vpop.f32.mrb[0].mxu0
      %v3614 = vadd.f32 %v3325, %v3613
      %v3615 = vpop.f32.mrb[0].mxu0
      %3616 = vmatprep.mubr.bf16.mxu0 %v1736
      %3617 = vmatmul.mubr.bf16.gmra.mrb[0].mxu0 %v1735
      %v3618 = vpop.f32.mrb[0].mxu0
      %v3619 = vadd.f32 %v3330, %v3618
      %v3620 = vpop.f32.mrb[0].mxu0
      %v3621 = vpop.f32.mrb[0].mxu0
      %v3622 = vadd.f32 %v3333, %v3621
      %v3623 = vpop.f32.mrb[0].mxu0
      %3624 = vmatprep.mubr.bf16.mxu0 %v1745
      %3625 = vmatmul.mubr.bf16.gmra.mrb[0].mxu0 %v1744
      %v3626 = vpop.f32.mrb[0].mxu0
      %v3627 = vadd.f32 %v3338, %v3626
      %v3628 = vpop.f32.mrb[0].mxu0
      %v3629 = vpop.f32.mrb[0].mxu0
      %v3630 = vadd.f32 %v3341, %v3629
      %v3631 = vpop.f32.mrb[0].mxu0
      %3632 = vmatprep.mubr.bf16.mxu0 %v1754
      %3633 = vmatmul.mubr.bf16.gmra.mrb[0].mxu0 %v1753
      %v3634 = vpop.f32.mrb[0].mxu0
      %v3635 = vadd.f32 %v3346, %v3634
      %v3636 = vpop.f32.mrb[0].mxu0
      %v3637 = vpop.f32.mrb[0].mxu0
      %v3638 = vadd.f32 %v3349, %v3637
      %v3639 = vpop.f32.mrb[0].mxu0
      %3640 = vmatprep.mubr.bf16.mxu0 %v1763
      %3641 = vmatmul.mubr.bf16.gmra.mrb[0].mxu0 %v1762
      %v3642 = vpop.f32.mrb[0].mxu0
      %v3643 = vadd.f32 %v3354, %v3642
      %v3644 = vpop.f32.mrb[0].mxu0
      %v3645 = vpop.f32.mrb[0].mxu0
      %v3646 = vadd.f32 %v3357, %v3645
      %v3647 = vpop.f32.mrb[0].mxu0
      %3648 = vmatprep.mubr.bf16.mxu0 %v1772
      %3649 = vmatmul.mubr.bf16.gmra.mrb[0].mxu0 %v1771
      %v3650 = vpop.f32.mrb[0].mxu0
      %v3651 = vadd.f32 %v3362, %v3650
      %v3652 = vpop.f32.mrb[0].mxu0
      %v3653 = vpop.f32.mrb[0].mxu0
      %v3654 = vadd.f32 %v3365, %v3653
      %v3655 = vpop.f32.mrb[0].mxu0
      %3656 = vmatprep.mubr.bf16.mxu0 %v1781
      %3657 = vmatmul.mubr.bf16.gmra.mrb[0].mxu0 %v1780
      %v3658 = vpop.f32.mrb[0].mxu0
      %v3659 = vadd.f32 %v3370, %v3658
      %v3660 = vpop.f32.mrb[0].mxu0
      %v3661 = vpop.f32.mrb[0].mxu0
      %v3662 = vadd.f32 %v3373, %v3661
      %v3663 = vpop.f32.mrb[0].mxu0
      %3664 = vmatprep.mubr.bf16.mxu0 %v1790
      %3665 = vmatmul.mubr.bf16.gmra.mrb[0].mxu0 %v1789
      %v3666 = vpop.f32.mrb[0].mxu0
      %v3667 = vadd.f32 %v3378, %v3666
      %v3668 = vpop.f32.mrb[0].mxu0
      %v3669 = vpop.f32.mrb[0].mxu0
      %v3670 = vadd.f32 %v3381, %v3669
      %v3671 = vpop.f32.mrb[0].mxu0
      %3672 = vmatprep.mubr.bf16.mxu0 %v1799
      %3673 = vmatmul.mubr.bf16.gmra.mrb[0].mxu0 %v1798
      %v3674 = vpop.f32.mrb[0].mxu0
      %v3675 = vadd.f32 %v3386, %v3674
      %v3676 = vpop.f32.mrb[0].mxu0
      %v3677 = vpop.f32.mrb[0].mxu0
      %v3678 = vadd.f32 %v3389, %v3677
      %v3679 = vpop.f32.mrb[0].mxu0
      %3680 = vmatprep.mubr.bf16.mxu0 %v1808
      %3681 = vmatmul.mubr.bf16.gmra.mrb[0].mxu0 %v1807
      %v3682 = vpop.f32.mrb[0].mxu0
      %v3683 = vadd.f32 %v3394, %v3682
      %v3684 = vpop.f32.mrb[0].mxu0
      %v3685 = vpop.f32.mrb[0].mxu0
      %v3686 = vadd.f32 %v3397, %v3685
      %v3687 = vpop.f32.mrb[0].mxu0
      %3688 = vmatprep.mubr.bf16.mxu0 %v1817
      %3689 = vmatmul.mubr.bf16.gmra.mrb[0].mxu0 %v1816
      %v3690 = vpop.f32.mrb[0].mxu0
      %v3691 = vadd.f32 %v3402, %v3690
      %v3692 = vpop.f32.mrb[0].mxu0
      %v3693 = vpop.f32.mrb[0].mxu0
      %v3694 = vadd.f32 %v3405, %v3693
      %v3695 = vpop.f32.mrb[0].mxu0
      %3696 = vmatprep.mubr.bf16.mxu0 %v1826
      %3697 = vmatmul.mubr.bf16.gmra.mrb[0].mxu0 %v1825
      %v3698 = vpop.f32.mrb[0].mxu0
      %v3699 = vadd.f32 %v3410, %v3698
      %v3700 = vpop.f32.mrb[0].mxu0
      %v3701 = vpop.f32.mrb[0].mxu0
      %v3702 = vadd.f32 %v3413, %v3701
      %v3703 = vpop.f32.mrb[0].mxu0
      %3704 = vmatprep.mubr.bf16.mxu0 %v1835
      %3705 = vmatmul.mubr.bf16.gmra.mrb[0].mxu0 %v1834
      %v3706 = vpop.f32.mrb[0].mxu0
      %v3707 = vadd.f32 %v3418, %v3706
      %v3708 = vpop.f32.mrb[0].mxu0
      %v3709 = vpop.f32.mrb[0].mxu0
      %v3710 = vadd.f32 %v3421, %v3709
      %v3711 = vpop.f32.mrb[0].mxu0
      %3712 = vdwg.mxu0
      %3713 = vmatprep.subr.bf16.mxu0 0
      %3714 = vmatpush1.bf16.msra.mxu0 %v2477
      %3715 = vmatprep.subr.bf16.mxu0 0
      %3716 = vmatpush1.bf16.msra.mxu0 %v2478
      %3717 = vmatprep.subr.bf16.mxu0 0
      %3718 = vmatpush1.bf16.msra.mxu0 %v2479
      %3719 = vmatprep.subr.bf16.mxu0 0
      %3720 = vmatpush1.bf16.msra.mxu0 %v2480
      %3721 = vmatprep.subr.bf16.mxu0 0
      %3722 = vmatpush1.bf16.msra.mxu0 %v2481
      %3723 = vmatprep.subr.bf16.mxu0 0
      %3724 = vmatpush1.bf16.msra.mxu0 %v2482
      %3725 = vmatprep.subr.bf16.mxu0 0
      %3726 = vmatpush1.bf16.msra.mxu0 %v2483
      %3727 = vmatprep.subr.bf16.mxu0 0
      %3728 = vmatpush1.bf16.msra.mxu0 %v2484
      %3729 = vmatprep.subr.bf16.mxu0 0
      %3730 = vmatpush1.bf16.msra.mxu0 0
      %3731 = vmatprep.subr.bf16.mxu0 0
      %3732 = vmatpush1.bf16.msra.mxu0 0
      %3733 = vmatprep.subr.bf16.mxu0 0
      %3734 = vmatpush1.bf16.msra.mxu0 0
      %3735 = vmatprep.subr.bf16.mxu0 0
      %3736 = vmatpush1.bf16.msra.mxu0 0
      %3737 = vmatprep.subr.bf16.mxu0 0
      %3738 = vmatpush1.bf16.msra.mxu0 0
      %3739 = vmatprep.subr.bf16.mxu0 0
      %3740 = vmatpush1.bf16.msra.mxu0 0
      %3741 = vmatprep.subr.bf16.mxu0 0
      %3742 = vmatpush1.bf16.msra.mxu0 0
      %3743 = vmatprep.subr.bf16.mxu0 0
      %3744 = vmatpush1.bf16.msra.mxu0 0
      %3745 = vmatprep.mubr.bf16.mxu0 0
      %3746 = vmatmul.mubr.bf16.gmra.mrb[0].mxu0 %v1557
      %v3747 = vpop.f32.mrb[0].mxu0
      %v3748 = vadd.f32 %v3459, %v3747
      %v3749 = vpop.f32.mrb[0].mxu0
      %v3750 = vpop.f32.mrb[0].mxu0
      %v3751 = vadd.f32 %v3462, %v3750
      %v3752 = vpop.f32.mrb[0].mxu0
      %3753 = vmatprep.mubr.bf16.mxu0 0
      %3754 = vmatmul.mubr.bf16.gmra.mrb[0].mxu0 %v1566
      %v3755 = vpop.f32.mrb[0].mxu0
      %v3756 = vadd.f32 %v3467, %v3755
      %v3757 = vpop.f32.mrb[0].mxu0
      %v3758 = vpop.f32.mrb[0].mxu0
      %v3759 = vadd.f32 %v3470, %v3758
      %v3760 = vpop.f32.mrb[0].mxu0
      %3761 = vmatprep.mubr.bf16.mxu0 0
      %3762 = vmatmul.mubr.bf16.gmra.mrb[0].mxu0 %v1575
      %v3763 = vpop.f32.mrb[0].mxu0
      %v3764 = vadd.f32 %v3475, %v3763
      %v3765 = vpop.f32.mrb[0].mxu0
      %v3766 = vpop.f32.mrb[0].mxu0
      %v3767 = vadd.f32 %v3478, %v3766
      %v3768 = vpop.f32.mrb[0].mxu0
      %3769 = vmatprep.mubr.bf16.mxu0 0
      %3770 = vmatmul.mubr.bf16.gmra.mrb[0].mxu0 %v1584
      %v3771 = vpop.f32.mrb[0].mxu0
      %v3772 = vadd.f32 %v3483, %v3771
      %v3773 = vpop.f32.mrb[0].mxu0
      %v3774 = vpop.f32.mrb[0].mxu0
      %v3775 = vadd.f32 %v3486, %v3774
      %v3776 = vpop.f32.mrb[0].mxu0
      %3777 = vmatprep.mubr.bf16.mxu0 0
      %3778 = vmatmul.mubr.bf16.gmra.mrb[0].mxu0 %v1593
      %v3779 = vpop.f32.mrb[0].mxu0
      %v3780 = vadd.f32 %v3491, %v3779
      %v3781 = vpop.f32.mrb[0].mxu0
      %v3782 = vpop.f32.mrb[0].mxu0
      %v3783 = vadd.f32 %v3494, %v3782
      %v3784 = vpop.f32.mrb[0].mxu0
      %3785 = vmatprep.mubr.bf16.mxu0 0
      %3786 = vmatmul.mubr.bf16.gmra.mrb[0].mxu0 %v1602
      %v3787 = vpop.f32.mrb[0].mxu0
      %v3788 = vadd.f32 %v3499, %v3787
      %v3789 = vpop.f32.mrb[0].mxu0
      %v3790 = vpop.f32.mrb[0].mxu0
      %v3791 = vadd.f32 %v3502, %v3790
      %v3792 = vpop.f32.mrb[0].mxu0
      %3793 = vmatprep.mubr.bf16.mxu0 0
      %3794 = vmatmul.mubr.bf16.gmra.mrb[0].mxu0 %v1611
      %v3795 = vpop.f32.mrb[0].mxu0
      %v3796 = vadd.f32 %v3507, %v3795
      %v3797 = vpop.f32.mrb[0].mxu0
      %v3798 = vpop.f32.mrb[0].mxu0
      %v3799 = vadd.f32 %v3510, %v3798
      %v3800 = vpop.f32.mrb[0].mxu0
      %3801 = vmatprep.mubr.bf16.mxu0 0
      %3802 = vmatmul.mubr.bf16.gmra.mrb[0].mxu0 %v1620
      %v3803 = vpop.f32.mrb[0].mxu0
      %v3804 = vadd.f32 %v3515, %v3803
      %v3805 = vpop.f32.mrb[0].mxu0
      %v3806 = vpop.f32.mrb[0].mxu0
      %v3807 = vadd.f32 %v3518, %v3806
      %v3808 = vpop.f32.mrb[0].mxu0
      %3809 = vmatprep.mubr.bf16.mxu0 0
      %3810 = vmatmul.mubr.bf16.gmra.mrb[0].mxu0 %v1629
      %v3811 = vpop.f32.mrb[0].mxu0
      %v3812 = vadd.f32 %v3523, %v3811
      %v3813 = vpop.f32.mrb[0].mxu0
      %v3814 = vpop.f32.mrb[0].mxu0
      %v3815 = vadd.f32 %v3526, %v3814
      %v3816 = vpop.f32.mrb[0].mxu0
      %3817 = vmatprep.mubr.bf16.mxu0 0
      %3818 = vmatmul.mubr.bf16.gmra.mrb[0].mxu0 %v1638
      %v3819 = vpop.f32.mrb[0].mxu0
      %v3820 = vadd.f32 %v3531, %v3819
      %v3821 = vpop.f32.mrb[0].mxu0
      %v3822 = vpop.f32.mrb[0].mxu0
      %v3823 = vadd.f32 %v3534, %v3822
      %v3824 = vpop.f32.mrb[0].mxu0
      %3825 = vmatprep.mubr.bf16.mxu0 0
      %3826 = vmatmul.mubr.bf16.gmra.mrb[0].mxu0 %v1647
      %v3827 = vpop.f32.mrb[0].mxu0
      %v3828 = vadd.f32 %v3539, %v3827
      %v3829 = vpop.f32.mrb[0].mxu0
      %v3830 = vpop.f32.mrb[0].mxu0
      %v3831 = vadd.f32 %v3542, %v3830
      %v3832 = vpop.f32.mrb[0].mxu0
      %3833 = vmatprep.mubr.bf16.mxu0 0
      %3834 = vmatmul.mubr.bf16.gmra.mrb[0].mxu0 %v1656
      %v3835 = vpop.f32.mrb[0].mxu0
      %v3836 = vadd.f32 %v3547, %v3835
      %v3837 = vpop.f32.mrb[0].mxu0
      %v3838 = vpop.f32.mrb[0].mxu0
      %v3839 = vadd.f32 %v3550, %v3838
      %v3840 = vpop.f32.mrb[0].mxu0
      %3841 = vmatprep.mubr.bf16.mxu0 0
      %3842 = vmatmul.mubr.bf16.gmra.mrb[0].mxu0 %v1665
      %v3843 = vpop.f32.mrb[0].mxu0
      %v3844 = vadd.f32 %v3555, %v3843
      %v3845 = vpop.f32.mrb[0].mxu0
      %v3846 = vpop.f32.mrb[0].mxu0
      %v3847 = vadd.f32 %v3558, %v3846
      %v3848 = vpop.f32.mrb[0].mxu0
      %3849 = vmatprep.mubr.bf16.mxu0 0
      %3850 = vmatmul.mubr.bf16.gmra.mrb[0].mxu0 %v1674
      %v3851 = vpop.f32.mrb[0].mxu0
      %v3852 = vadd.f32 %v3563, %v3851
      %v3853 = vpop.f32.mrb[0].mxu0
      %v3854 = vpop.f32.mrb[0].mxu0
      %v3855 = vadd.f32 %v3566, %v3854
      %v3856 = vpop.f32.mrb[0].mxu0
      %3857 = vmatprep.mubr.bf16.mxu0 0
      %3858 = vmatmul.mubr.bf16.gmra.mrb[0].mxu0 %v1683
      %v3859 = vpop.f32.mrb[0].mxu0
      %v3860 = vadd.f32 %v3571, %v3859
      %v3861 = vpop.f32.mrb[0].mxu0
      %v3862 = vpop.f32.mrb[0].mxu0
      %v3863 = vadd.f32 %v3574, %v3862
      %v3864 = vpop.f32.mrb[0].mxu0
      %3865 = vmatprep.mubr.bf16.mxu0 0
      %3866 = vmatmul.mubr.bf16.gmra.mrb[0].mxu0 %v1692
      %v3867 = vpop.f32.mrb[0].mxu0
      %v3868 = vadd.f32 %v3579, %v3867
      %v3869 = vpop.f32.mrb[0].mxu0
      %v3870 = vpop.f32.mrb[0].mxu0
      %v3871 = vadd.f32 %v3582, %v3870
      %v3872 = vpop.f32.mrb[0].mxu0
      %3873 = vmatprep.mubr.bf16.mxu0 0
      %3874 = vmatmul.mubr.bf16.gmra.mrb[0].mxu0 %v1701
      %v3875 = vpop.f32.mrb[0].mxu0
      %v3876 = vadd.f32 %v3587, %v3875
      %v3877 = vpop.f32.mrb[0].mxu0
      %v3878 = vpop.f32.mrb[0].mxu0
      %v3879 = vadd.f32 %v3590, %v3878
      %v3880 = vpop.f32.mrb[0].mxu0
      %3881 = vmatprep.mubr.bf16.mxu0 0
      %3882 = vmatmul.mubr.bf16.gmra.mrb[0].mxu0 %v1710
      %v3883 = vpop.f32.mrb[0].mxu0
      %v3884 = vadd.f32 %v3595, %v3883
      %v3885 = vpop.f32.mrb[0].mxu0
      %v3886 = vpop.f32.mrb[0].mxu0
      %v3887 = vadd.f32 %v3598, %v3886
      %v3888 = vpop.f32.mrb[0].mxu0
      %3889 = vmatprep.mubr.bf16.mxu0 0
      %3890 = vmatmul.mubr.bf16.gmra.mrb[0].mxu0 %v1719
      %v3891 = vpop.f32.mrb[0].mxu0
      %v3892 = vadd.f32 %v3603, %v3891
      %v3893 = vpop.f32.mrb[0].mxu0
      %v3894 = vpop.f32.mrb[0].mxu0
      %v3895 = vadd.f32 %v3606, %v3894
      %v3896 = vpop.f32.mrb[0].mxu0
      %3897 = vmatprep.mubr.bf16.mxu0 0
      %3898 = vmatmul.mubr.bf16.gmra.mrb[0].mxu0 %v1728
      %v3899 = vpop.f32.mrb[0].mxu0
      %v3900 = vadd.f32 %v3611, %v3899
      %v3901 = vpop.f32.mrb[0].mxu0
      %v3902 = vpop.f32.mrb[0].mxu0
      %v3903 = vadd.f32 %v3614, %v3902
      %v3904 = vpop.f32.mrb[0].mxu0
      %3905 = vmatprep.mubr.bf16.mxu0 0
      %3906 = vmatmul.mubr.bf16.gmra.mrb[0].mxu0 %v1737
      %v3907 = vpop.f32.mrb[0].mxu0
      %v3908 = vadd.f32 %v3619, %v3907
      %v3909 = vpop.f32.mrb[0].mxu0
      %v3910 = vpop.f32.mrb[0].mxu0
      %v3911 = vadd.f32 %v3622, %v3910
      %v3912 = vpop.f32.mrb[0].mxu0
      %3913 = vmatprep.mubr.bf16.mxu0 0
      %3914 = vmatmul.mubr.bf16.gmra.mrb[0].mxu0 %v1746
      %v3915 = vpop.f32.mrb[0].mxu0
      %v3916 = vadd.f32 %v3627, %v3915
      %v3917 = vpop.f32.mrb[0].mxu0
      %v3918 = vpop.f32.mrb[0].mxu0
      %v3919 = vadd.f32 %v3630, %v3918
      %v3920 = vpop.f32.mrb[0].mxu0
      %3921 = vmatprep.mubr.bf16.mxu0 0
      %3922 = vmatmul.mubr.bf16.gmra.mrb[0].mxu0 %v1755
      %v3923 = vpop.f32.mrb[0].mxu0
      %v3924 = vadd.f32 %v3635, %v3923
      %v3925 = vpop.f32.mrb[0].mxu0
      %v3926 = vpop.f32.mrb[0].mxu0
      %v3927 = vadd.f32 %v3638, %v3926
      %v3928 = vpop.f32.mrb[0].mxu0
      %3929 = vmatprep.mubr.bf16.mxu0 0
      %3930 = vmatmul.mubr.bf16.gmra.mrb[0].mxu0 %v1764
      %v3931 = vpop.f32.mrb[0].mxu0
      %v3932 = vadd.f32 %v3643, %v3931
      %v3933 = vpop.f32.mrb[0].mxu0
      %v3934 = vpop.f32.mrb[0].mxu0
      %v3935 = vadd.f32 %v3646, %v3934
      %v3936 = vpop.f32.mrb[0].mxu0
      %3937 = vmatprep.mubr.bf16.mxu0 0
      %3938 = vmatmul.mubr.bf16.gmra.mrb[0].mxu0 %v1773
      %v3939 = vpop.f32.mrb[0].mxu0
      %v3940 = vadd.f32 %v3651, %v3939
      %v3941 = vpop.f32.mrb[0].mxu0
      %v3942 = vpop.f32.mrb[0].mxu0
      %v3943 = vadd.f32 %v3654, %v3942
      %v3944 = vpop.f32.mrb[0].mxu0
      %3945 = vmatprep.mubr.bf16.mxu0 0
      %3946 = vmatmul.mubr.bf16.gmra.mrb[0].mxu0 %v1782
      %v3947 = vpop.f32.mrb[0].mxu0
      %v3948 = vadd.f32 %v3659, %v3947
      %v3949 = vpop.f32.mrb[0].mxu0
      %v3950 = vpop.f32.mrb[0].mxu0
      %v3951 = vadd.f32 %v3662, %v3950
      %v3952 = vpop.f32.mrb[0].mxu0
      %3953 = vmatprep.mubr.bf16.mxu0 0
      %3954 = vmatmul.mubr.bf16.gmra.mrb[0].mxu0 %v1791
      %v3955 = vpop.f32.mrb[0].mxu0
      %v3956 = vadd.f32 %v3667, %v3955
      %v3957 = vpop.f32.mrb[0].mxu0
      %v3958 = vpop.f32.mrb[0].mxu0
      %v3959 = vadd.f32 %v3670, %v3958
      %v3960 = vpop.f32.mrb[0].mxu0
      %3961 = vmatprep.mubr.bf16.mxu0 0
      %3962 = vmatmul.mubr.bf16.gmra.mrb[0].mxu0 %v1800
      %v3963 = vpop.f32.mrb[0].mxu0
      %v3964 = vadd.f32 %v3675, %v3963
      %v3965 = vpop.f32.mrb[0].mxu0
      %v3966 = vpop.f32.mrb[0].mxu0
      %v3967 = vadd.f32 %v3678, %v3966
      %v3968 = vpop.f32.mrb[0].mxu0
      %3969 = vmatprep.mubr.bf16.mxu0 0
      %3970 = vmatmul.mubr.bf16.gmra.mrb[0].mxu0 %v1809
      %v3971 = vpop.f32.mrb[0].mxu0
      %v3972 = vadd.f32 %v3683, %v3971
      %v3973 = vpop.f32.mrb[0].mxu0
      %v3974 = vpop.f32.mrb[0].mxu0
      %v3975 = vadd.f32 %v3686, %v3974
      %v3976 = vpop.f32.mrb[0].mxu0
      %3977 = vmatprep.mubr.bf16.mxu0 0
      %3978 = vmatmul.mubr.bf16.gmra.mrb[0].mxu0 %v1818
      %v3979 = vpop.f32.mrb[0].mxu0
      %v3980 = vadd.f32 %v3691, %v3979
      %v3981 = vpop.f32.mrb[0].mxu0
      %v3982 = vpop.f32.mrb[0].mxu0
      %v3983 = vadd.f32 %v3694, %v3982
      %v3984 = vpop.f32.mrb[0].mxu0
      %3985 = vmatprep.mubr.bf16.mxu0 0
      %3986 = vmatmul.mubr.bf16.gmra.mrb[0].mxu0 %v1827
      %v3987 = vpop.f32.mrb[0].mxu0
      %v3988 = vadd.f32 %v3699, %v3987
      %v3989 = vpop.f32.mrb[0].mxu0
      %v3990 = vpop.f32.mrb[0].mxu0
      %v3991 = vadd.f32 %v3702, %v3990
      %v3992 = vpop.f32.mrb[0].mxu0
      %3993 = vmatprep.mubr.bf16.mxu0 0
      %3994 = vmatmul.mubr.bf16.gmra.mrb[0].mxu0 %v1836
      %v3995 = vpop.f32.mrb[0].mxu0
      %v3996 = vadd.f32 %v3707, %v3995
      %v3997 = vpop.f32.mrb[0].mxu0
      %v3998 = vpop.f32.mrb[0].mxu0
      %v3999 = vadd.f32 %v3710, %v3998
      %v4000 = vpop.f32.mrb[0].mxu0
      %4001 = vdwg.mxu0
      %4002 = vst [vmem:[%s182] sm:$0xff] %v3748
      %4003 = vst [vmem:[%s182 + $0x8] sm:$0xff] %v3751
      %4004 = vst [vmem:[%s182 + $0x10] sm:$0xff] %v3756
      %4005 = vst [vmem:[%s182 + $0x18] sm:$0xff] %v3759
      %4006 = vst [vmem:[%s182 + $0x20] sm:$0xff] %v3764
      %4007 = vst [vmem:[%s182 + $0x28] sm:$0xff] %v3767
      %4008 = vst [vmem:[%s182 + $0x30] sm:$0xff] %v3772
      %4009 = vst [vmem:[%s182 + $0x38] sm:$0xff] %v3775
      %4010 = vst [vmem:[%s182 + $0x40] sm:$0xff] %v3780
      %4011 = vst [vmem:[%s182 + $0x48] sm:$0xff] %v3783
      %4012 = vst [vmem:[%s182 + $0x50] sm:$0xff] %v3788
      %4013 = vst [vmem:[%s182 + $0x58] sm:$0xff] %v3791
      %4014 = vst [vmem:[%s182 + $0x60] sm:$0xff] %v3796
      %4015 = vst [vmem:[%s182 + $0x68] sm:$0xff] %v3799
      %4016 = vst [vmem:[%s182 + $0x70] sm:$0xff] %v3804
      %4017 = vst [vmem:[%s182 + $0x78] sm:$0xff] %v3807
      %4018 = vst [vmem:[%s182 + $0x80] sm:$0xff] %v3812
      %4019 = vst [vmem:[%s182 + $0x88] sm:$0xff] %v3815
      %4020 = vst [vmem:[%s182 + $0x90] sm:$0xff] %v3820
      %4021 = vst [vmem:[%s182 + $0x98] sm:$0xff] %v3823
      %4022 = vst [vmem:[%s182 + $0xa0] sm:$0xff] %v3828
      %4023 = vst [vmem:[%s182 + $0xa8] sm:$0xff] %v3831
      %4024 = vst [vmem:[%s182 + $0xb0] sm:$0xff] %v3836
      %4025 = vst [vmem:[%s182 + $0xb8] sm:$0xff] %v3839
      %4026 = vst [vmem:[%s182 + $0xc0] sm:$0xff] %v3844
      %4027 = vst [vmem:[%s182 + $0xc8] sm:$0xff] %v3847
      %4028 = vst [vmem:[%s182 + $0xd0] sm:$0xff] %v3852
      %4029 = vst [vmem:[%s182 + $0xd8] sm:$0xff] %v3855
      %4030 = vst [vmem:[%s182 + $0xe0] sm:$0xff] %v3860
      %4031 = vst [vmem:[%s182 + $0xe8] sm:$0xff] %v3863
      %4032 = vst [vmem:[%s182 + $0xf0] sm:$0xff] %v3868
      %4033 = vst [vmem:[%s182 + $0xf8] sm:$0xff] %v3871
      %4034 = vst [vmem:[%s182 + $0x100] sm:$0xff] %v3876
      %4035 = vst [vmem:[%s182 + $0x108] sm:$0xff] %v3879
      %4036 = vst [vmem:[%s182 + $0x110] sm:$0xff] %v3884
      %4037 = vst [vmem:[%s182 + $0x118] sm:$0xff] %v3887
      %4038 = vst [vmem:[%s182 + $0x120] sm:$0xff] %v3892
      %4039 = vst [vmem:[%s182 + $0x128] sm:$0xff] %v3895
      %4040 = vst [vmem:[%s182 + $0x130] sm:$0xff] %v3900
      %4041 = vst [vmem:[%s182 + $0x138] sm:$0xff] %v3903
      %4042 = vst [vmem:[%s182 + $0x140] sm:$0xff] %v3908
      %4043 = vst [vmem:[%s182 + $0x148] sm:$0xff] %v3911
      %4044 = vst [vmem:[%s182 + $0x150] sm:$0xff] %v3916
      %4045 = vst [vmem:[%s182 + $0x158] sm:$0xff] %v3919
      %4046 = vst [vmem:[%s182 + $0x160] sm:$0xff] %v3924
      %4047 = vst [vmem:[%s182 + $0x168] sm:$0xff] %v3927
      %4048 = vst [vmem:[%s182 + $0x170] sm:$0xff] %v3932
      %4049 = vst [vmem:[%s182 + $0x178] sm:$0xff] %v3935
      %4050 = vst [vmem:[%s182 + $0x180] sm:$0xff] %v3940
      %4051 = vst [vmem:[%s182 + $0x188] sm:$0xff] %v3943
      %4052 = vst [vmem:[%s182 + $0x190] sm:$0xff] %v3948
      %4053 = vst [vmem:[%s182 + $0x198] sm:$0xff] %v3951
      %4054 = vst [vmem:[%s182 + $0x1a0] sm:$0xff] %v3956
      %4055 = vst [vmem:[%s182 + $0x1a8] sm:$0xff] %v3959
      %4056 = vst [vmem:[%s182 + $0x1b0] sm:$0xff] %v3964
      %4057 = vst [vmem:[%s182 + $0x1b8] sm:$0xff] %v3967
      %4058 = vst [vmem:[%s182 + $0x1c0] sm:$0xff] %v3972
      %4059 = vst [vmem:[%s182 + $0x1c8] sm:$0xff] %v3975
      %4060 = vst [vmem:[%s182 + $0x1d0] sm:$0xff] %v3980
      %4061 = vst [vmem:[%s182 + $0x1d8] sm:$0xff] %v3983
      %4062 = vst [vmem:[%s182 + $0x1e0] sm:$0xff] %v3988
      %4063 = vst [vmem:[%s182 + $0x1e8] sm:$0xff] %v3991
      %4064 = vst [vmem:[%s182 + $0x1f0] sm:$0xff] %v3996
      %4065 = vst [vmem:[%s182 + $0x1f8] sm:$0xff] %v3999
      %v4066 = vadd.f32 %v3748, %v3751
      %v4067 = vadd.f32 %v4066, %v3756
      %v4068 = vadd.f32 %v4067, %v3759
      %v4069 = vadd.f32 %v4068, %v3764
      %v4070 = vadd.f32 %v4069, %v3767
      %v4071 = vadd.f32 %v4070, %v3772
      %v4072 = vadd.f32 %v4071, %v3775
      %v4073 = vadd.f32 %v4072, %v3780
      %v4074 = vadd.f32 %v4073, %v3783
      %v4075 = vadd.f32 %v4074, %v3788
      %v4076 = vadd.f32 %v4075, %v3791
      %v4077 = vadd.f32 %v4076, %v3796
      %v4078 = vadd.f32 %v4077, %v3799
      %v4079 = vadd.f32 %v4078, %v3804
      %v4080 = vadd.f32 %v4079, %v3807
      %v4081 = vadd.f32 %v4080, %v3812
      %v4082 = vadd.f32 %v4081, %v3815
      %v4083 = vadd.f32 %v4082, %v3820
      %v4084 = vadd.f32 %v4083, %v3823
      %v4085 = vadd.f32 %v4084, %v3828
      %v4086 = vadd.f32 %v4085, %v3831
      %v4087 = vadd.f32 %v4086, %v3836
      %v4088 = vadd.f32 %v4087, %v3839
      %v4089 = vadd.f32 %v4088, %v3844
      %v4090 = vadd.f32 %v4089, %v3847
      %v4091 = vadd.f32 %v4090, %v3852
      %v4092 = vadd.f32 %v4091, %v3855
      %v4093 = vadd.f32 %v4092, %v3860
      %v4094 = vadd.f32 %v4093, %v3863
      %v4095 = vadd.f32 %v4094, %v3868
      %v4096 = vadd.f32 %v4095, %v3871
      %v4097 = vadd.f32 %v4096, %v3876
      %v4098 = vadd.f32 %v4097, %v3879
      %v4099 = vadd.f32 %v4098, %v3884
      %v4100 = vadd.f32 %v4099, %v3887
      %v4101 = vadd.f32 %v4100, %v3892
      %v4102 = vadd.f32 %v4101, %v3895
      %v4103 = vadd.f32 %v4102, %v3900
      %v4104 = vadd.f32 %v4103, %v3903
      %v4105 = vadd.f32 %v4104, %v3908
      %v4106 = vadd.f32 %v4105, %v3911
      %v4107 = vadd.f32 %v4106, %v3916
      %v4108 = vadd.f32 %v4107, %v3919
      %v4109 = vadd.f32 %v4108, %v3924
      %v4110 = vadd.f32 %v4109, %v3927
      %v4111 = vadd.f32 %v4110, %v3932
      %v4112 = vadd.f32 %v4111, %v3935
      %v4113 = vadd.f32 %v4112, %v3940
      %v4114 = vadd.f32 %v4113, %v3943
      %v4115 = vadd.f32 %v4114, %v3948
      %v4116 = vadd.f32 %v4115, %v3951
      %v4117 = vadd.f32 %v4116, %v3956
      %v4118 = vadd.f32 %v4117, %v3959
      %v4119 = vadd.f32 %v4118, %v3964
      %v4120 = vadd.f32 %v4119, %v3967
      %v4121 = vadd.f32 %v4120, %v3972
      %v4122 = vadd.f32 %v4121, %v3975
      %v4123 = vadd.f32 %v4122, %v3980
      %v4124 = vadd.f32 %v4123, %v3983
      %v4125 = vadd.f32 %v4124, %v3988
      %v4126 = vadd.f32 %v4125, %v3991
      %v4127 = vadd.f32 %v4126, %v3996
      %v4128 = vadd.f32 %v4127, %v3999
      %v4129 = vrot.slane %v4128, 4
      %v4130 = vadd.f32 %v4128, %v4129
      %v4131 = vrot.slane %v4130, 2
      %v4132 = vadd.f32 %v4130, %v4131
      %v4133 = vrot.slane %v4132, 1
      %v4134 = vadd.f32 %v4132, %v4133
      %4135 = vst [vmem:[%s187] sm:$0x1] %v4134
      %v4136 = vmul.f32 %v3748, %v3748
      %v4137 = vmul.f32 %v3751, %v3751
      %v4138 = vmul.f32 %v3756, %v3756
      %v4139 = vmul.f32 %v3759, %v3759
      %v4140 = vmul.f32 %v3764, %v3764
      %v4141 = vmul.f32 %v3767, %v3767
      %v4142 = vmul.f32 %v3772, %v3772
      %v4143 = vmul.f32 %v3775, %v3775
      %v4144 = vmul.f32 %v3780, %v3780
      %v4145 = vmul.f32 %v3783, %v3783
      %v4146 = vmul.f32 %v3788, %v3788
      %v4147 = vmul.f32 %v3791, %v3791
      %v4148 = vmul.f32 %v3796, %v3796
      %v4149 = vmul.f32 %v3799, %v3799
      %v4150 = vmul.f32 %v3804, %v3804
      %v4151 = vmul.f32 %v3807, %v3807
      %v4152 = vmul.f32 %v3812, %v3812
      %v4153 = vmul.f32 %v3815, %v3815
      %v4154 = vmul.f32 %v3820, %v3820
      %v4155 = vmul.f32 %v3823, %v3823
      %v4156 = vmul.f32 %v3828, %v3828
      %v4157 = vmul.f32 %v3831, %v3831
      %v4158 = vmul.f32 %v3836, %v3836
      %v4159 = vmul.f32 %v3839, %v3839
      %v4160 = vmul.f32 %v3844, %v3844
      %v4161 = vmul.f32 %v3847, %v3847
      %v4162 = vmul.f32 %v3852, %v3852
      %v4163 = vmul.f32 %v3855, %v3855
      %v4164 = vmul.f32 %v3860, %v3860
      %v4165 = vmul.f32 %v3863, %v3863
      %v4166 = vmul.f32 %v3868, %v3868
      %v4167 = vmul.f32 %v3871, %v3871
      %v4168 = vmul.f32 %v3876, %v3876
      %v4169 = vmul.f32 %v3879, %v3879
      %v4170 = vmul.f32 %v3884, %v3884
      %v4171 = vmul.f32 %v3887, %v3887
      %v4172 = vmul.f32 %v3892, %v3892
      %v4173 = vmul.f32 %v3895, %v3895
      %v4174 = vmul.f32 %v3900, %v3900
      %v4175 = vmul.f32 %v3903, %v3903
      %v4176 = vmul.f32 %v3908, %v3908
      %v4177 = vmul.f32 %v3911, %v3911
      %v4178 = vmul.f32 %v3916, %v3916
      %v4179 = vmul.f32 %v3919, %v3919
      %v4180 = vmul.f32 %v3924, %v3924
      %v4181 = vmul.f32 %v3927, %v3927
      %v4182 = vmul.f32 %v3932, %v3932
      %v4183 = vmul.f32 %v3935, %v3935
      %v4184 = vmul.f32 %v3940, %v3940
      %v4185 = vmul.f32 %v3943, %v3943
      %v4186 = vmul.f32 %v3948, %v3948
      %v4187 = vmul.f32 %v3951, %v3951
      %v4188 = vmul.f32 %v3956, %v3956
      %v4189 = vmul.f32 %v3959, %v3959
      %v4190 = vmul.f32 %v3964, %v3964
      %v4191 = vmul.f32 %v3967, %v3967
      %v4192 = vmul.f32 %v3972, %v3972
      %v4193 = vmul.f32 %v3975, %v3975
      %v4194 = vmul.f32 %v3980, %v3980
      %v4195 = vmul.f32 %v3983, %v3983
      %v4196 = vmul.f32 %v3988, %v3988
      %v4197 = vmul.f32 %v3991, %v3991
      %v4198 = vmul.f32 %v3996, %v3996
      %v4199 = vmul.f32 %v3999, %v3999
      %v4200 = vadd.f32 %v4136, %v4137
      %v4201 = vadd.f32 %v4200, %v4138
      %v4202 = vadd.f32 %v4201, %v4139
      %v4203 = vadd.f32 %v4202, %v4140
      %v4204 = vadd.f32 %v4203, %v4141
      %v4205 = vadd.f32 %v4204, %v4142
      %v4206 = vadd.f32 %v4205, %v4143
      %v4207 = vadd.f32 %v4206, %v4144
      %v4208 = vadd.f32 %v4207, %v4145
      %v4209 = vadd.f32 %v4208, %v4146
      %v4210 = vadd.f32 %v4209, %v4147
      %v4211 = vadd.f32 %v4210, %v4148
      %v4212 = vadd.f32 %v4211, %v4149
      %v4213 = vadd.f32 %v4212, %v4150
      %v4214 = vadd.f32 %v4213, %v4151
      %v4215 = vadd.f32 %v4214, %v4152
      %v4216 = vadd.f32 %v4215, %v4153
      %v4217 = vadd.f32 %v4216, %v4154
      %v4218 = vadd.f32 %v4217, %v4155
      %v4219 = vadd.f32 %v4218, %v4156
      %v4220 = vadd.f32 %v4219, %v4157
      %v4221 = vadd.f32 %v4220, %v4158
      %v4222 = vadd.f32 %v4221, %v4159
      %v4223 = vadd.f32 %v4222, %v4160
      %v4224 = vadd.f32 %v4223, %v4161
      %v4225 = vadd.f32 %v4224, %v4162
      %v4226 = vadd.f32 %v4225, %v4163
      %v4227 = vadd.f32 %v4226, %v4164
      %v4228 = vadd.f32 %v4227, %v4165
      %v4229 = vadd.f32 %v4228, %v4166
      %v4230 = vadd.f32 %v4229, %v4167
      %v4231 = vadd.f32 %v4230, %v4168
      %v4232 = vadd.f32 %v4231, %v4169
      %v4233 = vadd.f32 %v4232, %v4170
      %v4234 = vadd.f32 %v4233, %v4171
      %v4235 = vadd.f32 %v4234, %v4172
      %v4236 = vadd.f32 %v4235, %v4173
      %v4237 = vadd.f32 %v4236, %v4174
      %v4238 = vadd.f32 %v4237, %v4175
      %v4239 = vadd.f32 %v4238, %v4176
      %v4240 = vadd.f32 %v4239, %v4177
      %v4241 = vadd.f32 %v4240, %v4178
      %v4242 = vadd.f32 %v4241, %v4179
      %v4243 = vadd.f32 %v4242, %v4180
      %v4244 = vadd.f32 %v4243, %v4181
      %v4245 = vadd.f32 %v4244, %v4182
      %v4246 = vadd.f32 %v4245, %v4183
      %v4247 = vadd.f32 %v4246, %v4184
      %v4248 = vadd.f32 %v4247, %v4185
      %v4249 = vadd.f32 %v4248, %v4186
      %v4250 = vadd.f32 %v4249, %v4187
      %v4251 = vadd.f32 %v4250, %v4188
      %v4252 = vadd.f32 %v4251, %v4189
      %v4253 = vadd.f32 %v4252, %v4190
      %v4254 = vadd.f32 %v4253, %v4191
      %v4255 = vadd.f32 %v4254, %v4192
      %v4256 = vadd.f32 %v4255, %v4193
      %v4257 = vadd.f32 %v4256, %v4194
      %v4258 = vadd.f32 %v4257, %v4195
      %v4259 = vadd.f32 %v4258, %v4196
      %v4260 = vadd.f32 %v4259, %v4197
      %v4261 = vadd.f32 %v4260, %v4198
      %v4262 = vadd.f32 %v4261, %v4199
      %v4263 = vrot.slane %v4262, 4
      %v4264 = vadd.f32 %v4262, %v4263
      %v4265 = vrot.slane %v4264, 2
      %v4266 = vadd.f32 %v4264, %v4265
      %v4267 = vrot.slane %v4266, 1
      %v4268 = vadd.f32 %v4266, %v4267
      %4269 = vst [vmem:[%s187 + $0x1] sm:$0x1] %v4268
      %s4270 = smul.u32 64, %s15
      %p4271 = scmp.lt.s32.totalorder %s4270, 191
      %s4272 = scalar_select %p4271, %s4270, 191
      %s4273 = smul.addr %s4272, 8
      %s4274 = scalar_lea.vmem %s2, %s4273
      %p4275 = scmp.lt.s32.totalorder %s15, 2
      %s4276 = scalar_select %p4275, %s15, 2
      %s4277 = smul.addr %s4276, 2
      %s4278 = scalar_lea.vmem %s3, %s4277
      // Predicated region
      $region29: #{bottleneck_forward.8} parent=27 // pred_check
        %p4279 = pneg %p80
      $region30: #{bottleneck_forward.8} parent=27 // pred_check_branch
        %4281 = sbr.rel (%p4279) target = $region32
      $region31: #{bottleneck_forward.8} parent=27 // pred_region
        %s4282 = smul.u32 64, %s15
      $region32: #{bottleneck_forward.8} parent=27 // pred_fallthru
        _
      // Predicated region
      $region33: #{bottleneck_forward.8} parent=27 // pred_check
        %p4283 = pneg %p106
      $region34: #{bottleneck_forward.8} parent=27 // pred_check_branch
        %4285 = sbr.rel (%p4283) target = $region36
      $region35: #{bottleneck_forward.8} parent=27 // pred_region
        _
      $region36: #{bottleneck_forward.8} parent=27 // pred_fallthru
        _
    $region28: #{bottleneck_forward.8} parent=5 // pred_fallthru
      _
    %p4286 = scmp.le.s32.totalorder 2, %s10
    // Predicated region
    $region37: #{bottleneck_forward.8} parent=5 // pred_check
      %p4287 = pneg %p4286
    $region38: #{bottleneck_forward.8} parent=5 // pred_check_branch
      %4289 = sbr.rel (%p4287) target = $region40
    $region39: #{bottleneck_forward.8} parent=5 // pred_region
      %s4290 = ssub.s32 %s10, 2
      // Predicated region
      $region41: #{bottleneck_forward.8} parent=39 // pred_check
        %p4291 = pneg %p86
      $region42: #{bottleneck_forward.8} parent=39 // pred_check_branch
        %4293 = sbr.rel (%p4291) target = $region44
      $region43: #{bottleneck_forward.8} parent=39 // pred_region
        %s4294 = smul.u32 64, %s16
        %p4295 = scmp.lt.s32.totalorder %s4294, 191
        %s4296 = scalar_select %p4295, %s4294, 191
        %s4297 = smul.addr %s4296, 8
        %s4298 = scalar_lea.vmem %s2, %s4297
      $region44: #{bottleneck_forward.8} parent=39 // pred_fallthru
        _
      // Predicated region
      $region45: #{bottleneck_forward.8} parent=39 // pred_check
        %p4299 = pneg %p112
      $region46: #{bottleneck_forward.8} parent=39 // pred_check_branch
        %4301 = sbr.rel (%p4299) target = $region48
      $region47: #{bottleneck_forward.8} parent=39 // pred_region
        %p4302 = scmp.lt.s32.totalorder %s16, 2
        %s4303 = scalar_select %p4302, %s16, 2
        %s4304 = smul.addr %s4303, 2
        %s4305 = scalar_lea.vmem %s3, %s4304
      $region48: #{bottleneck_forward.8} parent=39 // pred_fallthru
        _
    $region40: #{bottleneck_forward.8} parent=5 // pred_fallthru
      _
  $region6: #{bottleneck_forward.8} parent=0 // loop_footer
    %s14 = sadd.s32 1, %s10
  $region7: #{bottleneck_forward.8} parent=0 // loop_footer_branch
    %9 = sbr.rel target = $region3
  $region8: #{bottleneck_forward.8} parent=0 // loop_exit
    _

// kernel: bottleneck_forward.11
$region0: #{bottleneck_forward.11}
  #allocation0 [shape = 'u32[]', space=smem, size = 0x4, offset = 0x4, fixed_abs, tag = 'smem constant byte address 0x4 - core index']
  #allocation1 [shape = 'u32[144,128]{1,0:T(1,128)}', space=vmem, size = 0x12000, scoped, tag = 'internal scratch']
  %s0 = inlined_call_operand.vmem [shape: f32[1536,128], index: 0, kind: input, shape index: {}]
  %s1 = inlined_call_operand.vmem [shape: f32[1,128], index: 1, kind: input, shape index: {}]
  %s2 = inlined_call_operand.vmem [shape: f32[1,128], index: 2, kind: input, shape index: {}]
  %s3 = inlined_call_operand.vmem [shape: f32[1536,128], index: 3, kind: input, shape index: {}]
  %s4 = inlined_call_operand.vmem [shape: f32[1,128], index: 4, kind: input, shape index: {}]
  %s5 = inlined_call_operand.vmem [shape: f32[1,128], index: 5, kind: input, shape index: {}]
  %s6 = inlined_call_operand.vmem [shape: f32[1536,128], index: 6, kind: output, shape index: {}]
  %s7 = sld [smem:[#allocation0]]
  $region57: #{bottleneck_forward.11} parent=0
    _
  %s9 = ssub.s32 1, %s7
  %s10 = scalar_select 0, %s9, %s7
  loop: start=0, step=1, limit=5
  $region2: #{bottleneck_forward.11} parent=0 // loop_pre_header
    _
  $region3: #{bottleneck_forward.11} parent=0 // loop_header
    %s12 = sphi 0, %s16
    %p13 = scmp.ge.s32.totalorder %s12, 5
    %s22 = sphi 0, %s24
    %s25 = sphi 0, %s22
    %s26 = sphi 0, %s25
    %s42 = sphi 0, %s26
    %s46 = sphi 0, %s46
    %s48 = sphi 0, %s46
    %s49 = sphi 0, %s48
    %s63 = sphi 0, %s49
    %s67 = sphi 0, %s67
    %s69 = sphi 0, %s67
    %s70 = sphi 0, %s69
    %s84 = sphi 0, %s70
    %s90 = sphi 0, %s92
    %s93 = sphi 0, %s90
    %s94 = sphi 0, %s93
    %s110 = sphi 0, %s94
    %s114 = sphi 0, %s114
    %s116 = sphi 0, %s114
    %s117 = sphi 0, %s116
    %s131 = sphi 0, %s117
    %s135 = sphi 0, %s135
    %s137 = sphi 0, %s135
    %s138 = sphi 0, %s137
    %s152 = sphi 0, %s138
    %s158 = sphi 0, %s160
    %s161 = sphi 0, %s158
    %s162 = sphi 0, %s161
    %s178 = sphi 0, %s162
  $region4: #{bottleneck_forward.11} parent=0 // loop_header_branch
    %15 = sbr.rel (%p13) target = $region8
  $region5: #{bottleneck_forward.11} parent=0 // loop_body
    %s17 = ssub.s32 %s12, 1
    %s18 = ssub.s32 %s12, 2
    %s19 = sadd.s32 %s12, 1
    %s20 = ssub.s32 %s12, %s19
    %p21 = scmp.eq.s32.totalorder %s20, 0
    %s23 = sadd.s32 %s22, 1
    %s24 = scalar_select %p21, %s22, %s23
    %p27 = pneg %p21
    %p28 = scmp.eq.s32.totalorder %s12, 2
    %p29 = por %p27, %p28
    %p30 = scmp.ne.s32.totalorder %s22, %s25
    %p31 = scmp.eq.s32.totalorder %s12, 0
    %p32 = por %p30, %p31
    %p33 = scmp.ne.s32.totalorder %s22, %s25
    %p34 = scmp.eq.s32.totalorder %s17, 2
    %p35 = por %p33, %p34
    %p36 = scmp.ne.s32.totalorder %s25, %s26
    %p37 = scmp.eq.s32.totalorder %s17, 0
    %p38 = por %p36, %p37
    %p39 = scmp.ne.s32.totalorder %s25, %s26
    %p40 = scmp.eq.s32.totalorder %s18, 2
    %p41 = por %p39, %p40
    %p43 = scmp.ne.s32.totalorder %s26, %s42
    %p44 = scmp.eq.s32.totalorder %s18, 0
    %p45 = por %p43, %p44
    %s47 = sadd.s32 %s46, 1
    %p50 = scmp.eq.s32.totalorder %s12, 2
    %p51 = scmp.ne.s32.totalorder %s46, %s48
    %p52 = scmp.eq.s32.totalorder %s12, 0
    %p53 = por %p51, %p52
    %p54 = scmp.ne.s32.totalorder %s46, %s48
    %p55 = scmp.eq.s32.totalorder %s17, 2
    %p56 = por %p54, %p55
    %p57 = scmp.ne.s32.totalorder %s48, %s49
    %p58 = scmp.eq.s32.totalorder %s17, 0
    %p59 = por %p57, %p58
    %p60 = scmp.ne.s32.totalorder %s48, %s49
    %p61 = scmp.eq.s32.totalorder %s18, 2
    %p62 = por %p60, %p61
    %p64 = scmp.ne.s32.totalorder %s49, %s63
    %p65 = scmp.eq.s32.totalorder %s18, 0
    %p66 = por %p64, %p65
    %s68 = sadd.s32 %s67, 1
    %p71 = scmp.eq.s32.totalorder %s12, 2
    %p72 = scmp.ne.s32.totalorder %s67, %s69
    %p73 = scmp.eq.s32.totalorder %s12, 0
    %p74 = por %p72, %p73
    %p75 = scmp.ne.s32.totalorder %s67, %s69
    %p76 = scmp.eq.s32.totalorder %s17, 2
    %p77 = por %p75, %p76
    %p78 = scmp.ne.s32.totalorder %s69, %s70
    %p79 = scmp.eq.s32.totalorder %s17, 0
    %p80 = por %p78, %p79
    %p81 = scmp.ne.s32.totalorder %s69, %s70
    %p82 = scmp.eq.s32.totalorder %s18, 2
    %p83 = por %p81, %p82
    %p85 = scmp.ne.s32.totalorder %s70, %s84
    %p86 = scmp.eq.s32.totalorder %s18, 0
    %p87 = por %p85, %p86
    %s88 = ssub.s32 %s12, %s19
    %p89 = scmp.eq.s32.totalorder %s88, 0
    %s91 = sadd.s32 %s90, 1
    %s92 = scalar_select %p89, %s90, %s91
    %p95 = pneg %p89
    %p96 = scmp.eq.s32.totalorder %s12, 2
    %p97 = por %p95, %p96
    %p98 = scmp.ne.s32.totalorder %s90, %s93
    %p99 = scmp.eq.s32.totalorder %s12, 0
    %p100 = por %p98, %p99
    %p101 = scmp.ne.s32.totalorder %s90, %s93
    %p102 = scmp.eq.s32.totalorder %s17, 2
    %p103 = por %p101, %p102
    %p104 = scmp.ne.s32.totalorder %s93, %s94
    %p105 = scmp.eq.s32.totalorder %s17, 0
    %p106 = por %p104, %p105
    %p107 = scmp.ne.s32.totalorder %s93, %s94
    %p108 = scmp.eq.s32.totalorder %s18, 2
    %p109 = por %p107, %p108
    %p111 = scmp.ne.s32.totalorder %s94, %s110
    %p112 = scmp.eq.s32.totalorder %s18, 0
    %p113 = por %p111, %p112
    %s115 = sadd.s32 %s114, 1
    %p118 = scmp.eq.s32.totalorder %s12, 2
    %p119 = scmp.ne.s32.totalorder %s114, %s116
    %p120 = scmp.eq.s32.totalorder %s12, 0
    %p121 = por %p119, %p120
    %p122 = scmp.ne.s32.totalorder %s114, %s116
    %p123 = scmp.eq.s32.totalorder %s17, 2
    %p124 = por %p122, %p123
    %p125 = scmp.ne.s32.totalorder %s116, %s117
    %p126 = scmp.eq.s32.totalorder %s17, 0
    %p127 = por %p125, %p126
    %p128 = scmp.ne.s32.totalorder %s116, %s117
    %p129 = scmp.eq.s32.totalorder %s18, 2
    %p130 = por %p128, %p129
    %p132 = scmp.ne.s32.totalorder %s117, %s131
    %p133 = scmp.eq.s32.totalorder %s18, 0
    %p134 = por %p132, %p133
    %s136 = sadd.s32 %s135, 1
    %p139 = scmp.eq.s32.totalorder %s12, 2
    %p140 = scmp.ne.s32.totalorder %s135, %s137
    %p141 = scmp.eq.s32.totalorder %s12, 0
    %p142 = por %p140, %p141
    %p143 = scmp.ne.s32.totalorder %s135, %s137
    %p144 = scmp.eq.s32.totalorder %s17, 2
    %p145 = por %p143, %p144
    %p146 = scmp.ne.s32.totalorder %s137, %s138
    %p147 = scmp.eq.s32.totalorder %s17, 0
    %p148 = por %p146, %p147
    %p149 = scmp.ne.s32.totalorder %s137, %s138
    %p150 = scmp.eq.s32.totalorder %s18, 2
    %p151 = por %p149, %p150
    %p153 = scmp.ne.s32.totalorder %s138, %s152
    %p154 = scmp.eq.s32.totalorder %s18, 0
    %p155 = por %p153, %p154
    %s156 = ssub.s32 %s12, %s19
    %p157 = scmp.eq.s32.totalorder %s156, 0
    %s159 = sadd.s32 %s158, 1
    %s160 = scalar_select %p157, %s158, %s159
    %p163 = pneg %p157
    %p164 = scmp.eq.s32.totalorder %s12, 2
    %p165 = por %p163, %p164
    %p166 = scmp.ne.s32.totalorder %s158, %s161
    %p167 = scmp.eq.s32.totalorder %s12, 0
    %p168 = por %p166, %p167
    %p169 = scmp.ne.s32.totalorder %s158, %s161
    %p170 = scmp.eq.s32.totalorder %s17, 2
    %p171 = por %p169, %p170
    %p172 = scmp.ne.s32.totalorder %s161, %s162
    %p173 = scmp.eq.s32.totalorder %s17, 0
    %p174 = por %p172, %p173
    %p175 = scmp.ne.s32.totalorder %s161, %s162
    %p176 = scmp.eq.s32.totalorder %s18, 2
    %p177 = por %p175, %p176
    %p179 = scmp.ne.s32.totalorder %s162, %s178
    %p180 = scmp.eq.s32.totalorder %s18, 0
    %p181 = por %p179, %p180
    %p182 = scmp.le.s32.totalorder 1, %s12
    %p183 = scmp.lt.s32.totalorder %s12, 4
    %p184 = pnand %p182, %p183
    %p185 = pneg %p184
    // Predicated region
    $region9: #{bottleneck_forward.11} parent=5 // pred_check
      _
    $region10: #{bottleneck_forward.11} parent=5 // pred_check_branch
      %187 = sbr.rel (%p184) target = $region12
    $region11: #{bottleneck_forward.11} parent=5 // pred_region
      %s188 = ssub.s32 %s12, 1
      // Predicated region
      $region13: #{bottleneck_forward.11} parent=11 // pred_check
        %p189 = pneg %p59
      $region14: #{bottleneck_forward.11} parent=11 // pred_check_branch
        %191 = sbr.rel (%p189) target = $region16
      $region15: #{bottleneck_forward.11} parent=11 // pred_region
        _
      $region16: #{bottleneck_forward.11} parent=11 // pred_fallthru
        _
      // Predicated region
      $region17: #{bottleneck_forward.11} parent=11 // pred_check
        %p192 = pneg %p80
      $region18: #{bottleneck_forward.11} parent=11 // pred_check_branch
        %194 = sbr.rel (%p192) target = $region20
      $region19: #{bottleneck_forward.11} parent=11 // pred_region
        _
      $region20: #{bottleneck_forward.11} parent=11 // pred_fallthru
        _
      // Predicated region
      $region21: #{bottleneck_forward.11} parent=11 // pred_check
        %p195 = pneg %p127
      $region22: #{bottleneck_forward.11} parent=11 // pred_check_branch
        %197 = sbr.rel (%p195) target = $region24
      $region23: #{bottleneck_forward.11} parent=11 // pred_region
        _
      $region24: #{bottleneck_forward.11} parent=11 // pred_fallthru
        _
      // Predicated region
      $region25: #{bottleneck_forward.11} parent=11 // pred_check
        %p198 = pneg %p148
      $region26: #{bottleneck_forward.11} parent=11 // pred_check_branch
        %200 = sbr.rel (%p198) target = $region28
      $region27: #{bottleneck_forward.11} parent=11 // pred_region
        _
      $region28: #{bottleneck_forward.11} parent=11 // pred_fallthru
        _
    $region12: #{bottleneck_forward.11} parent=5 // pred_fallthru
      _
    %p201 = scmp.lt.s32.totalorder %s12, 3
    // Predicated region
    $region29: #{bottleneck_forward.11} parent=5 // pred_check
      %p202 = pneg %p201
    $region30: #{bottleneck_forward.11} parent=5 // pred_check_branch
      %204 = sbr.rel (%p202) target = $region32
    $region31: #{bottleneck_forward.11} parent=5 // pred_region
      // Predicated region
      $region33: #{bottleneck_forward.11} parent=31 // pred_check
        %p205 = pneg %p32
      $region34: #{bottleneck_forward.11} parent=31 // pred_check_branch
        %207 = sbr.rel (%p205) target = $region36
      $region35: #{bottleneck_forward.11} parent=31 // pred_region
        %s208 = smul.u32 64, %s12
        %p209 = scmp.lt.s32.totalorder %s208, 191
        %s210 = scalar_select %p209, %s208, 191
        %s211 = smul.addr %s210, 8
        %s212 = scalar_lea.vmem %s0, %s211
        %s213 = smul.u32 64, %s12
      $region36: #{bottleneck_forward.11} parent=31 // pred_fallthru
        _
      // Predicated region
      $region37: #{bottleneck_forward.11} parent=31 // pred_check
        %p214 = pneg %p100
      $region38: #{bottleneck_forward.11} parent=31 // pred_check_branch
        %216 = sbr.rel (%p214) target = $region40
      $region39: #{bottleneck_forward.11} parent=31 // pred_region
        %s217 = smul.u32 64, %s12
        %p218 = scmp.lt.s32.totalorder %s217, 191
        %s219 = scalar_select %p218, %s217, 191
        %s220 = smul.addr %s219, 8
        %s221 = scalar_lea.vmem %s3, %s220
        %s222 = smul.u32 64, %s12
      $region40: #{bottleneck_forward.11} parent=31 // pred_fallthru
        _
    $region32: #{bottleneck_forward.11} parent=5 // pred_fallthru
      _
    %p223 = scmp.le.s32.totalorder 1, %s12
    %p224 = scmp.lt.s32.totalorder %s12, 4
    %p225 = pnand %p223, %p224
    %p226 = pneg %p225
    // Predicated region
    $region41: #{bottleneck_forward.11} parent=5 // pred_check
      _
    $region42: #{bottleneck_forward.11} parent=5 // pred_check_branch
      %228 = sbr.rel (%p225) target = $region44
    $region43: #{bottleneck_forward.11} parent=5 // pred_region
      %s229 = ssub.s32 %s12, 1
      %s230 = smul.u32 64, %s17
      %p231 = scmp.lt.s32.totalorder %s230, 191
      %s232 = scalar_select %p231, %s230, 191
      %s233 = smul.addr %s232, 8
      %s234 = scalar_lea.vmem %s0, %s233
      %p235 = pneg %p38
      %p236 = pneg %p35
      %p237 = pneg %p59
      %p238 = pneg %p56
      %p239 = pneg %p80
      %p240 = pneg %p77
      %s241 = smul.u32 64, %s17
      %p242 = scmp.lt.s32.totalorder %s241, 191
      %s243 = scalar_select %p242, %s241, 191
      %s244 = smul.addr %s243, 8
      %s245 = scalar_lea.vmem %s3, %s244
      %p246 = pneg %p106
      %p247 = pneg %p103
      %p248 = pneg %p127
      %p249 = pneg %p124
      %p250 = pneg %p148
      %p251 = pneg %p145
      %p252 = pneg %p174
      %p253 = pneg %p171
      %s254 = smul.u32 64, %s17
      %p255 = scmp.lt.s32.totalorder %s254, 191
      %s256 = scalar_select %p255, %s254, 191
      %s257 = smul.addr %s256, 8
      %s258 = scalar_lea.vmem %s6, %s257
      %s259 = smul.u32 64, %s17
      %p260 = scmp.lt.s32.totalorder %s259, 191
      %s261 = scalar_select %p260, %s259, 191
      %s262 = smul.addr %s261, 8
      %s263 = scalar_lea.vmem %s0, %s262
      %s264 = smul.u32 64, %s17
      %s265 = smul.u32 64, %s17
      %p266 = scmp.lt.s32.totalorder %s265, 191
      %s267 = scalar_select %p266, %s265, 191
      %s268 = smul.addr %s267, 8
      %s269 = scalar_lea.vmem %s3, %s268
      %s270 = smul.u32 64, %s17
      %s271 = smul.u32 64, %s17
      %p272 = scmp.lt.s32.totalorder %s271, 191
      %s273 = scalar_select %p272, %s271, 191
      %s274 = smul.addr %s273, 8
      %s275 = scalar_lea.vmem %s6, %s274
      %s276 = smul.u32 64, %s17
      %v277 = vld [vmem:[%s263] sm:$0xff]
      %v278 = vld [vmem:[%s263 + $0x8] sm:$0xff]
      %v279 = vld [vmem:[%s263 + $0x10] sm:$0xff]
      %v280 = vld [vmem:[%s263 + $0x18] sm:$0xff]
      %v281 = vld [vmem:[%s263 + $0x20] sm:$0xff]
      %v282 = vld [vmem:[%s263 + $0x28] sm:$0xff]
      %v283 = vld [vmem:[%s263 + $0x30] sm:$0xff]
      %v284 = vld [vmem:[%s263 + $0x38] sm:$0xff]
      %v285 = vld [vmem:[%s263 + $0x40] sm:$0xff]
      %v286 = vld [vmem:[%s263 + $0x48] sm:$0xff]
      %v287 = vld [vmem:[%s263 + $0x50] sm:$0xff]
      %v288 = vld [vmem:[%s263 + $0x58] sm:$0xff]
      %v289 = vld [vmem:[%s263 + $0x60] sm:$0xff]
      %v290 = vld [vmem:[%s263 + $0x68] sm:$0xff]
      %v291 = vld [vmem:[%s263 + $0x70] sm:$0xff]
      %v292 = vld [vmem:[%s263 + $0x78] sm:$0xff]
      %v293 = vld [vmem:[%s263 + $0x80] sm:$0xff]
      %v294 = vld [vmem:[%s263 + $0x88] sm:$0xff]
      %v295 = vld [vmem:[%s263 + $0x90] sm:$0xff]
      %v296 = vld [vmem:[%s263 + $0x98] sm:$0xff]
      %v297 = vld [vmem:[%s263 + $0xa0] sm:$0xff]
      %v298 = vld [vmem:[%s263 + $0xa8] sm:$0xff]
      %v299 = vld [vmem:[%s263 + $0xb0] sm:$0xff]
      %v300 = vld [vmem:[%s263 + $0xb8] sm:$0xff]
      %v301 = vld [vmem:[%s263 + $0xc0] sm:$0xff]
      %v302 = vld [vmem:[%s263 + $0xc8] sm:$0xff]
      %v303 = vld [vmem:[%s263 + $0xd0] sm:$0xff]
      %v304 = vld [vmem:[%s263 + $0xd8] sm:$0xff]
      %v305 = vld [vmem:[%s263 + $0xe0] sm:$0xff]
      %v306 = vld [vmem:[%s263 + $0xe8] sm:$0xff]
      %v307 = vld [vmem:[%s263 + $0xf0] sm:$0xff]
      %v308 = vld [vmem:[%s263 + $0xf8] sm:$0xff]
      %v309 = vld [vmem:[%s263 + $0x100] sm:$0xff]
      %v310 = vld [vmem:[%s263 + $0x108] sm:$0xff]
      %v311 = vld [vmem:[%s263 + $0x110] sm:$0xff]
      %v312 = vld [vmem:[%s263 + $0x118] sm:$0xff]
      %v313 = vld [vmem:[%s263 + $0x120] sm:$0xff]
      %v314 = vld [vmem:[%s263 + $0x128] sm:$0xff]
      %v315 = vld [vmem:[%s263 + $0x130] sm:$0xff]
      %v316 = vld [vmem:[%s263 + $0x138] sm:$0xff]
      %v317 = vld [vmem:[%s263 + $0x140] sm:$0xff]
      %v318 = vld [vmem:[%s263 + $0x148] sm:$0xff]
      %v319 = vld [vmem:[%s263 + $0x150] sm:$0xff]
      %v320 = vld [vmem:[%s263 + $0x158] sm:$0xff]
      %v321 = vld [vmem:[%s263 + $0x160] sm:$0xff]
      %v322 = vld [vmem:[%s263 + $0x168] sm:$0xff]
      %v323 = vld [vmem:[%s263 + $0x170] sm:$0xff]
      %v324 = vld [vmem:[%s263 + $0x178] sm:$0xff]
      %v325 = vld [vmem:[%s263 + $0x180] sm:$0xff]
      %v326 = vld [vmem:[%s263 + $0x188] sm:$0xff]
      %v327 = vld [vmem:[%s263 + $0x190] sm:$0xff]
      %v328 = vld [vmem:[%s263 + $0x198] sm:$0xff]
      %v329 = vld [vmem:[%s263 + $0x1a0] sm:$0xff]
      %v330 = vld [vmem:[%s263 + $0x1a8] sm:$0xff]
      %v331 = vld [vmem:[%s263 + $0x1b0] sm:$0xff]
      %v332 = vld [vmem:[%s263 + $0x1b8] sm:$0xff]
      %v333 = vld [vmem:[%s263 + $0x1c0] sm:$0xff]
      %v334 = vld [vmem:[%s263 + $0x1c8] sm:$0xff]
      %v335 = vld [vmem:[%s263 + $0x1d0] sm:$0xff]
      %v336 = vld [vmem:[%s263 + $0x1d8] sm:$0xff]
      %v337 = vld [vmem:[%s263 + $0x1e0] sm:$0xff]
      %v338 = vld [vmem:[%s263 + $0x1e8] sm:$0xff]
      %v339 = vld [vmem:[%s263 + $0x1f0] sm:$0xff]
      %v340 = vld [vmem:[%s263 + $0x1f8] sm:$0xff]
      %v341 = vld [vmem:[%s1] sm:$0x1]
      %v343 = vlaneseq
      %v344 = vshrl.u32 %v343, 7
      %v345 = vsub.s32 0, %v344
      %v346 = vrot.slane %v341, %v345
      %v348 = vmul.f32 %v277, %v346
      %v349 = vmul.f32 %v278, %v346
      %v350 = vmul.f32 %v279, %v346
      %v351 = vmul.f32 %v280, %v346
      %v352 = vmul.f32 %v281, %v346
      %v353 = vmul.f32 %v282, %v346
      %v354 = vmul.f32 %v283, %v346
      %v355 = vmul.f32 %v284, %v346
      %v356 = vmul.f32 %v285, %v346
      %v357 = vmul.f32 %v286, %v346
      %v358 = vmul.f32 %v287, %v346
      %v359 = vmul.f32 %v288, %v346
      %v360 = vmul.f32 %v289, %v346
      %v361 = vmul.f32 %v290, %v346
      %v362 = vmul.f32 %v291, %v346
      %v363 = vmul.f32 %v292, %v346
      %v364 = vmul.f32 %v293, %v346
      %v365 = vmul.f32 %v294, %v346
      %v366 = vmul.f32 %v295, %v346
      %v367 = vmul.f32 %v296, %v346
      %v368 = vmul.f32 %v297, %v346
      %v369 = vmul.f32 %v298, %v346
      %v370 = vmul.f32 %v299, %v346
      %v371 = vmul.f32 %v300, %v346
      %v372 = vmul.f32 %v301, %v346
      %v373 = vmul.f32 %v302, %v346
      %v374 = vmul.f32 %v303, %v346
      %v375 = vmul.f32 %v304, %v346
      %v376 = vmul.f32 %v305, %v346
      %v377 = vmul.f32 %v306, %v346
      %v378 = vmul.f32 %v307, %v346
      %v379 = vmul.f32 %v308, %v346
      %v380 = vmul.f32 %v309, %v346
      %v381 = vmul.f32 %v310, %v346
      %v382 = vmul.f32 %v311, %v346
      %v383 = vmul.f32 %v312, %v346
      %v384 = vmul.f32 %v313, %v346
      %v385 = vmul.f32 %v314, %v346
      %v386 = vmul.f32 %v315, %v346
      %v387 = vmul.f32 %v316, %v346
      %v388 = vmul.f32 %v317, %v346
      %v389 = vmul.f32 %v318, %v346
      %v390 = vmul.f32 %v319, %v346
      %v391 = vmul.f32 %v320, %v346
      %v392 = vmul.f32 %v321, %v346
      %v393 = vmul.f32 %v322, %v346
      %v394 = vmul.f32 %v323, %v346
      %v395 = vmul.f32 %v324, %v346
      %v396 = vmul.f32 %v325, %v346
      %v397 = vmul.f32 %v326, %v346
      %v398 = vmul.f32 %v327, %v346
      %v399 = vmul.f32 %v328, %v346
      %v400 = vmul.f32 %v329, %v346
      %v401 = vmul.f32 %v330, %v346
      %v402 = vmul.f32 %v331, %v346
      %v403 = vmul.f32 %v332, %v346
      %v404 = vmul.f32 %v333, %v346
      %v405 = vmul.f32 %v334, %v346
      %v406 = vmul.f32 %v335, %v346
      %v407 = vmul.f32 %v336, %v346
      %v408 = vmul.f32 %v337, %v346
      %v409 = vmul.f32 %v338, %v346
      %v410 = vmul.f32 %v339, %v346
      %v411 = vmul.f32 %v340, %v346
      %v412 = vld [vmem:[%s2] sm:$0x1]
      %v414 = vlaneseq
      %v415 = vshrl.u32 %v414, 7
      %v416 = vsub.s32 0, %v415
      %v417 = vrot.slane %v412, %v416
      %v419 = vadd.f32 %v348, %v417
      %v420 = vadd.f32 %v349, %v417
      %v421 = vadd.f32 %v350, %v417
      %v422 = vadd.f32 %v351, %v417
      %v423 = vadd.f32 %v352, %v417
      %v424 = vadd.f32 %v353, %v417
      %v425 = vadd.f32 %v354, %v417
      %v426 = vadd.f32 %v355, %v417
      %v427 = vadd.f32 %v356, %v417
      %v428 = vadd.f32 %v357, %v417
      %v429 = vadd.f32 %v358, %v417
      %v430 = vadd.f32 %v359, %v417
      %v431 = vadd.f32 %v360, %v417
      %v432 = vadd.f32 %v361, %v417
      %v433 = vadd.f32 %v362, %v417
      %v434 = vadd.f32 %v363, %v417
      %v435 = vadd.f32 %v364, %v417
      %v436 = vadd.f32 %v365, %v417
      %v437 = vadd.f32 %v366, %v417
      %v438 = vadd.f32 %v367, %v417
      %v439 = vadd.f32 %v368, %v417
      %v440 = vadd.f32 %v369, %v417
      %v441 = vadd.f32 %v370, %v417
      %v442 = vadd.f32 %v371, %v417
      %v443 = vadd.f32 %v372, %v417
      %v444 = vadd.f32 %v373, %v417
      %v445 = vadd.f32 %v374, %v417
      %v446 = vadd.f32 %v375, %v417
      %v447 = vadd.f32 %v376, %v417
      %v448 = vadd.f32 %v377, %v417
      %v449 = vadd.f32 %v378, %v417
      %v450 = vadd.f32 %v379, %v417
      %v451 = vadd.f32 %v380, %v417
      %v452 = vadd.f32 %v381, %v417
      %v453 = vadd.f32 %v382, %v417
      %v454 = vadd.f32 %v383, %v417
      %v455 = vadd.f32 %v384, %v417
      %v456 = vadd.f32 %v385, %v417
      %v457 = vadd.f32 %v386, %v417
      %v458 = vadd.f32 %v387, %v417
      %v459 = vadd.f32 %v388, %v417
      %v460 = vadd.f32 %v389, %v417
      %v461 = vadd.f32 %v390, %v417
      %v462 = vadd.f32 %v391, %v417
      %v463 = vadd.f32 %v392, %v417
      %v464 = vadd.f32 %v393, %v417
      %v465 = vadd.f32 %v394, %v417
      %v466 = vadd.f32 %v395, %v417
      %v467 = vadd.f32 %v396, %v417
      %v468 = vadd.f32 %v397, %v417
      %v469 = vadd.f32 %v398, %v417
      %v470 = vadd.f32 %v399, %v417
      %v471 = vadd.f32 %v400, %v417
      %v472 = vadd.f32 %v401, %v417
      %v473 = vadd.f32 %v402, %v417
      %v474 = vadd.f32 %v403, %v417
      %v475 = vadd.f32 %v404, %v417
      %v476 = vadd.f32 %v405, %v417
      %v477 = vadd.f32 %v406, %v417
      %v478 = vadd.f32 %v407, %v417
      %v479 = vadd.f32 %v408, %v417
      %v480 = vadd.f32 %v409, %v417
      %v481 = vadd.f32 %v410, %v417
      %v482 = vadd.f32 %v411, %v417
      %v483 = vld [vmem:[%s269] sm:$0xff]
      %v484 = vld [vmem:[%s269 + $0x8] sm:$0xff]
      %v485 = vld [vmem:[%s269 + $0x10] sm:$0xff]
      %v486 = vld [vmem:[%s269 + $0x18] sm:$0xff]
      %v487 = vld [vmem:[%s269 + $0x20] sm:$0xff]
      %v488 = vld [vmem:[%s269 + $0x28] sm:$0xff]
      %v489 = vld [vmem:[%s269 + $0x30] sm:$0xff]
      %v490 = vld [vmem:[%s269 + $0x38] sm:$0xff]
      %v491 = vld [vmem:[%s269 + $0x40] sm:$0xff]
      %v492 = vld [vmem:[%s269 + $0x48] sm:$0xff]
      %v493 = vld [vmem:[%s269 + $0x50] sm:$0xff]
      %v494 = vld [vmem:[%s269 + $0x58] sm:$0xff]
      %v495 = vld [vmem:[%s269 + $0x60] sm:$0xff]
      %v496 = vld [vmem:[%s269 + $0x68] sm:$0xff]
      %v497 = vld [vmem:[%s269 + $0x70] sm:$0xff]
      %v498 = vld [vmem:[%s269 + $0x78] sm:$0xff]
      %v499 = vld [vmem:[%s269 + $0x80] sm:$0xff]
      %v500 = vld [vmem:[%s269 + $0x88] sm:$0xff]
      %v501 = vld [vmem:[%s269 + $0x90] sm:$0xff]
      %v502 = vld [vmem:[%s269 + $0x98] sm:$0xff]
      %v503 = vld [vmem:[%s269 + $0xa0] sm:$0xff]
      %v504 = vld [vmem:[%s269 + $0xa8] sm:$0xff]
      %v505 = vld [vmem:[%s269 + $0xb0] sm:$0xff]
      %v506 = vld [vmem:[%s269 + $0xb8] sm:$0xff]
      %v507 = vld [vmem:[%s269 + $0xc0] sm:$0xff]
      %v508 = vld [vmem:[%s269 + $0xc8] sm:$0xff]
      %v509 = vld [vmem:[%s269 + $0xd0] sm:$0xff]
      %v510 = vld [vmem:[%s269 + $0xd8] sm:$0xff]
      %v511 = vld [vmem:[%s269 + $0xe0] sm:$0xff]
      %v512 = vld [vmem:[%s269 + $0xe8] sm:$0xff]
      %v513 = vld [vmem:[%s269 + $0xf0] sm:$0xff]
      %v514 = vld [vmem:[%s269 + $0xf8] sm:$0xff]
      %v515 = vld [vmem:[%s269 + $0x100] sm:$0xff]
      %v516 = vld [vmem:[%s269 + $0x108] sm:$0xff]
      %v517 = vld [vmem:[%s269 + $0x110] sm:$0xff]
      %v518 = vld [vmem:[%s269 + $0x118] sm:$0xff]
      %v519 = vld [vmem:[%s269 + $0x120] sm:$0xff]
      %v520 = vld [vmem:[%s269 + $0x128] sm:$0xff]
      %v521 = vld [vmem:[%s269 + $0x130] sm:$0xff]
      %v522 = vld [vmem:[%s269 + $0x138] sm:$0xff]
      %v523 = vld [vmem:[%s269 + $0x140] sm:$0xff]
      %v524 = vld [vmem:[%s269 + $0x148] sm:$0xff]
      %v525 = vld [vmem:[%s269 + $0x150] sm:$0xff]
      %v526 = vld [vmem:[%s269 + $0x158] sm:$0xff]
      %v527 = vld [vmem:[%s269 + $0x160] sm:$0xff]
      %v528 = vld [vmem:[%s269 + $0x168] sm:$0xff]
      %v529 = vld [vmem:[%s269 + $0x170] sm:$0xff]
      %v530 = vld [vmem:[%s269 + $0x178] sm:$0xff]
      %v531 = vld [vmem:[%s269 + $0x180] sm:$0xff]
      %v532 = vld [vmem:[%s269 + $0x188] sm:$0xff]
      %v533 = vld [vmem:[%s269 + $0x190] sm:$0xff]
      %v534 = vld [vmem:[%s269 + $0x198] sm:$0xff]
      %v535 = vld [vmem:[%s269 + $0x1a0] sm:$0xff]
      %v536 = vld [vmem:[%s269 + $0x1a8] sm:$0xff]
      %v537 = vld [vmem:[%s269 + $0x1b0] sm:$0xff]
      %v538 = vld [vmem:[%s269 + $0x1b8] sm:$0xff]
      %v539 = vld [vmem:[%s269 + $0x1c0] sm:$0xff]
      %v540 = vld [vmem:[%s269 + $0x1c8] sm:$0xff]
      %v541 = vld [vmem:[%s269 + $0x1d0] sm:$0xff]
      %v542 = vld [vmem:[%s269 + $0x1d8] sm:$0xff]
      %v543 = vld [vmem:[%s269 + $0x1e0] sm:$0xff]
      %v544 = vld [vmem:[%s269 + $0x1e8] sm:$0xff]
      %v545 = vld [vmem:[%s269 + $0x1f0] sm:$0xff]
      %v546 = vld [vmem:[%s269 + $0x1f8] sm:$0xff]
      %v547 = vld [vmem:[%s4] sm:$0x1]
      %v549 = vlaneseq
      %v550 = vshrl.u32 %v549, 7
      %v551 = vsub.s32 0, %v550
      %v552 = vrot.slane %v547, %v551
      %v554 = vmul.f32 %v483, %v552
      %v555 = vmul.f32 %v484, %v552
      %v556 = vmul.f32 %v485, %v552
      %v557 = vmul.f32 %v486, %v552
      %v558 = vmul.f32 %v487, %v552
      %v559 = vmul.f32 %v488, %v552
      %v560 = vmul.f32 %v489, %v552
      %v561 = vmul.f32 %v490, %v552
      %v562 = vmul.f32 %v491, %v552
      %v563 = vmul.f32 %v492, %v552
      %v564 = vmul.f32 %v493, %v552
      %v565 = vmul.f32 %v494, %v552
      %v566 = vmul.f32 %v495, %v552
      %v567 = vmul.f32 %v496, %v552
      %v568 = vmul.f32 %v497, %v552
      %v569 = vmul.f32 %v498, %v552
      %v570 = vmul.f32 %v499, %v552
      %v571 = vmul.f32 %v500, %v552
      %v572 = vmul.f32 %v501, %v552
      %v573 = vmul.f32 %v502, %v552
      %v574 = vmul.f32 %v503, %v552
      %v575 = vmul.f32 %v504, %v552
      %v576 = vmul.f32 %v505, %v552
      %v577 = vmul.f32 %v506, %v552
      %v578 = vmul.f32 %v507, %v552
      %v579 = vmul.f32 %v508, %v552
      %v580 = vmul.f32 %v509, %v552
      %v581 = vmul.f32 %v510, %v552
      %v582 = vmul.f32 %v511, %v552
      %v583 = vmul.f32 %v512, %v552
      %v584 = vmul.f32 %v513, %v552
      %v585 = vmul.f32 %v514, %v552
      %v586 = vmul.f32 %v515, %v552
      %v587 = vmul.f32 %v516, %v552
      %v588 = vmul.f32 %v517, %v552
      %v589 = vmul.f32 %v518, %v552
      %v590 = vmul.f32 %v519, %v552
      %v591 = vmul.f32 %v520, %v552
      %v592 = vmul.f32 %v521, %v552
      %v593 = vmul.f32 %v522, %v552
      %v594 = vmul.f32 %v523, %v552
      %v595 = vmul.f32 %v524, %v552
      %v596 = vmul.f32 %v525, %v552
      %v597 = vmul.f32 %v526, %v552
      %v598 = vmul.f32 %v527, %v552
      %v599 = vmul.f32 %v528, %v552
      %v600 = vmul.f32 %v529, %v552
      %v601 = vmul.f32 %v530, %v552
      %v602 = vmul.f32 %v531, %v552
      %v603 = vmul.f32 %v532, %v552
      %v604 = vmul.f32 %v533, %v552
      %v605 = vmul.f32 %v534, %v552
      %v606 = vmul.f32 %v535, %v552
      %v607 = vmul.f32 %v536, %v552
      %v608 = vmul.f32 %v537, %v552
      %v609 = vmul.f32 %v538, %v552
      %v610 = vmul.f32 %v539, %v552
      %v611 = vmul.f32 %v540, %v552
      %v612 = vmul.f32 %v541, %v552
      %v613 = vmul.f32 %v542, %v552
      %v614 = vmul.f32 %v543, %v552
      %v615 = vmul.f32 %v544, %v552
      %v616 = vmul.f32 %v545, %v552
      %v617 = vmul.f32 %v546, %v552
      %v618 = vld [vmem:[%s5] sm:$0x1]
      %v620 = vlaneseq
      %v621 = vshrl.u32 %v620, 7
      %v622 = vsub.s32 0, %v621
      %v623 = vrot.slane %v618, %v622
      %v625 = vadd.f32 %v554, %v623
      %v626 = vadd.f32 %v555, %v623
      %v627 = vadd.f32 %v556, %v623
      %v628 = vadd.f32 %v557, %v623
      %v629 = vadd.f32 %v558, %v623
      %v630 = vadd.f32 %v559, %v623
      %v631 = vadd.f32 %v560, %v623
      %v632 = vadd.f32 %v561, %v623
      %v633 = vadd.f32 %v562, %v623
      %v634 = vadd.f32 %v563, %v623
      %v635 = vadd.f32 %v564, %v623
      %v636 = vadd.f32 %v565, %v623
      %v637 = vadd.f32 %v566, %v623
      %v638 = vadd.f32 %v567, %v623
      %v639 = vadd.f32 %v568, %v623
      %v640 = vadd.f32 %v569, %v623
      %v641 = vadd.f32 %v570, %v623
      %v642 = vadd.f32 %v571, %v623
      %v643 = vadd.f32 %v572, %v623
      %v644 = vadd.f32 %v573, %v623
      %v645 = vadd.f32 %v574, %v623
      %v646 = vadd.f32 %v575, %v623
      %v647 = vadd.f32 %v576, %v623
      %v648 = vadd.f32 %v577, %v623
      %v649 = vadd.f32 %v578, %v623
      %v650 = vadd.f32 %v579, %v623
      %v651 = vadd.f32 %v580, %v623
      %v652 = vadd.f32 %v581, %v623
      %v653 = vadd.f32 %v582, %v623
      %v654 = vadd.f32 %v583, %v623
      %v655 = vadd.f32 %v584, %v623
      %v656 = vadd.f32 %v585, %v623
      %v657 = vadd.f32 %v586, %v623
      %v658 = vadd.f32 %v587, %v623
      %v659 = vadd.f32 %v588, %v623
      %v660 = vadd.f32 %v589, %v623
      %v661 = vadd.f32 %v590, %v623
      %v662 = vadd.f32 %v591, %v623
      %v663 = vadd.f32 %v592, %v623
      %v664 = vadd.f32 %v593, %v623
      %v665 = vadd.f32 %v594, %v623
      %v666 = vadd.f32 %v595, %v623
      %v667 = vadd.f32 %v596, %v623
      %v668 = vadd.f32 %v597, %v623
      %v669 = vadd.f32 %v598, %v623
      %v670 = vadd.f32 %v599, %v623
      %v671 = vadd.f32 %v600, %v623
      %v672 = vadd.f32 %v601, %v623
      %v673 = vadd.f32 %v602, %v623
      %v674 = vadd.f32 %v603, %v623
      %v675 = vadd.f32 %v604, %v623
      %v676 = vadd.f32 %v605, %v623
      %v677 = vadd.f32 %v606, %v623
      %v678 = vadd.f32 %v607, %v623
      %v679 = vadd.f32 %v608, %v623
      %v680 = vadd.f32 %v609, %v623
      %v681 = vadd.f32 %v610, %v623
      %v682 = vadd.f32 %v611, %v623
      %v683 = vadd.f32 %v612, %v623
      %v684 = vadd.f32 %v613, %v623
      %v685 = vadd.f32 %v614, %v623
      %v686 = vadd.f32 %v615, %v623
      %v687 = vadd.f32 %v616, %v623
      %v688 = vadd.f32 %v617, %v623
      %v689 = vadd.f32 %v419, %v625
      %v690 = vadd.f32 %v420, %v626
      %v691 = vadd.f32 %v421, %v627
      %v692 = vadd.f32 %v422, %v628
      %v693 = vadd.f32 %v423, %v629
      %v694 = vadd.f32 %v424, %v630
      %v695 = vadd.f32 %v425, %v631
      %v696 = vadd.f32 %v426, %v632
      %v697 = vadd.f32 %v427, %v633
      %v698 = vadd.f32 %v428, %v634
      %v699 = vadd.f32 %v429, %v635
      %v700 = vadd.f32 %v430, %v636
      %v701 = vadd.f32 %v431, %v637
      %v702 = vadd.f32 %v432, %v638
      %v703 = vadd.f32 %v433, %v639
      %v704 = vadd.f32 %v434, %v640
      %v705 = vadd.f32 %v435, %v641
      %v706 = vadd.f32 %v436, %v642
      %v707 = vadd.f32 %v437, %v643
      %v708 = vadd.f32 %v438, %v644
      %v709 = vadd.f32 %v439, %v645
      %v710 = vadd.f32 %v440, %v646
      %v711 = vadd.f32 %v441, %v647
      %v712 = vadd.f32 %v442, %v648
      %v713 = vadd.f32 %v443, %v649
      %v714 = vadd.f32 %v444, %v650
      %v715 = vadd.f32 %v445, %v651
      %v716 = vadd.f32 %v446, %v652
      %v717 = vadd.f32 %v447, %v653
      %v718 = vadd.f32 %v448, %v654
      %v719 = vadd.f32 %v449, %v655
      %v720 = vadd.f32 %v450, %v656
      %v721 = vadd.f32 %v451, %v657
      %v722 = vadd.f32 %v452, %v658
      %v723 = vadd.f32 %v453, %v659
      %v724 = vadd.f32 %v454, %v660
      %v725 = vadd.f32 %v455, %v661
      %v726 = vadd.f32 %v456, %v662
      %v727 = vadd.f32 %v457, %v663
      %v728 = vadd.f32 %v458, %v664
      %v729 = vadd.f32 %v459, %v665
      %v730 = vadd.f32 %v460, %v666
      %v731 = vadd.f32 %v461, %v667
      %v732 = vadd.f32 %v462, %v668
      %v733 = vadd.f32 %v463, %v669
      %v734 = vadd.f32 %v464, %v670
      %v735 = vadd.f32 %v465, %v671
      %v736 = vadd.f32 %v466, %v672
      %v737 = vadd.f32 %v467, %v673
      %v738 = vadd.f32 %v468, %v674
      %v739 = vadd.f32 %v469, %v675
      %v740 = vadd.f32 %v470, %v676
      %v741 = vadd.f32 %v471, %v677
      %v742 = vadd.f32 %v472, %v678
      %v743 = vadd.f32 %v473, %v679
      %v744 = vadd.f32 %v474, %v680
      %v745 = vadd.f32 %v475, %v681
      %v746 = vadd.f32 %v476, %v682
      %v747 = vadd.f32 %v477, %v683
      %v748 = vadd.f32 %v478, %v684
      %v749 = vadd.f32 %v479, %v685
      %v750 = vadd.f32 %v480, %v686
      %v751 = vadd.f32 %v481, %v687
      %v752 = vadd.f32 %v482, %v688
      %v753 = vmax.f32 %v689, 0.0
      %v754 = vmax.f32 %v690, 0.0
      %v755 = vmax.f32 %v691, 0.0
      %v756 = vmax.f32 %v692, 0.0
      %v757 = vmax.f32 %v693, 0.0
      %v758 = vmax.f32 %v694, 0.0
      %v759 = vmax.f32 %v695, 0.0
      %v760 = vmax.f32 %v696, 0.0
      %v761 = vmax.f32 %v697, 0.0
      %v762 = vmax.f32 %v698, 0.0
      %v763 = vmax.f32 %v699, 0.0
      %v764 = vmax.f32 %v700, 0.0
      %v765 = vmax.f32 %v701, 0.0
      %v766 = vmax.f32 %v702, 0.0
      %v767 = vmax.f32 %v703, 0.0
      %v768 = vmax.f32 %v704, 0.0
      %v769 = vmax.f32 %v705, 0.0
      %v770 = vmax.f32 %v706, 0.0
      %v771 = vmax.f32 %v707, 0.0
      %v772 = vmax.f32 %v708, 0.0
      %v773 = vmax.f32 %v709, 0.0
      %v774 = vmax.f32 %v710, 0.0
      %v775 = vmax.f32 %v711, 0.0
      %v776 = vmax.f32 %v712, 0.0
      %v777 = vmax.f32 %v713, 0.0
      %v778 = vmax.f32 %v714, 0.0
      %v779 = vmax.f32 %v715, 0.0
      %v780 = vmax.f32 %v716, 0.0
      %v781 = vmax.f32 %v717, 0.0
      %v782 = vmax.f32 %v718, 0.0
      %v783 = vmax.f32 %v719, 0.0
      %v784 = vmax.f32 %v720, 0.0
      %v785 = vmax.f32 %v721, 0.0
      %v786 = vmax.f32 %v722, 0.0
      %v787 = vmax.f32 %v723, 0.0
      %v788 = vmax.f32 %v724, 0.0
      %v789 = vmax.f32 %v725, 0.0
      %v790 = vmax.f32 %v726, 0.0
      %v791 = vmax.f32 %v727, 0.0
      %v792 = vmax.f32 %v728, 0.0
      %v793 = vmax.f32 %v729, 0.0
      %v794 = vmax.f32 %v730, 0.0
      %v795 = vmax.f32 %v731, 0.0
      %v796 = vmax.f32 %v732, 0.0
      %v797 = vmax.f32 %v733, 0.0
      %v798 = vmax.f32 %v734, 0.0
      %v799 = vmax.f32 %v735, 0.0
      %v800 = vmax.f32 %v736, 0.0
      %v801 = vmax.f32 %v737, 0.0
      %v802 = vmax.f32 %v738, 0.0
      %v803 = vmax.f32 %v739, 0.0
      %v804 = vmax.f32 %v740, 0.0
      %v805 = vmax.f32 %v741, 0.0
      %v806 = vmax.f32 %v742, 0.0
      %v807 = vmax.f32 %v743, 0.0
      %v808 = vmax.f32 %v744, 0.0
      %v809 = vmax.f32 %v745, 0.0
      %v810 = vmax.f32 %v746, 0.0
      %v811 = vmax.f32 %v747, 0.0
      %v812 = vmax.f32 %v748, 0.0
      %v813 = vmax.f32 %v749, 0.0
      %v814 = vmax.f32 %v750, 0.0
      %v815 = vmax.f32 %v751, 0.0
      %v816 = vmax.f32 %v752, 0.0
      %817 = vst [vmem:[%s275] sm:$0xff] %v753
      %818 = vst [vmem:[%s275 + $0x8] sm:$0xff] %v754
      %819 = vst [vmem:[%s275 + $0x10] sm:$0xff] %v755
      %820 = vst [vmem:[%s275 + $0x18] sm:$0xff] %v756
      %821 = vst [vmem:[%s275 + $0x20] sm:$0xff] %v757
      %822 = vst [vmem:[%s275 + $0x28] sm:$0xff] %v758
      %823 = vst [vmem:[%s275 + $0x30] sm:$0xff] %v759
      %824 = vst [vmem:[%s275 + $0x38] sm:$0xff] %v760
      %825 = vst [vmem:[%s275 + $0x40] sm:$0xff] %v761
      %826 = vst [vmem:[%s275 + $0x48] sm:$0xff] %v762
      %827 = vst [vmem:[%s275 + $0x50] sm:$0xff] %v763
      %828 = vst [vmem:[%s275 + $0x58] sm:$0xff] %v764
      %829 = vst [vmem:[%s275 + $0x60] sm:$0xff] %v765
      %830 = vst [vmem:[%s275 + $0x68] sm:$0xff] %v766
      %831 = vst [vmem:[%s275 + $0x70] sm:$0xff] %v767
      %832 = vst [vmem:[%s275 + $0x78] sm:$0xff] %v768
      %833 = vst [vmem:[%s275 + $0x80] sm:$0xff] %v769
      %834 = vst [vmem:[%s275 + $0x88] sm:$0xff] %v770
      %835 = vst [vmem:[%s275 + $0x90] sm:$0xff] %v771
      %836 = vst [vmem:[%s275 + $0x98] sm:$0xff] %v772
      %837 = vst [vmem:[%s275 + $0xa0] sm:$0xff] %v773
      %838 = vst [vmem:[%s275 + $0xa8] sm:$0xff] %v774
      %839 = vst [vmem:[%s275 + $0xb0] sm:$0xff] %v775
      %840 = vst [vmem:[%s275 + $0xb8] sm:$0xff] %v776
      %841 = vst [vmem:[%s275 + $0xc0] sm:$0xff] %v777
      %842 = vst [vmem:[%s275 + $0xc8] sm:$0xff] %v778
      %843 = vst [vmem:[%s275 + $0xd0] sm:$0xff] %v779
      %844 = vst [vmem:[%s275 + $0xd8] sm:$0xff] %v780
      %845 = vst [vmem:[%s275 + $0xe0] sm:$0xff] %v781
      %846 = vst [vmem:[%s275 + $0xe8] sm:$0xff] %v782
      %847 = vst [vmem:[%s275 + $0xf0] sm:$0xff] %v783
      %848 = vst [vmem:[%s275 + $0xf8] sm:$0xff] %v784
      %849 = vst [vmem:[%s275 + $0x100] sm:$0xff] %v785
      %850 = vst [vmem:[%s275 + $0x108] sm:$0xff] %v786
      %851 = vst [vmem:[%s275 + $0x110] sm:$0xff] %v787
      %852 = vst [vmem:[%s275 + $0x118] sm:$0xff] %v788
      %853 = vst [vmem:[%s275 + $0x120] sm:$0xff] %v789
      %854 = vst [vmem:[%s275 + $0x128] sm:$0xff] %v790
      %855 = vst [vmem:[%s275 + $0x130] sm:$0xff] %v791
      %856 = vst [vmem:[%s275 + $0x138] sm:$0xff] %v792
      %857 = vst [vmem:[%s275 + $0x140] sm:$0xff] %v793
      %858 = vst [vmem:[%s275 + $0x148] sm:$0xff] %v794
      %859 = vst [vmem:[%s275 + $0x150] sm:$0xff] %v795
      %860 = vst [vmem:[%s275 + $0x158] sm:$0xff] %v796
      %861 = vst [vmem:[%s275 + $0x160] sm:$0xff] %v797
      %862 = vst [vmem:[%s275 + $0x168] sm:$0xff] %v798
      %863 = vst [vmem:[%s275 + $0x170] sm:$0xff] %v799
      %864 = vst [vmem:[%s275 + $0x178] sm:$0xff] %v800
      %865 = vst [vmem:[%s275 + $0x180] sm:$0xff] %v801
      %866 = vst [vmem:[%s275 + $0x188] sm:$0xff] %v802
      %867 = vst [vmem:[%s275 + $0x190] sm:$0xff] %v803
      %868 = vst [vmem:[%s275 + $0x198] sm:$0xff] %v804
      %869 = vst [vmem:[%s275 + $0x1a0] sm:$0xff] %v805
      %870 = vst [vmem:[%s275 + $0x1a8] sm:$0xff] %v806
      %871 = vst [vmem:[%s275 + $0x1b0] sm:$0xff] %v807
      %872 = vst [vmem:[%s275 + $0x1b8] sm:$0xff] %v808
      %873 = vst [vmem:[%s275 + $0x1c0] sm:$0xff] %v809
      %874 = vst [vmem:[%s275 + $0x1c8] sm:$0xff] %v810
      %875 = vst [vmem:[%s275 + $0x1d0] sm:$0xff] %v811
      %876 = vst [vmem:[%s275 + $0x1d8] sm:$0xff] %v812
      %877 = vst [vmem:[%s275 + $0x1e0] sm:$0xff] %v813
      %878 = vst [vmem:[%s275 + $0x1e8] sm:$0xff] %v814
      %879 = vst [vmem:[%s275 + $0x1f0] sm:$0xff] %v815
      %880 = vst [vmem:[%s275 + $0x1f8] sm:$0xff] %v816
      %s881 = smul.u32 64, %s17
      %p882 = scmp.lt.s32.totalorder %s881, 191
      %s883 = scalar_select %p882, %s881, 191
      %s884 = smul.addr %s883, 8
      %s885 = scalar_lea.vmem %s6, %s884
      // Predicated region
      $region45: #{bottleneck_forward.11} parent=43 // pred_check
        %p886 = pneg %p171
      $region46: #{bottleneck_forward.11} parent=43 // pred_check_branch
        %888 = sbr.rel (%p886) target = $region48
      $region47: #{bottleneck_forward.11} parent=43 // pred_region
        %s889 = smul.u32 64, %s17
      $region48: #{bottleneck_forward.11} parent=43 // pred_fallthru
        _
    $region44: #{bottleneck_forward.11} parent=5 // pred_fallthru
      _
    %p890 = scmp.le.s32.totalorder 2, %s12
    // Predicated region
    $region49: #{bottleneck_forward.11} parent=5 // pred_check
      %p891 = pneg %p890
    $region50: #{bottleneck_forward.11} parent=5 // pred_check_branch
      %893 = sbr.rel (%p891) target = $region52
    $region51: #{bottleneck_forward.11} parent=5 // pred_region
      %s894 = ssub.s32 %s12, 2
      // Predicated region
      $region53: #{bottleneck_forward.11} parent=51 // pred_check
        %p895 = pneg %p177
      $region54: #{bottleneck_forward.11} parent=51 // pred_check_branch
        %897 = sbr.rel (%p895) target = $region56
      $region55: #{bottleneck_forward.11} parent=51 // pred_region
        %s898 = smul.u32 64, %s18
        %p899 = scmp.lt.s32.totalorder %s898, 191
        %s900 = scalar_select %p899, %s898, 191
        %s901 = smul.addr %s900, 8
        %s902 = scalar_lea.vmem %s6, %s901
      $region56: #{bottleneck_forward.11} parent=51 // pred_fallthru
        _
    $region52: #{bottleneck_forward.11} parent=5 // pred_fallthru
      _
  $region6: #{bottleneck_forward.11} parent=0 // loop_footer
    %s16 = sadd.s32 1, %s12
  $region7: #{bottleneck_forward.11} parent=0 // loop_footer_branch
    %11 = sbr.rel target = $region3
  $region8: #{bottleneck_forward.11} parent=0 // loop_exit
    _

</llo_original>
